<compile_context>
chip_gen: v7x
topology: tpu7x:2x2x1
jax: 0.10.0
libtpu: 0.0.40
codegen_flags: <defaults>
</compile_context>

<pallas_src>
import jax
import jax.numpy as jnp
from jax.experimental import pallas as pl
from jax.experimental.pallas import tpu as pltpu  # noqa: F401

# ---- small shapes consistent with the module structure ----
B = 2             # batch
T = 8             # maxlen
E = 32            # embed_size
H = 16            # hidden_size (gru_len)
V = 100           # max_features (vocab)
NUM_CAPS = 5
DIM_CAPS = 5
ROUTINGS = 4
T_EPS = 1e-7
FC = 16           # fc_layer1
N_FEATS = 2       # dense features x[1]  (concat width = 8H + 3 = 131)
BN_EPS = 1e-5

# rows of the packed "vec" (16, 128) parameter operand
ROW_LSTM_B = 0     # [0:128)  b_ih + b_hh, fwd|bwd, gate order i|f|g|o
ROW_GRU_XB = 1     # [0:96)   b_ih,        fwd|bwd, gate order r|z|n
ROW_GRU_HB = 2     # [0:96)   b_hh,        fwd|bwd
ROW_ATTL_W = 3     # [0:32)
ROW_ATTG_W = 4     # [0:32)
ROW_ATTL_B = 5     # [0:8)
ROW_ATTG_B = 6     # [0:8)
ROW_LCAPS_W = 7    # [0:25)
ROW_LINEAR_B = 8   # [0:16)
ROW_BN_G = 9
ROW_BN_B = 10
ROW_BN_M = 11
ROW_BN_V = 12
ROW_OUT_W = 13
ROW_SCALARS = 14   # lane 0 = lincaps bias, lane 1 = out bias

_sigmoid = jax.nn.sigmoid


# ----------------------------------------------------------------------------
# One fused kernel: bidi-LSTM -> bidi-GRU -> capsule routing -> attention /
# pooling / MLP head.  No grid; all operands land fully in VMEM.
# ----------------------------------------------------------------------------
def fused_forward_kernel(emb_ref, feats_ref,
                         lstm_xw_ref, lstm_hw_ref,
                         gru_xw_ref, gru_hw_ref,
                         caps_w_ref, linear_w_ref, vec_ref,
                         out_ref):
    emb_flat = emb_ref[...]                         # (T*B, E), time-major rows
    bsz = emb_flat.shape[0] // T
    vec = vec_ref[...]                              # (16, 128) packed params

    # ================= bidirectional LSTM =================
    # Hoisted input projection (one lane-dense (16,32)x(32,128) matmul,
    # biases folded in).  Columns [0:4H) = forward gates, [4H:8H) = backward.
    lstm_bias = vec[ROW_LSTM_B:ROW_LSTM_B + 1, 0:8 * H]
    xp_lstm = jnp.dot(emb_flat, lstm_xw_ref[...],
                      preferred_element_type=jnp.float32) + lstm_bias  # (TB,8H)
    lstm_hw = lstm_hw_ref[...]                      # (2H, 8H) block-diagonal

    h_f = jnp.zeros((bsz, H), jnp.float32)
    c_f = jnp.zeros((bsz, H), jnp.float32)
    h_b = jnp.zeros((bsz, H), jnp.float32)
    c_b = jnp.zeros((bsz, H), jnp.float32)
    hf_seq = [None] * T
    hb_seq = [None] * T
    for t in range(T):
        tb = T - 1 - t                              # backward-direction timestep
        hp = jnp.dot(jnp.concatenate([h_f, h_b], axis=-1), lstm_hw,
                     preferred_element_type=jnp.float32)               # (B, 8H)
        gf = xp_lstm[bsz * t:bsz * (t + 1), 0:4 * H] + hp[:, 0:4 * H]
        gb = xp_lstm[bsz * tb:bsz * (tb + 1), 4 * H:8 * H] + hp[:, 4 * H:8 * H]

        i_g = _sigmoid(gf[:, 0:H]); f_g = _sigmoid(gf[:, H:2 * H])
        g_g = jnp.tanh(gf[:, 2 * H:3 * H]); o_g = _sigmoid(gf[:, 3 * H:4 * H])
        c_f = f_g * c_f + i_g * g_g
        h_f = o_g * jnp.tanh(c_f)

        i_b = _sigmoid(gb[:, 0:H]); f_b = _sigmoid(gb[:, H:2 * H])
        g_b2 = jnp.tanh(gb[:, 2 * H:3 * H]); o_b = _sigmoid(gb[:, 3 * H:4 * H])
        c_b = f_b * c_b + i_b * g_b2
        h_b = o_b * jnp.tanh(c_b)

        hf_seq[t] = h_f
        hb_seq[tb] = h_b

    hl_seq = [jnp.concatenate([hf_seq[t], hb_seq[t]], axis=-1)
              for t in range(T)]                                       # T x (B,2H)
    hl_flat = jnp.concatenate(hl_seq, axis=0)                          # (TB, 2H)

    # ================= bidirectional GRU =================
    gru_xb = vec[ROW_GRU_XB:ROW_GRU_XB + 1, 0:6 * H]
    gru_hb = vec[ROW_GRU_HB:ROW_GRU_HB + 1, 0:6 * H]
    xp_gru = jnp.dot(hl_flat, gru_xw_ref[...],
                     preferred_element_type=jnp.float32) + gru_xb      # (TB, 6H)
    gru_hw = gru_hw_ref[...]                        # (2H, 6H) block-diagonal

    g_f = jnp.zeros((bsz, H), jnp.float32)
    g_b = jnp.zeros((bsz, H), jnp.float32)
    gf_seq = [None] * T
    gb_seq = [None] * T
    for t in range(T):
        tb = T - 1 - t
        hp = jnp.dot(jnp.concatenate([g_f, g_b], axis=-1), gru_hw,
                     preferred_element_type=jnp.float32) + gru_hb      # (B, 6H)
        xf = xp_gru[bsz * t:bsz * (t + 1), :]
        xb = xp_gru[bsz * tb:bsz * (tb + 1), :]

        r_f = _sigmoid(xf[:, 0:H] + hp[:, 0:H])
        z_f = _sigmoid(xf[:, H:2 * H] + hp[:, H:2 * H])
        n_f = jnp.tanh(xf[:, 2 * H:3 * H] + r_f * hp[:, 2 * H:3 * H])
        g_f = (1.0 - z_f) * n_f + z_f * g_f

        r_b = _sigmoid(xb[:, 3 * H:4 * H] + hp[:, 3 * H:4 * H])
        z_b = _sigmoid(xb[:, 4 * H:5 * H] + hp[:, 4 * H:5 * H])
        n_b = jnp.tanh(xb[:, 5 * H:6 * H] + r_b * hp[:, 5 * H:6 * H])
        g_b = (1.0 - z_b) * n_b + z_b * g_b

        gf_seq[t] = g_f
        gb_seq[tb] = g_b

    hg_seq = [jnp.concatenate([gf_seq[t], gb_seq[t]], axis=-1)
              for t in range(T)]                                       # T x (B,2H)
    hg_flat = jnp.concatenate(hg_seq, axis=0)                          # (TB, 2H)

    # ================= capsule layer with dynamic routing =================
    u_flat = jnp.dot(hg_flat, caps_w_ref[...],
                     preferred_element_type=jnp.float32)               # (TB, N*D)
    u3 = jnp.stack([u_flat[bsz * t:bsz * (t + 1), :] for t in range(T)],
                   axis=0)                                             # (T, B, N*D)
    u_list = [u3[:, :, n * DIM_CAPS:(n + 1) * DIM_CAPS]
              for n in range(NUM_CAPS)]                                # (T, B, D)

    blog = [jnp.zeros((T, bsz, 1), jnp.float32) for _ in range(NUM_CAPS)]
    outs = [None] * NUM_CAPS
    for it in range(ROUTINGS):
        # softmax over the capsule axis (per b, t)
        m = blog[0]
        for n in range(1, NUM_CAPS):
            m = jnp.maximum(m, blog[n])
        es = [jnp.exp(blog[n] - m) for n in range(NUM_CAPS)]
        den = es[0]
        for n in range(1, NUM_CAPS):
            den = den + es[n]
        inv = pl.reciprocal(den, approx=True)
        for n in range(NUM_CAPS):
            c_n = es[n] * inv                                          # (T, B, 1)
            s_n = jnp.sum(c_n * u_list[n], axis=0)                     # (B, D)
            # "squash" exactly as the torch module: x / sqrt(|x|^2 + eps)
            outs[n] = s_n * jax.lax.rsqrt(
                jnp.sum(s_n * s_n, axis=-1, keepdims=True) + T_EPS)
        if it < ROUTINGS - 1:
            for n in range(NUM_CAPS):
                blog[n] = jnp.sum(outs[n][None, :, :] * u_list[n],
                                  axis=-1, keepdims=True)              # (T, B, 1)
    caps_flat = jnp.concatenate(outs, axis=-1)                         # (B, N*D)

    lincaps_w = vec[ROW_LCAPS_W:ROW_LCAPS_W + 1, 0:NUM_CAPS * DIM_CAPS]
    lincaps_b = vec[ROW_SCALARS:ROW_SCALARS + 1, 0:1]
    content3 = jnp.maximum(
        jnp.sum(caps_flat * lincaps_w, axis=-1, keepdims=True) + lincaps_b, 0.0)

    # ================= attention heads, pooling, MLP head =================
    def attention(seq, w_row, b_row):
        # seq: list of T arrays (B, 2H); w_row (1, 2H); b_row (1, T)
        a_list = []
        for t in range(T):
            e = jnp.tanh(jnp.sum(seq[t] * w_row, axis=-1, keepdims=True)
                         + b_row[:, t:t + 1])
            a_list.append(jnp.exp(e))
        den = a_list[0]
        for t in range(1, T):
            den = den + a_list[t]
        inv = pl.reciprocal(den, approx=True)
        att = jnp.zeros_like(seq[0])
        for t in range(T):
            att = att + (a_list[t] * inv + 1e-10) * seq[t]
        return att                                                     # (B, 2H)

    att_l = attention(hl_seq, vec[ROW_ATTL_W:ROW_ATTL_W + 1, 0:2 * H],
                      vec[ROW_ATTL_B:ROW_ATTL_B + 1, 0:T])
    att_g = attention(hg_seq, vec[ROW_ATTG_W:ROW_ATTG_W + 1, 0:2 * H],
                      vec[ROW_ATTG_B:ROW_ATTG_B + 1, 0:T])

    tot = hg_seq[0]
    mx = hg_seq[0]
    for t in range(1, T):
        tot = tot + hg_seq[t]
        mx = jnp.maximum(mx, hg_seq[t])
    avg_pool = tot * (1.0 / T)
    max_pool = mx

    conc = jnp.concatenate(
        [att_l, att_g, content3, avg_pool, max_pool, feats_ref[...]], axis=-1)
    conc = jnp.maximum(
        jnp.dot(conc, linear_w_ref[...], preferred_element_type=jnp.float32)
        + vec[ROW_LINEAR_B:ROW_LINEAR_B + 1, 0:FC], 0.0)               # (B, FC)

    # BatchNorm1d, eval mode (running stats)
    bn_g = vec[ROW_BN_G:ROW_BN_G + 1, 0:FC]
    bn_b = vec[ROW_BN_B:ROW_BN_B + 1, 0:FC]
    bn_m = vec[ROW_BN_M:ROW_BN_M + 1, 0:FC]
    bn_v = vec[ROW_BN_V:ROW_BN_V + 1, 0:FC]
    conc = (conc - bn_m) * jax.lax.rsqrt(bn_v + BN_EPS) * bn_g + bn_b

    out_w = vec[ROW_OUT_W:ROW_OUT_W + 1, 0:FC]
    out_b = vec[ROW_SCALARS:ROW_SCALARS + 1, 1:2]
    out_ref[...] = jnp.sum(conc * out_w, axis=-1, keepdims=True) + out_b


# ----------------------------------------------------------------------------
# Parameters (PyTorch-style weights, pre-packed for the fused/hoisted matmuls)
# ----------------------------------------------------------------------------
def init_params(key):
    ks = iter(jax.random.split(key, 32))

    def nrm(shape, scale):
        return (scale * jax.random.normal(next(ks), shape)).astype(jnp.float32)

    p = {}
    p["embedding"] = nrm((V, E), 0.5)

    # ---- LSTM (gate order i|f|g|o), packed cuDNN-style ----
    lstm_xw, lstm_hh, lstm_bias = [], [], []
    for _ in range(2):                               # forward, backward
        wih = nrm((E, 4 * H), 1.0 / (E ** 0.5))
        whh = nrm((H, 4 * H), 1.0 / (H ** 0.5))
        bih = nrm((4 * H,), 0.1)
        bhh = nrm((4 * H,), 0.1)
        lstm_xw.append(wih)
        lstm_hh.append(whh)
        lstm_bias.append(bih + bhh)
    p["lstm_x_w"] = jnp.concatenate(lstm_xw, axis=1)                   # (E, 8H)
    hw = jnp.zeros((2 * H, 8 * H), jnp.float32)
    hw = hw.at[0:H, 0:4 * H].set(lstm_hh[0])
    hw = hw.at[H:2 * H, 4 * H:8 * H].set(lstm_hh[1])
    p["lstm_h_w"] = hw                                                 # block-diag
    lstm_bias = jnp.concatenate(lstm_bias)                             # (8H,)

    # ---- GRU (gate order r|z|n); h-side kept separate so that
    #      n = tanh(W_in x + b_in + r*(W_hn h + b_hn)) is exact ----
    gru_xw, gru_hh, gxb, ghb = [], [], [], []
    for _ in range(2):
        wih = nrm((2 * H, 3 * H), 1.0 / ((2 * H) ** 0.5))
        whh = nrm((H, 3 * H), 1.0 / (H ** 0.5))
        gru_xw.append(wih)
        gru_hh.append(whh)
        gxb.append(nrm((3 * H,), 0.1))
        ghb.append(nrm((3 * H,), 0.1))
    p["gru_x_w"] = jnp.concatenate(gru_xw, axis=1)                     # (2H, 6H)
    gw = jnp.zeros((2 * H, 6 * H), jnp.float32)
    gw = gw.at[0:H, 0:3 * H].set(gru_hh[0])
    gw = gw.at[H:2 * H, 3 * H:6 * H].set(gru_hh[1])
    p["gru_h_w"] = gw                                                  # block-diag
    gru_x_b = jnp.concatenate(gxb)                                     # (6H,)
    gru_h_b = jnp.concatenate(ghb)                                     # (6H,)

    # Capsule weight in its original shared layout (2H, NUM*DIM)
    p["caps_w"] = nrm((2 * H, NUM_CAPS * DIM_CAPS), 1.0 / ((2 * H) ** 0.5))
    # Linear(8H+3, FC) stored transposed for x @ W^T
    p["linear_w"] = nrm((8 * H + 1 + N_FEATS, FC), 1.0 / ((8 * H + 3) ** 0.5))

    att_l_w = nrm((2 * H,), 1.0 / ((2 * H) ** 0.5))
    att_g_w = nrm((2 * H,), 1.0 / ((2 * H) ** 0.5))
    lincaps_w = nrm((NUM_CAPS * DIM_CAPS,), 0.2)
    out_w = nrm((FC,), 1.0 / (FC ** 0.5))

    vec = jnp.zeros((16, 128), jnp.float32)
    vec = vec.at[ROW_LSTM_B, 0:8 * H].set(lstm_bias)
    vec = vec.at[ROW_GRU_XB, 0:6 * H].set(gru_x_b)
    vec = vec.at[ROW_GRU_HB, 0:6 * H].set(gru_h_b)
    vec = vec.at[ROW_ATTL_W, 0:2 * H].set(att_l_w)
    vec = vec.at[ROW_ATTG_W, 0:2 * H].set(att_g_w)
    # attention biases, lincaps/linear/out biases start at zero (torch init)
    vec = vec.at[ROW_LCAPS_W, 0:NUM_CAPS * DIM_CAPS].set(lincaps_w)
    vec = vec.at[ROW_BN_G, 0:FC].set(jnp.ones((FC,), jnp.float32))     # gamma
    vec = vec.at[ROW_BN_V, 0:FC].set(jnp.ones((FC,), jnp.float32))     # running var
    vec = vec.at[ROW_OUT_W, 0:FC].set(out_w)
    p["vec"] = vec
    return p


# ----------------------------------------------------------------------------
# Forward: embedding gather (XLA glue) + one fused Pallas kernel
# ----------------------------------------------------------------------------
@jax.jit
def neural_net_forward(params, tokens, feats):
    # TODO(synk): dropout layers are stochastic in training mode; eval-mode
    # identity semantics are used, and BatchNorm1d uses running statistics.
    # TODO(synk): the embedding row gather stays as XLA glue (could be moved
    # in-kernel via a scalar-prefetch row gather if dispatch latency matters).
    tok_tm = jnp.transpose(tokens, (1, 0)).reshape(-1)                 # time-major
    emb_flat = jnp.take(params["embedding"], tok_tm, axis=0)           # (T*B, E)
    bsz = tokens.shape[0]
    return pl.pallas_call(
        fused_forward_kernel,
        out_shape=jax.ShapeDtypeStruct((bsz, 1), jnp.float32),
    )(emb_flat, feats,
      params["lstm_x_w"], params["lstm_h_w"],
      params["gru_x_w"], params["gru_h_w"],
      params["caps_w"], params["linear_w"], params["vec"])


if __name__ == "__main__":
    key = jax.random.PRNGKey(0)
    kp, kt, kf = jax.random.split(key, 3)
    params = init_params(kp)
    tokens = jax.random.randint(kt, (B, T), 0, V, dtype=jnp.int32)     # x[0]
    feats = jax.random.normal(kf, (B, N_FEATS), jnp.float32)           # x[1]

    out = neural_net_forward(params, tokens, feats)
    out = jax.block_until_ready(out)
    assert out.shape == (B, 1), out.shape
    assert bool(jnp.all(jnp.isfinite(out)))
    print("KERNEL_OK")
</pallas_src>

<mosaic_0001>
module attributes {stable_mosaic.version = 11 : i64} {
  func.func @fused_forward_kernel(%arg0: memref<16x32xf32, #tpu.memory_space<vmem>>, %arg1: memref<2x2xf32, #tpu.memory_space<vmem>>, %arg2: memref<32x128xf32, #tpu.memory_space<vmem>>, %arg3: memref<32x128xf32, #tpu.memory_space<vmem>>, %arg4: memref<32x96xf32, #tpu.memory_space<vmem>>, %arg5: memref<32x96xf32, #tpu.memory_space<vmem>>, %arg6: memref<32x25xf32, #tpu.memory_space<vmem>>, %arg7: memref<131x16xf32, #tpu.memory_space<vmem>>, %arg8: memref<16x128xf32, #tpu.memory_space<vmem>>, %arg9: memref<2x1xf32, #tpu.memory_space<vmem>>) attributes {dimension_semantics = [], scalar_prefetch = 0 : i64, scratch_operands = 0 : i64, tpu.core_type = #tpu.core_type<tc>} {
    %c0 = arith.constant 0 : index
    %c0_0 = arith.constant 0 : index
    %0 = vector.load %arg0[%c0, %c0_0] : memref<16x32xf32, #tpu.memory_space<vmem>>, vector<16x32xf32>
    %c0_1 = arith.constant 0 : index
    %c0_2 = arith.constant 0 : index
    %1 = vector.load %arg8[%c0_1, %c0_2] : memref<16x128xf32, #tpu.memory_space<vmem>>, vector<16x128xf32>
    %2 = vector.extract_strided_slice %1 {offsets = [0, 0], sizes = [1, 128], strides = [1, 1]} : vector<16x128xf32> to vector<1x128xf32>
    %c0_3 = arith.constant 0 : index
    %c0_4 = arith.constant 0 : index
    %3 = vector.load %arg2[%c0_3, %c0_4] : memref<32x128xf32, #tpu.memory_space<vmem>>, vector<32x128xf32>
    %cst = arith.constant dense<0.000000e+00> : vector<16x128xf32>
    %4 = tpu.matmul %0, %3, %cst {dimension_numbers = #tpu.dot_dimension_numbers<[1], [0], [0], [1], [0, 0, 1, 1], [], []>} : vector<16x32xf32>, vector<32x128xf32>, vector<16x128xf32> -> vector<16x128xf32>
    %5 = vector.broadcast %2 : vector<1x128xf32> to vector<16x128xf32>
    %6 = arith.addf %4, %5 : vector<16x128xf32>
    %c0_5 = arith.constant 0 : index
    %c0_6 = arith.constant 0 : index
    %7 = vector.load %arg3[%c0_5, %c0_6] : memref<32x128xf32, #tpu.memory_space<vmem>>, vector<32x128xf32>
    %cst_7 = arith.constant 0.000000e+00 : f32
    %8 = vector.broadcast %cst_7 : f32 to vector<2x16xf32>
    %cst_8 = arith.constant 0.000000e+00 : f32
    %9 = vector.broadcast %cst_8 : f32 to vector<2x16xf32>
    %cst_9 = arith.constant 0.000000e+00 : f32
    %10 = vector.broadcast %cst_9 : f32 to vector<2x16xf32>
    %cst_10 = arith.constant 0.000000e+00 : f32
    %11 = vector.broadcast %cst_10 : f32 to vector<2x16xf32>
    %12 = tpu.concatenate %8, %10 in 1 : vector<2x16xf32>, vector<2x16xf32> -> vector<2x32xf32>
    %cst_11 = arith.constant dense<0.000000e+00> : vector<2x128xf32>
    %13 = tpu.matmul %12, %7, %cst_11 {dimension_numbers = #tpu.dot_dimension_numbers<[1], [0], [0], [1], [0, 0, 1, 1], [], []>} : vector<2x32xf32>, vector<32x128xf32>, vector<2x128xf32> -> vector<2x128xf32>
    %14 = vector.extract_strided_slice %6 {offsets = [0, 0], sizes = [2, 64], strides = [1, 1]} : vector<16x128xf32> to vector<2x64xf32>
    %15 = vector.extract_strided_slice %13 {offsets = [0, 0], sizes = [2, 64], strides = [1, 1]} : vector<2x128xf32> to vector<2x64xf32>
    %16 = arith.addf %14, %15 : vector<2x64xf32>
    %17 = vector.extract_strided_slice %6 {offsets = [14, 64], sizes = [2, 64], strides = [1, 1]} : vector<16x128xf32> to vector<2x64xf32>
    %18 = vector.extract_strided_slice %13 {offsets = [0, 64], sizes = [2, 64], strides = [1, 1]} : vector<2x128xf32> to vector<2x64xf32>
    %19 = arith.addf %17, %18 : vector<2x64xf32>
    %20 = vector.extract_strided_slice %16 {offsets = [0, 0], sizes = [2, 16], strides = [1, 1]} : vector<2x64xf32> to vector<2x16xf32>
    %21 = arith.negf %20 : vector<2x16xf32>
    %22 = math.exp %21 : vector<2x16xf32>
    %cst_12 = arith.constant 1.000000e+00 : f32
    %23 = vector.broadcast %cst_12 : f32 to vector<2x16xf32>
    %24 = arith.addf %23, %22 : vector<2x16xf32>
    %25 = arith.divf %23, %24 : vector<2x16xf32>
    %26 = vector.extract_strided_slice %16 {offsets = [0, 16], sizes = [2, 16], strides = [1, 1]} : vector<2x64xf32> to vector<2x16xf32>
    %27 = arith.negf %26 : vector<2x16xf32>
    %28 = math.exp %27 : vector<2x16xf32>
    %cst_13 = arith.constant 1.000000e+00 : f32
    %29 = vector.broadcast %cst_13 : f32 to vector<2x16xf32>
    %30 = arith.addf %29, %28 : vector<2x16xf32>
    %31 = arith.divf %29, %30 : vector<2x16xf32>
    %32 = vector.extract_strided_slice %16 {offsets = [0, 32], sizes = [2, 16], strides = [1, 1]} : vector<2x64xf32> to vector<2x16xf32>
    %33 = math.tanh %32 : vector<2x16xf32>
    %34 = vector.extract_strided_slice %16 {offsets = [0, 48], sizes = [2, 16], strides = [1, 1]} : vector<2x64xf32> to vector<2x16xf32>
    %35 = arith.negf %34 : vector<2x16xf32>
    %36 = math.exp %35 : vector<2x16xf32>
    %cst_14 = arith.constant 1.000000e+00 : f32
    %37 = vector.broadcast %cst_14 : f32 to vector<2x16xf32>
    %38 = arith.addf %37, %36 : vector<2x16xf32>
    %39 = arith.divf %37, %38 : vector<2x16xf32>
    %40 = arith.mulf %31, %9 : vector<2x16xf32>
    %41 = arith.mulf %25, %33 : vector<2x16xf32>
    %42 = arith.addf %40, %41 : vector<2x16xf32>
    %43 = math.tanh %42 : vector<2x16xf32>
    %44 = arith.mulf %39, %43 : vector<2x16xf32>
    %45 = vector.extract_strided_slice %19 {offsets = [0, 0], sizes = [2, 16], strides = [1, 1]} : vector<2x64xf32> to vector<2x16xf32>
    %46 = arith.negf %45 : vector<2x16xf32>
    %47 = math.exp %46 : vector<2x16xf32>
    %cst_15 = arith.constant 1.000000e+00 : f32
    %48 = vector.broadcast %cst_15 : f32 to vector<2x16xf32>
    %49 = arith.addf %48, %47 : vector<2x16xf32>
    %50 = arith.divf %48, %49 : vector<2x16xf32>
    %51 = vector.extract_strided_slice %19 {offsets = [0, 16], sizes = [2, 16], strides = [1, 1]} : vector<2x64xf32> to vector<2x16xf32>
    %52 = arith.negf %51 : vector<2x16xf32>
    %53 = math.exp %52 : vector<2x16xf32>
    %cst_16 = arith.constant 1.000000e+00 : f32
    %54 = vector.broadcast %cst_16 : f32 to vector<2x16xf32>
    %55 = arith.addf %54, %53 : vector<2x16xf32>
    %56 = arith.divf %54, %55 : vector<2x16xf32>
    %57 = vector.extract_strided_slice %19 {offsets = [0, 32], sizes = [2, 16], strides = [1, 1]} : vector<2x64xf32> to vector<2x16xf32>
    %58 = math.tanh %57 : vector<2x16xf32>
    %59 = vector.extract_strided_slice %19 {offsets = [0, 48], sizes = [2, 16], strides = [1, 1]} : vector<2x64xf32> to vector<2x16xf32>
    %60 = arith.negf %59 : vector<2x16xf32>
    %61 = math.exp %60 : vector<2x16xf32>
    %cst_17 = arith.constant 1.000000e+00 : f32
    %62 = vector.broadcast %cst_17 : f32 to vector<2x16xf32>
    %63 = arith.addf %62, %61 : vector<2x16xf32>
    %64 = arith.divf %62, %63 : vector<2x16xf32>
    %65 = arith.mulf %56, %11 : vector<2x16xf32>
    %66 = arith.mulf %50, %58 : vector<2x16xf32>
    %67 = arith.addf %65, %66 : vector<2x16xf32>
    %68 = math.tanh %67 : vector<2x16xf32>
    %69 = arith.mulf %64, %68 : vector<2x16xf32>
    %70 = tpu.concatenate %44, %69 in 1 : vector<2x16xf32>, vector<2x16xf32> -> vector<2x32xf32>
    %cst_18 = arith.constant dense<0.000000e+00> : vector<2x128xf32>
    %71 = tpu.matmul %70, %7, %cst_18 {dimension_numbers = #tpu.dot_dimension_numbers<[1], [0], [0], [1], [0, 0, 1, 1], [], []>} : vector<2x32xf32>, vector<32x128xf32>, vector<2x128xf32> -> vector<2x128xf32>
    %72 = vector.extract_strided_slice %6 {offsets = [2, 0], sizes = [2, 64], strides = [1, 1]} : vector<16x128xf32> to vector<2x64xf32>
    %73 = vector.extract_strided_slice %71 {offsets = [0, 0], sizes = [2, 64], strides = [1, 1]} : vector<2x128xf32> to vector<2x64xf32>
    %74 = arith.addf %72, %73 : vector<2x64xf32>
    %75 = vector.extract_strided_slice %6 {offsets = [12, 64], sizes = [2, 64], strides = [1, 1]} : vector<16x128xf32> to vector<2x64xf32>
    %76 = vector.extract_strided_slice %71 {offsets = [0, 64], sizes = [2, 64], strides = [1, 1]} : vector<2x128xf32> to vector<2x64xf32>
    %77 = arith.addf %75, %76 : vector<2x64xf32>
    %78 = vector.extract_strided_slice %74 {offsets = [0, 0], sizes = [2, 16], strides = [1, 1]} : vector<2x64xf32> to vector<2x16xf32>
    %79 = arith.negf %78 : vector<2x16xf32>
    %80 = math.exp %79 : vector<2x16xf32>
    %cst_19 = arith.constant 1.000000e+00 : f32
    %81 = vector.broadcast %cst_19 : f32 to vector<2x16xf32>
    %82 = arith.addf %81, %80 : vector<2x16xf32>
    %83 = arith.divf %81, %82 : vector<2x16xf32>
    %84 = vector.extract_strided_slice %74 {offsets = [0, 16], sizes = [2, 16], strides = [1, 1]} : vector<2x64xf32> to vector<2x16xf32>
    %85 = arith.negf %84 : vector<2x16xf32>
    %86 = math.exp %85 : vector<2x16xf32>
    %cst_20 = arith.constant 1.000000e+00 : f32
    %87 = vector.broadcast %cst_20 : f32 to vector<2x16xf32>
    %88 = arith.addf %87, %86 : vector<2x16xf32>
    %89 = arith.divf %87, %88 : vector<2x16xf32>
    %90 = vector.extract_strided_slice %74 {offsets = [0, 32], sizes = [2, 16], strides = [1, 1]} : vector<2x64xf32> to vector<2x16xf32>
    %91 = math.tanh %90 : vector<2x16xf32>
    %92 = vector.extract_strided_slice %74 {offsets = [0, 48], sizes = [2, 16], strides = [1, 1]} : vector<2x64xf32> to vector<2x16xf32>
    %93 = arith.negf %92 : vector<2x16xf32>
    %94 = math.exp %93 : vector<2x16xf32>
    %cst_21 = arith.constant 1.000000e+00 : f32
    %95 = vector.broadcast %cst_21 : f32 to vector<2x16xf32>
    %96 = arith.addf %95, %94 : vector<2x16xf32>
    %97 = arith.divf %95, %96 : vector<2x16xf32>
    %98 = arith.mulf %89, %42 : vector<2x16xf32>
    %99 = arith.mulf %83, %91 : vector<2x16xf32>
    %100 = arith.addf %98, %99 : vector<2x16xf32>
    %101 = math.tanh %100 : vector<2x16xf32>
    %102 = arith.mulf %97, %101 : vector<2x16xf32>
    %103 = vector.extract_strided_slice %77 {offsets = [0, 0], sizes = [2, 16], strides = [1, 1]} : vector<2x64xf32> to vector<2x16xf32>
    %104 = arith.negf %103 : vector<2x16xf32>
    %105 = math.exp %104 : vector<2x16xf32>
    %cst_22 = arith.constant 1.000000e+00 : f32
    %106 = vector.broadcast %cst_22 : f32 to vector<2x16xf32>
    %107 = arith.addf %106, %105 : vector<2x16xf32>
    %108 = arith.divf %106, %107 : vector<2x16xf32>
    %109 = vector.extract_strided_slice %77 {offsets = [0, 16], sizes = [2, 16], strides = [1, 1]} : vector<2x64xf32> to vector<2x16xf32>
    %110 = arith.negf %109 : vector<2x16xf32>
    %111 = math.exp %110 : vector<2x16xf32>
    %cst_23 = arith.constant 1.000000e+00 : f32
    %112 = vector.broadcast %cst_23 : f32 to vector<2x16xf32>
    %113 = arith.addf %112, %111 : vector<2x16xf32>
    %114 = arith.divf %112, %113 : vector<2x16xf32>
    %115 = vector.extract_strided_slice %77 {offsets = [0, 32], sizes = [2, 16], strides = [1, 1]} : vector<2x64xf32> to vector<2x16xf32>
    %116 = math.tanh %115 : vector<2x16xf32>
    %117 = vector.extract_strided_slice %77 {offsets = [0, 48], sizes = [2, 16], strides = [1, 1]} : vector<2x64xf32> to vector<2x16xf32>
    %118 = arith.negf %117 : vector<2x16xf32>
    %119 = math.exp %118 : vector<2x16xf32>
    %cst_24 = arith.constant 1.000000e+00 : f32
    %120 = vector.broadcast %cst_24 : f32 to vector<2x16xf32>
    %121 = arith.addf %120, %119 : vector<2x16xf32>
    %122 = arith.divf %120, %121 : vector<2x16xf32>
    %123 = arith.mulf %114, %67 : vector<2x16xf32>
    %124 = arith.mulf %108, %116 : vector<2x16xf32>
    %125 = arith.addf %123, %124 : vector<2x16xf32>
    %126 = math.tanh %125 : vector<2x16xf32>
    %127 = arith.mulf %122, %126 : vector<2x16xf32>
    %128 = tpu.concatenate %102, %127 in 1 : vector<2x16xf32>, vector<2x16xf32> -> vector<2x32xf32>
    %cst_25 = arith.constant dense<0.000000e+00> : vector<2x128xf32>
    %129 = tpu.matmul %128, %7, %cst_25 {dimension_numbers = #tpu.dot_dimension_numbers<[1], [0], [0], [1], [0, 0, 1, 1], [], []>} : vector<2x32xf32>, vector<32x128xf32>, vector<2x128xf32> -> vector<2x128xf32>
    %130 = vector.extract_strided_slice %6 {offsets = [4, 0], sizes = [2, 64], strides = [1, 1]} : vector<16x128xf32> to vector<2x64xf32>
    %131 = vector.extract_strided_slice %129 {offsets = [0, 0], sizes = [2, 64], strides = [1, 1]} : vector<2x128xf32> to vector<2x64xf32>
    %132 = arith.addf %130, %131 : vector<2x64xf32>
    %133 = vector.extract_strided_slice %6 {offsets = [10, 64], sizes = [2, 64], strides = [1, 1]} : vector<16x128xf32> to vector<2x64xf32>
    %134 = vector.extract_strided_slice %129 {offsets = [0, 64], sizes = [2, 64], strides = [1, 1]} : vector<2x128xf32> to vector<2x64xf32>
    %135 = arith.addf %133, %134 : vector<2x64xf32>
    %136 = vector.extract_strided_slice %132 {offsets = [0, 0], sizes = [2, 16], strides = [1, 1]} : vector<2x64xf32> to vector<2x16xf32>
    %137 = arith.negf %136 : vector<2x16xf32>
    %138 = math.exp %137 : vector<2x16xf32>
    %cst_26 = arith.constant 1.000000e+00 : f32
    %139 = vector.broadcast %cst_26 : f32 to vector<2x16xf32>
    %140 = arith.addf %139, %138 : vector<2x16xf32>
    %141 = arith.divf %139, %140 : vector<2x16xf32>
    %142 = vector.extract_strided_slice %132 {offsets = [0, 16], sizes = [2, 16], strides = [1, 1]} : vector<2x64xf32> to vector<2x16xf32>
    %143 = arith.negf %142 : vector<2x16xf32>
    %144 = math.exp %143 : vector<2x16xf32>
    %cst_27 = arith.constant 1.000000e+00 : f32
    %145 = vector.broadcast %cst_27 : f32 to vector<2x16xf32>
    %146 = arith.addf %145, %144 : vector<2x16xf32>
    %147 = arith.divf %145, %146 : vector<2x16xf32>
    %148 = vector.extract_strided_slice %132 {offsets = [0, 32], sizes = [2, 16], strides = [1, 1]} : vector<2x64xf32> to vector<2x16xf32>
    %149 = math.tanh %148 : vector<2x16xf32>
    %150 = vector.extract_strided_slice %132 {offsets = [0, 48], sizes = [2, 16], strides = [1, 1]} : vector<2x64xf32> to vector<2x16xf32>
    %151 = arith.negf %150 : vector<2x16xf32>
    %152 = math.exp %151 : vector<2x16xf32>
    %cst_28 = arith.constant 1.000000e+00 : f32
    %153 = vector.broadcast %cst_28 : f32 to vector<2x16xf32>
    %154 = arith.addf %153, %152 : vector<2x16xf32>
    %155 = arith.divf %153, %154 : vector<2x16xf32>
    %156 = arith.mulf %147, %100 : vector<2x16xf32>
    %157 = arith.mulf %141, %149 : vector<2x16xf32>
    %158 = arith.addf %156, %157 : vector<2x16xf32>
    %159 = math.tanh %158 : vector<2x16xf32>
    %160 = arith.mulf %155, %159 : vector<2x16xf32>
    %161 = vector.extract_strided_slice %135 {offsets = [0, 0], sizes = [2, 16], strides = [1, 1]} : vector<2x64xf32> to vector<2x16xf32>
    %162 = arith.negf %161 : vector<2x16xf32>
    %163 = math.exp %162 : vector<2x16xf32>
    %cst_29 = arith.constant 1.000000e+00 : f32
    %164 = vector.broadcast %cst_29 : f32 to vector<2x16xf32>
    %165 = arith.addf %164, %163 : vector<2x16xf32>
    %166 = arith.divf %164, %165 : vector<2x16xf32>
    %167 = vector.extract_strided_slice %135 {offsets = [0, 16], sizes = [2, 16], strides = [1, 1]} : vector<2x64xf32> to vector<2x16xf32>
    %168 = arith.negf %167 : vector<2x16xf32>
    %169 = math.exp %168 : vector<2x16xf32>
    %cst_30 = arith.constant 1.000000e+00 : f32
    %170 = vector.broadcast %cst_30 : f32 to vector<2x16xf32>
    %171 = arith.addf %170, %169 : vector<2x16xf32>
    %172 = arith.divf %170, %171 : vector<2x16xf32>
    %173 = vector.extract_strided_slice %135 {offsets = [0, 32], sizes = [2, 16], strides = [1, 1]} : vector<2x64xf32> to vector<2x16xf32>
    %174 = math.tanh %173 : vector<2x16xf32>
    %175 = vector.extract_strided_slice %135 {offsets = [0, 48], sizes = [2, 16], strides = [1, 1]} : vector<2x64xf32> to vector<2x16xf32>
    %176 = arith.negf %175 : vector<2x16xf32>
    %177 = math.exp %176 : vector<2x16xf32>
    %cst_31 = arith.constant 1.000000e+00 : f32
    %178 = vector.broadcast %cst_31 : f32 to vector<2x16xf32>
    %179 = arith.addf %178, %177 : vector<2x16xf32>
    %180 = arith.divf %178, %179 : vector<2x16xf32>
    %181 = arith.mulf %172, %125 : vector<2x16xf32>
    %182 = arith.mulf %166, %174 : vector<2x16xf32>
    %183 = arith.addf %181, %182 : vector<2x16xf32>
    %184 = math.tanh %183 : vector<2x16xf32>
    %185 = arith.mulf %180, %184 : vector<2x16xf32>
    %186 = tpu.concatenate %160, %185 in 1 : vector<2x16xf32>, vector<2x16xf32> -> vector<2x32xf32>
    %cst_32 = arith.constant dense<0.000000e+00> : vector<2x128xf32>
    %187 = tpu.matmul %186, %7, %cst_32 {dimension_numbers = #tpu.dot_dimension_numbers<[1], [0], [0], [1], [0, 0, 1, 1], [], []>} : vector<2x32xf32>, vector<32x128xf32>, vector<2x128xf32> -> vector<2x128xf32>
    %188 = vector.extract_strided_slice %6 {offsets = [6, 0], sizes = [2, 64], strides = [1, 1]} : vector<16x128xf32> to vector<2x64xf32>
    %189 = vector.extract_strided_slice %187 {offsets = [0, 0], sizes = [2, 64], strides = [1, 1]} : vector<2x128xf32> to vector<2x64xf32>
    %190 = arith.addf %188, %189 : vector<2x64xf32>
    %191 = vector.extract_strided_slice %6 {offsets = [8, 64], sizes = [2, 64], strides = [1, 1]} : vector<16x128xf32> to vector<2x64xf32>
    %192 = vector.extract_strided_slice %187 {offsets = [0, 64], sizes = [2, 64], strides = [1, 1]} : vector<2x128xf32> to vector<2x64xf32>
    %193 = arith.addf %191, %192 : vector<2x64xf32>
    %194 = vector.extract_strided_slice %190 {offsets = [0, 0], sizes = [2, 16], strides = [1, 1]} : vector<2x64xf32> to vector<2x16xf32>
    %195 = arith.negf %194 : vector<2x16xf32>
    %196 = math.exp %195 : vector<2x16xf32>
    %cst_33 = arith.constant 1.000000e+00 : f32
    %197 = vector.broadcast %cst_33 : f32 to vector<2x16xf32>
    %198 = arith.addf %197, %196 : vector<2x16xf32>
    %199 = arith.divf %197, %198 : vector<2x16xf32>
    %200 = vector.extract_strided_slice %190 {offsets = [0, 16], sizes = [2, 16], strides = [1, 1]} : vector<2x64xf32> to vector<2x16xf32>
    %201 = arith.negf %200 : vector<2x16xf32>
    %202 = math.exp %201 : vector<2x16xf32>
    %cst_34 = arith.constant 1.000000e+00 : f32
    %203 = vector.broadcast %cst_34 : f32 to vector<2x16xf32>
    %204 = arith.addf %203, %202 : vector<2x16xf32>
    %205 = arith.divf %203, %204 : vector<2x16xf32>
    %206 = vector.extract_strided_slice %190 {offsets = [0, 32], sizes = [2, 16], strides = [1, 1]} : vector<2x64xf32> to vector<2x16xf32>
    %207 = math.tanh %206 : vector<2x16xf32>
    %208 = vector.extract_strided_slice %190 {offsets = [0, 48], sizes = [2, 16], strides = [1, 1]} : vector<2x64xf32> to vector<2x16xf32>
    %209 = arith.negf %208 : vector<2x16xf32>
    %210 = math.exp %209 : vector<2x16xf32>
    %cst_35 = arith.constant 1.000000e+00 : f32
    %211 = vector.broadcast %cst_35 : f32 to vector<2x16xf32>
    %212 = arith.addf %211, %210 : vector<2x16xf32>
    %213 = arith.divf %211, %212 : vector<2x16xf32>
    %214 = arith.mulf %205, %158 : vector<2x16xf32>
    %215 = arith.mulf %199, %207 : vector<2x16xf32>
    %216 = arith.addf %214, %215 : vector<2x16xf32>
    %217 = math.tanh %216 : vector<2x16xf32>
    %218 = arith.mulf %213, %217 : vector<2x16xf32>
    %219 = vector.extract_strided_slice %193 {offsets = [0, 0], sizes = [2, 16], strides = [1, 1]} : vector<2x64xf32> to vector<2x16xf32>
    %220 = arith.negf %219 : vector<2x16xf32>
    %221 = math.exp %220 : vector<2x16xf32>
    %cst_36 = arith.constant 1.000000e+00 : f32
    %222 = vector.broadcast %cst_36 : f32 to vector<2x16xf32>
    %223 = arith.addf %222, %221 : vector<2x16xf32>
    %224 = arith.divf %222, %223 : vector<2x16xf32>
    %225 = vector.extract_strided_slice %193 {offsets = [0, 16], sizes = [2, 16], strides = [1, 1]} : vector<2x64xf32> to vector<2x16xf32>
    %226 = arith.negf %225 : vector<2x16xf32>
    %227 = math.exp %226 : vector<2x16xf32>
    %cst_37 = arith.constant 1.000000e+00 : f32
    %228 = vector.broadcast %cst_37 : f32 to vector<2x16xf32>
    %229 = arith.addf %228, %227 : vector<2x16xf32>
    %230 = arith.divf %228, %229 : vector<2x16xf32>
    %231 = vector.extract_strided_slice %193 {offsets = [0, 32], sizes = [2, 16], strides = [1, 1]} : vector<2x64xf32> to vector<2x16xf32>
    %232 = math.tanh %231 : vector<2x16xf32>
    %233 = vector.extract_strided_slice %193 {offsets = [0, 48], sizes = [2, 16], strides = [1, 1]} : vector<2x64xf32> to vector<2x16xf32>
    %234 = arith.negf %233 : vector<2x16xf32>
    %235 = math.exp %234 : vector<2x16xf32>
    %cst_38 = arith.constant 1.000000e+00 : f32
    %236 = vector.broadcast %cst_38 : f32 to vector<2x16xf32>
    %237 = arith.addf %236, %235 : vector<2x16xf32>
    %238 = arith.divf %236, %237 : vector<2x16xf32>
    %239 = arith.mulf %230, %183 : vector<2x16xf32>
    %240 = arith.mulf %224, %232 : vector<2x16xf32>
    %241 = arith.addf %239, %240 : vector<2x16xf32>
    %242 = math.tanh %241 : vector<2x16xf32>
    %243 = arith.mulf %238, %242 : vector<2x16xf32>
    %244 = tpu.concatenate %218, %243 in 1 : vector<2x16xf32>, vector<2x16xf32> -> vector<2x32xf32>
    %cst_39 = arith.constant dense<0.000000e+00> : vector<2x128xf32>
    %245 = tpu.matmul %244, %7, %cst_39 {dimension_numbers = #tpu.dot_dimension_numbers<[1], [0], [0], [1], [0, 0, 1, 1], [], []>} : vector<2x32xf32>, vector<32x128xf32>, vector<2x128xf32> -> vector<2x128xf32>
    %246 = vector.extract_strided_slice %6 {offsets = [8, 0], sizes = [2, 64], strides = [1, 1]} : vector<16x128xf32> to vector<2x64xf32>
    %247 = vector.extract_strided_slice %245 {offsets = [0, 0], sizes = [2, 64], strides = [1, 1]} : vector<2x128xf32> to vector<2x64xf32>
    %248 = arith.addf %246, %247 : vector<2x64xf32>
    %249 = vector.extract_strided_slice %6 {offsets = [6, 64], sizes = [2, 64], strides = [1, 1]} : vector<16x128xf32> to vector<2x64xf32>
    %250 = vector.extract_strided_slice %245 {offsets = [0, 64], sizes = [2, 64], strides = [1, 1]} : vector<2x128xf32> to vector<2x64xf32>
    %251 = arith.addf %249, %250 : vector<2x64xf32>
    %252 = vector.extract_strided_slice %248 {offsets = [0, 0], sizes = [2, 16], strides = [1, 1]} : vector<2x64xf32> to vector<2x16xf32>
    %253 = arith.negf %252 : vector<2x16xf32>
    %254 = math.exp %253 : vector<2x16xf32>
    %cst_40 = arith.constant 1.000000e+00 : f32
    %255 = vector.broadcast %cst_40 : f32 to vector<2x16xf32>
    %256 = arith.addf %255, %254 : vector<2x16xf32>
    %257 = arith.divf %255, %256 : vector<2x16xf32>
    %258 = vector.extract_strided_slice %248 {offsets = [0, 16], sizes = [2, 16], strides = [1, 1]} : vector<2x64xf32> to vector<2x16xf32>
    %259 = arith.negf %258 : vector<2x16xf32>
    %260 = math.exp %259 : vector<2x16xf32>
    %cst_41 = arith.constant 1.000000e+00 : f32
    %261 = vector.broadcast %cst_41 : f32 to vector<2x16xf32>
    %262 = arith.addf %261, %260 : vector<2x16xf32>
    %263 = arith.divf %261, %262 : vector<2x16xf32>
    %264 = vector.extract_strided_slice %248 {offsets = [0, 32], sizes = [2, 16], strides = [1, 1]} : vector<2x64xf32> to vector<2x16xf32>
    %265 = math.tanh %264 : vector<2x16xf32>
    %266 = vector.extract_strided_slice %248 {offsets = [0, 48], sizes = [2, 16], strides = [1, 1]} : vector<2x64xf32> to vector<2x16xf32>
    %267 = arith.negf %266 : vector<2x16xf32>
    %268 = math.exp %267 : vector<2x16xf32>
    %cst_42 = arith.constant 1.000000e+00 : f32
    %269 = vector.broadcast %cst_42 : f32 to vector<2x16xf32>
    %270 = arith.addf %269, %268 : vector<2x16xf32>
    %271 = arith.divf %269, %270 : vector<2x16xf32>
    %272 = arith.mulf %263, %216 : vector<2x16xf32>
    %273 = arith.mulf %257, %265 : vector<2x16xf32>
    %274 = arith.addf %272, %273 : vector<2x16xf32>
    %275 = math.tanh %274 : vector<2x16xf32>
    %276 = arith.mulf %271, %275 : vector<2x16xf32>
    %277 = vector.extract_strided_slice %251 {offsets = [0, 0], sizes = [2, 16], strides = [1, 1]} : vector<2x64xf32> to vector<2x16xf32>
    %278 = arith.negf %277 : vector<2x16xf32>
    %279 = math.exp %278 : vector<2x16xf32>
    %cst_43 = arith.constant 1.000000e+00 : f32
    %280 = vector.broadcast %cst_43 : f32 to vector<2x16xf32>
    %281 = arith.addf %280, %279 : vector<2x16xf32>
    %282 = arith.divf %280, %281 : vector<2x16xf32>
    %283 = vector.extract_strided_slice %251 {offsets = [0, 16], sizes = [2, 16], strides = [1, 1]} : vector<2x64xf32> to vector<2x16xf32>
    %284 = arith.negf %283 : vector<2x16xf32>
    %285 = math.exp %284 : vector<2x16xf32>
    %cst_44 = arith.constant 1.000000e+00 : f32
    %286 = vector.broadcast %cst_44 : f32 to vector<2x16xf32>
    %287 = arith.addf %286, %285 : vector<2x16xf32>
    %288 = arith.divf %286, %287 : vector<2x16xf32>
    %289 = vector.extract_strided_slice %251 {offsets = [0, 32], sizes = [2, 16], strides = [1, 1]} : vector<2x64xf32> to vector<2x16xf32>
    %290 = math.tanh %289 : vector<2x16xf32>
    %291 = vector.extract_strided_slice %251 {offsets = [0, 48], sizes = [2, 16], strides = [1, 1]} : vector<2x64xf32> to vector<2x16xf32>
    %292 = arith.negf %291 : vector<2x16xf32>
    %293 = math.exp %292 : vector<2x16xf32>
    %cst_45 = arith.constant 1.000000e+00 : f32
    %294 = vector.broadcast %cst_45 : f32 to vector<2x16xf32>
    %295 = arith.addf %294, %293 : vector<2x16xf32>
    %296 = arith.divf %294, %295 : vector<2x16xf32>
    %297 = arith.mulf %288, %241 : vector<2x16xf32>
    %298 = arith.mulf %282, %290 : vector<2x16xf32>
    %299 = arith.addf %297, %298 : vector<2x16xf32>
    %300 = math.tanh %299 : vector<2x16xf32>
    %301 = arith.mulf %296, %300 : vector<2x16xf32>
    %302 = tpu.concatenate %276, %301 in 1 : vector<2x16xf32>, vector<2x16xf32> -> vector<2x32xf32>
    %cst_46 = arith.constant dense<0.000000e+00> : vector<2x128xf32>
    %303 = tpu.matmul %302, %7, %cst_46 {dimension_numbers = #tpu.dot_dimension_numbers<[1], [0], [0], [1], [0, 0, 1, 1], [], []>} : vector<2x32xf32>, vector<32x128xf32>, vector<2x128xf32> -> vector<2x128xf32>
    %304 = vector.extract_strided_slice %6 {offsets = [10, 0], sizes = [2, 64], strides = [1, 1]} : vector<16x128xf32> to vector<2x64xf32>
    %305 = vector.extract_strided_slice %303 {offsets = [0, 0], sizes = [2, 64], strides = [1, 1]} : vector<2x128xf32> to vector<2x64xf32>
    %306 = arith.addf %304, %305 : vector<2x64xf32>
    %307 = vector.extract_strided_slice %6 {offsets = [4, 64], sizes = [2, 64], strides = [1, 1]} : vector<16x128xf32> to vector<2x64xf32>
    %308 = vector.extract_strided_slice %303 {offsets = [0, 64], sizes = [2, 64], strides = [1, 1]} : vector<2x128xf32> to vector<2x64xf32>
    %309 = arith.addf %307, %308 : vector<2x64xf32>
    %310 = vector.extract_strided_slice %306 {offsets = [0, 0], sizes = [2, 16], strides = [1, 1]} : vector<2x64xf32> to vector<2x16xf32>
    %311 = arith.negf %310 : vector<2x16xf32>
    %312 = math.exp %311 : vector<2x16xf32>
    %cst_47 = arith.constant 1.000000e+00 : f32
    %313 = vector.broadcast %cst_47 : f32 to vector<2x16xf32>
    %314 = arith.addf %313, %312 : vector<2x16xf32>
    %315 = arith.divf %313, %314 : vector<2x16xf32>
    %316 = vector.extract_strided_slice %306 {offsets = [0, 16], sizes = [2, 16], strides = [1, 1]} : vector<2x64xf32> to vector<2x16xf32>
    %317 = arith.negf %316 : vector<2x16xf32>
    %318 = math.exp %317 : vector<2x16xf32>
    %cst_48 = arith.constant 1.000000e+00 : f32
    %319 = vector.broadcast %cst_48 : f32 to vector<2x16xf32>
    %320 = arith.addf %319, %318 : vector<2x16xf32>
    %321 = arith.divf %319, %320 : vector<2x16xf32>
    %322 = vector.extract_strided_slice %306 {offsets = [0, 32], sizes = [2, 16], strides = [1, 1]} : vector<2x64xf32> to vector<2x16xf32>
    %323 = math.tanh %322 : vector<2x16xf32>
    %324 = vector.extract_strided_slice %306 {offsets = [0, 48], sizes = [2, 16], strides = [1, 1]} : vector<2x64xf32> to vector<2x16xf32>
    %325 = arith.negf %324 : vector<2x16xf32>
    %326 = math.exp %325 : vector<2x16xf32>
    %cst_49 = arith.constant 1.000000e+00 : f32
    %327 = vector.broadcast %cst_49 : f32 to vector<2x16xf32>
    %328 = arith.addf %327, %326 : vector<2x16xf32>
    %329 = arith.divf %327, %328 : vector<2x16xf32>
    %330 = arith.mulf %321, %274 : vector<2x16xf32>
    %331 = arith.mulf %315, %323 : vector<2x16xf32>
    %332 = arith.addf %330, %331 : vector<2x16xf32>
    %333 = math.tanh %332 : vector<2x16xf32>
    %334 = arith.mulf %329, %333 : vector<2x16xf32>
    %335 = vector.extract_strided_slice %309 {offsets = [0, 0], sizes = [2, 16], strides = [1, 1]} : vector<2x64xf32> to vector<2x16xf32>
    %336 = arith.negf %335 : vector<2x16xf32>
    %337 = math.exp %336 : vector<2x16xf32>
    %cst_50 = arith.constant 1.000000e+00 : f32
    %338 = vector.broadcast %cst_50 : f32 to vector<2x16xf32>
    %339 = arith.addf %338, %337 : vector<2x16xf32>
    %340 = arith.divf %338, %339 : vector<2x16xf32>
    %341 = vector.extract_strided_slice %309 {offsets = [0, 16], sizes = [2, 16], strides = [1, 1]} : vector<2x64xf32> to vector<2x16xf32>
    %342 = arith.negf %341 : vector<2x16xf32>
    %343 = math.exp %342 : vector<2x16xf32>
    %cst_51 = arith.constant 1.000000e+00 : f32
    %344 = vector.broadcast %cst_51 : f32 to vector<2x16xf32>
    %345 = arith.addf %344, %343 : vector<2x16xf32>
    %346 = arith.divf %344, %345 : vector<2x16xf32>
    %347 = vector.extract_strided_slice %309 {offsets = [0, 32], sizes = [2, 16], strides = [1, 1]} : vector<2x64xf32> to vector<2x16xf32>
    %348 = math.tanh %347 : vector<2x16xf32>
    %349 = vector.extract_strided_slice %309 {offsets = [0, 48], sizes = [2, 16], strides = [1, 1]} : vector<2x64xf32> to vector<2x16xf32>
    %350 = arith.negf %349 : vector<2x16xf32>
    %351 = math.exp %350 : vector<2x16xf32>
    %cst_52 = arith.constant 1.000000e+00 : f32
    %352 = vector.broadcast %cst_52 : f32 to vector<2x16xf32>
    %353 = arith.addf %352, %351 : vector<2x16xf32>
    %354 = arith.divf %352, %353 : vector<2x16xf32>
    %355 = arith.mulf %346, %299 : vector<2x16xf32>
    %356 = arith.mulf %340, %348 : vector<2x16xf32>
    %357 = arith.addf %355, %356 : vector<2x16xf32>
    %358 = math.tanh %357 : vector<2x16xf32>
    %359 = arith.mulf %354, %358 : vector<2x16xf32>
    %360 = tpu.concatenate %334, %359 in 1 : vector<2x16xf32>, vector<2x16xf32> -> vector<2x32xf32>
    %cst_53 = arith.constant dense<0.000000e+00> : vector<2x128xf32>
    %361 = tpu.matmul %360, %7, %cst_53 {dimension_numbers = #tpu.dot_dimension_numbers<[1], [0], [0], [1], [0, 0, 1, 1], [], []>} : vector<2x32xf32>, vector<32x128xf32>, vector<2x128xf32> -> vector<2x128xf32>
    %362 = vector.extract_strided_slice %6 {offsets = [12, 0], sizes = [2, 64], strides = [1, 1]} : vector<16x128xf32> to vector<2x64xf32>
    %363 = vector.extract_strided_slice %361 {offsets = [0, 0], sizes = [2, 64], strides = [1, 1]} : vector<2x128xf32> to vector<2x64xf32>
    %364 = arith.addf %362, %363 : vector<2x64xf32>
    %365 = vector.extract_strided_slice %6 {offsets = [2, 64], sizes = [2, 64], strides = [1, 1]} : vector<16x128xf32> to vector<2x64xf32>
    %366 = vector.extract_strided_slice %361 {offsets = [0, 64], sizes = [2, 64], strides = [1, 1]} : vector<2x128xf32> to vector<2x64xf32>
    %367 = arith.addf %365, %366 : vector<2x64xf32>
    %368 = vector.extract_strided_slice %364 {offsets = [0, 0], sizes = [2, 16], strides = [1, 1]} : vector<2x64xf32> to vector<2x16xf32>
    %369 = arith.negf %368 : vector<2x16xf32>
    %370 = math.exp %369 : vector<2x16xf32>
    %cst_54 = arith.constant 1.000000e+00 : f32
    %371 = vector.broadcast %cst_54 : f32 to vector<2x16xf32>
    %372 = arith.addf %371, %370 : vector<2x16xf32>
    %373 = arith.divf %371, %372 : vector<2x16xf32>
    %374 = vector.extract_strided_slice %364 {offsets = [0, 16], sizes = [2, 16], strides = [1, 1]} : vector<2x64xf32> to vector<2x16xf32>
    %375 = arith.negf %374 : vector<2x16xf32>
    %376 = math.exp %375 : vector<2x16xf32>
    %cst_55 = arith.constant 1.000000e+00 : f32
    %377 = vector.broadcast %cst_55 : f32 to vector<2x16xf32>
    %378 = arith.addf %377, %376 : vector<2x16xf32>
    %379 = arith.divf %377, %378 : vector<2x16xf32>
    %380 = vector.extract_strided_slice %364 {offsets = [0, 32], sizes = [2, 16], strides = [1, 1]} : vector<2x64xf32> to vector<2x16xf32>
    %381 = math.tanh %380 : vector<2x16xf32>
    %382 = vector.extract_strided_slice %364 {offsets = [0, 48], sizes = [2, 16], strides = [1, 1]} : vector<2x64xf32> to vector<2x16xf32>
    %383 = arith.negf %382 : vector<2x16xf32>
    %384 = math.exp %383 : vector<2x16xf32>
    %cst_56 = arith.constant 1.000000e+00 : f32
    %385 = vector.broadcast %cst_56 : f32 to vector<2x16xf32>
    %386 = arith.addf %385, %384 : vector<2x16xf32>
    %387 = arith.divf %385, %386 : vector<2x16xf32>
    %388 = arith.mulf %379, %332 : vector<2x16xf32>
    %389 = arith.mulf %373, %381 : vector<2x16xf32>
    %390 = arith.addf %388, %389 : vector<2x16xf32>
    %391 = math.tanh %390 : vector<2x16xf32>
    %392 = arith.mulf %387, %391 : vector<2x16xf32>
    %393 = vector.extract_strided_slice %367 {offsets = [0, 0], sizes = [2, 16], strides = [1, 1]} : vector<2x64xf32> to vector<2x16xf32>
    %394 = arith.negf %393 : vector<2x16xf32>
    %395 = math.exp %394 : vector<2x16xf32>
    %cst_57 = arith.constant 1.000000e+00 : f32
    %396 = vector.broadcast %cst_57 : f32 to vector<2x16xf32>
    %397 = arith.addf %396, %395 : vector<2x16xf32>
    %398 = arith.divf %396, %397 : vector<2x16xf32>
    %399 = vector.extract_strided_slice %367 {offsets = [0, 16], sizes = [2, 16], strides = [1, 1]} : vector<2x64xf32> to vector<2x16xf32>
    %400 = arith.negf %399 : vector<2x16xf32>
    %401 = math.exp %400 : vector<2x16xf32>
    %cst_58 = arith.constant 1.000000e+00 : f32
    %402 = vector.broadcast %cst_58 : f32 to vector<2x16xf32>
    %403 = arith.addf %402, %401 : vector<2x16xf32>
    %404 = arith.divf %402, %403 : vector<2x16xf32>
    %405 = vector.extract_strided_slice %367 {offsets = [0, 32], sizes = [2, 16], strides = [1, 1]} : vector<2x64xf32> to vector<2x16xf32>
    %406 = math.tanh %405 : vector<2x16xf32>
    %407 = vector.extract_strided_slice %367 {offsets = [0, 48], sizes = [2, 16], strides = [1, 1]} : vector<2x64xf32> to vector<2x16xf32>
    %408 = arith.negf %407 : vector<2x16xf32>
    %409 = math.exp %408 : vector<2x16xf32>
    %cst_59 = arith.constant 1.000000e+00 : f32
    %410 = vector.broadcast %cst_59 : f32 to vector<2x16xf32>
    %411 = arith.addf %410, %409 : vector<2x16xf32>
    %412 = arith.divf %410, %411 : vector<2x16xf32>
    %413 = arith.mulf %404, %357 : vector<2x16xf32>
    %414 = arith.mulf %398, %406 : vector<2x16xf32>
    %415 = arith.addf %413, %414 : vector<2x16xf32>
    %416 = math.tanh %415 : vector<2x16xf32>
    %417 = arith.mulf %412, %416 : vector<2x16xf32>
    %418 = tpu.concatenate %392, %417 in 1 : vector<2x16xf32>, vector<2x16xf32> -> vector<2x32xf32>
    %cst_60 = arith.constant dense<0.000000e+00> : vector<2x128xf32>
    %419 = tpu.matmul %418, %7, %cst_60 {dimension_numbers = #tpu.dot_dimension_numbers<[1], [0], [0], [1], [0, 0, 1, 1], [], []>} : vector<2x32xf32>, vector<32x128xf32>, vector<2x128xf32> -> vector<2x128xf32>
    %420 = vector.extract_strided_slice %6 {offsets = [14, 0], sizes = [2, 64], strides = [1, 1]} : vector<16x128xf32> to vector<2x64xf32>
    %421 = vector.extract_strided_slice %419 {offsets = [0, 0], sizes = [2, 64], strides = [1, 1]} : vector<2x128xf32> to vector<2x64xf32>
    %422 = arith.addf %420, %421 : vector<2x64xf32>
    %423 = vector.extract_strided_slice %6 {offsets = [0, 64], sizes = [2, 64], strides = [1, 1]} : vector<16x128xf32> to vector<2x64xf32>
    %424 = vector.extract_strided_slice %419 {offsets = [0, 64], sizes = [2, 64], strides = [1, 1]} : vector<2x128xf32> to vector<2x64xf32>
    %425 = arith.addf %423, %424 : vector<2x64xf32>
    %426 = vector.extract_strided_slice %422 {offsets = [0, 0], sizes = [2, 16], strides = [1, 1]} : vector<2x64xf32> to vector<2x16xf32>
    %427 = arith.negf %426 : vector<2x16xf32>
    %428 = math.exp %427 : vector<2x16xf32>
    %cst_61 = arith.constant 1.000000e+00 : f32
    %429 = vector.broadcast %cst_61 : f32 to vector<2x16xf32>
    %430 = arith.addf %429, %428 : vector<2x16xf32>
    %431 = arith.divf %429, %430 : vector<2x16xf32>
    %432 = vector.extract_strided_slice %422 {offsets = [0, 16], sizes = [2, 16], strides = [1, 1]} : vector<2x64xf32> to vector<2x16xf32>
    %433 = arith.negf %432 : vector<2x16xf32>
    %434 = math.exp %433 : vector<2x16xf32>
    %cst_62 = arith.constant 1.000000e+00 : f32
    %435 = vector.broadcast %cst_62 : f32 to vector<2x16xf32>
    %436 = arith.addf %435, %434 : vector<2x16xf32>
    %437 = arith.divf %435, %436 : vector<2x16xf32>
    %438 = vector.extract_strided_slice %422 {offsets = [0, 32], sizes = [2, 16], strides = [1, 1]} : vector<2x64xf32> to vector<2x16xf32>
    %439 = math.tanh %438 : vector<2x16xf32>
    %440 = vector.extract_strided_slice %422 {offsets = [0, 48], sizes = [2, 16], strides = [1, 1]} : vector<2x64xf32> to vector<2x16xf32>
    %441 = arith.negf %440 : vector<2x16xf32>
    %442 = math.exp %441 : vector<2x16xf32>
    %cst_63 = arith.constant 1.000000e+00 : f32
    %443 = vector.broadcast %cst_63 : f32 to vector<2x16xf32>
    %444 = arith.addf %443, %442 : vector<2x16xf32>
    %445 = arith.divf %443, %444 : vector<2x16xf32>
    %446 = arith.mulf %437, %390 : vector<2x16xf32>
    %447 = arith.mulf %431, %439 : vector<2x16xf32>
    %448 = arith.addf %446, %447 : vector<2x16xf32>
    %449 = math.tanh %448 : vector<2x16xf32>
    %450 = arith.mulf %445, %449 : vector<2x16xf32>
    %451 = vector.extract_strided_slice %425 {offsets = [0, 0], sizes = [2, 16], strides = [1, 1]} : vector<2x64xf32> to vector<2x16xf32>
    %452 = arith.negf %451 : vector<2x16xf32>
    %453 = math.exp %452 : vector<2x16xf32>
    %cst_64 = arith.constant 1.000000e+00 : f32
    %454 = vector.broadcast %cst_64 : f32 to vector<2x16xf32>
    %455 = arith.addf %454, %453 : vector<2x16xf32>
    %456 = arith.divf %454, %455 : vector<2x16xf32>
    %457 = vector.extract_strided_slice %425 {offsets = [0, 16], sizes = [2, 16], strides = [1, 1]} : vector<2x64xf32> to vector<2x16xf32>
    %458 = arith.negf %457 : vector<2x16xf32>
    %459 = math.exp %458 : vector<2x16xf32>
    %cst_65 = arith.constant 1.000000e+00 : f32
    %460 = vector.broadcast %cst_65 : f32 to vector<2x16xf32>
    %461 = arith.addf %460, %459 : vector<2x16xf32>
    %462 = arith.divf %460, %461 : vector<2x16xf32>
    %463 = vector.extract_strided_slice %425 {offsets = [0, 32], sizes = [2, 16], strides = [1, 1]} : vector<2x64xf32> to vector<2x16xf32>
    %464 = math.tanh %463 : vector<2x16xf32>
    %465 = vector.extract_strided_slice %425 {offsets = [0, 48], sizes = [2, 16], strides = [1, 1]} : vector<2x64xf32> to vector<2x16xf32>
    %466 = arith.negf %465 : vector<2x16xf32>
    %467 = math.exp %466 : vector<2x16xf32>
    %cst_66 = arith.constant 1.000000e+00 : f32
    %468 = vector.broadcast %cst_66 : f32 to vector<2x16xf32>
    %469 = arith.addf %468, %467 : vector<2x16xf32>
    %470 = arith.divf %468, %469 : vector<2x16xf32>
    %471 = arith.mulf %462, %415 : vector<2x16xf32>
    %472 = arith.mulf %456, %464 : vector<2x16xf32>
    %473 = arith.addf %471, %472 : vector<2x16xf32>
    %474 = math.tanh %473 : vector<2x16xf32>
    %475 = arith.mulf %470, %474 : vector<2x16xf32>
    %476 = tpu.concatenate %44, %475 in 1 : vector<2x16xf32>, vector<2x16xf32> -> vector<2x32xf32>
    %477 = tpu.concatenate %102, %417 in 1 : vector<2x16xf32>, vector<2x16xf32> -> vector<2x32xf32>
    %478 = tpu.concatenate %160, %359 in 1 : vector<2x16xf32>, vector<2x16xf32> -> vector<2x32xf32>
    %479 = tpu.concatenate %218, %301 in 1 : vector<2x16xf32>, vector<2x16xf32> -> vector<2x32xf32>
    %480 = tpu.concatenate %276, %243 in 1 : vector<2x16xf32>, vector<2x16xf32> -> vector<2x32xf32>
    %481 = tpu.concatenate %334, %185 in 1 : vector<2x16xf32>, vector<2x16xf32> -> vector<2x32xf32>
    %482 = tpu.concatenate %392, %127 in 1 : vector<2x16xf32>, vector<2x16xf32> -> vector<2x32xf32>
    %483 = tpu.concatenate %450, %69 in 1 : vector<2x16xf32>, vector<2x16xf32> -> vector<2x32xf32>
    %484 = tpu.concatenate %476, %477, %478, %479, %480, %481, %482, %483 in 0 : vector<2x32xf32>, vector<2x32xf32>, vector<2x32xf32>, vector<2x32xf32>, vector<2x32xf32>, vector<2x32xf32>, vector<2x32xf32>, vector<2x32xf32> -> vector<16x32xf32>
    %485 = vector.extract_strided_slice %1 {offsets = [1, 0], sizes = [1, 96], strides = [1, 1]} : vector<16x128xf32> to vector<1x96xf32>
    %486 = vector.extract_strided_slice %1 {offsets = [2, 0], sizes = [1, 96], strides = [1, 1]} : vector<16x128xf32> to vector<1x96xf32>
    %c0_67 = arith.constant 0 : index
    %c0_68 = arith.constant 0 : index
    %487 = vector.load %arg4[%c0_67, %c0_68] : memref<32x96xf32, #tpu.memory_space<vmem>>, vector<32x96xf32>
    %cst_69 = arith.constant dense<0.000000e+00> : vector<16x96xf32>
    %488 = tpu.matmul %484, %487, %cst_69 {dimension_numbers = #tpu.dot_dimension_numbers<[1], [0], [0], [1], [0, 0, 1, 1], [], []>} : vector<16x32xf32>, vector<32x96xf32>, vector<16x96xf32> -> vector<16x96xf32>
    %489 = vector.broadcast %485 : vector<1x96xf32> to vector<16x96xf32>
    %490 = arith.addf %488, %489 : vector<16x96xf32>
    %c0_70 = arith.constant 0 : index
    %c0_71 = arith.constant 0 : index
    %491 = vector.load %arg5[%c0_70, %c0_71] : memref<32x96xf32, #tpu.memory_space<vmem>>, vector<32x96xf32>
    %cst_72 = arith.constant 0.000000e+00 : f32
    %492 = vector.broadcast %cst_72 : f32 to vector<2x16xf32>
    %cst_73 = arith.constant 0.000000e+00 : f32
    %493 = vector.broadcast %cst_73 : f32 to vector<2x16xf32>
    %494 = tpu.concatenate %492, %493 in 1 : vector<2x16xf32>, vector<2x16xf32> -> vector<2x32xf32>
    %cst_74 = arith.constant dense<0.000000e+00> : vector<2x96xf32>
    %495 = tpu.matmul %494, %491, %cst_74 {dimension_numbers = #tpu.dot_dimension_numbers<[1], [0], [0], [1], [0, 0, 1, 1], [], []>} : vector<2x32xf32>, vector<32x96xf32>, vector<2x96xf32> -> vector<2x96xf32>
    %496 = vector.broadcast %486 : vector<1x96xf32> to vector<2x96xf32>
    %497 = arith.addf %495, %496 : vector<2x96xf32>
    %498 = vector.extract_strided_slice %490 {offsets = [0, 0], sizes = [2, 96], strides = [1, 1]} : vector<16x96xf32> to vector<2x96xf32>
    %499 = vector.extract_strided_slice %490 {offsets = [14, 0], sizes = [2, 96], strides = [1, 1]} : vector<16x96xf32> to vector<2x96xf32>
    %500 = vector.extract_strided_slice %498 {offsets = [0, 0], sizes = [2, 16], strides = [1, 1]} : vector<2x96xf32> to vector<2x16xf32>
    %501 = vector.extract_strided_slice %497 {offsets = [0, 0], sizes = [2, 16], strides = [1, 1]} : vector<2x96xf32> to vector<2x16xf32>
    %502 = arith.addf %500, %501 : vector<2x16xf32>
    %503 = arith.negf %502 : vector<2x16xf32>
    %504 = math.exp %503 : vector<2x16xf32>
    %cst_75 = arith.constant 1.000000e+00 : f32
    %505 = vector.broadcast %cst_75 : f32 to vector<2x16xf32>
    %506 = arith.addf %505, %504 : vector<2x16xf32>
    %507 = arith.divf %505, %506 : vector<2x16xf32>
    %508 = vector.extract_strided_slice %498 {offsets = [0, 16], sizes = [2, 16], strides = [1, 1]} : vector<2x96xf32> to vector<2x16xf32>
    %509 = vector.extract_strided_slice %497 {offsets = [0, 16], sizes = [2, 16], strides = [1, 1]} : vector<2x96xf32> to vector<2x16xf32>
    %510 = arith.addf %508, %509 : vector<2x16xf32>
    %511 = arith.negf %510 : vector<2x16xf32>
    %512 = math.exp %511 : vector<2x16xf32>
    %cst_76 = arith.constant 1.000000e+00 : f32
    %513 = vector.broadcast %cst_76 : f32 to vector<2x16xf32>
    %514 = arith.addf %513, %512 : vector<2x16xf32>
    %515 = arith.divf %513, %514 : vector<2x16xf32>
    %516 = vector.extract_strided_slice %498 {offsets = [0, 32], sizes = [2, 16], strides = [1, 1]} : vector<2x96xf32> to vector<2x16xf32>
    %517 = vector.extract_strided_slice %497 {offsets = [0, 32], sizes = [2, 16], strides = [1, 1]} : vector<2x96xf32> to vector<2x16xf32>
    %518 = arith.mulf %507, %517 : vector<2x16xf32>
    %519 = arith.addf %516, %518 : vector<2x16xf32>
    %520 = math.tanh %519 : vector<2x16xf32>
    %cst_77 = arith.constant 1.000000e+00 : f32
    %521 = vector.broadcast %cst_77 : f32 to vector<2x16xf32>
    %522 = arith.subf %521, %515 : vector<2x16xf32>
    %523 = arith.mulf %522, %520 : vector<2x16xf32>
    %524 = arith.mulf %515, %492 : vector<2x16xf32>
    %525 = arith.addf %523, %524 : vector<2x16xf32>
    %526 = vector.extract_strided_slice %499 {offsets = [0, 48], sizes = [2, 16], strides = [1, 1]} : vector<2x96xf32> to vector<2x16xf32>
    %527 = vector.extract_strided_slice %497 {offsets = [0, 48], sizes = [2, 16], strides = [1, 1]} : vector<2x96xf32> to vector<2x16xf32>
    %528 = arith.addf %526, %527 : vector<2x16xf32>
    %529 = arith.negf %528 : vector<2x16xf32>
    %530 = math.exp %529 : vector<2x16xf32>
    %cst_78 = arith.constant 1.000000e+00 : f32
    %531 = vector.broadcast %cst_78 : f32 to vector<2x16xf32>
    %532 = arith.addf %531, %530 : vector<2x16xf32>
    %533 = arith.divf %531, %532 : vector<2x16xf32>
    %534 = vector.extract_strided_slice %499 {offsets = [0, 64], sizes = [2, 16], strides = [1, 1]} : vector<2x96xf32> to vector<2x16xf32>
    %535 = vector.extract_strided_slice %497 {offsets = [0, 64], sizes = [2, 16], strides = [1, 1]} : vector<2x96xf32> to vector<2x16xf32>
    %536 = arith.addf %534, %535 : vector<2x16xf32>
    %537 = arith.negf %536 : vector<2x16xf32>
    %538 = math.exp %537 : vector<2x16xf32>
    %cst_79 = arith.constant 1.000000e+00 : f32
    %539 = vector.broadcast %cst_79 : f32 to vector<2x16xf32>
    %540 = arith.addf %539, %538 : vector<2x16xf32>
    %541 = arith.divf %539, %540 : vector<2x16xf32>
    %542 = vector.extract_strided_slice %499 {offsets = [0, 80], sizes = [2, 16], strides = [1, 1]} : vector<2x96xf32> to vector<2x16xf32>
    %543 = vector.extract_strided_slice %497 {offsets = [0, 80], sizes = [2, 16], strides = [1, 1]} : vector<2x96xf32> to vector<2x16xf32>
    %544 = arith.mulf %533, %543 : vector<2x16xf32>
    %545 = arith.addf %542, %544 : vector<2x16xf32>
    %546 = math.tanh %545 : vector<2x16xf32>
    %cst_80 = arith.constant 1.000000e+00 : f32
    %547 = vector.broadcast %cst_80 : f32 to vector<2x16xf32>
    %548 = arith.subf %547, %541 : vector<2x16xf32>
    %549 = arith.mulf %548, %546 : vector<2x16xf32>
    %550 = arith.mulf %541, %493 : vector<2x16xf32>
    %551 = arith.addf %549, %550 : vector<2x16xf32>
    %552 = tpu.concatenate %525, %551 in 1 : vector<2x16xf32>, vector<2x16xf32> -> vector<2x32xf32>
    %cst_81 = arith.constant dense<0.000000e+00> : vector<2x96xf32>
    %553 = tpu.matmul %552, %491, %cst_81 {dimension_numbers = #tpu.dot_dimension_numbers<[1], [0], [0], [1], [0, 0, 1, 1], [], []>} : vector<2x32xf32>, vector<32x96xf32>, vector<2x96xf32> -> vector<2x96xf32>
    %554 = vector.broadcast %486 : vector<1x96xf32> to vector<2x96xf32>
    %555 = arith.addf %553, %554 : vector<2x96xf32>
    %556 = vector.extract_strided_slice %490 {offsets = [2, 0], sizes = [2, 96], strides = [1, 1]} : vector<16x96xf32> to vector<2x96xf32>
    %557 = vector.extract_strided_slice %490 {offsets = [12, 0], sizes = [2, 96], strides = [1, 1]} : vector<16x96xf32> to vector<2x96xf32>
    %558 = vector.extract_strided_slice %556 {offsets = [0, 0], sizes = [2, 16], strides = [1, 1]} : vector<2x96xf32> to vector<2x16xf32>
    %559 = vector.extract_strided_slice %555 {offsets = [0, 0], sizes = [2, 16], strides = [1, 1]} : vector<2x96xf32> to vector<2x16xf32>
    %560 = arith.addf %558, %559 : vector<2x16xf32>
    %561 = arith.negf %560 : vector<2x16xf32>
    %562 = math.exp %561 : vector<2x16xf32>
    %cst_82 = arith.constant 1.000000e+00 : f32
    %563 = vector.broadcast %cst_82 : f32 to vector<2x16xf32>
    %564 = arith.addf %563, %562 : vector<2x16xf32>
    %565 = arith.divf %563, %564 : vector<2x16xf32>
    %566 = vector.extract_strided_slice %556 {offsets = [0, 16], sizes = [2, 16], strides = [1, 1]} : vector<2x96xf32> to vector<2x16xf32>
    %567 = vector.extract_strided_slice %555 {offsets = [0, 16], sizes = [2, 16], strides = [1, 1]} : vector<2x96xf32> to vector<2x16xf32>
    %568 = arith.addf %566, %567 : vector<2x16xf32>
    %569 = arith.negf %568 : vector<2x16xf32>
    %570 = math.exp %569 : vector<2x16xf32>
    %cst_83 = arith.constant 1.000000e+00 : f32
    %571 = vector.broadcast %cst_83 : f32 to vector<2x16xf32>
    %572 = arith.addf %571, %570 : vector<2x16xf32>
    %573 = arith.divf %571, %572 : vector<2x16xf32>
    %574 = vector.extract_strided_slice %556 {offsets = [0, 32], sizes = [2, 16], strides = [1, 1]} : vector<2x96xf32> to vector<2x16xf32>
    %575 = vector.extract_strided_slice %555 {offsets = [0, 32], sizes = [2, 16], strides = [1, 1]} : vector<2x96xf32> to vector<2x16xf32>
    %576 = arith.mulf %565, %575 : vector<2x16xf32>
    %577 = arith.addf %574, %576 : vector<2x16xf32>
    %578 = math.tanh %577 : vector<2x16xf32>
    %cst_84 = arith.constant 1.000000e+00 : f32
    %579 = vector.broadcast %cst_84 : f32 to vector<2x16xf32>
    %580 = arith.subf %579, %573 : vector<2x16xf32>
    %581 = arith.mulf %580, %578 : vector<2x16xf32>
    %582 = arith.mulf %573, %525 : vector<2x16xf32>
    %583 = arith.addf %581, %582 : vector<2x16xf32>
    %584 = vector.extract_strided_slice %557 {offsets = [0, 48], sizes = [2, 16], strides = [1, 1]} : vector<2x96xf32> to vector<2x16xf32>
    %585 = vector.extract_strided_slice %555 {offsets = [0, 48], sizes = [2, 16], strides = [1, 1]} : vector<2x96xf32> to vector<2x16xf32>
    %586 = arith.addf %584, %585 : vector<2x16xf32>
    %587 = arith.negf %586 : vector<2x16xf32>
    %588 = math.exp %587 : vector<2x16xf32>
    %cst_85 = arith.constant 1.000000e+00 : f32
    %589 = vector.broadcast %cst_85 : f32 to vector<2x16xf32>
    %590 = arith.addf %589, %588 : vector<2x16xf32>
    %591 = arith.divf %589, %590 : vector<2x16xf32>
    %592 = vector.extract_strided_slice %557 {offsets = [0, 64], sizes = [2, 16], strides = [1, 1]} : vector<2x96xf32> to vector<2x16xf32>
    %593 = vector.extract_strided_slice %555 {offsets = [0, 64], sizes = [2, 16], strides = [1, 1]} : vector<2x96xf32> to vector<2x16xf32>
    %594 = arith.addf %592, %593 : vector<2x16xf32>
    %595 = arith.negf %594 : vector<2x16xf32>
    %596 = math.exp %595 : vector<2x16xf32>
    %cst_86 = arith.constant 1.000000e+00 : f32
    %597 = vector.broadcast %cst_86 : f32 to vector<2x16xf32>
    %598 = arith.addf %597, %596 : vector<2x16xf32>
    %599 = arith.divf %597, %598 : vector<2x16xf32>
    %600 = vector.extract_strided_slice %557 {offsets = [0, 80], sizes = [2, 16], strides = [1, 1]} : vector<2x96xf32> to vector<2x16xf32>
    %601 = vector.extract_strided_slice %555 {offsets = [0, 80], sizes = [2, 16], strides = [1, 1]} : vector<2x96xf32> to vector<2x16xf32>
    %602 = arith.mulf %591, %601 : vector<2x16xf32>
    %603 = arith.addf %600, %602 : vector<2x16xf32>
    %604 = math.tanh %603 : vector<2x16xf32>
    %cst_87 = arith.constant 1.000000e+00 : f32
    %605 = vector.broadcast %cst_87 : f32 to vector<2x16xf32>
    %606 = arith.subf %605, %599 : vector<2x16xf32>
    %607 = arith.mulf %606, %604 : vector<2x16xf32>
    %608 = arith.mulf %599, %551 : vector<2x16xf32>
    %609 = arith.addf %607, %608 : vector<2x16xf32>
    %610 = tpu.concatenate %583, %609 in 1 : vector<2x16xf32>, vector<2x16xf32> -> vector<2x32xf32>
    %cst_88 = arith.constant dense<0.000000e+00> : vector<2x96xf32>
    %611 = tpu.matmul %610, %491, %cst_88 {dimension_numbers = #tpu.dot_dimension_numbers<[1], [0], [0], [1], [0, 0, 1, 1], [], []>} : vector<2x32xf32>, vector<32x96xf32>, vector<2x96xf32> -> vector<2x96xf32>
    %612 = vector.broadcast %486 : vector<1x96xf32> to vector<2x96xf32>
    %613 = arith.addf %611, %612 : vector<2x96xf32>
    %614 = vector.extract_strided_slice %490 {offsets = [4, 0], sizes = [2, 96], strides = [1, 1]} : vector<16x96xf32> to vector<2x96xf32>
    %615 = vector.extract_strided_slice %490 {offsets = [10, 0], sizes = [2, 96], strides = [1, 1]} : vector<16x96xf32> to vector<2x96xf32>
    %616 = vector.extract_strided_slice %614 {offsets = [0, 0], sizes = [2, 16], strides = [1, 1]} : vector<2x96xf32> to vector<2x16xf32>
    %617 = vector.extract_strided_slice %613 {offsets = [0, 0], sizes = [2, 16], strides = [1, 1]} : vector<2x96xf32> to vector<2x16xf32>
    %618 = arith.addf %616, %617 : vector<2x16xf32>
    %619 = arith.negf %618 : vector<2x16xf32>
    %620 = math.exp %619 : vector<2x16xf32>
    %cst_89 = arith.constant 1.000000e+00 : f32
    %621 = vector.broadcast %cst_89 : f32 to vector<2x16xf32>
    %622 = arith.addf %621, %620 : vector<2x16xf32>
    %623 = arith.divf %621, %622 : vector<2x16xf32>
    %624 = vector.extract_strided_slice %614 {offsets = [0, 16], sizes = [2, 16], strides = [1, 1]} : vector<2x96xf32> to vector<2x16xf32>
    %625 = vector.extract_strided_slice %613 {offsets = [0, 16], sizes = [2, 16], strides = [1, 1]} : vector<2x96xf32> to vector<2x16xf32>
    %626 = arith.addf %624, %625 : vector<2x16xf32>
    %627 = arith.negf %626 : vector<2x16xf32>
    %628 = math.exp %627 : vector<2x16xf32>
    %cst_90 = arith.constant 1.000000e+00 : f32
    %629 = vector.broadcast %cst_90 : f32 to vector<2x16xf32>
    %630 = arith.addf %629, %628 : vector<2x16xf32>
    %631 = arith.divf %629, %630 : vector<2x16xf32>
    %632 = vector.extract_strided_slice %614 {offsets = [0, 32], sizes = [2, 16], strides = [1, 1]} : vector<2x96xf32> to vector<2x16xf32>
    %633 = vector.extract_strided_slice %613 {offsets = [0, 32], sizes = [2, 16], strides = [1, 1]} : vector<2x96xf32> to vector<2x16xf32>
    %634 = arith.mulf %623, %633 : vector<2x16xf32>
    %635 = arith.addf %632, %634 : vector<2x16xf32>
    %636 = math.tanh %635 : vector<2x16xf32>
    %cst_91 = arith.constant 1.000000e+00 : f32
    %637 = vector.broadcast %cst_91 : f32 to vector<2x16xf32>
    %638 = arith.subf %637, %631 : vector<2x16xf32>
    %639 = arith.mulf %638, %636 : vector<2x16xf32>
    %640 = arith.mulf %631, %583 : vector<2x16xf32>
    %641 = arith.addf %639, %640 : vector<2x16xf32>
    %642 = vector.extract_strided_slice %615 {offsets = [0, 48], sizes = [2, 16], strides = [1, 1]} : vector<2x96xf32> to vector<2x16xf32>
    %643 = vector.extract_strided_slice %613 {offsets = [0, 48], sizes = [2, 16], strides = [1, 1]} : vector<2x96xf32> to vector<2x16xf32>
    %644 = arith.addf %642, %643 : vector<2x16xf32>
    %645 = arith.negf %644 : vector<2x16xf32>
    %646 = math.exp %645 : vector<2x16xf32>
    %cst_92 = arith.constant 1.000000e+00 : f32
    %647 = vector.broadcast %cst_92 : f32 to vector<2x16xf32>
    %648 = arith.addf %647, %646 : vector<2x16xf32>
    %649 = arith.divf %647, %648 : vector<2x16xf32>
    %650 = vector.extract_strided_slice %615 {offsets = [0, 64], sizes = [2, 16], strides = [1, 1]} : vector<2x96xf32> to vector<2x16xf32>
    %651 = vector.extract_strided_slice %613 {offsets = [0, 64], sizes = [2, 16], strides = [1, 1]} : vector<2x96xf32> to vector<2x16xf32>
    %652 = arith.addf %650, %651 : vector<2x16xf32>
    %653 = arith.negf %652 : vector<2x16xf32>
    %654 = math.exp %653 : vector<2x16xf32>
    %cst_93 = arith.constant 1.000000e+00 : f32
    %655 = vector.broadcast %cst_93 : f32 to vector<2x16xf32>
    %656 = arith.addf %655, %654 : vector<2x16xf32>
    %657 = arith.divf %655, %656 : vector<2x16xf32>
    %658 = vector.extract_strided_slice %615 {offsets = [0, 80], sizes = [2, 16], strides = [1, 1]} : vector<2x96xf32> to vector<2x16xf32>
    %659 = vector.extract_strided_slice %613 {offsets = [0, 80], sizes = [2, 16], strides = [1, 1]} : vector<2x96xf32> to vector<2x16xf32>
    %660 = arith.mulf %649, %659 : vector<2x16xf32>
    %661 = arith.addf %658, %660 : vector<2x16xf32>
    %662 = math.tanh %661 : vector<2x16xf32>
    %cst_94 = arith.constant 1.000000e+00 : f32
    %663 = vector.broadcast %cst_94 : f32 to vector<2x16xf32>
    %664 = arith.subf %663, %657 : vector<2x16xf32>
    %665 = arith.mulf %664, %662 : vector<2x16xf32>
    %666 = arith.mulf %657, %609 : vector<2x16xf32>
    %667 = arith.addf %665, %666 : vector<2x16xf32>
    %668 = tpu.concatenate %641, %667 in 1 : vector<2x16xf32>, vector<2x16xf32> -> vector<2x32xf32>
    %cst_95 = arith.constant dense<0.000000e+00> : vector<2x96xf32>
    %669 = tpu.matmul %668, %491, %cst_95 {dimension_numbers = #tpu.dot_dimension_numbers<[1], [0], [0], [1], [0, 0, 1, 1], [], []>} : vector<2x32xf32>, vector<32x96xf32>, vector<2x96xf32> -> vector<2x96xf32>
    %670 = vector.broadcast %486 : vector<1x96xf32> to vector<2x96xf32>
    %671 = arith.addf %669, %670 : vector<2x96xf32>
    %672 = vector.extract_strided_slice %490 {offsets = [6, 0], sizes = [2, 96], strides = [1, 1]} : vector<16x96xf32> to vector<2x96xf32>
    %673 = vector.extract_strided_slice %490 {offsets = [8, 0], sizes = [2, 96], strides = [1, 1]} : vector<16x96xf32> to vector<2x96xf32>
    %674 = vector.extract_strided_slice %672 {offsets = [0, 0], sizes = [2, 16], strides = [1, 1]} : vector<2x96xf32> to vector<2x16xf32>
    %675 = vector.extract_strided_slice %671 {offsets = [0, 0], sizes = [2, 16], strides = [1, 1]} : vector<2x96xf32> to vector<2x16xf32>
    %676 = arith.addf %674, %675 : vector<2x16xf32>
    %677 = arith.negf %676 : vector<2x16xf32>
    %678 = math.exp %677 : vector<2x16xf32>
    %cst_96 = arith.constant 1.000000e+00 : f32
    %679 = vector.broadcast %cst_96 : f32 to vector<2x16xf32>
    %680 = arith.addf %679, %678 : vector<2x16xf32>
    %681 = arith.divf %679, %680 : vector<2x16xf32>
    %682 = vector.extract_strided_slice %672 {offsets = [0, 16], sizes = [2, 16], strides = [1, 1]} : vector<2x96xf32> to vector<2x16xf32>
    %683 = vector.extract_strided_slice %671 {offsets = [0, 16], sizes = [2, 16], strides = [1, 1]} : vector<2x96xf32> to vector<2x16xf32>
    %684 = arith.addf %682, %683 : vector<2x16xf32>
    %685 = arith.negf %684 : vector<2x16xf32>
    %686 = math.exp %685 : vector<2x16xf32>
    %cst_97 = arith.constant 1.000000e+00 : f32
    %687 = vector.broadcast %cst_97 : f32 to vector<2x16xf32>
    %688 = arith.addf %687, %686 : vector<2x16xf32>
    %689 = arith.divf %687, %688 : vector<2x16xf32>
    %690 = vector.extract_strided_slice %672 {offsets = [0, 32], sizes = [2, 16], strides = [1, 1]} : vector<2x96xf32> to vector<2x16xf32>
    %691 = vector.extract_strided_slice %671 {offsets = [0, 32], sizes = [2, 16], strides = [1, 1]} : vector<2x96xf32> to vector<2x16xf32>
    %692 = arith.mulf %681, %691 : vector<2x16xf32>
    %693 = arith.addf %690, %692 : vector<2x16xf32>
    %694 = math.tanh %693 : vector<2x16xf32>
    %cst_98 = arith.constant 1.000000e+00 : f32
    %695 = vector.broadcast %cst_98 : f32 to vector<2x16xf32>
    %696 = arith.subf %695, %689 : vector<2x16xf32>
    %697 = arith.mulf %696, %694 : vector<2x16xf32>
    %698 = arith.mulf %689, %641 : vector<2x16xf32>
    %699 = arith.addf %697, %698 : vector<2x16xf32>
    %700 = vector.extract_strided_slice %673 {offsets = [0, 48], sizes = [2, 16], strides = [1, 1]} : vector<2x96xf32> to vector<2x16xf32>
    %701 = vector.extract_strided_slice %671 {offsets = [0, 48], sizes = [2, 16], strides = [1, 1]} : vector<2x96xf32> to vector<2x16xf32>
    %702 = arith.addf %700, %701 : vector<2x16xf32>
    %703 = arith.negf %702 : vector<2x16xf32>
    %704 = math.exp %703 : vector<2x16xf32>
    %cst_99 = arith.constant 1.000000e+00 : f32
    %705 = vector.broadcast %cst_99 : f32 to vector<2x16xf32>
    %706 = arith.addf %705, %704 : vector<2x16xf32>
    %707 = arith.divf %705, %706 : vector<2x16xf32>
    %708 = vector.extract_strided_slice %673 {offsets = [0, 64], sizes = [2, 16], strides = [1, 1]} : vector<2x96xf32> to vector<2x16xf32>
    %709 = vector.extract_strided_slice %671 {offsets = [0, 64], sizes = [2, 16], strides = [1, 1]} : vector<2x96xf32> to vector<2x16xf32>
    %710 = arith.addf %708, %709 : vector<2x16xf32>
    %711 = arith.negf %710 : vector<2x16xf32>
    %712 = math.exp %711 : vector<2x16xf32>
    %cst_100 = arith.constant 1.000000e+00 : f32
    %713 = vector.broadcast %cst_100 : f32 to vector<2x16xf32>
    %714 = arith.addf %713, %712 : vector<2x16xf32>
    %715 = arith.divf %713, %714 : vector<2x16xf32>
    %716 = vector.extract_strided_slice %673 {offsets = [0, 80], sizes = [2, 16], strides = [1, 1]} : vector<2x96xf32> to vector<2x16xf32>
    %717 = vector.extract_strided_slice %671 {offsets = [0, 80], sizes = [2, 16], strides = [1, 1]} : vector<2x96xf32> to vector<2x16xf32>
    %718 = arith.mulf %707, %717 : vector<2x16xf32>
    %719 = arith.addf %716, %718 : vector<2x16xf32>
    %720 = math.tanh %719 : vector<2x16xf32>
    %cst_101 = arith.constant 1.000000e+00 : f32
    %721 = vector.broadcast %cst_101 : f32 to vector<2x16xf32>
    %722 = arith.subf %721, %715 : vector<2x16xf32>
    %723 = arith.mulf %722, %720 : vector<2x16xf32>
    %724 = arith.mulf %715, %667 : vector<2x16xf32>
    %725 = arith.addf %723, %724 : vector<2x16xf32>
    %726 = tpu.concatenate %699, %725 in 1 : vector<2x16xf32>, vector<2x16xf32> -> vector<2x32xf32>
    %cst_102 = arith.constant dense<0.000000e+00> : vector<2x96xf32>
    %727 = tpu.matmul %726, %491, %cst_102 {dimension_numbers = #tpu.dot_dimension_numbers<[1], [0], [0], [1], [0, 0, 1, 1], [], []>} : vector<2x32xf32>, vector<32x96xf32>, vector<2x96xf32> -> vector<2x96xf32>
    %728 = vector.broadcast %486 : vector<1x96xf32> to vector<2x96xf32>
    %729 = arith.addf %727, %728 : vector<2x96xf32>
    %730 = vector.extract_strided_slice %490 {offsets = [8, 0], sizes = [2, 96], strides = [1, 1]} : vector<16x96xf32> to vector<2x96xf32>
    %731 = vector.extract_strided_slice %490 {offsets = [6, 0], sizes = [2, 96], strides = [1, 1]} : vector<16x96xf32> to vector<2x96xf32>
    %732 = vector.extract_strided_slice %730 {offsets = [0, 0], sizes = [2, 16], strides = [1, 1]} : vector<2x96xf32> to vector<2x16xf32>
    %733 = vector.extract_strided_slice %729 {offsets = [0, 0], sizes = [2, 16], strides = [1, 1]} : vector<2x96xf32> to vector<2x16xf32>
    %734 = arith.addf %732, %733 : vector<2x16xf32>
    %735 = arith.negf %734 : vector<2x16xf32>
    %736 = math.exp %735 : vector<2x16xf32>
    %cst_103 = arith.constant 1.000000e+00 : f32
    %737 = vector.broadcast %cst_103 : f32 to vector<2x16xf32>
    %738 = arith.addf %737, %736 : vector<2x16xf32>
    %739 = arith.divf %737, %738 : vector<2x16xf32>
    %740 = vector.extract_strided_slice %730 {offsets = [0, 16], sizes = [2, 16], strides = [1, 1]} : vector<2x96xf32> to vector<2x16xf32>
    %741 = vector.extract_strided_slice %729 {offsets = [0, 16], sizes = [2, 16], strides = [1, 1]} : vector<2x96xf32> to vector<2x16xf32>
    %742 = arith.addf %740, %741 : vector<2x16xf32>
    %743 = arith.negf %742 : vector<2x16xf32>
    %744 = math.exp %743 : vector<2x16xf32>
    %cst_104 = arith.constant 1.000000e+00 : f32
    %745 = vector.broadcast %cst_104 : f32 to vector<2x16xf32>
    %746 = arith.addf %745, %744 : vector<2x16xf32>
    %747 = arith.divf %745, %746 : vector<2x16xf32>
    %748 = vector.extract_strided_slice %730 {offsets = [0, 32], sizes = [2, 16], strides = [1, 1]} : vector<2x96xf32> to vector<2x16xf32>
    %749 = vector.extract_strided_slice %729 {offsets = [0, 32], sizes = [2, 16], strides = [1, 1]} : vector<2x96xf32> to vector<2x16xf32>
    %750 = arith.mulf %739, %749 : vector<2x16xf32>
    %751 = arith.addf %748, %750 : vector<2x16xf32>
    %752 = math.tanh %751 : vector<2x16xf32>
    %cst_105 = arith.constant 1.000000e+00 : f32
    %753 = vector.broadcast %cst_105 : f32 to vector<2x16xf32>
    %754 = arith.subf %753, %747 : vector<2x16xf32>
    %755 = arith.mulf %754, %752 : vector<2x16xf32>
    %756 = arith.mulf %747, %699 : vector<2x16xf32>
    %757 = arith.addf %755, %756 : vector<2x16xf32>
    %758 = vector.extract_strided_slice %731 {offsets = [0, 48], sizes = [2, 16], strides = [1, 1]} : vector<2x96xf32> to vector<2x16xf32>
    %759 = vector.extract_strided_slice %729 {offsets = [0, 48], sizes = [2, 16], strides = [1, 1]} : vector<2x96xf32> to vector<2x16xf32>
    %760 = arith.addf %758, %759 : vector<2x16xf32>
    %761 = arith.negf %760 : vector<2x16xf32>
    %762 = math.exp %761 : vector<2x16xf32>
    %cst_106 = arith.constant 1.000000e+00 : f32
    %763 = vector.broadcast %cst_106 : f32 to vector<2x16xf32>
    %764 = arith.addf %763, %762 : vector<2x16xf32>
    %765 = arith.divf %763, %764 : vector<2x16xf32>
    %766 = vector.extract_strided_slice %731 {offsets = [0, 64], sizes = [2, 16], strides = [1, 1]} : vector<2x96xf32> to vector<2x16xf32>
    %767 = vector.extract_strided_slice %729 {offsets = [0, 64], sizes = [2, 16], strides = [1, 1]} : vector<2x96xf32> to vector<2x16xf32>
    %768 = arith.addf %766, %767 : vector<2x16xf32>
    %769 = arith.negf %768 : vector<2x16xf32>
    %770 = math.exp %769 : vector<2x16xf32>
    %cst_107 = arith.constant 1.000000e+00 : f32
    %771 = vector.broadcast %cst_107 : f32 to vector<2x16xf32>
    %772 = arith.addf %771, %770 : vector<2x16xf32>
    %773 = arith.divf %771, %772 : vector<2x16xf32>
    %774 = vector.extract_strided_slice %731 {offsets = [0, 80], sizes = [2, 16], strides = [1, 1]} : vector<2x96xf32> to vector<2x16xf32>
    %775 = vector.extract_strided_slice %729 {offsets = [0, 80], sizes = [2, 16], strides = [1, 1]} : vector<2x96xf32> to vector<2x16xf32>
    %776 = arith.mulf %765, %775 : vector<2x16xf32>
    %777 = arith.addf %774, %776 : vector<2x16xf32>
    %778 = math.tanh %777 : vector<2x16xf32>
    %cst_108 = arith.constant 1.000000e+00 : f32
    %779 = vector.broadcast %cst_108 : f32 to vector<2x16xf32>
    %780 = arith.subf %779, %773 : vector<2x16xf32>
    %781 = arith.mulf %780, %778 : vector<2x16xf32>
    %782 = arith.mulf %773, %725 : vector<2x16xf32>
    %783 = arith.addf %781, %782 : vector<2x16xf32>
    %784 = tpu.concatenate %757, %783 in 1 : vector<2x16xf32>, vector<2x16xf32> -> vector<2x32xf32>
    %cst_109 = arith.constant dense<0.000000e+00> : vector<2x96xf32>
    %785 = tpu.matmul %784, %491, %cst_109 {dimension_numbers = #tpu.dot_dimension_numbers<[1], [0], [0], [1], [0, 0, 1, 1], [], []>} : vector<2x32xf32>, vector<32x96xf32>, vector<2x96xf32> -> vector<2x96xf32>
    %786 = vector.broadcast %486 : vector<1x96xf32> to vector<2x96xf32>
    %787 = arith.addf %785, %786 : vector<2x96xf32>
    %788 = vector.extract_strided_slice %490 {offsets = [10, 0], sizes = [2, 96], strides = [1, 1]} : vector<16x96xf32> to vector<2x96xf32>
    %789 = vector.extract_strided_slice %490 {offsets = [4, 0], sizes = [2, 96], strides = [1, 1]} : vector<16x96xf32> to vector<2x96xf32>
    %790 = vector.extract_strided_slice %788 {offsets = [0, 0], sizes = [2, 16], strides = [1, 1]} : vector<2x96xf32> to vector<2x16xf32>
    %791 = vector.extract_strided_slice %787 {offsets = [0, 0], sizes = [2, 16], strides = [1, 1]} : vector<2x96xf32> to vector<2x16xf32>
    %792 = arith.addf %790, %791 : vector<2x16xf32>
    %793 = arith.negf %792 : vector<2x16xf32>
    %794 = math.exp %793 : vector<2x16xf32>
    %cst_110 = arith.constant 1.000000e+00 : f32
    %795 = vector.broadcast %cst_110 : f32 to vector<2x16xf32>
    %796 = arith.addf %795, %794 : vector<2x16xf32>
    %797 = arith.divf %795, %796 : vector<2x16xf32>
    %798 = vector.extract_strided_slice %788 {offsets = [0, 16], sizes = [2, 16], strides = [1, 1]} : vector<2x96xf32> to vector<2x16xf32>
    %799 = vector.extract_strided_slice %787 {offsets = [0, 16], sizes = [2, 16], strides = [1, 1]} : vector<2x96xf32> to vector<2x16xf32>
    %800 = arith.addf %798, %799 : vector<2x16xf32>
    %801 = arith.negf %800 : vector<2x16xf32>
    %802 = math.exp %801 : vector<2x16xf32>
    %cst_111 = arith.constant 1.000000e+00 : f32
    %803 = vector.broadcast %cst_111 : f32 to vector<2x16xf32>
    %804 = arith.addf %803, %802 : vector<2x16xf32>
    %805 = arith.divf %803, %804 : vector<2x16xf32>
    %806 = vector.extract_strided_slice %788 {offsets = [0, 32], sizes = [2, 16], strides = [1, 1]} : vector<2x96xf32> to vector<2x16xf32>
    %807 = vector.extract_strided_slice %787 {offsets = [0, 32], sizes = [2, 16], strides = [1, 1]} : vector<2x96xf32> to vector<2x16xf32>
    %808 = arith.mulf %797, %807 : vector<2x16xf32>
    %809 = arith.addf %806, %808 : vector<2x16xf32>
    %810 = math.tanh %809 : vector<2x16xf32>
    %cst_112 = arith.constant 1.000000e+00 : f32
    %811 = vector.broadcast %cst_112 : f32 to vector<2x16xf32>
    %812 = arith.subf %811, %805 : vector<2x16xf32>
    %813 = arith.mulf %812, %810 : vector<2x16xf32>
    %814 = arith.mulf %805, %757 : vector<2x16xf32>
    %815 = arith.addf %813, %814 : vector<2x16xf32>
    %816 = vector.extract_strided_slice %789 {offsets = [0, 48], sizes = [2, 16], strides = [1, 1]} : vector<2x96xf32> to vector<2x16xf32>
    %817 = vector.extract_strided_slice %787 {offsets = [0, 48], sizes = [2, 16], strides = [1, 1]} : vector<2x96xf32> to vector<2x16xf32>
    %818 = arith.addf %816, %817 : vector<2x16xf32>
    %819 = arith.negf %818 : vector<2x16xf32>
    %820 = math.exp %819 : vector<2x16xf32>
    %cst_113 = arith.constant 1.000000e+00 : f32
    %821 = vector.broadcast %cst_113 : f32 to vector<2x16xf32>
    %822 = arith.addf %821, %820 : vector<2x16xf32>
    %823 = arith.divf %821, %822 : vector<2x16xf32>
    %824 = vector.extract_strided_slice %789 {offsets = [0, 64], sizes = [2, 16], strides = [1, 1]} : vector<2x96xf32> to vector<2x16xf32>
    %825 = vector.extract_strided_slice %787 {offsets = [0, 64], sizes = [2, 16], strides = [1, 1]} : vector<2x96xf32> to vector<2x16xf32>
    %826 = arith.addf %824, %825 : vector<2x16xf32>
    %827 = arith.negf %826 : vector<2x16xf32>
    %828 = math.exp %827 : vector<2x16xf32>
    %cst_114 = arith.constant 1.000000e+00 : f32
    %829 = vector.broadcast %cst_114 : f32 to vector<2x16xf32>
    %830 = arith.addf %829, %828 : vector<2x16xf32>
    %831 = arith.divf %829, %830 : vector<2x16xf32>
    %832 = vector.extract_strided_slice %789 {offsets = [0, 80], sizes = [2, 16], strides = [1, 1]} : vector<2x96xf32> to vector<2x16xf32>
    %833 = vector.extract_strided_slice %787 {offsets = [0, 80], sizes = [2, 16], strides = [1, 1]} : vector<2x96xf32> to vector<2x16xf32>
    %834 = arith.mulf %823, %833 : vector<2x16xf32>
    %835 = arith.addf %832, %834 : vector<2x16xf32>
    %836 = math.tanh %835 : vector<2x16xf32>
    %cst_115 = arith.constant 1.000000e+00 : f32
    %837 = vector.broadcast %cst_115 : f32 to vector<2x16xf32>
    %838 = arith.subf %837, %831 : vector<2x16xf32>
    %839 = arith.mulf %838, %836 : vector<2x16xf32>
    %840 = arith.mulf %831, %783 : vector<2x16xf32>
    %841 = arith.addf %839, %840 : vector<2x16xf32>
    %842 = tpu.concatenate %815, %841 in 1 : vector<2x16xf32>, vector<2x16xf32> -> vector<2x32xf32>
    %cst_116 = arith.constant dense<0.000000e+00> : vector<2x96xf32>
    %843 = tpu.matmul %842, %491, %cst_116 {dimension_numbers = #tpu.dot_dimension_numbers<[1], [0], [0], [1], [0, 0, 1, 1], [], []>} : vector<2x32xf32>, vector<32x96xf32>, vector<2x96xf32> -> vector<2x96xf32>
    %844 = vector.broadcast %486 : vector<1x96xf32> to vector<2x96xf32>
    %845 = arith.addf %843, %844 : vector<2x96xf32>
    %846 = vector.extract_strided_slice %490 {offsets = [12, 0], sizes = [2, 96], strides = [1, 1]} : vector<16x96xf32> to vector<2x96xf32>
    %847 = vector.extract_strided_slice %490 {offsets = [2, 0], sizes = [2, 96], strides = [1, 1]} : vector<16x96xf32> to vector<2x96xf32>
    %848 = vector.extract_strided_slice %846 {offsets = [0, 0], sizes = [2, 16], strides = [1, 1]} : vector<2x96xf32> to vector<2x16xf32>
    %849 = vector.extract_strided_slice %845 {offsets = [0, 0], sizes = [2, 16], strides = [1, 1]} : vector<2x96xf32> to vector<2x16xf32>
    %850 = arith.addf %848, %849 : vector<2x16xf32>
    %851 = arith.negf %850 : vector<2x16xf32>
    %852 = math.exp %851 : vector<2x16xf32>
    %cst_117 = arith.constant 1.000000e+00 : f32
    %853 = vector.broadcast %cst_117 : f32 to vector<2x16xf32>
    %854 = arith.addf %853, %852 : vector<2x16xf32>
    %855 = arith.divf %853, %854 : vector<2x16xf32>
    %856 = vector.extract_strided_slice %846 {offsets = [0, 16], sizes = [2, 16], strides = [1, 1]} : vector<2x96xf32> to vector<2x16xf32>
    %857 = vector.extract_strided_slice %845 {offsets = [0, 16], sizes = [2, 16], strides = [1, 1]} : vector<2x96xf32> to vector<2x16xf32>
    %858 = arith.addf %856, %857 : vector<2x16xf32>
    %859 = arith.negf %858 : vector<2x16xf32>
    %860 = math.exp %859 : vector<2x16xf32>
    %cst_118 = arith.constant 1.000000e+00 : f32
    %861 = vector.broadcast %cst_118 : f32 to vector<2x16xf32>
    %862 = arith.addf %861, %860 : vector<2x16xf32>
    %863 = arith.divf %861, %862 : vector<2x16xf32>
    %864 = vector.extract_strided_slice %846 {offsets = [0, 32], sizes = [2, 16], strides = [1, 1]} : vector<2x96xf32> to vector<2x16xf32>
    %865 = vector.extract_strided_slice %845 {offsets = [0, 32], sizes = [2, 16], strides = [1, 1]} : vector<2x96xf32> to vector<2x16xf32>
    %866 = arith.mulf %855, %865 : vector<2x16xf32>
    %867 = arith.addf %864, %866 : vector<2x16xf32>
    %868 = math.tanh %867 : vector<2x16xf32>
    %cst_119 = arith.constant 1.000000e+00 : f32
    %869 = vector.broadcast %cst_119 : f32 to vector<2x16xf32>
    %870 = arith.subf %869, %863 : vector<2x16xf32>
    %871 = arith.mulf %870, %868 : vector<2x16xf32>
    %872 = arith.mulf %863, %815 : vector<2x16xf32>
    %873 = arith.addf %871, %872 : vector<2x16xf32>
    %874 = vector.extract_strided_slice %847 {offsets = [0, 48], sizes = [2, 16], strides = [1, 1]} : vector<2x96xf32> to vector<2x16xf32>
    %875 = vector.extract_strided_slice %845 {offsets = [0, 48], sizes = [2, 16], strides = [1, 1]} : vector<2x96xf32> to vector<2x16xf32>
    %876 = arith.addf %874, %875 : vector<2x16xf32>
    %877 = arith.negf %876 : vector<2x16xf32>
    %878 = math.exp %877 : vector<2x16xf32>
    %cst_120 = arith.constant 1.000000e+00 : f32
    %879 = vector.broadcast %cst_120 : f32 to vector<2x16xf32>
    %880 = arith.addf %879, %878 : vector<2x16xf32>
    %881 = arith.divf %879, %880 : vector<2x16xf32>
    %882 = vector.extract_strided_slice %847 {offsets = [0, 64], sizes = [2, 16], strides = [1, 1]} : vector<2x96xf32> to vector<2x16xf32>
    %883 = vector.extract_strided_slice %845 {offsets = [0, 64], sizes = [2, 16], strides = [1, 1]} : vector<2x96xf32> to vector<2x16xf32>
    %884 = arith.addf %882, %883 : vector<2x16xf32>
    %885 = arith.negf %884 : vector<2x16xf32>
    %886 = math.exp %885 : vector<2x16xf32>
    %cst_121 = arith.constant 1.000000e+00 : f32
    %887 = vector.broadcast %cst_121 : f32 to vector<2x16xf32>
    %888 = arith.addf %887, %886 : vector<2x16xf32>
    %889 = arith.divf %887, %888 : vector<2x16xf32>
    %890 = vector.extract_strided_slice %847 {offsets = [0, 80], sizes = [2, 16], strides = [1, 1]} : vector<2x96xf32> to vector<2x16xf32>
    %891 = vector.extract_strided_slice %845 {offsets = [0, 80], sizes = [2, 16], strides = [1, 1]} : vector<2x96xf32> to vector<2x16xf32>
    %892 = arith.mulf %881, %891 : vector<2x16xf32>
    %893 = arith.addf %890, %892 : vector<2x16xf32>
    %894 = math.tanh %893 : vector<2x16xf32>
    %cst_122 = arith.constant 1.000000e+00 : f32
    %895 = vector.broadcast %cst_122 : f32 to vector<2x16xf32>
    %896 = arith.subf %895, %889 : vector<2x16xf32>
    %897 = arith.mulf %896, %894 : vector<2x16xf32>
    %898 = arith.mulf %889, %841 : vector<2x16xf32>
    %899 = arith.addf %897, %898 : vector<2x16xf32>
    %900 = tpu.concatenate %873, %899 in 1 : vector<2x16xf32>, vector<2x16xf32> -> vector<2x32xf32>
    %cst_123 = arith.constant dense<0.000000e+00> : vector<2x96xf32>
    %901 = tpu.matmul %900, %491, %cst_123 {dimension_numbers = #tpu.dot_dimension_numbers<[1], [0], [0], [1], [0, 0, 1, 1], [], []>} : vector<2x32xf32>, vector<32x96xf32>, vector<2x96xf32> -> vector<2x96xf32>
    %902 = vector.broadcast %486 : vector<1x96xf32> to vector<2x96xf32>
    %903 = arith.addf %901, %902 : vector<2x96xf32>
    %904 = vector.extract_strided_slice %490 {offsets = [14, 0], sizes = [2, 96], strides = [1, 1]} : vector<16x96xf32> to vector<2x96xf32>
    %905 = vector.extract_strided_slice %490 {offsets = [0, 0], sizes = [2, 96], strides = [1, 1]} : vector<16x96xf32> to vector<2x96xf32>
    %906 = vector.extract_strided_slice %904 {offsets = [0, 0], sizes = [2, 16], strides = [1, 1]} : vector<2x96xf32> to vector<2x16xf32>
    %907 = vector.extract_strided_slice %903 {offsets = [0, 0], sizes = [2, 16], strides = [1, 1]} : vector<2x96xf32> to vector<2x16xf32>
    %908 = arith.addf %906, %907 : vector<2x16xf32>
    %909 = arith.negf %908 : vector<2x16xf32>
    %910 = math.exp %909 : vector<2x16xf32>
    %cst_124 = arith.constant 1.000000e+00 : f32
    %911 = vector.broadcast %cst_124 : f32 to vector<2x16xf32>
    %912 = arith.addf %911, %910 : vector<2x16xf32>
    %913 = arith.divf %911, %912 : vector<2x16xf32>
    %914 = vector.extract_strided_slice %904 {offsets = [0, 16], sizes = [2, 16], strides = [1, 1]} : vector<2x96xf32> to vector<2x16xf32>
    %915 = vector.extract_strided_slice %903 {offsets = [0, 16], sizes = [2, 16], strides = [1, 1]} : vector<2x96xf32> to vector<2x16xf32>
    %916 = arith.addf %914, %915 : vector<2x16xf32>
    %917 = arith.negf %916 : vector<2x16xf32>
    %918 = math.exp %917 : vector<2x16xf32>
    %cst_125 = arith.constant 1.000000e+00 : f32
    %919 = vector.broadcast %cst_125 : f32 to vector<2x16xf32>
    %920 = arith.addf %919, %918 : vector<2x16xf32>
    %921 = arith.divf %919, %920 : vector<2x16xf32>
    %922 = vector.extract_strided_slice %904 {offsets = [0, 32], sizes = [2, 16], strides = [1, 1]} : vector<2x96xf32> to vector<2x16xf32>
    %923 = vector.extract_strided_slice %903 {offsets = [0, 32], sizes = [2, 16], strides = [1, 1]} : vector<2x96xf32> to vector<2x16xf32>
    %924 = arith.mulf %913, %923 : vector<2x16xf32>
    %925 = arith.addf %922, %924 : vector<2x16xf32>
    %926 = math.tanh %925 : vector<2x16xf32>
    %cst_126 = arith.constant 1.000000e+00 : f32
    %927 = vector.broadcast %cst_126 : f32 to vector<2x16xf32>
    %928 = arith.subf %927, %921 : vector<2x16xf32>
    %929 = arith.mulf %928, %926 : vector<2x16xf32>
    %930 = arith.mulf %921, %873 : vector<2x16xf32>
    %931 = arith.addf %929, %930 : vector<2x16xf32>
    %932 = vector.extract_strided_slice %905 {offsets = [0, 48], sizes = [2, 16], strides = [1, 1]} : vector<2x96xf32> to vector<2x16xf32>
    %933 = vector.extract_strided_slice %903 {offsets = [0, 48], sizes = [2, 16], strides = [1, 1]} : vector<2x96xf32> to vector<2x16xf32>
    %934 = arith.addf %932, %933 : vector<2x16xf32>
    %935 = arith.negf %934 : vector<2x16xf32>
    %936 = math.exp %935 : vector<2x16xf32>
    %cst_127 = arith.constant 1.000000e+00 : f32
    %937 = vector.broadcast %cst_127 : f32 to vector<2x16xf32>
    %938 = arith.addf %937, %936 : vector<2x16xf32>
    %939 = arith.divf %937, %938 : vector<2x16xf32>
    %940 = vector.extract_strided_slice %905 {offsets = [0, 64], sizes = [2, 16], strides = [1, 1]} : vector<2x96xf32> to vector<2x16xf32>
    %941 = vector.extract_strided_slice %903 {offsets = [0, 64], sizes = [2, 16], strides = [1, 1]} : vector<2x96xf32> to vector<2x16xf32>
    %942 = arith.addf %940, %941 : vector<2x16xf32>
    %943 = arith.negf %942 : vector<2x16xf32>
    %944 = math.exp %943 : vector<2x16xf32>
    %cst_128 = arith.constant 1.000000e+00 : f32
    %945 = vector.broadcast %cst_128 : f32 to vector<2x16xf32>
    %946 = arith.addf %945, %944 : vector<2x16xf32>
    %947 = arith.divf %945, %946 : vector<2x16xf32>
    %948 = vector.extract_strided_slice %905 {offsets = [0, 80], sizes = [2, 16], strides = [1, 1]} : vector<2x96xf32> to vector<2x16xf32>
    %949 = vector.extract_strided_slice %903 {offsets = [0, 80], sizes = [2, 16], strides = [1, 1]} : vector<2x96xf32> to vector<2x16xf32>
    %950 = arith.mulf %939, %949 : vector<2x16xf32>
    %951 = arith.addf %948, %950 : vector<2x16xf32>
    %952 = math.tanh %951 : vector<2x16xf32>
    %cst_129 = arith.constant 1.000000e+00 : f32
    %953 = vector.broadcast %cst_129 : f32 to vector<2x16xf32>
    %954 = arith.subf %953, %947 : vector<2x16xf32>
    %955 = arith.mulf %954, %952 : vector<2x16xf32>
    %956 = arith.mulf %947, %899 : vector<2x16xf32>
    %957 = arith.addf %955, %956 : vector<2x16xf32>
    %958 = tpu.concatenate %525, %957 in 1 : vector<2x16xf32>, vector<2x16xf32> -> vector<2x32xf32>
    %959 = tpu.concatenate %583, %899 in 1 : vector<2x16xf32>, vector<2x16xf32> -> vector<2x32xf32>
    %960 = tpu.concatenate %641, %841 in 1 : vector<2x16xf32>, vector<2x16xf32> -> vector<2x32xf32>
    %961 = tpu.concatenate %699, %783 in 1 : vector<2x16xf32>, vector<2x16xf32> -> vector<2x32xf32>
    %962 = tpu.concatenate %757, %725 in 1 : vector<2x16xf32>, vector<2x16xf32> -> vector<2x32xf32>
    %963 = tpu.concatenate %815, %667 in 1 : vector<2x16xf32>, vector<2x16xf32> -> vector<2x32xf32>
    %964 = tpu.concatenate %873, %609 in 1 : vector<2x16xf32>, vector<2x16xf32> -> vector<2x32xf32>
    %965 = tpu.concatenate %931, %551 in 1 : vector<2x16xf32>, vector<2x16xf32> -> vector<2x32xf32>
    %966 = tpu.concatenate %958, %959, %960, %961, %962, %963, %964, %965 in 0 : vector<2x32xf32>, vector<2x32xf32>, vector<2x32xf32>, vector<2x32xf32>, vector<2x32xf32>, vector<2x32xf32>, vector<2x32xf32>, vector<2x32xf32> -> vector<16x32xf32>
    %c0_130 = arith.constant 0 : index
    %c0_131 = arith.constant 0 : index
    %967 = vector.load %arg6[%c0_130, %c0_131] : memref<32x25xf32, #tpu.memory_space<vmem>>, vector<32x25xf32>
    %cst_132 = arith.constant dense<0.000000e+00> : vector<16x25xf32>
    %968 = tpu.matmul %966, %967, %cst_132 {dimension_numbers = #tpu.dot_dimension_numbers<[1], [0], [0], [1], [0, 0, 1, 1], [], []>} : vector<16x32xf32>, vector<32x25xf32>, vector<16x25xf32> -> vector<16x25xf32>
    %969 = vector.extract_strided_slice %968 {offsets = [0, 0], sizes = [2, 25], strides = [1, 1]} : vector<16x25xf32> to vector<2x25xf32>
    %970 = vector.extract_strided_slice %968 {offsets = [2, 0], sizes = [2, 25], strides = [1, 1]} : vector<16x25xf32> to vector<2x25xf32>
    %971 = vector.extract_strided_slice %968 {offsets = [4, 0], sizes = [2, 25], strides = [1, 1]} : vector<16x25xf32> to vector<2x25xf32>
    %972 = vector.extract_strided_slice %968 {offsets = [6, 0], sizes = [2, 25], strides = [1, 1]} : vector<16x25xf32> to vector<2x25xf32>
    %973 = vector.extract_strided_slice %968 {offsets = [8, 0], sizes = [2, 25], strides = [1, 1]} : vector<16x25xf32> to vector<2x25xf32>
    %974 = vector.extract_strided_slice %968 {offsets = [10, 0], sizes = [2, 25], strides = [1, 1]} : vector<16x25xf32> to vector<2x25xf32>
    %975 = vector.extract_strided_slice %968 {offsets = [12, 0], sizes = [2, 25], strides = [1, 1]} : vector<16x25xf32> to vector<2x25xf32>
    %976 = vector.extract_strided_slice %968 {offsets = [14, 0], sizes = [2, 25], strides = [1, 1]} : vector<16x25xf32> to vector<2x25xf32>
    %977 = vector.shape_cast %969 : vector<2x25xf32> to vector<1x2x25xf32>
    %978 = vector.shape_cast %970 : vector<2x25xf32> to vector<1x2x25xf32>
    %979 = vector.shape_cast %971 : vector<2x25xf32> to vector<1x2x25xf32>
    %980 = vector.shape_cast %972 : vector<2x25xf32> to vector<1x2x25xf32>
    %981 = vector.shape_cast %973 : vector<2x25xf32> to vector<1x2x25xf32>
    %982 = vector.shape_cast %974 : vector<2x25xf32> to vector<1x2x25xf32>
    %983 = vector.shape_cast %975 : vector<2x25xf32> to vector<1x2x25xf32>
    %984 = vector.shape_cast %976 : vector<2x25xf32> to vector<1x2x25xf32>
    %985 = tpu.concatenate %977, %978, %979, %980, %981, %982, %983, %984 in 0 : vector<1x2x25xf32>, vector<1x2x25xf32>, vector<1x2x25xf32>, vector<1x2x25xf32>, vector<1x2x25xf32>, vector<1x2x25xf32>, vector<1x2x25xf32>, vector<1x2x25xf32> -> vector<8x2x25xf32>
    %986 = vector.extract_strided_slice %985 {offsets = [0, 0, 0], sizes = [8, 2, 5], strides = [1, 1, 1]} : vector<8x2x25xf32> to vector<8x2x5xf32>
    %987 = vector.extract_strided_slice %985 {offsets = [0, 0, 5], sizes = [8, 2, 5], strides = [1, 1, 1]} : vector<8x2x25xf32> to vector<8x2x5xf32>
    %988 = vector.extract_strided_slice %985 {offsets = [0, 0, 10], sizes = [8, 2, 5], strides = [1, 1, 1]} : vector<8x2x25xf32> to vector<8x2x5xf32>
    %989 = vector.extract_strided_slice %985 {offsets = [0, 0, 15], sizes = [8, 2, 5], strides = [1, 1, 1]} : vector<8x2x25xf32> to vector<8x2x5xf32>
    %990 = vector.extract_strided_slice %985 {offsets = [0, 0, 20], sizes = [8, 2, 5], strides = [1, 1, 1]} : vector<8x2x25xf32> to vector<8x2x5xf32>
    %cst_133 = arith.constant 0.000000e+00 : f32
    %991 = vector.broadcast %cst_133 : f32 to vector<8x2x1xf32>
    %cst_134 = arith.constant 0.000000e+00 : f32
    %992 = vector.broadcast %cst_134 : f32 to vector<8x2x1xf32>
    %cst_135 = arith.constant 0.000000e+00 : f32
    %993 = vector.broadcast %cst_135 : f32 to vector<8x2x1xf32>
    %cst_136 = arith.constant 0.000000e+00 : f32
    %994 = vector.broadcast %cst_136 : f32 to vector<8x2x1xf32>
    %cst_137 = arith.constant 0.000000e+00 : f32
    %995 = vector.broadcast %cst_137 : f32 to vector<8x2x1xf32>
    %996 = arith.maximumf %991, %992 : vector<8x2x1xf32>
    %997 = arith.maximumf %996, %993 : vector<8x2x1xf32>
    %998 = arith.maximumf %997, %994 : vector<8x2x1xf32>
    %999 = arith.maximumf %998, %995 : vector<8x2x1xf32>
    %1000 = arith.subf %991, %999 : vector<8x2x1xf32>
    %1001 = math.exp %1000 : vector<8x2x1xf32>
    %1002 = arith.subf %992, %999 : vector<8x2x1xf32>
    %1003 = math.exp %1002 : vector<8x2x1xf32>
    %1004 = arith.subf %993, %999 : vector<8x2x1xf32>
    %1005 = math.exp %1004 : vector<8x2x1xf32>
    %1006 = arith.subf %994, %999 : vector<8x2x1xf32>
    %1007 = math.exp %1006 : vector<8x2x1xf32>
    %1008 = arith.subf %995, %999 : vector<8x2x1xf32>
    %1009 = math.exp %1008 : vector<8x2x1xf32>
    %1010 = arith.addf %1001, %1003 : vector<8x2x1xf32>
    %1011 = arith.addf %1010, %1005 : vector<8x2x1xf32>
    %1012 = arith.addf %1011, %1007 : vector<8x2x1xf32>
    %1013 = arith.addf %1012, %1009 : vector<8x2x1xf32>
    %1014 = tpu.reciprocal %1013 {approx = true} : vector<8x2x1xf32> -> vector<8x2x1xf32>
    %1015 = arith.mulf %1001, %1014 : vector<8x2x1xf32>
    %1016 = vector.broadcast %1015 : vector<8x2x1xf32> to vector<8x2x5xf32>
    %1017 = arith.mulf %1016, %986 : vector<8x2x5xf32>
    %cst_138 = arith.constant dense<0.000000e+00> : vector<2x5xf32>
    %1018 = vector.multi_reduction <add>, %1017, %cst_138 [0] : vector<8x2x5xf32> to vector<2x5xf32>
    %1019 = arith.mulf %1018, %1018 : vector<2x5xf32>
    %cst_139 = arith.constant dense<0.000000e+00> : vector<2xf32>
    %1020 = vector.multi_reduction <add>, %1019, %cst_139 [1] : vector<2x5xf32> to vector<2xf32>
    %1021 = vector.shape_cast %1020 : vector<2xf32> to vector<2x1xf32>
    %cst_140 = arith.constant 1.000000e-07 : f32
    %1022 = vector.broadcast %cst_140 : f32 to vector<2x1xf32>
    %1023 = arith.addf %1021, %1022 : vector<2x1xf32>
    %1024 = math.rsqrt %1023 : vector<2x1xf32>
    %1025 = vector.broadcast %1024 : vector<2x1xf32> to vector<2x5xf32>
    %1026 = arith.mulf %1018, %1025 : vector<2x5xf32>
    %1027 = arith.mulf %1003, %1014 : vector<8x2x1xf32>
    %1028 = vector.broadcast %1027 : vector<8x2x1xf32> to vector<8x2x5xf32>
    %1029 = arith.mulf %1028, %987 : vector<8x2x5xf32>
    %cst_141 = arith.constant dense<0.000000e+00> : vector<2x5xf32>
    %1030 = vector.multi_reduction <add>, %1029, %cst_141 [0] : vector<8x2x5xf32> to vector<2x5xf32>
    %1031 = arith.mulf %1030, %1030 : vector<2x5xf32>
    %cst_142 = arith.constant dense<0.000000e+00> : vector<2xf32>
    %1032 = vector.multi_reduction <add>, %1031, %cst_142 [1] : vector<2x5xf32> to vector<2xf32>
    %1033 = vector.shape_cast %1032 : vector<2xf32> to vector<2x1xf32>
    %cst_143 = arith.constant 1.000000e-07 : f32
    %1034 = vector.broadcast %cst_143 : f32 to vector<2x1xf32>
    %1035 = arith.addf %1033, %1034 : vector<2x1xf32>
    %1036 = math.rsqrt %1035 : vector<2x1xf32>
    %1037 = vector.broadcast %1036 : vector<2x1xf32> to vector<2x5xf32>
    %1038 = arith.mulf %1030, %1037 : vector<2x5xf32>
    %1039 = arith.mulf %1005, %1014 : vector<8x2x1xf32>
    %1040 = vector.broadcast %1039 : vector<8x2x1xf32> to vector<8x2x5xf32>
    %1041 = arith.mulf %1040, %988 : vector<8x2x5xf32>
    %cst_144 = arith.constant dense<0.000000e+00> : vector<2x5xf32>
    %1042 = vector.multi_reduction <add>, %1041, %cst_144 [0] : vector<8x2x5xf32> to vector<2x5xf32>
    %1043 = arith.mulf %1042, %1042 : vector<2x5xf32>
    %cst_145 = arith.constant dense<0.000000e+00> : vector<2xf32>
    %1044 = vector.multi_reduction <add>, %1043, %cst_145 [1] : vector<2x5xf32> to vector<2xf32>
    %1045 = vector.shape_cast %1044 : vector<2xf32> to vector<2x1xf32>
    %cst_146 = arith.constant 1.000000e-07 : f32
    %1046 = vector.broadcast %cst_146 : f32 to vector<2x1xf32>
    %1047 = arith.addf %1045, %1046 : vector<2x1xf32>
    %1048 = math.rsqrt %1047 : vector<2x1xf32>
    %1049 = vector.broadcast %1048 : vector<2x1xf32> to vector<2x5xf32>
    %1050 = arith.mulf %1042, %1049 : vector<2x5xf32>
    %1051 = arith.mulf %1007, %1014 : vector<8x2x1xf32>
    %1052 = vector.broadcast %1051 : vector<8x2x1xf32> to vector<8x2x5xf32>
    %1053 = arith.mulf %1052, %989 : vector<8x2x5xf32>
    %cst_147 = arith.constant dense<0.000000e+00> : vector<2x5xf32>
    %1054 = vector.multi_reduction <add>, %1053, %cst_147 [0] : vector<8x2x5xf32> to vector<2x5xf32>
    %1055 = arith.mulf %1054, %1054 : vector<2x5xf32>
    %cst_148 = arith.constant dense<0.000000e+00> : vector<2xf32>
    %1056 = vector.multi_reduction <add>, %1055, %cst_148 [1] : vector<2x5xf32> to vector<2xf32>
    %1057 = vector.shape_cast %1056 : vector<2xf32> to vector<2x1xf32>
    %cst_149 = arith.constant 1.000000e-07 : f32
    %1058 = vector.broadcast %cst_149 : f32 to vector<2x1xf32>
    %1059 = arith.addf %1057, %1058 : vector<2x1xf32>
    %1060 = math.rsqrt %1059 : vector<2x1xf32>
    %1061 = vector.broadcast %1060 : vector<2x1xf32> to vector<2x5xf32>
    %1062 = arith.mulf %1054, %1061 : vector<2x5xf32>
    %1063 = arith.mulf %1009, %1014 : vector<8x2x1xf32>
    %1064 = vector.broadcast %1063 : vector<8x2x1xf32> to vector<8x2x5xf32>
    %1065 = arith.mulf %1064, %990 : vector<8x2x5xf32>
    %cst_150 = arith.constant dense<0.000000e+00> : vector<2x5xf32>
    %1066 = vector.multi_reduction <add>, %1065, %cst_150 [0] : vector<8x2x5xf32> to vector<2x5xf32>
    %1067 = arith.mulf %1066, %1066 : vector<2x5xf32>
    %cst_151 = arith.constant dense<0.000000e+00> : vector<2xf32>
    %1068 = vector.multi_reduction <add>, %1067, %cst_151 [1] : vector<2x5xf32> to vector<2xf32>
    %1069 = vector.shape_cast %1068 : vector<2xf32> to vector<2x1xf32>
    %cst_152 = arith.constant 1.000000e-07 : f32
    %1070 = vector.broadcast %cst_152 : f32 to vector<2x1xf32>
    %1071 = arith.addf %1069, %1070 : vector<2x1xf32>
    %1072 = math.rsqrt %1071 : vector<2x1xf32>
    %1073 = vector.broadcast %1072 : vector<2x1xf32> to vector<2x5xf32>
    %1074 = arith.mulf %1066, %1073 : vector<2x5xf32>
    %1075 = vector.shape_cast %1026 : vector<2x5xf32> to vector<1x2x5xf32>
    %1076 = vector.broadcast %1075 : vector<1x2x5xf32> to vector<8x2x5xf32>
    %1077 = arith.mulf %1076, %986 : vector<8x2x5xf32>
    %cst_153 = arith.constant dense<0.000000e+00> : vector<8x2xf32>
    %1078 = vector.multi_reduction <add>, %1077, %cst_153 [2] : vector<8x2x5xf32> to vector<8x2xf32>
    %1079 = vector.shape_cast %1078 : vector<8x2xf32> to vector<8x2x1xf32>
    %1080 = vector.shape_cast %1038 : vector<2x5xf32> to vector<1x2x5xf32>
    %1081 = vector.broadcast %1080 : vector<1x2x5xf32> to vector<8x2x5xf32>
    %1082 = arith.mulf %1081, %987 : vector<8x2x5xf32>
    %cst_154 = arith.constant dense<0.000000e+00> : vector<8x2xf32>
    %1083 = vector.multi_reduction <add>, %1082, %cst_154 [2] : vector<8x2x5xf32> to vector<8x2xf32>
    %1084 = vector.shape_cast %1083 : vector<8x2xf32> to vector<8x2x1xf32>
    %1085 = vector.shape_cast %1050 : vector<2x5xf32> to vector<1x2x5xf32>
    %1086 = vector.broadcast %1085 : vector<1x2x5xf32> to vector<8x2x5xf32>
    %1087 = arith.mulf %1086, %988 : vector<8x2x5xf32>
    %cst_155 = arith.constant dense<0.000000e+00> : vector<8x2xf32>
    %1088 = vector.multi_reduction <add>, %1087, %cst_155 [2] : vector<8x2x5xf32> to vector<8x2xf32>
    %1089 = vector.shape_cast %1088 : vector<8x2xf32> to vector<8x2x1xf32>
    %1090 = vector.shape_cast %1062 : vector<2x5xf32> to vector<1x2x5xf32>
    %1091 = vector.broadcast %1090 : vector<1x2x5xf32> to vector<8x2x5xf32>
    %1092 = arith.mulf %1091, %989 : vector<8x2x5xf32>
    %cst_156 = arith.constant dense<0.000000e+00> : vector<8x2xf32>
    %1093 = vector.multi_reduction <add>, %1092, %cst_156 [2] : vector<8x2x5xf32> to vector<8x2xf32>
    %1094 = vector.shape_cast %1093 : vector<8x2xf32> to vector<8x2x1xf32>
    %1095 = vector.shape_cast %1074 : vector<2x5xf32> to vector<1x2x5xf32>
    %1096 = vector.broadcast %1095 : vector<1x2x5xf32> to vector<8x2x5xf32>
    %1097 = arith.mulf %1096, %990 : vector<8x2x5xf32>
    %cst_157 = arith.constant dense<0.000000e+00> : vector<8x2xf32>
    %1098 = vector.multi_reduction <add>, %1097, %cst_157 [2] : vector<8x2x5xf32> to vector<8x2xf32>
    %1099 = vector.shape_cast %1098 : vector<8x2xf32> to vector<8x2x1xf32>
    %1100 = arith.maximumf %1079, %1084 : vector<8x2x1xf32>
    %1101 = arith.maximumf %1100, %1089 : vector<8x2x1xf32>
    %1102 = arith.maximumf %1101, %1094 : vector<8x2x1xf32>
    %1103 = arith.maximumf %1102, %1099 : vector<8x2x1xf32>
    %1104 = arith.subf %1079, %1103 : vector<8x2x1xf32>
    %1105 = math.exp %1104 : vector<8x2x1xf32>
    %1106 = arith.subf %1084, %1103 : vector<8x2x1xf32>
    %1107 = math.exp %1106 : vector<8x2x1xf32>
    %1108 = arith.subf %1089, %1103 : vector<8x2x1xf32>
    %1109 = math.exp %1108 : vector<8x2x1xf32>
    %1110 = arith.subf %1094, %1103 : vector<8x2x1xf32>
    %1111 = math.exp %1110 : vector<8x2x1xf32>
    %1112 = arith.subf %1099, %1103 : vector<8x2x1xf32>
    %1113 = math.exp %1112 : vector<8x2x1xf32>
    %1114 = arith.addf %1105, %1107 : vector<8x2x1xf32>
    %1115 = arith.addf %1114, %1109 : vector<8x2x1xf32>
    %1116 = arith.addf %1115, %1111 : vector<8x2x1xf32>
    %1117 = arith.addf %1116, %1113 : vector<8x2x1xf32>
    %1118 = tpu.reciprocal %1117 {approx = true} : vector<8x2x1xf32> -> vector<8x2x1xf32>
    %1119 = arith.mulf %1105, %1118 : vector<8x2x1xf32>
    %1120 = vector.broadcast %1119 : vector<8x2x1xf32> to vector<8x2x5xf32>
    %1121 = arith.mulf %1120, %986 : vector<8x2x5xf32>
    %cst_158 = arith.constant dense<0.000000e+00> : vector<2x5xf32>
    %1122 = vector.multi_reduction <add>, %1121, %cst_158 [0] : vector<8x2x5xf32> to vector<2x5xf32>
    %1123 = arith.mulf %1122, %1122 : vector<2x5xf32>
    %cst_159 = arith.constant dense<0.000000e+00> : vector<2xf32>
    %1124 = vector.multi_reduction <add>, %1123, %cst_159 [1] : vector<2x5xf32> to vector<2xf32>
    %1125 = vector.shape_cast %1124 : vector<2xf32> to vector<2x1xf32>
    %cst_160 = arith.constant 1.000000e-07 : f32
    %1126 = vector.broadcast %cst_160 : f32 to vector<2x1xf32>
    %1127 = arith.addf %1125, %1126 : vector<2x1xf32>
    %1128 = math.rsqrt %1127 : vector<2x1xf32>
    %1129 = vector.broadcast %1128 : vector<2x1xf32> to vector<2x5xf32>
    %1130 = arith.mulf %1122, %1129 : vector<2x5xf32>
    %1131 = arith.mulf %1107, %1118 : vector<8x2x1xf32>
    %1132 = vector.broadcast %1131 : vector<8x2x1xf32> to vector<8x2x5xf32>
    %1133 = arith.mulf %1132, %987 : vector<8x2x5xf32>
    %cst_161 = arith.constant dense<0.000000e+00> : vector<2x5xf32>
    %1134 = vector.multi_reduction <add>, %1133, %cst_161 [0] : vector<8x2x5xf32> to vector<2x5xf32>
    %1135 = arith.mulf %1134, %1134 : vector<2x5xf32>
    %cst_162 = arith.constant dense<0.000000e+00> : vector<2xf32>
    %1136 = vector.multi_reduction <add>, %1135, %cst_162 [1] : vector<2x5xf32> to vector<2xf32>
    %1137 = vector.shape_cast %1136 : vector<2xf32> to vector<2x1xf32>
    %cst_163 = arith.constant 1.000000e-07 : f32
    %1138 = vector.broadcast %cst_163 : f32 to vector<2x1xf32>
    %1139 = arith.addf %1137, %1138 : vector<2x1xf32>
    %1140 = math.rsqrt %1139 : vector<2x1xf32>
    %1141 = vector.broadcast %1140 : vector<2x1xf32> to vector<2x5xf32>
    %1142 = arith.mulf %1134, %1141 : vector<2x5xf32>
    %1143 = arith.mulf %1109, %1118 : vector<8x2x1xf32>
    %1144 = vector.broadcast %1143 : vector<8x2x1xf32> to vector<8x2x5xf32>
    %1145 = arith.mulf %1144, %988 : vector<8x2x5xf32>
    %cst_164 = arith.constant dense<0.000000e+00> : vector<2x5xf32>
    %1146 = vector.multi_reduction <add>, %1145, %cst_164 [0] : vector<8x2x5xf32> to vector<2x5xf32>
    %1147 = arith.mulf %1146, %1146 : vector<2x5xf32>
    %cst_165 = arith.constant dense<0.000000e+00> : vector<2xf32>
    %1148 = vector.multi_reduction <add>, %1147, %cst_165 [1] : vector<2x5xf32> to vector<2xf32>
    %1149 = vector.shape_cast %1148 : vector<2xf32> to vector<2x1xf32>
    %cst_166 = arith.constant 1.000000e-07 : f32
    %1150 = vector.broadcast %cst_166 : f32 to vector<2x1xf32>
    %1151 = arith.addf %1149, %1150 : vector<2x1xf32>
    %1152 = math.rsqrt %1151 : vector<2x1xf32>
    %1153 = vector.broadcast %1152 : vector<2x1xf32> to vector<2x5xf32>
    %1154 = arith.mulf %1146, %1153 : vector<2x5xf32>
    %1155 = arith.mulf %1111, %1118 : vector<8x2x1xf32>
    %1156 = vector.broadcast %1155 : vector<8x2x1xf32> to vector<8x2x5xf32>
    %1157 = arith.mulf %1156, %989 : vector<8x2x5xf32>
    %cst_167 = arith.constant dense<0.000000e+00> : vector<2x5xf32>
    %1158 = vector.multi_reduction <add>, %1157, %cst_167 [0] : vector<8x2x5xf32> to vector<2x5xf32>
    %1159 = arith.mulf %1158, %1158 : vector<2x5xf32>
    %cst_168 = arith.constant dense<0.000000e+00> : vector<2xf32>
    %1160 = vector.multi_reduction <add>, %1159, %cst_168 [1] : vector<2x5xf32> to vector<2xf32>
    %1161 = vector.shape_cast %1160 : vector<2xf32> to vector<2x1xf32>
    %cst_169 = arith.constant 1.000000e-07 : f32
    %1162 = vector.broadcast %cst_169 : f32 to vector<2x1xf32>
    %1163 = arith.addf %1161, %1162 : vector<2x1xf32>
    %1164 = math.rsqrt %1163 : vector<2x1xf32>
    %1165 = vector.broadcast %1164 : vector<2x1xf32> to vector<2x5xf32>
    %1166 = arith.mulf %1158, %1165 : vector<2x5xf32>
    %1167 = arith.mulf %1113, %1118 : vector<8x2x1xf32>
    %1168 = vector.broadcast %1167 : vector<8x2x1xf32> to vector<8x2x5xf32>
    %1169 = arith.mulf %1168, %990 : vector<8x2x5xf32>
    %cst_170 = arith.constant dense<0.000000e+00> : vector<2x5xf32>
    %1170 = vector.multi_reduction <add>, %1169, %cst_170 [0] : vector<8x2x5xf32> to vector<2x5xf32>
    %1171 = arith.mulf %1170, %1170 : vector<2x5xf32>
    %cst_171 = arith.constant dense<0.000000e+00> : vector<2xf32>
    %1172 = vector.multi_reduction <add>, %1171, %cst_171 [1] : vector<2x5xf32> to vector<2xf32>
    %1173 = vector.shape_cast %1172 : vector<2xf32> to vector<2x1xf32>
    %cst_172 = arith.constant 1.000000e-07 : f32
    %1174 = vector.broadcast %cst_172 : f32 to vector<2x1xf32>
    %1175 = arith.addf %1173, %1174 : vector<2x1xf32>
    %1176 = math.rsqrt %1175 : vector<2x1xf32>
    %1177 = vector.broadcast %1176 : vector<2x1xf32> to vector<2x5xf32>
    %1178 = arith.mulf %1170, %1177 : vector<2x5xf32>
    %1179 = vector.shape_cast %1130 : vector<2x5xf32> to vector<1x2x5xf32>
    %1180 = vector.broadcast %1179 : vector<1x2x5xf32> to vector<8x2x5xf32>
    %1181 = arith.mulf %1180, %986 : vector<8x2x5xf32>
    %cst_173 = arith.constant dense<0.000000e+00> : vector<8x2xf32>
    %1182 = vector.multi_reduction <add>, %1181, %cst_173 [2] : vector<8x2x5xf32> to vector<8x2xf32>
    %1183 = vector.shape_cast %1182 : vector<8x2xf32> to vector<8x2x1xf32>
    %1184 = vector.shape_cast %1142 : vector<2x5xf32> to vector<1x2x5xf32>
    %1185 = vector.broadcast %1184 : vector<1x2x5xf32> to vector<8x2x5xf32>
    %1186 = arith.mulf %1185, %987 : vector<8x2x5xf32>
    %cst_174 = arith.constant dense<0.000000e+00> : vector<8x2xf32>
    %1187 = vector.multi_reduction <add>, %1186, %cst_174 [2] : vector<8x2x5xf32> to vector<8x2xf32>
    %1188 = vector.shape_cast %1187 : vector<8x2xf32> to vector<8x2x1xf32>
    %1189 = vector.shape_cast %1154 : vector<2x5xf32> to vector<1x2x5xf32>
    %1190 = vector.broadcast %1189 : vector<1x2x5xf32> to vector<8x2x5xf32>
    %1191 = arith.mulf %1190, %988 : vector<8x2x5xf32>
    %cst_175 = arith.constant dense<0.000000e+00> : vector<8x2xf32>
    %1192 = vector.multi_reduction <add>, %1191, %cst_175 [2] : vector<8x2x5xf32> to vector<8x2xf32>
    %1193 = vector.shape_cast %1192 : vector<8x2xf32> to vector<8x2x1xf32>
    %1194 = vector.shape_cast %1166 : vector<2x5xf32> to vector<1x2x5xf32>
    %1195 = vector.broadcast %1194 : vector<1x2x5xf32> to vector<8x2x5xf32>
    %1196 = arith.mulf %1195, %989 : vector<8x2x5xf32>
    %cst_176 = arith.constant dense<0.000000e+00> : vector<8x2xf32>
    %1197 = vector.multi_reduction <add>, %1196, %cst_176 [2] : vector<8x2x5xf32> to vector<8x2xf32>
    %1198 = vector.shape_cast %1197 : vector<8x2xf32> to vector<8x2x1xf32>
    %1199 = vector.shape_cast %1178 : vector<2x5xf32> to vector<1x2x5xf32>
    %1200 = vector.broadcast %1199 : vector<1x2x5xf32> to vector<8x2x5xf32>
    %1201 = arith.mulf %1200, %990 : vector<8x2x5xf32>
    %cst_177 = arith.constant dense<0.000000e+00> : vector<8x2xf32>
    %1202 = vector.multi_reduction <add>, %1201, %cst_177 [2] : vector<8x2x5xf32> to vector<8x2xf32>
    %1203 = vector.shape_cast %1202 : vector<8x2xf32> to vector<8x2x1xf32>
    %1204 = arith.maximumf %1183, %1188 : vector<8x2x1xf32>
    %1205 = arith.maximumf %1204, %1193 : vector<8x2x1xf32>
    %1206 = arith.maximumf %1205, %1198 : vector<8x2x1xf32>
    %1207 = arith.maximumf %1206, %1203 : vector<8x2x1xf32>
    %1208 = arith.subf %1183, %1207 : vector<8x2x1xf32>
    %1209 = math.exp %1208 : vector<8x2x1xf32>
    %1210 = arith.subf %1188, %1207 : vector<8x2x1xf32>
    %1211 = math.exp %1210 : vector<8x2x1xf32>
    %1212 = arith.subf %1193, %1207 : vector<8x2x1xf32>
    %1213 = math.exp %1212 : vector<8x2x1xf32>
    %1214 = arith.subf %1198, %1207 : vector<8x2x1xf32>
    %1215 = math.exp %1214 : vector<8x2x1xf32>
    %1216 = arith.subf %1203, %1207 : vector<8x2x1xf32>
    %1217 = math.exp %1216 : vector<8x2x1xf32>
    %1218 = arith.addf %1209, %1211 : vector<8x2x1xf32>
    %1219 = arith.addf %1218, %1213 : vector<8x2x1xf32>
    %1220 = arith.addf %1219, %1215 : vector<8x2x1xf32>
    %1221 = arith.addf %1220, %1217 : vector<8x2x1xf32>
    %1222 = tpu.reciprocal %1221 {approx = true} : vector<8x2x1xf32> -> vector<8x2x1xf32>
    %1223 = arith.mulf %1209, %1222 : vector<8x2x1xf32>
    %1224 = vector.broadcast %1223 : vector<8x2x1xf32> to vector<8x2x5xf32>
    %1225 = arith.mulf %1224, %986 : vector<8x2x5xf32>
    %cst_178 = arith.constant dense<0.000000e+00> : vector<2x5xf32>
    %1226 = vector.multi_reduction <add>, %1225, %cst_178 [0] : vector<8x2x5xf32> to vector<2x5xf32>
    %1227 = arith.mulf %1226, %1226 : vector<2x5xf32>
    %cst_179 = arith.constant dense<0.000000e+00> : vector<2xf32>
    %1228 = vector.multi_reduction <add>, %1227, %cst_179 [1] : vector<2x5xf32> to vector<2xf32>
    %1229 = vector.shape_cast %1228 : vector<2xf32> to vector<2x1xf32>
    %cst_180 = arith.constant 1.000000e-07 : f32
    %1230 = vector.broadcast %cst_180 : f32 to vector<2x1xf32>
    %1231 = arith.addf %1229, %1230 : vector<2x1xf32>
    %1232 = math.rsqrt %1231 : vector<2x1xf32>
    %1233 = vector.broadcast %1232 : vector<2x1xf32> to vector<2x5xf32>
    %1234 = arith.mulf %1226, %1233 : vector<2x5xf32>
    %1235 = arith.mulf %1211, %1222 : vector<8x2x1xf32>
    %1236 = vector.broadcast %1235 : vector<8x2x1xf32> to vector<8x2x5xf32>
    %1237 = arith.mulf %1236, %987 : vector<8x2x5xf32>
    %cst_181 = arith.constant dense<0.000000e+00> : vector<2x5xf32>
    %1238 = vector.multi_reduction <add>, %1237, %cst_181 [0] : vector<8x2x5xf32> to vector<2x5xf32>
    %1239 = arith.mulf %1238, %1238 : vector<2x5xf32>
    %cst_182 = arith.constant dense<0.000000e+00> : vector<2xf32>
    %1240 = vector.multi_reduction <add>, %1239, %cst_182 [1] : vector<2x5xf32> to vector<2xf32>
    %1241 = vector.shape_cast %1240 : vector<2xf32> to vector<2x1xf32>
    %cst_183 = arith.constant 1.000000e-07 : f32
    %1242 = vector.broadcast %cst_183 : f32 to vector<2x1xf32>
    %1243 = arith.addf %1241, %1242 : vector<2x1xf32>
    %1244 = math.rsqrt %1243 : vector<2x1xf32>
    %1245 = vector.broadcast %1244 : vector<2x1xf32> to vector<2x5xf32>
    %1246 = arith.mulf %1238, %1245 : vector<2x5xf32>
    %1247 = arith.mulf %1213, %1222 : vector<8x2x1xf32>
    %1248 = vector.broadcast %1247 : vector<8x2x1xf32> to vector<8x2x5xf32>
    %1249 = arith.mulf %1248, %988 : vector<8x2x5xf32>
    %cst_184 = arith.constant dense<0.000000e+00> : vector<2x5xf32>
    %1250 = vector.multi_reduction <add>, %1249, %cst_184 [0] : vector<8x2x5xf32> to vector<2x5xf32>
    %1251 = arith.mulf %1250, %1250 : vector<2x5xf32>
    %cst_185 = arith.constant dense<0.000000e+00> : vector<2xf32>
    %1252 = vector.multi_reduction <add>, %1251, %cst_185 [1] : vector<2x5xf32> to vector<2xf32>
    %1253 = vector.shape_cast %1252 : vector<2xf32> to vector<2x1xf32>
    %cst_186 = arith.constant 1.000000e-07 : f32
    %1254 = vector.broadcast %cst_186 : f32 to vector<2x1xf32>
    %1255 = arith.addf %1253, %1254 : vector<2x1xf32>
    %1256 = math.rsqrt %1255 : vector<2x1xf32>
    %1257 = vector.broadcast %1256 : vector<2x1xf32> to vector<2x5xf32>
    %1258 = arith.mulf %1250, %1257 : vector<2x5xf32>
    %1259 = arith.mulf %1215, %1222 : vector<8x2x1xf32>
    %1260 = vector.broadcast %1259 : vector<8x2x1xf32> to vector<8x2x5xf32>
    %1261 = arith.mulf %1260, %989 : vector<8x2x5xf32>
    %cst_187 = arith.constant dense<0.000000e+00> : vector<2x5xf32>
    %1262 = vector.multi_reduction <add>, %1261, %cst_187 [0] : vector<8x2x5xf32> to vector<2x5xf32>
    %1263 = arith.mulf %1262, %1262 : vector<2x5xf32>
    %cst_188 = arith.constant dense<0.000000e+00> : vector<2xf32>
    %1264 = vector.multi_reduction <add>, %1263, %cst_188 [1] : vector<2x5xf32> to vector<2xf32>
    %1265 = vector.shape_cast %1264 : vector<2xf32> to vector<2x1xf32>
    %cst_189 = arith.constant 1.000000e-07 : f32
    %1266 = vector.broadcast %cst_189 : f32 to vector<2x1xf32>
    %1267 = arith.addf %1265, %1266 : vector<2x1xf32>
    %1268 = math.rsqrt %1267 : vector<2x1xf32>
    %1269 = vector.broadcast %1268 : vector<2x1xf32> to vector<2x5xf32>
    %1270 = arith.mulf %1262, %1269 : vector<2x5xf32>
    %1271 = arith.mulf %1217, %1222 : vector<8x2x1xf32>
    %1272 = vector.broadcast %1271 : vector<8x2x1xf32> to vector<8x2x5xf32>
    %1273 = arith.mulf %1272, %990 : vector<8x2x5xf32>
    %cst_190 = arith.constant dense<0.000000e+00> : vector<2x5xf32>
    %1274 = vector.multi_reduction <add>, %1273, %cst_190 [0] : vector<8x2x5xf32> to vector<2x5xf32>
    %1275 = arith.mulf %1274, %1274 : vector<2x5xf32>
    %cst_191 = arith.constant dense<0.000000e+00> : vector<2xf32>
    %1276 = vector.multi_reduction <add>, %1275, %cst_191 [1] : vector<2x5xf32> to vector<2xf32>
    %1277 = vector.shape_cast %1276 : vector<2xf32> to vector<2x1xf32>
    %cst_192 = arith.constant 1.000000e-07 : f32
    %1278 = vector.broadcast %cst_192 : f32 to vector<2x1xf32>
    %1279 = arith.addf %1277, %1278 : vector<2x1xf32>
    %1280 = math.rsqrt %1279 : vector<2x1xf32>
    %1281 = vector.broadcast %1280 : vector<2x1xf32> to vector<2x5xf32>
    %1282 = arith.mulf %1274, %1281 : vector<2x5xf32>
    %1283 = vector.shape_cast %1234 : vector<2x5xf32> to vector<1x2x5xf32>
    %1284 = vector.broadcast %1283 : vector<1x2x5xf32> to vector<8x2x5xf32>
    %1285 = arith.mulf %1284, %986 : vector<8x2x5xf32>
    %cst_193 = arith.constant dense<0.000000e+00> : vector<8x2xf32>
    %1286 = vector.multi_reduction <add>, %1285, %cst_193 [2] : vector<8x2x5xf32> to vector<8x2xf32>
    %1287 = vector.shape_cast %1286 : vector<8x2xf32> to vector<8x2x1xf32>
    %1288 = vector.shape_cast %1246 : vector<2x5xf32> to vector<1x2x5xf32>
    %1289 = vector.broadcast %1288 : vector<1x2x5xf32> to vector<8x2x5xf32>
    %1290 = arith.mulf %1289, %987 : vector<8x2x5xf32>
    %cst_194 = arith.constant dense<0.000000e+00> : vector<8x2xf32>
    %1291 = vector.multi_reduction <add>, %1290, %cst_194 [2] : vector<8x2x5xf32> to vector<8x2xf32>
    %1292 = vector.shape_cast %1291 : vector<8x2xf32> to vector<8x2x1xf32>
    %1293 = vector.shape_cast %1258 : vector<2x5xf32> to vector<1x2x5xf32>
    %1294 = vector.broadcast %1293 : vector<1x2x5xf32> to vector<8x2x5xf32>
    %1295 = arith.mulf %1294, %988 : vector<8x2x5xf32>
    %cst_195 = arith.constant dense<0.000000e+00> : vector<8x2xf32>
    %1296 = vector.multi_reduction <add>, %1295, %cst_195 [2] : vector<8x2x5xf32> to vector<8x2xf32>
    %1297 = vector.shape_cast %1296 : vector<8x2xf32> to vector<8x2x1xf32>
    %1298 = vector.shape_cast %1270 : vector<2x5xf32> to vector<1x2x5xf32>
    %1299 = vector.broadcast %1298 : vector<1x2x5xf32> to vector<8x2x5xf32>
    %1300 = arith.mulf %1299, %989 : vector<8x2x5xf32>
    %cst_196 = arith.constant dense<0.000000e+00> : vector<8x2xf32>
    %1301 = vector.multi_reduction <add>, %1300, %cst_196 [2] : vector<8x2x5xf32> to vector<8x2xf32>
    %1302 = vector.shape_cast %1301 : vector<8x2xf32> to vector<8x2x1xf32>
    %1303 = vector.shape_cast %1282 : vector<2x5xf32> to vector<1x2x5xf32>
    %1304 = vector.broadcast %1303 : vector<1x2x5xf32> to vector<8x2x5xf32>
    %1305 = arith.mulf %1304, %990 : vector<8x2x5xf32>
    %cst_197 = arith.constant dense<0.000000e+00> : vector<8x2xf32>
    %1306 = vector.multi_reduction <add>, %1305, %cst_197 [2] : vector<8x2x5xf32> to vector<8x2xf32>
    %1307 = vector.shape_cast %1306 : vector<8x2xf32> to vector<8x2x1xf32>
    %1308 = arith.maximumf %1287, %1292 : vector<8x2x1xf32>
    %1309 = arith.maximumf %1308, %1297 : vector<8x2x1xf32>
    %1310 = arith.maximumf %1309, %1302 : vector<8x2x1xf32>
    %1311 = arith.maximumf %1310, %1307 : vector<8x2x1xf32>
    %1312 = arith.subf %1287, %1311 : vector<8x2x1xf32>
    %1313 = math.exp %1312 : vector<8x2x1xf32>
    %1314 = arith.subf %1292, %1311 : vector<8x2x1xf32>
    %1315 = math.exp %1314 : vector<8x2x1xf32>
    %1316 = arith.subf %1297, %1311 : vector<8x2x1xf32>
    %1317 = math.exp %1316 : vector<8x2x1xf32>
    %1318 = arith.subf %1302, %1311 : vector<8x2x1xf32>
    %1319 = math.exp %1318 : vector<8x2x1xf32>
    %1320 = arith.subf %1307, %1311 : vector<8x2x1xf32>
    %1321 = math.exp %1320 : vector<8x2x1xf32>
    %1322 = arith.addf %1313, %1315 : vector<8x2x1xf32>
    %1323 = arith.addf %1322, %1317 : vector<8x2x1xf32>
    %1324 = arith.addf %1323, %1319 : vector<8x2x1xf32>
    %1325 = arith.addf %1324, %1321 : vector<8x2x1xf32>
    %1326 = tpu.reciprocal %1325 {approx = true} : vector<8x2x1xf32> -> vector<8x2x1xf32>
    %1327 = arith.mulf %1313, %1326 : vector<8x2x1xf32>
    %1328 = vector.broadcast %1327 : vector<8x2x1xf32> to vector<8x2x5xf32>
    %1329 = arith.mulf %1328, %986 : vector<8x2x5xf32>
    %cst_198 = arith.constant dense<0.000000e+00> : vector<2x5xf32>
    %1330 = vector.multi_reduction <add>, %1329, %cst_198 [0] : vector<8x2x5xf32> to vector<2x5xf32>
    %1331 = arith.mulf %1330, %1330 : vector<2x5xf32>
    %cst_199 = arith.constant dense<0.000000e+00> : vector<2xf32>
    %1332 = vector.multi_reduction <add>, %1331, %cst_199 [1] : vector<2x5xf32> to vector<2xf32>
    %1333 = vector.shape_cast %1332 : vector<2xf32> to vector<2x1xf32>
    %cst_200 = arith.constant 1.000000e-07 : f32
    %1334 = vector.broadcast %cst_200 : f32 to vector<2x1xf32>
    %1335 = arith.addf %1333, %1334 : vector<2x1xf32>
    %1336 = math.rsqrt %1335 : vector<2x1xf32>
    %1337 = vector.broadcast %1336 : vector<2x1xf32> to vector<2x5xf32>
    %1338 = arith.mulf %1330, %1337 : vector<2x5xf32>
    %1339 = arith.mulf %1315, %1326 : vector<8x2x1xf32>
    %1340 = vector.broadcast %1339 : vector<8x2x1xf32> to vector<8x2x5xf32>
    %1341 = arith.mulf %1340, %987 : vector<8x2x5xf32>
    %cst_201 = arith.constant dense<0.000000e+00> : vector<2x5xf32>
    %1342 = vector.multi_reduction <add>, %1341, %cst_201 [0] : vector<8x2x5xf32> to vector<2x5xf32>
    %1343 = arith.mulf %1342, %1342 : vector<2x5xf32>
    %cst_202 = arith.constant dense<0.000000e+00> : vector<2xf32>
    %1344 = vector.multi_reduction <add>, %1343, %cst_202 [1] : vector<2x5xf32> to vector<2xf32>
    %1345 = vector.shape_cast %1344 : vector<2xf32> to vector<2x1xf32>
    %cst_203 = arith.constant 1.000000e-07 : f32
    %1346 = vector.broadcast %cst_203 : f32 to vector<2x1xf32>
    %1347 = arith.addf %1345, %1346 : vector<2x1xf32>
    %1348 = math.rsqrt %1347 : vector<2x1xf32>
    %1349 = vector.broadcast %1348 : vector<2x1xf32> to vector<2x5xf32>
    %1350 = arith.mulf %1342, %1349 : vector<2x5xf32>
    %1351 = arith.mulf %1317, %1326 : vector<8x2x1xf32>
    %1352 = vector.broadcast %1351 : vector<8x2x1xf32> to vector<8x2x5xf32>
    %1353 = arith.mulf %1352, %988 : vector<8x2x5xf32>
    %cst_204 = arith.constant dense<0.000000e+00> : vector<2x5xf32>
    %1354 = vector.multi_reduction <add>, %1353, %cst_204 [0] : vector<8x2x5xf32> to vector<2x5xf32>
    %1355 = arith.mulf %1354, %1354 : vector<2x5xf32>
    %cst_205 = arith.constant dense<0.000000e+00> : vector<2xf32>
    %1356 = vector.multi_reduction <add>, %1355, %cst_205 [1] : vector<2x5xf32> to vector<2xf32>
    %1357 = vector.shape_cast %1356 : vector<2xf32> to vector<2x1xf32>
    %cst_206 = arith.constant 1.000000e-07 : f32
    %1358 = vector.broadcast %cst_206 : f32 to vector<2x1xf32>
    %1359 = arith.addf %1357, %1358 : vector<2x1xf32>
    %1360 = math.rsqrt %1359 : vector<2x1xf32>
    %1361 = vector.broadcast %1360 : vector<2x1xf32> to vector<2x5xf32>
    %1362 = arith.mulf %1354, %1361 : vector<2x5xf32>
    %1363 = arith.mulf %1319, %1326 : vector<8x2x1xf32>
    %1364 = vector.broadcast %1363 : vector<8x2x1xf32> to vector<8x2x5xf32>
    %1365 = arith.mulf %1364, %989 : vector<8x2x5xf32>
    %cst_207 = arith.constant dense<0.000000e+00> : vector<2x5xf32>
    %1366 = vector.multi_reduction <add>, %1365, %cst_207 [0] : vector<8x2x5xf32> to vector<2x5xf32>
    %1367 = arith.mulf %1366, %1366 : vector<2x5xf32>
    %cst_208 = arith.constant dense<0.000000e+00> : vector<2xf32>
    %1368 = vector.multi_reduction <add>, %1367, %cst_208 [1] : vector<2x5xf32> to vector<2xf32>
    %1369 = vector.shape_cast %1368 : vector<2xf32> to vector<2x1xf32>
    %cst_209 = arith.constant 1.000000e-07 : f32
    %1370 = vector.broadcast %cst_209 : f32 to vector<2x1xf32>
    %1371 = arith.addf %1369, %1370 : vector<2x1xf32>
    %1372 = math.rsqrt %1371 : vector<2x1xf32>
    %1373 = vector.broadcast %1372 : vector<2x1xf32> to vector<2x5xf32>
    %1374 = arith.mulf %1366, %1373 : vector<2x5xf32>
    %1375 = arith.mulf %1321, %1326 : vector<8x2x1xf32>
    %1376 = vector.broadcast %1375 : vector<8x2x1xf32> to vector<8x2x5xf32>
    %1377 = arith.mulf %1376, %990 : vector<8x2x5xf32>
    %cst_210 = arith.constant dense<0.000000e+00> : vector<2x5xf32>
    %1378 = vector.multi_reduction <add>, %1377, %cst_210 [0] : vector<8x2x5xf32> to vector<2x5xf32>
    %1379 = arith.mulf %1378, %1378 : vector<2x5xf32>
    %cst_211 = arith.constant dense<0.000000e+00> : vector<2xf32>
    %1380 = vector.multi_reduction <add>, %1379, %cst_211 [1] : vector<2x5xf32> to vector<2xf32>
    %1381 = vector.shape_cast %1380 : vector<2xf32> to vector<2x1xf32>
    %cst_212 = arith.constant 1.000000e-07 : f32
    %1382 = vector.broadcast %cst_212 : f32 to vector<2x1xf32>
    %1383 = arith.addf %1381, %1382 : vector<2x1xf32>
    %1384 = math.rsqrt %1383 : vector<2x1xf32>
    %1385 = vector.broadcast %1384 : vector<2x1xf32> to vector<2x5xf32>
    %1386 = arith.mulf %1378, %1385 : vector<2x5xf32>
    %1387 = tpu.concatenate %1338, %1350, %1362, %1374, %1386 in 1 : vector<2x5xf32>, vector<2x5xf32>, vector<2x5xf32>, vector<2x5xf32>, vector<2x5xf32> -> vector<2x25xf32>
    %1388 = vector.extract_strided_slice %1 {offsets = [7, 0], sizes = [1, 25], strides = [1, 1]} : vector<16x128xf32> to vector<1x25xf32>
    %1389 = vector.extract_strided_slice %1 {offsets = [14, 0], sizes = [1, 1], strides = [1, 1]} : vector<16x128xf32> to vector<1x1xf32>
    %1390 = vector.broadcast %1388 : vector<1x25xf32> to vector<2x25xf32>
    %1391 = arith.mulf %1387, %1390 : vector<2x25xf32>
    %cst_213 = arith.constant dense<0.000000e+00> : vector<2xf32>
    %1392 = vector.multi_reduction <add>, %1391, %cst_213 [1] : vector<2x25xf32> to vector<2xf32>
    %1393 = vector.shape_cast %1392 : vector<2xf32> to vector<2x1xf32>
    %1394 = vector.broadcast %1389 : vector<1x1xf32> to vector<2x1xf32>
    %1395 = arith.addf %1393, %1394 : vector<2x1xf32>
    %cst_214 = arith.constant 0.000000e+00 : f32
    %1396 = vector.broadcast %cst_214 : f32 to vector<2x1xf32>
    %1397 = arith.maximumf %1395, %1396 : vector<2x1xf32>
    %1398 = vector.extract_strided_slice %1 {offsets = [3, 0], sizes = [1, 32], strides = [1, 1]} : vector<16x128xf32> to vector<1x32xf32>
    %1399 = vector.extract_strided_slice %1 {offsets = [5, 0], sizes = [1, 8], strides = [1, 1]} : vector<16x128xf32> to vector<1x8xf32>
    %1400 = vector.broadcast %1398 : vector<1x32xf32> to vector<2x32xf32>
    %1401 = arith.mulf %476, %1400 : vector<2x32xf32>
    %cst_215 = arith.constant dense<0.000000e+00> : vector<2xf32>
    %1402 = vector.multi_reduction <add>, %1401, %cst_215 [1] : vector<2x32xf32> to vector<2xf32>
    %1403 = vector.shape_cast %1402 : vector<2xf32> to vector<2x1xf32>
    %1404 = vector.extract_strided_slice %1399 {offsets = [0, 0], sizes = [1, 1], strides = [1, 1]} : vector<1x8xf32> to vector<1x1xf32>
    %1405 = vector.broadcast %1404 : vector<1x1xf32> to vector<2x1xf32>
    %1406 = arith.addf %1403, %1405 : vector<2x1xf32>
    %1407 = math.tanh %1406 : vector<2x1xf32>
    %1408 = math.exp %1407 : vector<2x1xf32>
    %1409 = vector.broadcast %1398 : vector<1x32xf32> to vector<2x32xf32>
    %1410 = arith.mulf %477, %1409 : vector<2x32xf32>
    %cst_216 = arith.constant dense<0.000000e+00> : vector<2xf32>
    %1411 = vector.multi_reduction <add>, %1410, %cst_216 [1] : vector<2x32xf32> to vector<2xf32>
    %1412 = vector.shape_cast %1411 : vector<2xf32> to vector<2x1xf32>
    %1413 = vector.extract_strided_slice %1399 {offsets = [0, 1], sizes = [1, 1], strides = [1, 1]} : vector<1x8xf32> to vector<1x1xf32>
    %1414 = vector.broadcast %1413 : vector<1x1xf32> to vector<2x1xf32>
    %1415 = arith.addf %1412, %1414 : vector<2x1xf32>
    %1416 = math.tanh %1415 : vector<2x1xf32>
    %1417 = math.exp %1416 : vector<2x1xf32>
    %1418 = vector.broadcast %1398 : vector<1x32xf32> to vector<2x32xf32>
    %1419 = arith.mulf %478, %1418 : vector<2x32xf32>
    %cst_217 = arith.constant dense<0.000000e+00> : vector<2xf32>
    %1420 = vector.multi_reduction <add>, %1419, %cst_217 [1] : vector<2x32xf32> to vector<2xf32>
    %1421 = vector.shape_cast %1420 : vector<2xf32> to vector<2x1xf32>
    %1422 = vector.extract_strided_slice %1399 {offsets = [0, 2], sizes = [1, 1], strides = [1, 1]} : vector<1x8xf32> to vector<1x1xf32>
    %1423 = vector.broadcast %1422 : vector<1x1xf32> to vector<2x1xf32>
    %1424 = arith.addf %1421, %1423 : vector<2x1xf32>
    %1425 = math.tanh %1424 : vector<2x1xf32>
    %1426 = math.exp %1425 : vector<2x1xf32>
    %1427 = vector.broadcast %1398 : vector<1x32xf32> to vector<2x32xf32>
    %1428 = arith.mulf %479, %1427 : vector<2x32xf32>
    %cst_218 = arith.constant dense<0.000000e+00> : vector<2xf32>
    %1429 = vector.multi_reduction <add>, %1428, %cst_218 [1] : vector<2x32xf32> to vector<2xf32>
    %1430 = vector.shape_cast %1429 : vector<2xf32> to vector<2x1xf32>
    %1431 = vector.extract_strided_slice %1399 {offsets = [0, 3], sizes = [1, 1], strides = [1, 1]} : vector<1x8xf32> to vector<1x1xf32>
    %1432 = vector.broadcast %1431 : vector<1x1xf32> to vector<2x1xf32>
    %1433 = arith.addf %1430, %1432 : vector<2x1xf32>
    %1434 = math.tanh %1433 : vector<2x1xf32>
    %1435 = math.exp %1434 : vector<2x1xf32>
    %1436 = vector.broadcast %1398 : vector<1x32xf32> to vector<2x32xf32>
    %1437 = arith.mulf %480, %1436 : vector<2x32xf32>
    %cst_219 = arith.constant dense<0.000000e+00> : vector<2xf32>
    %1438 = vector.multi_reduction <add>, %1437, %cst_219 [1] : vector<2x32xf32> to vector<2xf32>
    %1439 = vector.shape_cast %1438 : vector<2xf32> to vector<2x1xf32>
    %1440 = vector.extract_strided_slice %1399 {offsets = [0, 4], sizes = [1, 1], strides = [1, 1]} : vector<1x8xf32> to vector<1x1xf32>
    %1441 = vector.broadcast %1440 : vector<1x1xf32> to vector<2x1xf32>
    %1442 = arith.addf %1439, %1441 : vector<2x1xf32>
    %1443 = math.tanh %1442 : vector<2x1xf32>
    %1444 = math.exp %1443 : vector<2x1xf32>
    %1445 = vector.broadcast %1398 : vector<1x32xf32> to vector<2x32xf32>
    %1446 = arith.mulf %481, %1445 : vector<2x32xf32>
    %cst_220 = arith.constant dense<0.000000e+00> : vector<2xf32>
    %1447 = vector.multi_reduction <add>, %1446, %cst_220 [1] : vector<2x32xf32> to vector<2xf32>
    %1448 = vector.shape_cast %1447 : vector<2xf32> to vector<2x1xf32>
    %1449 = vector.extract_strided_slice %1399 {offsets = [0, 5], sizes = [1, 1], strides = [1, 1]} : vector<1x8xf32> to vector<1x1xf32>
    %1450 = vector.broadcast %1449 : vector<1x1xf32> to vector<2x1xf32>
    %1451 = arith.addf %1448, %1450 : vector<2x1xf32>
    %1452 = math.tanh %1451 : vector<2x1xf32>
    %1453 = math.exp %1452 : vector<2x1xf32>
    %1454 = vector.broadcast %1398 : vector<1x32xf32> to vector<2x32xf32>
    %1455 = arith.mulf %482, %1454 : vector<2x32xf32>
    %cst_221 = arith.constant dense<0.000000e+00> : vector<2xf32>
    %1456 = vector.multi_reduction <add>, %1455, %cst_221 [1] : vector<2x32xf32> to vector<2xf32>
    %1457 = vector.shape_cast %1456 : vector<2xf32> to vector<2x1xf32>
    %1458 = vector.extract_strided_slice %1399 {offsets = [0, 6], sizes = [1, 1], strides = [1, 1]} : vector<1x8xf32> to vector<1x1xf32>
    %1459 = vector.broadcast %1458 : vector<1x1xf32> to vector<2x1xf32>
    %1460 = arith.addf %1457, %1459 : vector<2x1xf32>
    %1461 = math.tanh %1460 : vector<2x1xf32>
    %1462 = math.exp %1461 : vector<2x1xf32>
    %1463 = vector.broadcast %1398 : vector<1x32xf32> to vector<2x32xf32>
    %1464 = arith.mulf %483, %1463 : vector<2x32xf32>
    %cst_222 = arith.constant dense<0.000000e+00> : vector<2xf32>
    %1465 = vector.multi_reduction <add>, %1464, %cst_222 [1] : vector<2x32xf32> to vector<2xf32>
    %1466 = vector.shape_cast %1465 : vector<2xf32> to vector<2x1xf32>
    %1467 = vector.extract_strided_slice %1399 {offsets = [0, 7], sizes = [1, 1], strides = [1, 1]} : vector<1x8xf32> to vector<1x1xf32>
    %1468 = vector.broadcast %1467 : vector<1x1xf32> to vector<2x1xf32>
    %1469 = arith.addf %1466, %1468 : vector<2x1xf32>
    %1470 = math.tanh %1469 : vector<2x1xf32>
    %1471 = math.exp %1470 : vector<2x1xf32>
    %1472 = arith.addf %1408, %1417 : vector<2x1xf32>
    %1473 = arith.addf %1472, %1426 : vector<2x1xf32>
    %1474 = arith.addf %1473, %1435 : vector<2x1xf32>
    %1475 = arith.addf %1474, %1444 : vector<2x1xf32>
    %1476 = arith.addf %1475, %1453 : vector<2x1xf32>
    %1477 = arith.addf %1476, %1462 : vector<2x1xf32>
    %1478 = arith.addf %1477, %1471 : vector<2x1xf32>
    %1479 = tpu.reciprocal %1478 {approx = true} : vector<2x1xf32> -> vector<2x1xf32>
    %cst_223 = arith.constant 0.000000e+00 : f32
    %1480 = vector.broadcast %cst_223 : f32 to vector<2x32xf32>
    %1481 = arith.mulf %1408, %1479 : vector<2x1xf32>
    %cst_224 = arith.constant 1.000000e-10 : f32
    %1482 = vector.broadcast %cst_224 : f32 to vector<2x1xf32>
    %1483 = arith.addf %1481, %1482 : vector<2x1xf32>
    %1484 = vector.broadcast %1483 : vector<2x1xf32> to vector<2x32xf32>
    %1485 = arith.mulf %1484, %476 : vector<2x32xf32>
    %1486 = arith.addf %1480, %1485 : vector<2x32xf32>
    %1487 = arith.mulf %1417, %1479 : vector<2x1xf32>
    %cst_225 = arith.constant 1.000000e-10 : f32
    %1488 = vector.broadcast %cst_225 : f32 to vector<2x1xf32>
    %1489 = arith.addf %1487, %1488 : vector<2x1xf32>
    %1490 = vector.broadcast %1489 : vector<2x1xf32> to vector<2x32xf32>
    %1491 = arith.mulf %1490, %477 : vector<2x32xf32>
    %1492 = arith.addf %1486, %1491 : vector<2x32xf32>
    %1493 = arith.mulf %1426, %1479 : vector<2x1xf32>
    %cst_226 = arith.constant 1.000000e-10 : f32
    %1494 = vector.broadcast %cst_226 : f32 to vector<2x1xf32>
    %1495 = arith.addf %1493, %1494 : vector<2x1xf32>
    %1496 = vector.broadcast %1495 : vector<2x1xf32> to vector<2x32xf32>
    %1497 = arith.mulf %1496, %478 : vector<2x32xf32>
    %1498 = arith.addf %1492, %1497 : vector<2x32xf32>
    %1499 = arith.mulf %1435, %1479 : vector<2x1xf32>
    %cst_227 = arith.constant 1.000000e-10 : f32
    %1500 = vector.broadcast %cst_227 : f32 to vector<2x1xf32>
    %1501 = arith.addf %1499, %1500 : vector<2x1xf32>
    %1502 = vector.broadcast %1501 : vector<2x1xf32> to vector<2x32xf32>
    %1503 = arith.mulf %1502, %479 : vector<2x32xf32>
    %1504 = arith.addf %1498, %1503 : vector<2x32xf32>
    %1505 = arith.mulf %1444, %1479 : vector<2x1xf32>
    %cst_228 = arith.constant 1.000000e-10 : f32
    %1506 = vector.broadcast %cst_228 : f32 to vector<2x1xf32>
    %1507 = arith.addf %1505, %1506 : vector<2x1xf32>
    %1508 = vector.broadcast %1507 : vector<2x1xf32> to vector<2x32xf32>
    %1509 = arith.mulf %1508, %480 : vector<2x32xf32>
    %1510 = arith.addf %1504, %1509 : vector<2x32xf32>
    %1511 = arith.mulf %1453, %1479 : vector<2x1xf32>
    %cst_229 = arith.constant 1.000000e-10 : f32
    %1512 = vector.broadcast %cst_229 : f32 to vector<2x1xf32>
    %1513 = arith.addf %1511, %1512 : vector<2x1xf32>
    %1514 = vector.broadcast %1513 : vector<2x1xf32> to vector<2x32xf32>
    %1515 = arith.mulf %1514, %481 : vector<2x32xf32>
    %1516 = arith.addf %1510, %1515 : vector<2x32xf32>
    %1517 = arith.mulf %1462, %1479 : vector<2x1xf32>
    %cst_230 = arith.constant 1.000000e-10 : f32
    %1518 = vector.broadcast %cst_230 : f32 to vector<2x1xf32>
    %1519 = arith.addf %1517, %1518 : vector<2x1xf32>
    %1520 = vector.broadcast %1519 : vector<2x1xf32> to vector<2x32xf32>
    %1521 = arith.mulf %1520, %482 : vector<2x32xf32>
    %1522 = arith.addf %1516, %1521 : vector<2x32xf32>
    %1523 = arith.mulf %1471, %1479 : vector<2x1xf32>
    %cst_231 = arith.constant 1.000000e-10 : f32
    %1524 = vector.broadcast %cst_231 : f32 to vector<2x1xf32>
    %1525 = arith.addf %1523, %1524 : vector<2x1xf32>
    %1526 = vector.broadcast %1525 : vector<2x1xf32> to vector<2x32xf32>
    %1527 = arith.mulf %1526, %483 : vector<2x32xf32>
    %1528 = arith.addf %1522, %1527 : vector<2x32xf32>
    %1529 = vector.extract_strided_slice %1 {offsets = [4, 0], sizes = [1, 32], strides = [1, 1]} : vector<16x128xf32> to vector<1x32xf32>
    %1530 = vector.extract_strided_slice %1 {offsets = [6, 0], sizes = [1, 8], strides = [1, 1]} : vector<16x128xf32> to vector<1x8xf32>
    %1531 = vector.broadcast %1529 : vector<1x32xf32> to vector<2x32xf32>
    %1532 = arith.mulf %958, %1531 : vector<2x32xf32>
    %cst_232 = arith.constant dense<0.000000e+00> : vector<2xf32>
    %1533 = vector.multi_reduction <add>, %1532, %cst_232 [1] : vector<2x32xf32> to vector<2xf32>
    %1534 = vector.shape_cast %1533 : vector<2xf32> to vector<2x1xf32>
    %1535 = vector.extract_strided_slice %1530 {offsets = [0, 0], sizes = [1, 1], strides = [1, 1]} : vector<1x8xf32> to vector<1x1xf32>
    %1536 = vector.broadcast %1535 : vector<1x1xf32> to vector<2x1xf32>
    %1537 = arith.addf %1534, %1536 : vector<2x1xf32>
    %1538 = math.tanh %1537 : vector<2x1xf32>
    %1539 = math.exp %1538 : vector<2x1xf32>
    %1540 = vector.broadcast %1529 : vector<1x32xf32> to vector<2x32xf32>
    %1541 = arith.mulf %959, %1540 : vector<2x32xf32>
    %cst_233 = arith.constant dense<0.000000e+00> : vector<2xf32>
    %1542 = vector.multi_reduction <add>, %1541, %cst_233 [1] : vector<2x32xf32> to vector<2xf32>
    %1543 = vector.shape_cast %1542 : vector<2xf32> to vector<2x1xf32>
    %1544 = vector.extract_strided_slice %1530 {offsets = [0, 1], sizes = [1, 1], strides = [1, 1]} : vector<1x8xf32> to vector<1x1xf32>
    %1545 = vector.broadcast %1544 : vector<1x1xf32> to vector<2x1xf32>
    %1546 = arith.addf %1543, %1545 : vector<2x1xf32>
    %1547 = math.tanh %1546 : vector<2x1xf32>
    %1548 = math.exp %1547 : vector<2x1xf32>
    %1549 = vector.broadcast %1529 : vector<1x32xf32> to vector<2x32xf32>
    %1550 = arith.mulf %960, %1549 : vector<2x32xf32>
    %cst_234 = arith.constant dense<0.000000e+00> : vector<2xf32>
    %1551 = vector.multi_reduction <add>, %1550, %cst_234 [1] : vector<2x32xf32> to vector<2xf32>
    %1552 = vector.shape_cast %1551 : vector<2xf32> to vector<2x1xf32>
    %1553 = vector.extract_strided_slice %1530 {offsets = [0, 2], sizes = [1, 1], strides = [1, 1]} : vector<1x8xf32> to vector<1x1xf32>
    %1554 = vector.broadcast %1553 : vector<1x1xf32> to vector<2x1xf32>
    %1555 = arith.addf %1552, %1554 : vector<2x1xf32>
    %1556 = math.tanh %1555 : vector<2x1xf32>
    %1557 = math.exp %1556 : vector<2x1xf32>
    %1558 = vector.broadcast %1529 : vector<1x32xf32> to vector<2x32xf32>
    %1559 = arith.mulf %961, %1558 : vector<2x32xf32>
    %cst_235 = arith.constant dense<0.000000e+00> : vector<2xf32>
    %1560 = vector.multi_reduction <add>, %1559, %cst_235 [1] : vector<2x32xf32> to vector<2xf32>
    %1561 = vector.shape_cast %1560 : vector<2xf32> to vector<2x1xf32>
    %1562 = vector.extract_strided_slice %1530 {offsets = [0, 3], sizes = [1, 1], strides = [1, 1]} : vector<1x8xf32> to vector<1x1xf32>
    %1563 = vector.broadcast %1562 : vector<1x1xf32> to vector<2x1xf32>
    %1564 = arith.addf %1561, %1563 : vector<2x1xf32>
    %1565 = math.tanh %1564 : vector<2x1xf32>
    %1566 = math.exp %1565 : vector<2x1xf32>
    %1567 = vector.broadcast %1529 : vector<1x32xf32> to vector<2x32xf32>
    %1568 = arith.mulf %962, %1567 : vector<2x32xf32>
    %cst_236 = arith.constant dense<0.000000e+00> : vector<2xf32>
    %1569 = vector.multi_reduction <add>, %1568, %cst_236 [1] : vector<2x32xf32> to vector<2xf32>
    %1570 = vector.shape_cast %1569 : vector<2xf32> to vector<2x1xf32>
    %1571 = vector.extract_strided_slice %1530 {offsets = [0, 4], sizes = [1, 1], strides = [1, 1]} : vector<1x8xf32> to vector<1x1xf32>
    %1572 = vector.broadcast %1571 : vector<1x1xf32> to vector<2x1xf32>
    %1573 = arith.addf %1570, %1572 : vector<2x1xf32>
    %1574 = math.tanh %1573 : vector<2x1xf32>
    %1575 = math.exp %1574 : vector<2x1xf32>
    %1576 = vector.broadcast %1529 : vector<1x32xf32> to vector<2x32xf32>
    %1577 = arith.mulf %963, %1576 : vector<2x32xf32>
    %cst_237 = arith.constant dense<0.000000e+00> : vector<2xf32>
    %1578 = vector.multi_reduction <add>, %1577, %cst_237 [1] : vector<2x32xf32> to vector<2xf32>
    %1579 = vector.shape_cast %1578 : vector<2xf32> to vector<2x1xf32>
    %1580 = vector.extract_strided_slice %1530 {offsets = [0, 5], sizes = [1, 1], strides = [1, 1]} : vector<1x8xf32> to vector<1x1xf32>
    %1581 = vector.broadcast %1580 : vector<1x1xf32> to vector<2x1xf32>
    %1582 = arith.addf %1579, %1581 : vector<2x1xf32>
    %1583 = math.tanh %1582 : vector<2x1xf32>
    %1584 = math.exp %1583 : vector<2x1xf32>
    %1585 = vector.broadcast %1529 : vector<1x32xf32> to vector<2x32xf32>
    %1586 = arith.mulf %964, %1585 : vector<2x32xf32>
    %cst_238 = arith.constant dense<0.000000e+00> : vector<2xf32>
    %1587 = vector.multi_reduction <add>, %1586, %cst_238 [1] : vector<2x32xf32> to vector<2xf32>
    %1588 = vector.shape_cast %1587 : vector<2xf32> to vector<2x1xf32>
    %1589 = vector.extract_strided_slice %1530 {offsets = [0, 6], sizes = [1, 1], strides = [1, 1]} : vector<1x8xf32> to vector<1x1xf32>
    %1590 = vector.broadcast %1589 : vector<1x1xf32> to vector<2x1xf32>
    %1591 = arith.addf %1588, %1590 : vector<2x1xf32>
    %1592 = math.tanh %1591 : vector<2x1xf32>
    %1593 = math.exp %1592 : vector<2x1xf32>
    %1594 = vector.broadcast %1529 : vector<1x32xf32> to vector<2x32xf32>
    %1595 = arith.mulf %965, %1594 : vector<2x32xf32>
    %cst_239 = arith.constant dense<0.000000e+00> : vector<2xf32>
    %1596 = vector.multi_reduction <add>, %1595, %cst_239 [1] : vector<2x32xf32> to vector<2xf32>
    %1597 = vector.shape_cast %1596 : vector<2xf32> to vector<2x1xf32>
    %1598 = vector.extract_strided_slice %1530 {offsets = [0, 7], sizes = [1, 1], strides = [1, 1]} : vector<1x8xf32> to vector<1x1xf32>
    %1599 = vector.broadcast %1598 : vector<1x1xf32> to vector<2x1xf32>
    %1600 = arith.addf %1597, %1599 : vector<2x1xf32>
    %1601 = math.tanh %1600 : vector<2x1xf32>
    %1602 = math.exp %1601 : vector<2x1xf32>
    %1603 = arith.addf %1539, %1548 : vector<2x1xf32>
    %1604 = arith.addf %1603, %1557 : vector<2x1xf32>
    %1605 = arith.addf %1604, %1566 : vector<2x1xf32>
    %1606 = arith.addf %1605, %1575 : vector<2x1xf32>
    %1607 = arith.addf %1606, %1584 : vector<2x1xf32>
    %1608 = arith.addf %1607, %1593 : vector<2x1xf32>
    %1609 = arith.addf %1608, %1602 : vector<2x1xf32>
    %1610 = tpu.reciprocal %1609 {approx = true} : vector<2x1xf32> -> vector<2x1xf32>
    %cst_240 = arith.constant 0.000000e+00 : f32
    %1611 = vector.broadcast %cst_240 : f32 to vector<2x32xf32>
    %1612 = arith.mulf %1539, %1610 : vector<2x1xf32>
    %cst_241 = arith.constant 1.000000e-10 : f32
    %1613 = vector.broadcast %cst_241 : f32 to vector<2x1xf32>
    %1614 = arith.addf %1612, %1613 : vector<2x1xf32>
    %1615 = vector.broadcast %1614 : vector<2x1xf32> to vector<2x32xf32>
    %1616 = arith.mulf %1615, %958 : vector<2x32xf32>
    %1617 = arith.addf %1611, %1616 : vector<2x32xf32>
    %1618 = arith.mulf %1548, %1610 : vector<2x1xf32>
    %cst_242 = arith.constant 1.000000e-10 : f32
    %1619 = vector.broadcast %cst_242 : f32 to vector<2x1xf32>
    %1620 = arith.addf %1618, %1619 : vector<2x1xf32>
    %1621 = vector.broadcast %1620 : vector<2x1xf32> to vector<2x32xf32>
    %1622 = arith.mulf %1621, %959 : vector<2x32xf32>
    %1623 = arith.addf %1617, %1622 : vector<2x32xf32>
    %1624 = arith.mulf %1557, %1610 : vector<2x1xf32>
    %cst_243 = arith.constant 1.000000e-10 : f32
    %1625 = vector.broadcast %cst_243 : f32 to vector<2x1xf32>
    %1626 = arith.addf %1624, %1625 : vector<2x1xf32>
    %1627 = vector.broadcast %1626 : vector<2x1xf32> to vector<2x32xf32>
    %1628 = arith.mulf %1627, %960 : vector<2x32xf32>
    %1629 = arith.addf %1623, %1628 : vector<2x32xf32>
    %1630 = arith.mulf %1566, %1610 : vector<2x1xf32>
    %cst_244 = arith.constant 1.000000e-10 : f32
    %1631 = vector.broadcast %cst_244 : f32 to vector<2x1xf32>
    %1632 = arith.addf %1630, %1631 : vector<2x1xf32>
    %1633 = vector.broadcast %1632 : vector<2x1xf32> to vector<2x32xf32>
    %1634 = arith.mulf %1633, %961 : vector<2x32xf32>
    %1635 = arith.addf %1629, %1634 : vector<2x32xf32>
    %1636 = arith.mulf %1575, %1610 : vector<2x1xf32>
    %cst_245 = arith.constant 1.000000e-10 : f32
    %1637 = vector.broadcast %cst_245 : f32 to vector<2x1xf32>
    %1638 = arith.addf %1636, %1637 : vector<2x1xf32>
    %1639 = vector.broadcast %1638 : vector<2x1xf32> to vector<2x32xf32>
    %1640 = arith.mulf %1639, %962 : vector<2x32xf32>
    %1641 = arith.addf %1635, %1640 : vector<2x32xf32>
    %1642 = arith.mulf %1584, %1610 : vector<2x1xf32>
    %cst_246 = arith.constant 1.000000e-10 : f32
    %1643 = vector.broadcast %cst_246 : f32 to vector<2x1xf32>
    %1644 = arith.addf %1642, %1643 : vector<2x1xf32>
    %1645 = vector.broadcast %1644 : vector<2x1xf32> to vector<2x32xf32>
    %1646 = arith.mulf %1645, %963 : vector<2x32xf32>
    %1647 = arith.addf %1641, %1646 : vector<2x32xf32>
    %1648 = arith.mulf %1593, %1610 : vector<2x1xf32>
    %cst_247 = arith.constant 1.000000e-10 : f32
    %1649 = vector.broadcast %cst_247 : f32 to vector<2x1xf32>
    %1650 = arith.addf %1648, %1649 : vector<2x1xf32>
    %1651 = vector.broadcast %1650 : vector<2x1xf32> to vector<2x32xf32>
    %1652 = arith.mulf %1651, %964 : vector<2x32xf32>
    %1653 = arith.addf %1647, %1652 : vector<2x32xf32>
    %1654 = arith.mulf %1602, %1610 : vector<2x1xf32>
    %cst_248 = arith.constant 1.000000e-10 : f32
    %1655 = vector.broadcast %cst_248 : f32 to vector<2x1xf32>
    %1656 = arith.addf %1654, %1655 : vector<2x1xf32>
    %1657 = vector.broadcast %1656 : vector<2x1xf32> to vector<2x32xf32>
    %1658 = arith.mulf %1657, %965 : vector<2x32xf32>
    %1659 = arith.addf %1653, %1658 : vector<2x32xf32>
    %1660 = arith.addf %958, %959 : vector<2x32xf32>
    %1661 = arith.maximumf %958, %959 : vector<2x32xf32>
    %1662 = arith.addf %1660, %960 : vector<2x32xf32>
    %1663 = arith.maximumf %1661, %960 : vector<2x32xf32>
    %1664 = arith.addf %1662, %961 : vector<2x32xf32>
    %1665 = arith.maximumf %1663, %961 : vector<2x32xf32>
    %1666 = arith.addf %1664, %962 : vector<2x32xf32>
    %1667 = arith.maximumf %1665, %962 : vector<2x32xf32>
    %1668 = arith.addf %1666, %963 : vector<2x32xf32>
    %1669 = arith.maximumf %1667, %963 : vector<2x32xf32>
    %1670 = arith.addf %1668, %964 : vector<2x32xf32>
    %1671 = arith.maximumf %1669, %964 : vector<2x32xf32>
    %1672 = arith.addf %1670, %965 : vector<2x32xf32>
    %1673 = arith.maximumf %1671, %965 : vector<2x32xf32>
    %cst_249 = arith.constant 1.250000e-01 : f32
    %1674 = vector.broadcast %cst_249 : f32 to vector<2x32xf32>
    %1675 = arith.mulf %1672, %1674 : vector<2x32xf32>
    %c0_250 = arith.constant 0 : index
    %c0_251 = arith.constant 0 : index
    %1676 = vector.load %arg1[%c0_250, %c0_251] : memref<2x2xf32, #tpu.memory_space<vmem>>, vector<2x2xf32>
    %1677 = tpu.concatenate %1528, %1659, %1397, %1675, %1673, %1676 in 1 : vector<2x32xf32>, vector<2x32xf32>, vector<2x1xf32>, vector<2x32xf32>, vector<2x32xf32>, vector<2x2xf32> -> vector<2x131xf32>
    %c0_252 = arith.constant 0 : index
    %c0_253 = arith.constant 0 : index
    %1678 = vector.load %arg7[%c0_252, %c0_253] : memref<131x16xf32, #tpu.memory_space<vmem>>, vector<131x16xf32>
    %cst_254 = arith.constant dense<0.000000e+00> : vector<2x16xf32>
    %1679 = tpu.matmul %1677, %1678, %cst_254 {dimension_numbers = #tpu.dot_dimension_numbers<[1], [0], [0], [1], [0, 0, 1, 1], [], []>} : vector<2x131xf32>, vector<131x16xf32>, vector<2x16xf32> -> vector<2x16xf32>
    %1680 = vector.extract_strided_slice %1 {offsets = [8, 0], sizes = [1, 16], strides = [1, 1]} : vector<16x128xf32> to vector<1x16xf32>
    %1681 = vector.broadcast %1680 : vector<1x16xf32> to vector<2x16xf32>
    %1682 = arith.addf %1679, %1681 : vector<2x16xf32>
    %cst_255 = arith.constant 0.000000e+00 : f32
    %1683 = vector.broadcast %cst_255 : f32 to vector<2x16xf32>
    %1684 = arith.maximumf %1682, %1683 : vector<2x16xf32>
    %1685 = vector.extract_strided_slice %1 {offsets = [9, 0], sizes = [1, 16], strides = [1, 1]} : vector<16x128xf32> to vector<1x16xf32>
    %1686 = vector.extract_strided_slice %1 {offsets = [10, 0], sizes = [1, 16], strides = [1, 1]} : vector<16x128xf32> to vector<1x16xf32>
    %1687 = vector.extract_strided_slice %1 {offsets = [11, 0], sizes = [1, 16], strides = [1, 1]} : vector<16x128xf32> to vector<1x16xf32>
    %1688 = vector.extract_strided_slice %1 {offsets = [12, 0], sizes = [1, 16], strides = [1, 1]} : vector<16x128xf32> to vector<1x16xf32>
    %1689 = vector.broadcast %1687 : vector<1x16xf32> to vector<2x16xf32>
    %1690 = arith.subf %1684, %1689 : vector<2x16xf32>
    %cst_256 = arith.constant 9.99999974E-6 : f32
    %1691 = vector.broadcast %cst_256 : f32 to vector<1x16xf32>
    %1692 = arith.addf %1688, %1691 : vector<1x16xf32>
    %1693 = math.rsqrt %1692 : vector<1x16xf32>
    %1694 = vector.broadcast %1693 : vector<1x16xf32> to vector<2x16xf32>
    %1695 = arith.mulf %1690, %1694 : vector<2x16xf32>
    %1696 = vector.broadcast %1685 : vector<1x16xf32> to vector<2x16xf32>
    %1697 = arith.mulf %1695, %1696 : vector<2x16xf32>
    %1698 = vector.broadcast %1686 : vector<1x16xf32> to vector<2x16xf32>
    %1699 = arith.addf %1697, %1698 : vector<2x16xf32>
    %1700 = vector.extract_strided_slice %1 {offsets = [13, 0], sizes = [1, 16], strides = [1, 1]} : vector<16x128xf32> to vector<1x16xf32>
    %1701 = vector.extract_strided_slice %1 {offsets = [14, 1], sizes = [1, 1], strides = [1, 1]} : vector<16x128xf32> to vector<1x1xf32>
    %1702 = vector.broadcast %1700 : vector<1x16xf32> to vector<2x16xf32>
    %1703 = arith.mulf %1699, %1702 : vector<2x16xf32>
    %cst_257 = arith.constant dense<0.000000e+00> : vector<2xf32>
    %1704 = vector.multi_reduction <add>, %1703, %cst_257 [1] : vector<2x16xf32> to vector<2xf32>
    %1705 = vector.shape_cast %1704 : vector<2xf32> to vector<2x1xf32>
    %1706 = vector.broadcast %1701 : vector<1x1xf32> to vector<2x1xf32>
    %1707 = arith.addf %1705, %1706 : vector<2x1xf32>
    %c0_258 = arith.constant 0 : index
    %c0_259 = arith.constant 0 : index
    %1708 = vector.load %arg9[%c0_258, %c0_259] : memref<2x1xf32, #tpu.memory_space<vmem>>, vector<2x1xf32>
    tpu.vector_store %arg9[%c0_258, %c0_259], %1707 {strides = array<i32>} : memref<2x1xf32, #tpu.memory_space<vmem>>, vector<2x1xf32>,
    return
  }
}

</mosaic_0001>

<llo_original>
// kernel: neural_net_forward.1
$region0: #{neural_net_forward.1}
  #allocation0 [shape = 'u32[]', space=smem, size = 0x4, offset = 0x4, fixed_abs, tag = 'smem constant byte address 0x4 - core index']
  #allocation1 [shape = 'u32[144,128]{1,0:T(1,128)}', space=vmem, size = 0x12000, scoped, tag = 'internal scratch']
  %s0 = inlined_call_operand.vmem [shape: f32[16,32], index: 0, kind: input, shape index: {}]
  %s1 = inlined_call_operand.vmem [shape: f32[2,2], index: 1, kind: input, shape index: {}]
  %s2 = inlined_call_operand.vmem [shape: f32[32,128], index: 2, kind: input, shape index: {}]
  %s3 = inlined_call_operand.vmem [shape: f32[32,128], index: 3, kind: input, shape index: {}]
  %s4 = inlined_call_operand.vmem [shape: f32[32,96], index: 4, kind: input, shape index: {}]
  %s5 = inlined_call_operand.vmem [shape: f32[32,96], index: 5, kind: input, shape index: {}]
  %s6 = inlined_call_operand.vmem [shape: f32[32,25], index: 6, kind: input, shape index: {}]
  %s7 = inlined_call_operand.vmem [shape: f32[131,16], index: 7, kind: input, shape index: {}]
  %s8 = inlined_call_operand.vmem [shape: f32[16,128], index: 8, kind: input, shape index: {}]
  %s9 = inlined_call_operand.vmem [shape: f32[2,1], index: 9, kind: output, shape index: {}]
  %s10 = sld [smem:[#allocation0]]
  $region46: #{neural_net_forward.1} parent=0
    _
  %s12 = ssub.s32 1, %s10
  %s13 = scalar_select 0, %s12, %s10
  // Predicated region
  $region2: #{neural_net_forward.1} parent=0 // pred_check
    _
  $region3: #{neural_net_forward.1} parent=0 // pred_check_branch
    %15 = sbr.rel (0) target = $region5
  $region4: #{neural_net_forward.1} parent=0 // pred_region
    _
  $region5: #{neural_net_forward.1} parent=0 // pred_fallthru
    _
  // Predicated region
  $region6: #{neural_net_forward.1} parent=0 // pred_check
    _
  $region7: #{neural_net_forward.1} parent=0 // pred_check_branch
    %17 = sbr.rel (0) target = $region9
  $region8: #{neural_net_forward.1} parent=0 // pred_region
    _
  $region9: #{neural_net_forward.1} parent=0 // pred_fallthru
    _
  // Predicated region
  $region10: #{neural_net_forward.1} parent=0 // pred_check
    _
  $region11: #{neural_net_forward.1} parent=0 // pred_check_branch
    %19 = sbr.rel (0) target = $region13
  $region12: #{neural_net_forward.1} parent=0 // pred_region
    _
  $region13: #{neural_net_forward.1} parent=0 // pred_fallthru
    _
  // Predicated region
  $region14: #{neural_net_forward.1} parent=0 // pred_check
    _
  $region15: #{neural_net_forward.1} parent=0 // pred_check_branch
    %21 = sbr.rel (0) target = $region17
  $region16: #{neural_net_forward.1} parent=0 // pred_region
    _
  $region17: #{neural_net_forward.1} parent=0 // pred_fallthru
    _
  // Predicated region
  $region18: #{neural_net_forward.1} parent=0 // pred_check
    _
  $region19: #{neural_net_forward.1} parent=0 // pred_check_branch
    %23 = sbr.rel (0) target = $region21
  $region20: #{neural_net_forward.1} parent=0 // pred_region
    _
  $region21: #{neural_net_forward.1} parent=0 // pred_fallthru
    _
  // Predicated region
  $region22: #{neural_net_forward.1} parent=0 // pred_check
    _
  $region23: #{neural_net_forward.1} parent=0 // pred_check_branch
    %25 = sbr.rel (0) target = $region25
  $region24: #{neural_net_forward.1} parent=0 // pred_region
    _
  $region25: #{neural_net_forward.1} parent=0 // pred_fallthru
    _
  // Predicated region
  $region26: #{neural_net_forward.1} parent=0 // pred_check
    _
  $region27: #{neural_net_forward.1} parent=0 // pred_check_branch
    %27 = sbr.rel (0) target = $region29
  $region28: #{neural_net_forward.1} parent=0 // pred_region
    _
  $region29: #{neural_net_forward.1} parent=0 // pred_fallthru
    _
  // Predicated region
  $region30: #{neural_net_forward.1} parent=0 // pred_check
    _
  $region31: #{neural_net_forward.1} parent=0 // pred_check_branch
    %29 = sbr.rel (0) target = $region33
  $region32: #{neural_net_forward.1} parent=0 // pred_region
    _
  $region33: #{neural_net_forward.1} parent=0 // pred_fallthru
    _
  // Predicated region
  $region34: #{neural_net_forward.1} parent=0 // pred_check
    _
  $region35: #{neural_net_forward.1} parent=0 // pred_check_branch
    %31 = sbr.rel (0) target = $region37
  $region36: #{neural_net_forward.1} parent=0 // pred_region
    _
  $region37: #{neural_net_forward.1} parent=0 // pred_fallthru
    _
  %v32 = vld [vmem:[%s0] sm:$0xff]
  %v33 = vld [vmem:[%s0 + $0x8] sm:$0xff]
  %v34 = vld [vmem:[%s8] sm:$0xff]
  %v35 = vld [vmem:[%s8 + $0x8] sm:$0xff]
  %v36 = vld [vmem:[%s2] sm:$0xff]
  %v37 = vld [vmem:[%s2 + $0x8] sm:$0xff]
  %v38 = vld [vmem:[%s2 + $0x10] sm:$0xff]
  %v39 = vld [vmem:[%s2 + $0x18] sm:$0xff]
  %v40 = vlaneseq
  %v41 = vshrl.u32 %v40, 7
  %v42 = vsub.s32 0, %v41
  %v43 = vrot.slane %v34, %v42
  %vm44 = vcmask 261120
  %v46 = vsel %vm44, %v32, 0
  %v49 = vsel %vm44, %v33, 0
  %51 = vmatprep.subr.mxu0 0.0
  %52 = vmatpush1.msra.mxu0 %v36
  %53 = vmatprep.subr.mxu0 0.0
  %54 = vmatpush1.msra.mxu0 %v37
  %55 = vmatprep.subr.mxu0 0.0
  %56 = vmatpush1.msra.mxu0 %v38
  %57 = vmatprep.subr.mxu0 0.0
  %58 = vmatpush1.msra.mxu0 %v39
  %59 = vmatprep.subr.mxu0 0.0
  %60 = vmatpush1.msra.mxu0 0.0
  %61 = vmatprep.subr.mxu0 0.0
  %62 = vmatpush1.msra.mxu0 0.0
  %63 = vmatprep.subr.mxu0 0.0
  %64 = vmatpush1.msra.mxu0 0.0
  %65 = vmatprep.subr.mxu0 0.0
  %66 = vmatpush1.msra.mxu0 0.0
  %67 = vmatprep.subr.mxu0 0.0
  %68 = vmatpush1.msra.mxu0 0.0
  %69 = vmatprep.subr.mxu0 0.0
  %70 = vmatpush1.msra.mxu0 0.0
  %71 = vmatprep.subr.mxu0 0.0
  %72 = vmatpush1.msra.mxu0 0.0
  %73 = vmatprep.subr.mxu0 0.0
  %74 = vmatpush1.msra.mxu0 0.0
  %75 = vmatprep.subr.mxu0 0.0
  %76 = vmatpush1.msra.mxu0 0.0
  %77 = vmatprep.subr.mxu0 0.0
  %78 = vmatpush1.msra.mxu0 0.0
  %79 = vmatprep.subr.mxu0 0.0
  %80 = vmatpush1.msra.mxu0 0.0
  %81 = vmatprep.subr.mxu0 0.0
  %82 = vmatpush1.msra.mxu0 0.0
  %83 = vmatprep.subr.mxu0 0.0
  %84 = vmatpush1.msra.mxu0 0.0
  %85 = vmatprep.subr.mxu0 0.0
  %86 = vmatpush1.msra.mxu0 0.0
  %87 = vmatprep.subr.mxu0 0.0
  %88 = vmatpush1.msra.mxu0 0.0
  %89 = vmatprep.subr.mxu0 0.0
  %90 = vmatpush1.msra.mxu0 0.0
  %91 = vmatprep.subr.mxu0 0.0
  %92 = vmatpush1.msra.mxu0 0.0
  %93 = vmatprep.subr.mxu0 0.0
  %94 = vmatpush1.msra.mxu0 0.0
  %95 = vmatprep.subr.mxu0 0.0
  %96 = vmatpush1.msra.mxu0 0.0
  %97 = vmatprep.subr.mxu0 0.0
  %98 = vmatpush1.msra.mxu0 0.0
  %99 = vmatprep.subr.mxu0 0.0
  %100 = vmatpush1.msra.mxu0 0.0
  %101 = vmatprep.subr.mxu0 0.0
  %102 = vmatpush1.msra.mxu0 0.0
  %103 = vmatprep.subr.mxu0 0.0
  %104 = vmatpush1.msra.mxu0 0.0
  %105 = vmatprep.subr.mxu0 0.0
  %106 = vmatpush1.msra.mxu0 0.0
  %107 = vmatprep.subr.mxu0 0.0
  %108 = vmatpush1.msra.mxu0 0.0
  %109 = vmatprep.subr.mxu0 0.0
  %110 = vmatpush1.msra.mxu0 0.0
  %111 = vmatprep.subr.mxu0 0.0
  %112 = vmatpush1.msra.mxu0 0.0
  %113 = vmatprep.subr.mxu0 0.0
  %114 = vmatpush1.msra.mxu0 0.0
  %115 = vmatprep.mubr.f32.mxu0 0.0
  %116 = vmatmul.mubr.f32.gmra.mrb[0].mxu0 %v46
  %v117 = vpop.f32.mrb[0].mxu0
  %v118 = vadd.f32 %v43, %v117
  %v119 = vpop.f32.mrb[0].mxu0
  %120 = vmatprep.mubr.f32.mxu0 0.0
  %121 = vmatmul.mubr.f32.gmra.mrb[0].mxu0 %v49
  %v122 = vpop.f32.mrb[0].mxu0
  %v123 = vadd.f32 %v43, %v122
  %v124 = vpop.f32.mrb[0].mxu0
  %125 = vdwg.mxu0
  %v126 = vld [vmem:[%s3] sm:$0xff]
  %v127 = vld [vmem:[%s3 + $0x8] sm:$0xff]
  %v128 = vld [vmem:[%s3 + $0x10] sm:$0xff]
  %v129 = vld [vmem:[%s3 + $0x18] sm:$0xff]
  %v131 = vsel %vm44, 0.0, 0
  %133 = vmatprep.subr.mxu0 0.0
  %134 = vmatpush1.msra.mxu0 %v126
  %135 = vmatprep.subr.mxu0 0.0
  %136 = vmatpush1.msra.mxu0 %v127
  %137 = vmatprep.subr.mxu0 0.0
  %138 = vmatpush1.msra.mxu0 %v128
  %139 = vmatprep.subr.mxu0 0.0
  %140 = vmatpush1.msra.mxu0 %v129
  %141 = vmatprep.subr.mxu0 0.0
  %142 = vmatpush1.msra.mxu0 0.0
  %143 = vmatprep.subr.mxu0 0.0
  %144 = vmatpush1.msra.mxu0 0.0
  %145 = vmatprep.subr.mxu0 0.0
  %146 = vmatpush1.msra.mxu0 0.0
  %147 = vmatprep.subr.mxu0 0.0
  %148 = vmatpush1.msra.mxu0 0.0
  %149 = vmatprep.subr.mxu0 0.0
  %150 = vmatpush1.msra.mxu0 0.0
  %151 = vmatprep.subr.mxu0 0.0
  %152 = vmatpush1.msra.mxu0 0.0
  %153 = vmatprep.subr.mxu0 0.0
  %154 = vmatpush1.msra.mxu0 0.0
  %155 = vmatprep.subr.mxu0 0.0
  %156 = vmatpush1.msra.mxu0 0.0
  %157 = vmatprep.subr.mxu0 0.0
  %158 = vmatpush1.msra.mxu0 0.0
  %159 = vmatprep.subr.mxu0 0.0
  %160 = vmatpush1.msra.mxu0 0.0
  %161 = vmatprep.subr.mxu0 0.0
  %162 = vmatpush1.msra.mxu0 0.0
  %163 = vmatprep.subr.mxu0 0.0
  %164 = vmatpush1.msra.mxu0 0.0
  %165 = vmatprep.subr.mxu0 0.0
  %166 = vmatpush1.msra.mxu0 0.0
  %167 = vmatprep.subr.mxu0 0.0
  %168 = vmatpush1.msra.mxu0 0.0
  %169 = vmatprep.subr.mxu0 0.0
  %170 = vmatpush1.msra.mxu0 0.0
  %171 = vmatprep.subr.mxu0 0.0
  %172 = vmatpush1.msra.mxu0 0.0
  %173 = vmatprep.subr.mxu0 0.0
  %174 = vmatpush1.msra.mxu0 0.0
  %175 = vmatprep.subr.mxu0 0.0
  %176 = vmatpush1.msra.mxu0 0.0
  %177 = vmatprep.subr.mxu0 0.0
  %178 = vmatpush1.msra.mxu0 0.0
  %179 = vmatprep.subr.mxu0 0.0
  %180 = vmatpush1.msra.mxu0 0.0
  %181 = vmatprep.subr.mxu0 0.0
  %182 = vmatpush1.msra.mxu0 0.0
  %183 = vmatprep.subr.mxu0 0.0
  %184 = vmatpush1.msra.mxu0 0.0
  %185 = vmatprep.subr.mxu0 0.0
  %186 = vmatpush1.msra.mxu0 0.0
  %187 = vmatprep.subr.mxu0 0.0
  %188 = vmatpush1.msra.mxu0 0.0
  %189 = vmatprep.subr.mxu0 0.0
  %190 = vmatpush1.msra.mxu0 0.0
  %191 = vmatprep.subr.mxu0 0.0
  %192 = vmatpush1.msra.mxu0 0.0
  %193 = vmatprep.subr.mxu0 0.0
  %194 = vmatpush1.msra.mxu0 0.0
  %195 = vmatprep.subr.mxu0 0.0
  %196 = vmatpush1.msra.mxu0 0.0
  %197 = vmatprep.mubr.f32.mxu0 0.0
  %198 = vmatmul.mubr.f32.gmra.mrb[0].mxu0 %v131
  %v199 = vpop.f32.mrb[0].mxu0
  %v200 = vadd.f32 0.0, %v199
  %v201 = vpop.f32.mrb[0].mxu0
  %202 = vdwg.mxu0
  %v203 = vadd.f32 %v118, %v200
  %v205 = vrot.slane %v200, 2
  %v207 = vadd.f32 %v123, %v205
  %v208 = vxor.u32 %v203, 2147483648
  %v209 = vmul.f32 %v208, 1.442695
  %v210 = vpow.pop %v209
  %v211 = vadd.f32 %v210, 1.0
  %v212 = vrcp.pop %v211
  %v213 = vmul.f32 1.0, %v212
  %v214 = vtanh.pop %v203
  %v215 = vmul.f32 %v213, 0.0
  %217 = vrot.lane.b32.xlu0 %v214, 96
  %v218 = vpop.permute.xlu0 %217
  %v220 = vmul.f32 %v213, %v218
  %222 = vrot.lane.b32.xlu0 %v220, 16
  %v223 = vpop.permute.xlu0 %222
  %v225 = vadd.f32 %v215, %v223
  %v226 = vtanh.pop %v225
  %228 = vrot.lane.b32.xlu0 %v226, 32
  %v229 = vpop.permute.xlu0 %228
  %v231 = vmul.f32 %v213, %v229
  %v232 = vxor.u32 %v207, 2147483648
  %v233 = vmul.f32 %v232, 1.442695
  %v234 = vpow.pop %v233
  %v235 = vadd.f32 %v234, 1.0
  %v236 = vrcp.pop %v235
  %v237 = vmul.f32 1.0, %v236
  %v238 = vtanh.pop %v207
  %v239 = vmul.f32 %v237, 0.0
  %241 = vrot.lane.b32.xlu0 %v238, 96
  %v242 = vpop.permute.xlu0 %241
  %v244 = vmul.f32 %v237, %v242
  %246 = vrot.lane.b32.xlu0 %v244, 16
  %v247 = vpop.permute.xlu0 %246
  %v249 = vadd.f32 %v239, %v247
  %v250 = vtanh.pop %v249
  %252 = vrot.lane.b32.xlu0 %v250, 32
  %v253 = vpop.permute.xlu0 %252
  %v255 = vmul.f32 %v237, %v253
  %257 = vrot.lane.b32.xlu0 %v231, 80
  %v258 = vpop.permute.xlu0 %257
  %v261 = vrot.slane %v255, 6
  %262 = vrot.lane.b32.xlu0 %v261, 32
  %v263 = vpop.permute.xlu0 %262
  %vm265 = vcmask 130048
  %v266 = vsel %vm265, %v258, %v263
  %v268 = vsel %vm44, %v266, 0
  %270 = vmatprep.subr.mxu0 0.0
  %271 = vmatpush1.msra.mxu0 %v126
  %272 = vmatprep.subr.mxu0 0.0
  %273 = vmatpush1.msra.mxu0 %v127
  %274 = vmatprep.subr.mxu0 0.0
  %275 = vmatpush1.msra.mxu0 %v128
  %276 = vmatprep.subr.mxu0 0.0
  %277 = vmatpush1.msra.mxu0 %v129
  %278 = vmatprep.subr.mxu0 0.0
  %279 = vmatpush1.msra.mxu0 0.0
  %280 = vmatprep.subr.mxu0 0.0
  %281 = vmatpush1.msra.mxu0 0.0
  %282 = vmatprep.subr.mxu0 0.0
  %283 = vmatpush1.msra.mxu0 0.0
  %284 = vmatprep.subr.mxu0 0.0
  %285 = vmatpush1.msra.mxu0 0.0
  %286 = vmatprep.subr.mxu0 0.0
  %287 = vmatpush1.msra.mxu0 0.0
  %288 = vmatprep.subr.mxu0 0.0
  %289 = vmatpush1.msra.mxu0 0.0
  %290 = vmatprep.subr.mxu0 0.0
  %291 = vmatpush1.msra.mxu0 0.0
  %292 = vmatprep.subr.mxu0 0.0
  %293 = vmatpush1.msra.mxu0 0.0
  %294 = vmatprep.subr.mxu0 0.0
  %295 = vmatpush1.msra.mxu0 0.0
  %296 = vmatprep.subr.mxu0 0.0
  %297 = vmatpush1.msra.mxu0 0.0
  %298 = vmatprep.subr.mxu0 0.0
  %299 = vmatpush1.msra.mxu0 0.0
  %300 = vmatprep.subr.mxu0 0.0
  %301 = vmatpush1.msra.mxu0 0.0
  %302 = vmatprep.subr.mxu0 0.0
  %303 = vmatpush1.msra.mxu0 0.0
  %304 = vmatprep.subr.mxu0 0.0
  %305 = vmatpush1.msra.mxu0 0.0
  %306 = vmatprep.subr.mxu0 0.0
  %307 = vmatpush1.msra.mxu0 0.0
  %308 = vmatprep.subr.mxu0 0.0
  %309 = vmatpush1.msra.mxu0 0.0
  %310 = vmatprep.subr.mxu0 0.0
  %311 = vmatpush1.msra.mxu0 0.0
  %312 = vmatprep.subr.mxu0 0.0
  %313 = vmatpush1.msra.mxu0 0.0
  %314 = vmatprep.subr.mxu0 0.0
  %315 = vmatpush1.msra.mxu0 0.0
  %316 = vmatprep.subr.mxu0 0.0
  %317 = vmatpush1.msra.mxu0 0.0
  %318 = vmatprep.subr.mxu0 0.0
  %319 = vmatpush1.msra.mxu0 0.0
  %320 = vmatprep.subr.mxu0 0.0
  %321 = vmatpush1.msra.mxu0 0.0
  %322 = vmatprep.subr.mxu0 0.0
  %323 = vmatpush1.msra.mxu0 0.0
  %324 = vmatprep.subr.mxu0 0.0
  %325 = vmatpush1.msra.mxu0 0.0
  %326 = vmatprep.subr.mxu0 0.0
  %327 = vmatpush1.msra.mxu0 0.0
  %328 = vmatprep.subr.mxu0 0.0
  %329 = vmatpush1.msra.mxu0 0.0
  %330 = vmatprep.subr.mxu0 0.0
  %331 = vmatpush1.msra.mxu0 0.0
  %332 = vmatprep.subr.mxu0 0.0
  %333 = vmatpush1.msra.mxu0 0.0
  %334 = vmatprep.mubr.f32.mxu0 0.0
  %335 = vmatmul.mubr.f32.gmra.mrb[0].mxu0 %v268
  %v336 = vpop.f32.mrb[0].mxu0
  %v337 = vadd.f32 0.0, %v336
  %v338 = vpop.f32.mrb[0].mxu0
  %339 = vdwg.mxu0
  %v341 = vrot.slane %v337, 6
  %v343 = vadd.f32 %v118, %v341
  %v344 = vrot.slane %v337, 4
  %v346 = vadd.f32 %v123, %v344
  %v347 = vxor.u32 %v343, 2147483648
  %v348 = vmul.f32 %v347, 1.442695
  %v349 = vpow.pop %v348
  %v350 = vadd.f32 %v349, 1.0
  %v351 = vrcp.pop %v350
  %v352 = vmul.f32 1.0, %v351
  %v353 = vtanh.pop %v343
  %v355 = vrot.slane %v225, 6
  %v357 = vmul.f32 %v352, %v355
  %359 = vrot.lane.b32.xlu0 %v353, 96
  %v360 = vpop.permute.xlu0 %359
  %v362 = vmul.f32 %v352, %v360
  %364 = vrot.lane.b32.xlu0 %v362, 16
  %v365 = vpop.permute.xlu0 %364
  %v367 = vadd.f32 %v357, %v365
  %v368 = vtanh.pop %v367
  %370 = vrot.lane.b32.xlu0 %v368, 32
  %v371 = vpop.permute.xlu0 %370
  %v373 = vmul.f32 %v352, %v371
  %v374 = vxor.u32 %v346, 2147483648
  %v375 = vmul.f32 %v374, 1.442695
  %v376 = vpow.pop %v375
  %v377 = vadd.f32 %v376, 1.0
  %v378 = vrcp.pop %v377
  %v379 = vmul.f32 1.0, %v378
  %v380 = vtanh.pop %v346
  %v382 = vrot.slane %v249, 2
  %v384 = vmul.f32 %v379, %v382
  %386 = vrot.lane.b32.xlu0 %v380, 96
  %v387 = vpop.permute.xlu0 %386
  %v389 = vmul.f32 %v379, %v387
  %391 = vrot.lane.b32.xlu0 %v389, 16
  %v392 = vpop.permute.xlu0 %391
  %v394 = vadd.f32 %v384, %v392
  %v395 = vtanh.pop %v394
  %397 = vrot.lane.b32.xlu0 %v395, 32
  %v398 = vpop.permute.xlu0 %397
  %v400 = vmul.f32 %v379, %v398
  %402 = vrot.lane.b32.xlu0 %v373, 80
  %v403 = vpop.permute.xlu0 %402
  %v406 = vrot.slane %v400, 2
  %407 = vrot.lane.b32.xlu0 %v406, 32
  %v408 = vpop.permute.xlu0 %407
  %v410 = vsel %vm265, %v403, %v408
  %v412 = vrot.slane %v410, 2
  %v413 = vsel %vm44, %v412, 0
  %415 = vmatprep.subr.mxu0 0.0
  %416 = vmatpush1.msra.mxu0 %v126
  %417 = vmatprep.subr.mxu0 0.0
  %418 = vmatpush1.msra.mxu0 %v127
  %419 = vmatprep.subr.mxu0 0.0
  %420 = vmatpush1.msra.mxu0 %v128
  %421 = vmatprep.subr.mxu0 0.0
  %422 = vmatpush1.msra.mxu0 %v129
  %423 = vmatprep.subr.mxu0 0.0
  %424 = vmatpush1.msra.mxu0 0.0
  %425 = vmatprep.subr.mxu0 0.0
  %426 = vmatpush1.msra.mxu0 0.0
  %427 = vmatprep.subr.mxu0 0.0
  %428 = vmatpush1.msra.mxu0 0.0
  %429 = vmatprep.subr.mxu0 0.0
  %430 = vmatpush1.msra.mxu0 0.0
  %431 = vmatprep.subr.mxu0 0.0
  %432 = vmatpush1.msra.mxu0 0.0
  %433 = vmatprep.subr.mxu0 0.0
  %434 = vmatpush1.msra.mxu0 0.0
  %435 = vmatprep.subr.mxu0 0.0
  %436 = vmatpush1.msra.mxu0 0.0
  %437 = vmatprep.subr.mxu0 0.0
  %438 = vmatpush1.msra.mxu0 0.0
  %439 = vmatprep.subr.mxu0 0.0
  %440 = vmatpush1.msra.mxu0 0.0
  %441 = vmatprep.subr.mxu0 0.0
  %442 = vmatpush1.msra.mxu0 0.0
  %443 = vmatprep.subr.mxu0 0.0
  %444 = vmatpush1.msra.mxu0 0.0
  %445 = vmatprep.subr.mxu0 0.0
  %446 = vmatpush1.msra.mxu0 0.0
  %447 = vmatprep.subr.mxu0 0.0
  %448 = vmatpush1.msra.mxu0 0.0
  %449 = vmatprep.subr.mxu0 0.0
  %450 = vmatpush1.msra.mxu0 0.0
  %451 = vmatprep.subr.mxu0 0.0
  %452 = vmatpush1.msra.mxu0 0.0
  %453 = vmatprep.subr.mxu0 0.0
  %454 = vmatpush1.msra.mxu0 0.0
  %455 = vmatprep.subr.mxu0 0.0
  %456 = vmatpush1.msra.mxu0 0.0
  %457 = vmatprep.subr.mxu0 0.0
  %458 = vmatpush1.msra.mxu0 0.0
  %459 = vmatprep.subr.mxu0 0.0
  %460 = vmatpush1.msra.mxu0 0.0
  %461 = vmatprep.subr.mxu0 0.0
  %462 = vmatpush1.msra.mxu0 0.0
  %463 = vmatprep.subr.mxu0 0.0
  %464 = vmatpush1.msra.mxu0 0.0
  %465 = vmatprep.subr.mxu0 0.0
  %466 = vmatpush1.msra.mxu0 0.0
  %467 = vmatprep.subr.mxu0 0.0
  %468 = vmatpush1.msra.mxu0 0.0
  %469 = vmatprep.subr.mxu0 0.0
  %470 = vmatpush1.msra.mxu0 0.0
  %471 = vmatprep.subr.mxu0 0.0
  %472 = vmatpush1.msra.mxu0 0.0
  %473 = vmatprep.subr.mxu0 0.0
  %474 = vmatpush1.msra.mxu0 0.0
  %475 = vmatprep.subr.mxu0 0.0
  %476 = vmatpush1.msra.mxu0 0.0
  %477 = vmatprep.subr.mxu0 0.0
  %478 = vmatpush1.msra.mxu0 0.0
  %479 = vmatprep.mubr.f32.mxu0 0.0
  %480 = vmatmul.mubr.f32.gmra.mrb[0].mxu0 %v413
  %v481 = vpop.f32.mrb[0].mxu0
  %v482 = vadd.f32 0.0, %v481
  %v483 = vpop.f32.mrb[0].mxu0
  %484 = vdwg.mxu0
  %v486 = vrot.slane %v482, 4
  %v488 = vadd.f32 %v118, %v486
  %v489 = vrot.slane %v482, 6
  %v491 = vadd.f32 %v123, %v489
  %v492 = vxor.u32 %v488, 2147483648
  %v493 = vmul.f32 %v492, 1.442695
  %v494 = vpow.pop %v493
  %v495 = vadd.f32 %v494, 1.0
  %v496 = vrcp.pop %v495
  %v497 = vmul.f32 1.0, %v496
  %v498 = vtanh.pop %v488
  %v500 = vrot.slane %v367, 6
  %v502 = vmul.f32 %v497, %v500
  %504 = vrot.lane.b32.xlu0 %v498, 96
  %v505 = vpop.permute.xlu0 %504
  %v507 = vmul.f32 %v497, %v505
  %509 = vrot.lane.b32.xlu0 %v507, 16
  %v510 = vpop.permute.xlu0 %509
  %v512 = vadd.f32 %v502, %v510
  %v513 = vtanh.pop %v512
  %515 = vrot.lane.b32.xlu0 %v513, 32
  %v516 = vpop.permute.xlu0 %515
  %v518 = vmul.f32 %v497, %v516
  %v519 = vxor.u32 %v491, 2147483648
  %v520 = vmul.f32 %v519, 1.442695
  %v521 = vpow.pop %v520
  %v522 = vadd.f32 %v521, 1.0
  %v523 = vrcp.pop %v522
  %v524 = vmul.f32 1.0, %v523
  %v525 = vtanh.pop %v491
  %v527 = vrot.slane %v394, 2
  %v529 = vmul.f32 %v524, %v527
  %531 = vrot.lane.b32.xlu0 %v525, 96
  %v532 = vpop.permute.xlu0 %531
  %v534 = vmul.f32 %v524, %v532
  %536 = vrot.lane.b32.xlu0 %v534, 16
  %v537 = vpop.permute.xlu0 %536
  %v539 = vadd.f32 %v529, %v537
  %v540 = vtanh.pop %v539
  %542 = vrot.lane.b32.xlu0 %v540, 32
  %v543 = vpop.permute.xlu0 %542
  %v545 = vmul.f32 %v524, %v543
  %547 = vrot.lane.b32.xlu0 %v518, 80
  %v548 = vpop.permute.xlu0 %547
  %v551 = vrot.slane %v545, 6
  %552 = vrot.lane.b32.xlu0 %v551, 32
  %v553 = vpop.permute.xlu0 %552
  %v555 = vsel %vm265, %v548, %v553
  %v557 = vrot.slane %v555, 4
  %v558 = vsel %vm44, %v557, 0
  %560 = vmatprep.subr.mxu0 0.0
  %561 = vmatpush1.msra.mxu0 %v126
  %562 = vmatprep.subr.mxu0 0.0
  %563 = vmatpush1.msra.mxu0 %v127
  %564 = vmatprep.subr.mxu0 0.0
  %565 = vmatpush1.msra.mxu0 %v128
  %566 = vmatprep.subr.mxu0 0.0
  %567 = vmatpush1.msra.mxu0 %v129
  %568 = vmatprep.subr.mxu0 0.0
  %569 = vmatpush1.msra.mxu0 0.0
  %570 = vmatprep.subr.mxu0 0.0
  %571 = vmatpush1.msra.mxu0 0.0
  %572 = vmatprep.subr.mxu0 0.0
  %573 = vmatpush1.msra.mxu0 0.0
  %574 = vmatprep.subr.mxu0 0.0
  %575 = vmatpush1.msra.mxu0 0.0
  %576 = vmatprep.subr.mxu0 0.0
  %577 = vmatpush1.msra.mxu0 0.0
  %578 = vmatprep.subr.mxu0 0.0
  %579 = vmatpush1.msra.mxu0 0.0
  %580 = vmatprep.subr.mxu0 0.0
  %581 = vmatpush1.msra.mxu0 0.0
  %582 = vmatprep.subr.mxu0 0.0
  %583 = vmatpush1.msra.mxu0 0.0
  %584 = vmatprep.subr.mxu0 0.0
  %585 = vmatpush1.msra.mxu0 0.0
  %586 = vmatprep.subr.mxu0 0.0
  %587 = vmatpush1.msra.mxu0 0.0
  %588 = vmatprep.subr.mxu0 0.0
  %589 = vmatpush1.msra.mxu0 0.0
  %590 = vmatprep.subr.mxu0 0.0
  %591 = vmatpush1.msra.mxu0 0.0
  %592 = vmatprep.subr.mxu0 0.0
  %593 = vmatpush1.msra.mxu0 0.0
  %594 = vmatprep.subr.mxu0 0.0
  %595 = vmatpush1.msra.mxu0 0.0
  %596 = vmatprep.subr.mxu0 0.0
  %597 = vmatpush1.msra.mxu0 0.0
  %598 = vmatprep.subr.mxu0 0.0
  %599 = vmatpush1.msra.mxu0 0.0
  %600 = vmatprep.subr.mxu0 0.0
  %601 = vmatpush1.msra.mxu0 0.0
  %602 = vmatprep.subr.mxu0 0.0
  %603 = vmatpush1.msra.mxu0 0.0
  %604 = vmatprep.subr.mxu0 0.0
  %605 = vmatpush1.msra.mxu0 0.0
  %606 = vmatprep.subr.mxu0 0.0
  %607 = vmatpush1.msra.mxu0 0.0
  %608 = vmatprep.subr.mxu0 0.0
  %609 = vmatpush1.msra.mxu0 0.0
  %610 = vmatprep.subr.mxu0 0.0
  %611 = vmatpush1.msra.mxu0 0.0
  %612 = vmatprep.subr.mxu0 0.0
  %613 = vmatpush1.msra.mxu0 0.0
  %614 = vmatprep.subr.mxu0 0.0
  %615 = vmatpush1.msra.mxu0 0.0
  %616 = vmatprep.subr.mxu0 0.0
  %617 = vmatpush1.msra.mxu0 0.0
  %618 = vmatprep.subr.mxu0 0.0
  %619 = vmatpush1.msra.mxu0 0.0
  %620 = vmatprep.subr.mxu0 0.0
  %621 = vmatpush1.msra.mxu0 0.0
  %622 = vmatprep.subr.mxu0 0.0
  %623 = vmatpush1.msra.mxu0 0.0
  %624 = vmatprep.mubr.f32.mxu0 0.0
  %625 = vmatmul.mubr.f32.gmra.mrb[0].mxu0 %v558
  %v626 = vpop.f32.mrb[0].mxu0
  %v627 = vadd.f32 0.0, %v626
  %v628 = vpop.f32.mrb[0].mxu0
  %629 = vdwg.mxu0
  %v631 = vrot.slane %v627, 2
  %v633 = vadd.f32 %v118, %v631
  %v634 = vadd.f32 %v123, %v627
  %v635 = vxor.u32 %v633, 2147483648
  %v636 = vmul.f32 %v635, 1.442695
  %v637 = vpow.pop %v636
  %v638 = vadd.f32 %v637, 1.0
  %v639 = vrcp.pop %v638
  %v640 = vmul.f32 1.0, %v639
  %v641 = vtanh.pop %v633
  %v643 = vrot.slane %v512, 6
  %v645 = vmul.f32 %v640, %v643
  %647 = vrot.lane.b32.xlu0 %v641, 96
  %v648 = vpop.permute.xlu0 %647
  %v650 = vmul.f32 %v640, %v648
  %652 = vrot.lane.b32.xlu0 %v650, 16
  %v653 = vpop.permute.xlu0 %652
  %v655 = vadd.f32 %v645, %v653
  %v656 = vtanh.pop %v655
  %658 = vrot.lane.b32.xlu0 %v656, 32
  %v659 = vpop.permute.xlu0 %658
  %v661 = vmul.f32 %v640, %v659
  %v662 = vxor.u32 %v634, 2147483648
  %v663 = vmul.f32 %v662, 1.442695
  %v664 = vpow.pop %v663
  %v665 = vadd.f32 %v664, 1.0
  %v666 = vrcp.pop %v665
  %v667 = vmul.f32 1.0, %v666
  %v668 = vtanh.pop %v634
  %v670 = vrot.slane %v539, 2
  %v672 = vmul.f32 %v667, %v670
  %674 = vrot.lane.b32.xlu0 %v668, 96
  %v675 = vpop.permute.xlu0 %674
  %v677 = vmul.f32 %v667, %v675
  %679 = vrot.lane.b32.xlu0 %v677, 16
  %v680 = vpop.permute.xlu0 %679
  %v682 = vadd.f32 %v672, %v680
  %v683 = vtanh.pop %v682
  %685 = vrot.lane.b32.xlu0 %v683, 32
  %v686 = vpop.permute.xlu0 %685
  %v688 = vmul.f32 %v667, %v686
  %690 = vrot.lane.b32.xlu0 %v661, 80
  %v691 = vpop.permute.xlu0 %690
  %v694 = vrot.slane %v688, 2
  %695 = vrot.lane.b32.xlu0 %v694, 32
  %v696 = vpop.permute.xlu0 %695
  %v698 = vsel %vm265, %v691, %v696
  %v700 = vrot.slane %v698, 6
  %v701 = vsel %vm44, %v700, 0
  %703 = vmatprep.subr.mxu0 0.0
  %704 = vmatpush1.msra.mxu0 %v126
  %705 = vmatprep.subr.mxu0 0.0
  %706 = vmatpush1.msra.mxu0 %v127
  %707 = vmatprep.subr.mxu0 0.0
  %708 = vmatpush1.msra.mxu0 %v128
  %709 = vmatprep.subr.mxu0 0.0
  %710 = vmatpush1.msra.mxu0 %v129
  %711 = vmatprep.subr.mxu0 0.0
  %712 = vmatpush1.msra.mxu0 0.0
  %713 = vmatprep.subr.mxu0 0.0
  %714 = vmatpush1.msra.mxu0 0.0
  %715 = vmatprep.subr.mxu0 0.0
  %716 = vmatpush1.msra.mxu0 0.0
  %717 = vmatprep.subr.mxu0 0.0
  %718 = vmatpush1.msra.mxu0 0.0
  %719 = vmatprep.subr.mxu0 0.0
  %720 = vmatpush1.msra.mxu0 0.0
  %721 = vmatprep.subr.mxu0 0.0
  %722 = vmatpush1.msra.mxu0 0.0
  %723 = vmatprep.subr.mxu0 0.0
  %724 = vmatpush1.msra.mxu0 0.0
  %725 = vmatprep.subr.mxu0 0.0
  %726 = vmatpush1.msra.mxu0 0.0
  %727 = vmatprep.subr.mxu0 0.0
  %728 = vmatpush1.msra.mxu0 0.0
  %729 = vmatprep.subr.mxu0 0.0
  %730 = vmatpush1.msra.mxu0 0.0
  %731 = vmatprep.subr.mxu0 0.0
  %732 = vmatpush1.msra.mxu0 0.0
  %733 = vmatprep.subr.mxu0 0.0
  %734 = vmatpush1.msra.mxu0 0.0
  %735 = vmatprep.subr.mxu0 0.0
  %736 = vmatpush1.msra.mxu0 0.0
  %737 = vmatprep.subr.mxu0 0.0
  %738 = vmatpush1.msra.mxu0 0.0
  %739 = vmatprep.subr.mxu0 0.0
  %740 = vmatpush1.msra.mxu0 0.0
  %741 = vmatprep.subr.mxu0 0.0
  %742 = vmatpush1.msra.mxu0 0.0
  %743 = vmatprep.subr.mxu0 0.0
  %744 = vmatpush1.msra.mxu0 0.0
  %745 = vmatprep.subr.mxu0 0.0
  %746 = vmatpush1.msra.mxu0 0.0
  %747 = vmatprep.subr.mxu0 0.0
  %748 = vmatpush1.msra.mxu0 0.0
  %749 = vmatprep.subr.mxu0 0.0
  %750 = vmatpush1.msra.mxu0 0.0
  %751 = vmatprep.subr.mxu0 0.0
  %752 = vmatpush1.msra.mxu0 0.0
  %753 = vmatprep.subr.mxu0 0.0
  %754 = vmatpush1.msra.mxu0 0.0
  %755 = vmatprep.subr.mxu0 0.0
  %756 = vmatpush1.msra.mxu0 0.0
  %757 = vmatprep.subr.mxu0 0.0
  %758 = vmatpush1.msra.mxu0 0.0
  %759 = vmatprep.subr.mxu0 0.0
  %760 = vmatpush1.msra.mxu0 0.0
  %761 = vmatprep.subr.mxu0 0.0
  %762 = vmatpush1.msra.mxu0 0.0
  %763 = vmatprep.subr.mxu0 0.0
  %764 = vmatpush1.msra.mxu0 0.0
  %765 = vmatprep.subr.mxu0 0.0
  %766 = vmatpush1.msra.mxu0 0.0
  %767 = vmatprep.mubr.f32.mxu0 0.0
  %768 = vmatmul.mubr.f32.gmra.mrb[0].mxu0 %v701
  %v769 = vpop.f32.mrb[0].mxu0
  %v770 = vadd.f32 0.0, %v769
  %v771 = vpop.f32.mrb[0].mxu0
  %772 = vdwg.mxu0
  %v773 = vadd.f32 %v123, %v770
  %v775 = vrot.slane %v770, 2
  %v777 = vadd.f32 %v118, %v775
  %v778 = vxor.u32 %v773, 2147483648
  %v779 = vmul.f32 %v778, 1.442695
  %v780 = vpow.pop %v779
  %v781 = vadd.f32 %v780, 1.0
  %v782 = vrcp.pop %v781
  %v783 = vmul.f32 1.0, %v782
  %v784 = vtanh.pop %v773
  %v786 = vrot.slane %v655, 6
  %v788 = vmul.f32 %v783, %v786
  %790 = vrot.lane.b32.xlu0 %v784, 96
  %v791 = vpop.permute.xlu0 %790
  %v793 = vmul.f32 %v783, %v791
  %795 = vrot.lane.b32.xlu0 %v793, 16
  %v796 = vpop.permute.xlu0 %795
  %v798 = vadd.f32 %v788, %v796
  %v799 = vtanh.pop %v798
  %801 = vrot.lane.b32.xlu0 %v799, 32
  %v802 = vpop.permute.xlu0 %801
  %v804 = vmul.f32 %v783, %v802
  %v805 = vxor.u32 %v777, 2147483648
  %v806 = vmul.f32 %v805, 1.442695
  %v807 = vpow.pop %v806
  %v808 = vadd.f32 %v807, 1.0
  %v809 = vrcp.pop %v808
  %v810 = vmul.f32 1.0, %v809
  %v811 = vtanh.pop %v777
  %v813 = vrot.slane %v682, 2
  %v815 = vmul.f32 %v810, %v813
  %817 = vrot.lane.b32.xlu0 %v811, 96
  %v818 = vpop.permute.xlu0 %817
  %v820 = vmul.f32 %v810, %v818
  %822 = vrot.lane.b32.xlu0 %v820, 16
  %v823 = vpop.permute.xlu0 %822
  %v825 = vadd.f32 %v815, %v823
  %v826 = vtanh.pop %v825
  %828 = vrot.lane.b32.xlu0 %v826, 32
  %v829 = vpop.permute.xlu0 %828
  %v831 = vmul.f32 %v810, %v829
  %833 = vrot.lane.b32.xlu0 %v804, 80
  %v834 = vpop.permute.xlu0 %833
  %v837 = vrot.slane %v831, 6
  %838 = vrot.lane.b32.xlu0 %v837, 32
  %v839 = vpop.permute.xlu0 %838
  %v841 = vsel %vm265, %v834, %v839
  %v843 = vsel %vm44, %v841, 0
  %845 = vmatprep.subr.mxu0 0.0
  %846 = vmatpush1.msra.mxu0 %v126
  %847 = vmatprep.subr.mxu0 0.0
  %848 = vmatpush1.msra.mxu0 %v127
  %849 = vmatprep.subr.mxu0 0.0
  %850 = vmatpush1.msra.mxu0 %v128
  %851 = vmatprep.subr.mxu0 0.0
  %852 = vmatpush1.msra.mxu0 %v129
  %853 = vmatprep.subr.mxu0 0.0
  %854 = vmatpush1.msra.mxu0 0.0
  %855 = vmatprep.subr.mxu0 0.0
  %856 = vmatpush1.msra.mxu0 0.0
  %857 = vmatprep.subr.mxu0 0.0
  %858 = vmatpush1.msra.mxu0 0.0
  %859 = vmatprep.subr.mxu0 0.0
  %860 = vmatpush1.msra.mxu0 0.0
  %861 = vmatprep.subr.mxu0 0.0
  %862 = vmatpush1.msra.mxu0 0.0
  %863 = vmatprep.subr.mxu0 0.0
  %864 = vmatpush1.msra.mxu0 0.0
  %865 = vmatprep.subr.mxu0 0.0
  %866 = vmatpush1.msra.mxu0 0.0
  %867 = vmatprep.subr.mxu0 0.0
  %868 = vmatpush1.msra.mxu0 0.0
  %869 = vmatprep.subr.mxu0 0.0
  %870 = vmatpush1.msra.mxu0 0.0
  %871 = vmatprep.subr.mxu0 0.0
  %872 = vmatpush1.msra.mxu0 0.0
  %873 = vmatprep.subr.mxu0 0.0
  %874 = vmatpush1.msra.mxu0 0.0
  %875 = vmatprep.subr.mxu0 0.0
  %876 = vmatpush1.msra.mxu0 0.0
  %877 = vmatprep.subr.mxu0 0.0
  %878 = vmatpush1.msra.mxu0 0.0
  %879 = vmatprep.subr.mxu0 0.0
  %880 = vmatpush1.msra.mxu0 0.0
  %881 = vmatprep.subr.mxu0 0.0
  %882 = vmatpush1.msra.mxu0 0.0
  %883 = vmatprep.subr.mxu0 0.0
  %884 = vmatpush1.msra.mxu0 0.0
  %885 = vmatprep.subr.mxu0 0.0
  %886 = vmatpush1.msra.mxu0 0.0
  %887 = vmatprep.subr.mxu0 0.0
  %888 = vmatpush1.msra.mxu0 0.0
  %889 = vmatprep.subr.mxu0 0.0
  %890 = vmatpush1.msra.mxu0 0.0
  %891 = vmatprep.subr.mxu0 0.0
  %892 = vmatpush1.msra.mxu0 0.0
  %893 = vmatprep.subr.mxu0 0.0
  %894 = vmatpush1.msra.mxu0 0.0
  %895 = vmatprep.subr.mxu0 0.0
  %896 = vmatpush1.msra.mxu0 0.0
  %897 = vmatprep.subr.mxu0 0.0
  %898 = vmatpush1.msra.mxu0 0.0
  %899 = vmatprep.subr.mxu0 0.0
  %900 = vmatpush1.msra.mxu0 0.0
  %901 = vmatprep.subr.mxu0 0.0
  %902 = vmatpush1.msra.mxu0 0.0
  %903 = vmatprep.subr.mxu0 0.0
  %904 = vmatpush1.msra.mxu0 0.0
  %905 = vmatprep.subr.mxu0 0.0
  %906 = vmatpush1.msra.mxu0 0.0
  %907 = vmatprep.subr.mxu0 0.0
  %908 = vmatpush1.msra.mxu0 0.0
  %909 = vmatprep.mubr.f32.mxu0 0.0
  %910 = vmatmul.mubr.f32.gmra.mrb[0].mxu0 %v843
  %v911 = vpop.f32.mrb[0].mxu0
  %v912 = vadd.f32 0.0, %v911
  %v913 = vpop.f32.mrb[0].mxu0
  %914 = vdwg.mxu0
  %v916 = vrot.slane %v912, 6
  %v918 = vadd.f32 %v123, %v916
  %v919 = vrot.slane %v912, 4
  %v921 = vadd.f32 %v118, %v919
  %v922 = vxor.u32 %v918, 2147483648
  %v923 = vmul.f32 %v922, 1.442695
  %v924 = vpow.pop %v923
  %v925 = vadd.f32 %v924, 1.0
  %v926 = vrcp.pop %v925
  %v927 = vmul.f32 1.0, %v926
  %v928 = vtanh.pop %v918
  %v930 = vrot.slane %v798, 6
  %v932 = vmul.f32 %v927, %v930
  %934 = vrot.lane.b32.xlu0 %v928, 96
  %v935 = vpop.permute.xlu0 %934
  %v937 = vmul.f32 %v927, %v935
  %939 = vrot.lane.b32.xlu0 %v937, 16
  %v940 = vpop.permute.xlu0 %939
  %v942 = vadd.f32 %v932, %v940
  %v943 = vtanh.pop %v942
  %945 = vrot.lane.b32.xlu0 %v943, 32
  %v946 = vpop.permute.xlu0 %945
  %v948 = vmul.f32 %v927, %v946
  %v949 = vxor.u32 %v921, 2147483648
  %v950 = vmul.f32 %v949, 1.442695
  %v951 = vpow.pop %v950
  %v952 = vadd.f32 %v951, 1.0
  %v953 = vrcp.pop %v952
  %v954 = vmul.f32 1.0, %v953
  %v955 = vtanh.pop %v921
  %v957 = vrot.slane %v825, 2
  %v959 = vmul.f32 %v954, %v957
  %961 = vrot.lane.b32.xlu0 %v955, 96
  %v962 = vpop.permute.xlu0 %961
  %v964 = vmul.f32 %v954, %v962
  %966 = vrot.lane.b32.xlu0 %v964, 16
  %v967 = vpop.permute.xlu0 %966
  %v969 = vadd.f32 %v959, %v967
  %v970 = vtanh.pop %v969
  %972 = vrot.lane.b32.xlu0 %v970, 32
  %v973 = vpop.permute.xlu0 %972
  %v975 = vmul.f32 %v954, %v973
  %977 = vrot.lane.b32.xlu0 %v948, 80
  %v978 = vpop.permute.xlu0 %977
  %v981 = vrot.slane %v975, 2
  %982 = vrot.lane.b32.xlu0 %v981, 32
  %v983 = vpop.permute.xlu0 %982
  %v985 = vsel %vm265, %v978, %v983
  %v987 = vrot.slane %v985, 2
  %v988 = vsel %vm44, %v987, 0
  %990 = vmatprep.subr.mxu0 0.0
  %991 = vmatpush1.msra.mxu0 %v126
  %992 = vmatprep.subr.mxu0 0.0
  %993 = vmatpush1.msra.mxu0 %v127
  %994 = vmatprep.subr.mxu0 0.0
  %995 = vmatpush1.msra.mxu0 %v128
  %996 = vmatprep.subr.mxu0 0.0
  %997 = vmatpush1.msra.mxu0 %v129
  %998 = vmatprep.subr.mxu0 0.0
  %999 = vmatpush1.msra.mxu0 0.0
  %1000 = vmatprep.subr.mxu0 0.0
  %1001 = vmatpush1.msra.mxu0 0.0
  %1002 = vmatprep.subr.mxu0 0.0
  %1003 = vmatpush1.msra.mxu0 0.0
  %1004 = vmatprep.subr.mxu0 0.0
  %1005 = vmatpush1.msra.mxu0 0.0
  %1006 = vmatprep.subr.mxu0 0.0
  %1007 = vmatpush1.msra.mxu0 0.0
  %1008 = vmatprep.subr.mxu0 0.0
  %1009 = vmatpush1.msra.mxu0 0.0
  %1010 = vmatprep.subr.mxu0 0.0
  %1011 = vmatpush1.msra.mxu0 0.0
  %1012 = vmatprep.subr.mxu0 0.0
  %1013 = vmatpush1.msra.mxu0 0.0
  %1014 = vmatprep.subr.mxu0 0.0
  %1015 = vmatpush1.msra.mxu0 0.0
  %1016 = vmatprep.subr.mxu0 0.0
  %1017 = vmatpush1.msra.mxu0 0.0
  %1018 = vmatprep.subr.mxu0 0.0
  %1019 = vmatpush1.msra.mxu0 0.0
  %1020 = vmatprep.subr.mxu0 0.0
  %1021 = vmatpush1.msra.mxu0 0.0
  %1022 = vmatprep.subr.mxu0 0.0
  %1023 = vmatpush1.msra.mxu0 0.0
  %1024 = vmatprep.subr.mxu0 0.0
  %1025 = vmatpush1.msra.mxu0 0.0
  %1026 = vmatprep.subr.mxu0 0.0
  %1027 = vmatpush1.msra.mxu0 0.0
  %1028 = vmatprep.subr.mxu0 0.0
  %1029 = vmatpush1.msra.mxu0 0.0
  %1030 = vmatprep.subr.mxu0 0.0
  %1031 = vmatpush1.msra.mxu0 0.0
  %1032 = vmatprep.subr.mxu0 0.0
  %1033 = vmatpush1.msra.mxu0 0.0
  %1034 = vmatprep.subr.mxu0 0.0
  %1035 = vmatpush1.msra.mxu0 0.0
  %1036 = vmatprep.subr.mxu0 0.0
  %1037 = vmatpush1.msra.mxu0 0.0
  %1038 = vmatprep.subr.mxu0 0.0
  %1039 = vmatpush1.msra.mxu0 0.0
  %1040 = vmatprep.subr.mxu0 0.0
  %1041 = vmatpush1.msra.mxu0 0.0
  %1042 = vmatprep.subr.mxu0 0.0
  %1043 = vmatpush1.msra.mxu0 0.0
  %1044 = vmatprep.subr.mxu0 0.0
  %1045 = vmatpush1.msra.mxu0 0.0
  %1046 = vmatprep.subr.mxu0 0.0
  %1047 = vmatpush1.msra.mxu0 0.0
  %1048 = vmatprep.subr.mxu0 0.0
  %1049 = vmatpush1.msra.mxu0 0.0
  %1050 = vmatprep.subr.mxu0 0.0
  %1051 = vmatpush1.msra.mxu0 0.0
  %1052 = vmatprep.subr.mxu0 0.0
  %1053 = vmatpush1.msra.mxu0 0.0
  %1054 = vmatprep.mubr.f32.mxu0 0.0
  %1055 = vmatmul.mubr.f32.gmra.mrb[0].mxu0 %v988
  %v1056 = vpop.f32.mrb[0].mxu0
  %v1057 = vadd.f32 0.0, %v1056
  %v1058 = vpop.f32.mrb[0].mxu0
  %1059 = vdwg.mxu0
  %v1061 = vrot.slane %v1057, 4
  %v1063 = vadd.f32 %v123, %v1061
  %v1064 = vrot.slane %v1057, 6
  %v1066 = vadd.f32 %v118, %v1064
  %v1067 = vxor.u32 %v1063, 2147483648
  %v1068 = vmul.f32 %v1067, 1.442695
  %v1069 = vpow.pop %v1068
  %v1070 = vadd.f32 %v1069, 1.0
  %v1071 = vrcp.pop %v1070
  %v1072 = vmul.f32 1.0, %v1071
  %v1073 = vtanh.pop %v1063
  %v1075 = vrot.slane %v942, 6
  %v1077 = vmul.f32 %v1072, %v1075
  %1079 = vrot.lane.b32.xlu0 %v1073, 96
  %v1080 = vpop.permute.xlu0 %1079
  %v1082 = vmul.f32 %v1072, %v1080
  %1084 = vrot.lane.b32.xlu0 %v1082, 16
  %v1085 = vpop.permute.xlu0 %1084
  %v1087 = vadd.f32 %v1077, %v1085
  %v1088 = vtanh.pop %v1087
  %1090 = vrot.lane.b32.xlu0 %v1088, 32
  %v1091 = vpop.permute.xlu0 %1090
  %v1093 = vmul.f32 %v1072, %v1091
  %v1094 = vxor.u32 %v1066, 2147483648
  %v1095 = vmul.f32 %v1094, 1.442695
  %v1096 = vpow.pop %v1095
  %v1097 = vadd.f32 %v1096, 1.0
  %v1098 = vrcp.pop %v1097
  %v1099 = vmul.f32 1.0, %v1098
  %v1100 = vtanh.pop %v1066
  %v1102 = vrot.slane %v969, 2
  %v1104 = vmul.f32 %v1099, %v1102
  %1106 = vrot.lane.b32.xlu0 %v1100, 96
  %v1107 = vpop.permute.xlu0 %1106
  %v1109 = vmul.f32 %v1099, %v1107
  %1111 = vrot.lane.b32.xlu0 %v1109, 16
  %v1112 = vpop.permute.xlu0 %1111
  %v1114 = vadd.f32 %v1104, %v1112
  %v1115 = vtanh.pop %v1114
  %1117 = vrot.lane.b32.xlu0 %v1115, 32
  %v1118 = vpop.permute.xlu0 %1117
  %v1120 = vmul.f32 %v1099, %v1118
  %1122 = vrot.lane.b32.xlu0 %v1093, 80
  %v1123 = vpop.permute.xlu0 %1122
  %v1126 = vrot.slane %v1120, 6
  %1127 = vrot.lane.b32.xlu0 %v1126, 32
  %v1128 = vpop.permute.xlu0 %1127
  %v1130 = vsel %vm265, %v1123, %v1128
  %v1132 = vrot.slane %v1130, 4
  %v1133 = vsel %vm44, %v1132, 0
  %1135 = vmatprep.subr.mxu0 0.0
  %1136 = vmatpush1.msra.mxu0 %v126
  %1137 = vmatprep.subr.mxu0 0.0
  %1138 = vmatpush1.msra.mxu0 %v127
  %1139 = vmatprep.subr.mxu0 0.0
  %1140 = vmatpush1.msra.mxu0 %v128
  %1141 = vmatprep.subr.mxu0 0.0
  %1142 = vmatpush1.msra.mxu0 %v129
  %1143 = vmatprep.subr.mxu0 0.0
  %1144 = vmatpush1.msra.mxu0 0.0
  %1145 = vmatprep.subr.mxu0 0.0
  %1146 = vmatpush1.msra.mxu0 0.0
  %1147 = vmatprep.subr.mxu0 0.0
  %1148 = vmatpush1.msra.mxu0 0.0
  %1149 = vmatprep.subr.mxu0 0.0
  %1150 = vmatpush1.msra.mxu0 0.0
  %1151 = vmatprep.subr.mxu0 0.0
  %1152 = vmatpush1.msra.mxu0 0.0
  %1153 = vmatprep.subr.mxu0 0.0
  %1154 = vmatpush1.msra.mxu0 0.0
  %1155 = vmatprep.subr.mxu0 0.0
  %1156 = vmatpush1.msra.mxu0 0.0
  %1157 = vmatprep.subr.mxu0 0.0
  %1158 = vmatpush1.msra.mxu0 0.0
  %1159 = vmatprep.subr.mxu0 0.0
  %1160 = vmatpush1.msra.mxu0 0.0
  %1161 = vmatprep.subr.mxu0 0.0
  %1162 = vmatpush1.msra.mxu0 0.0
  %1163 = vmatprep.subr.mxu0 0.0
  %1164 = vmatpush1.msra.mxu0 0.0
  %1165 = vmatprep.subr.mxu0 0.0
  %1166 = vmatpush1.msra.mxu0 0.0
  %1167 = vmatprep.subr.mxu0 0.0
  %1168 = vmatpush1.msra.mxu0 0.0
  %1169 = vmatprep.subr.mxu0 0.0
  %1170 = vmatpush1.msra.mxu0 0.0
  %1171 = vmatprep.subr.mxu0 0.0
  %1172 = vmatpush1.msra.mxu0 0.0
  %1173 = vmatprep.subr.mxu0 0.0
  %1174 = vmatpush1.msra.mxu0 0.0
  %1175 = vmatprep.subr.mxu0 0.0
  %1176 = vmatpush1.msra.mxu0 0.0
  %1177 = vmatprep.subr.mxu0 0.0
  %1178 = vmatpush1.msra.mxu0 0.0
  %1179 = vmatprep.subr.mxu0 0.0
  %1180 = vmatpush1.msra.mxu0 0.0
  %1181 = vmatprep.subr.mxu0 0.0
  %1182 = vmatpush1.msra.mxu0 0.0
  %1183 = vmatprep.subr.mxu0 0.0
  %1184 = vmatpush1.msra.mxu0 0.0
  %1185 = vmatprep.subr.mxu0 0.0
  %1186 = vmatpush1.msra.mxu0 0.0
  %1187 = vmatprep.subr.mxu0 0.0
  %1188 = vmatpush1.msra.mxu0 0.0
  %1189 = vmatprep.subr.mxu0 0.0
  %1190 = vmatpush1.msra.mxu0 0.0
  %1191 = vmatprep.subr.mxu0 0.0
  %1192 = vmatpush1.msra.mxu0 0.0
  %1193 = vmatprep.subr.mxu0 0.0
  %1194 = vmatpush1.msra.mxu0 0.0
  %1195 = vmatprep.subr.mxu0 0.0
  %1196 = vmatpush1.msra.mxu0 0.0
  %1197 = vmatprep.subr.mxu0 0.0
  %1198 = vmatpush1.msra.mxu0 0.0
  %1199 = vmatprep.mubr.f32.mxu0 0.0
  %1200 = vmatmul.mubr.f32.gmra.mrb[0].mxu0 %v1133
  %v1201 = vpop.f32.mrb[0].mxu0
  %v1202 = vadd.f32 0.0, %v1201
  %v1203 = vpop.f32.mrb[0].mxu0
  %1204 = vdwg.mxu0
  %v1206 = vrot.slane %v1202, 2
  %v1208 = vadd.f32 %v123, %v1206
  %v1209 = vadd.f32 %v118, %v1202
  %v1210 = vxor.u32 %v1208, 2147483648
  %v1211 = vmul.f32 %v1210, 1.442695
  %v1212 = vpow.pop %v1211
  %v1213 = vadd.f32 %v1212, 1.0
  %v1214 = vrcp.pop %v1213
  %v1215 = vmul.f32 1.0, %v1214
  %v1216 = vtanh.pop %v1208
  %v1218 = vrot.slane %v1087, 6
  %v1220 = vmul.f32 %v1215, %v1218
  %1222 = vrot.lane.b32.xlu0 %v1216, 96
  %v1223 = vpop.permute.xlu0 %1222
  %v1225 = vmul.f32 %v1215, %v1223
  %1227 = vrot.lane.b32.xlu0 %v1225, 16
  %v1228 = vpop.permute.xlu0 %1227
  %v1230 = vadd.f32 %v1220, %v1228
  %v1231 = vtanh.pop %v1230
  %1233 = vrot.lane.b32.xlu0 %v1231, 32
  %v1234 = vpop.permute.xlu0 %1233
  %v1236 = vmul.f32 %v1215, %v1234
  %v1237 = vxor.u32 %v1209, 2147483648
  %v1238 = vmul.f32 %v1237, 1.442695
  %v1239 = vpow.pop %v1238
  %v1240 = vadd.f32 %v1239, 1.0
  %v1241 = vrcp.pop %v1240
  %v1242 = vmul.f32 1.0, %v1241
  %v1243 = vtanh.pop %v1209
  %v1245 = vrot.slane %v1114, 2
  %v1247 = vmul.f32 %v1242, %v1245
  %1249 = vrot.lane.b32.xlu0 %v1243, 96
  %v1250 = vpop.permute.xlu0 %1249
  %v1252 = vmul.f32 %v1242, %v1250
  %1254 = vrot.lane.b32.xlu0 %v1252, 16
  %v1255 = vpop.permute.xlu0 %1254
  %v1257 = vadd.f32 %v1247, %v1255
  %v1258 = vtanh.pop %v1257
  %1260 = vrot.lane.b32.xlu0 %v1258, 32
  %v1261 = vpop.permute.xlu0 %1260
  %v1263 = vmul.f32 %v1242, %v1261
  %1265 = vrot.lane.b32.xlu0 %v1263, 32
  %v1266 = vpop.permute.xlu0 %1265
  %v1268 = vsel %vm265, %v258, %v1266
  %1269 = vrot.lane.b32.xlu0 %v1120, 32
  %v1270 = vpop.permute.xlu0 %1269
  %v1272 = vsel %vm265, %v403, %v1270
  %1273 = vrot.lane.b32.xlu0 %v975, 32
  %v1274 = vpop.permute.xlu0 %1273
  %v1276 = vsel %vm265, %v548, %v1274
  %1277 = vrot.lane.b32.xlu0 %v831, 32
  %v1278 = vpop.permute.xlu0 %1277
  %v1280 = vsel %vm265, %v691, %v1278
  %1281 = vrot.lane.b32.xlu0 %v688, 32
  %v1282 = vpop.permute.xlu0 %1281
  %v1284 = vsel %vm265, %v834, %v1282
  %1285 = vrot.lane.b32.xlu0 %v545, 32
  %v1286 = vpop.permute.xlu0 %1285
  %v1288 = vsel %vm265, %v978, %v1286
  %1289 = vrot.lane.b32.xlu0 %v400, 32
  %v1290 = vpop.permute.xlu0 %1289
  %v1292 = vsel %vm265, %v1123, %v1290
  %1294 = vrot.lane.b32.xlu0 %v1236, 80
  %v1295 = vpop.permute.xlu0 %1294
  %1297 = vrot.lane.b32.xlu0 %v255, 32
  %v1298 = vpop.permute.xlu0 %1297
  %v1300 = vsel %vm265, %v1295, %v1298
  %vm1301 = vcmask 1041408
  %v1302 = vsel %vm1301, %v1268, %v1272
  %vm1303 = vcmask 1043456
  %v1304 = vsel %vm1303, %v1302, %v1276
  %vm1305 = vcmask 1045504
  %v1306 = vsel %vm1305, %v1304, %v1280
  %v1307 = vsel %vm1301, %v1284, %v1288
  %v1308 = vsel %vm1303, %v1307, %v1292
  %v1309 = vsel %vm1305, %v1308, %v1300
  %v1310 = vld [vmem:[%s4] sm:$0xff]
  %v1311 = vld [vmem:[%s4 + $0x8] sm:$0xff]
  %v1312 = vld [vmem:[%s4 + $0x10] sm:$0xff]
  %v1313 = vld [vmem:[%s4 + $0x18] sm:$0xff]
  %v1314 = vlaneseq
  %v1315 = vshrl.u32 %v1314, 7
  %v1316 = vsub.s32 1, %v1315
  %v1317 = vrot.slane %v34, %v1316
  %v1319 = vsel %vm44, %v1306, 0
  %v1322 = vsel %vm44, %v1309, 0
  %1324 = vmatprep.subr.mxu0 0.0
  %1325 = vmatpush1.msra.mxu0 %v1310
  %1326 = vmatprep.subr.mxu0 0.0
  %1327 = vmatpush1.msra.mxu0 %v1311
  %1328 = vmatprep.subr.mxu0 0.0
  %1329 = vmatpush1.msra.mxu0 %v1312
  %1330 = vmatprep.subr.mxu0 0.0
  %1331 = vmatpush1.msra.mxu0 %v1313
  %1332 = vmatprep.subr.mxu0 0.0
  %1333 = vmatpush1.msra.mxu0 0.0
  %1334 = vmatprep.subr.mxu0 0.0
  %1335 = vmatpush1.msra.mxu0 0.0
  %1336 = vmatprep.subr.mxu0 0.0
  %1337 = vmatpush1.msra.mxu0 0.0
  %1338 = vmatprep.subr.mxu0 0.0
  %1339 = vmatpush1.msra.mxu0 0.0
  %1340 = vmatprep.subr.mxu0 0.0
  %1341 = vmatpush1.msra.mxu0 0.0
  %1342 = vmatprep.subr.mxu0 0.0
  %1343 = vmatpush1.msra.mxu0 0.0
  %1344 = vmatprep.subr.mxu0 0.0
  %1345 = vmatpush1.msra.mxu0 0.0
  %1346 = vmatprep.subr.mxu0 0.0
  %1347 = vmatpush1.msra.mxu0 0.0
  %1348 = vmatprep.subr.mxu0 0.0
  %1349 = vmatpush1.msra.mxu0 0.0
  %1350 = vmatprep.subr.mxu0 0.0
  %1351 = vmatpush1.msra.mxu0 0.0
  %1352 = vmatprep.subr.mxu0 0.0
  %1353 = vmatpush1.msra.mxu0 0.0
  %1354 = vmatprep.subr.mxu0 0.0
  %1355 = vmatpush1.msra.mxu0 0.0
  %1356 = vmatprep.subr.mxu0 0.0
  %1357 = vmatpush1.msra.mxu0 0.0
  %1358 = vmatprep.subr.mxu0 0.0
  %1359 = vmatpush1.msra.mxu0 0.0
  %1360 = vmatprep.subr.mxu0 0.0
  %1361 = vmatpush1.msra.mxu0 0.0
  %1362 = vmatprep.subr.mxu0 0.0
  %1363 = vmatpush1.msra.mxu0 0.0
  %1364 = vmatprep.subr.mxu0 0.0
  %1365 = vmatpush1.msra.mxu0 0.0
  %1366 = vmatprep.subr.mxu0 0.0
  %1367 = vmatpush1.msra.mxu0 0.0
  %1368 = vmatprep.subr.mxu0 0.0
  %1369 = vmatpush1.msra.mxu0 0.0
  %1370 = vmatprep.subr.mxu0 0.0
  %1371 = vmatpush1.msra.mxu0 0.0
  %1372 = vmatprep.subr.mxu0 0.0
  %1373 = vmatpush1.msra.mxu0 0.0
  %1374 = vmatprep.subr.mxu0 0.0
  %1375 = vmatpush1.msra.mxu0 0.0
  %1376 = vmatprep.subr.mxu0 0.0
  %1377 = vmatpush1.msra.mxu0 0.0
  %1378 = vmatprep.subr.mxu0 0.0
  %1379 = vmatpush1.msra.mxu0 0.0
  %1380 = vmatprep.subr.mxu0 0.0
  %1381 = vmatpush1.msra.mxu0 0.0
  %1382 = vmatprep.subr.mxu0 0.0
  %1383 = vmatpush1.msra.mxu0 0.0
  %1384 = vmatprep.subr.mxu0 0.0
  %1385 = vmatpush1.msra.mxu0 0.0
  %1386 = vmatprep.subr.mxu0 0.0
  %1387 = vmatpush1.msra.mxu0 0.0
  %1388 = vmatprep.mubr.f32.mxu0 0.0
  %1389 = vmatmul.mubr.f32.gmra.mrb[0].mxu0 %v1319
  %v1390 = vpop.f32.mrb[0].mxu0
  %v1391 = vadd.f32 %v1317, %v1390
  %v1392 = vpop.f32.mrb[0].mxu0
  %1393 = vmatprep.mubr.f32.mxu0 0.0
  %1394 = vmatmul.mubr.f32.gmra.mrb[0].mxu0 %v1322
  %v1395 = vpop.f32.mrb[0].mxu0
  %v1396 = vadd.f32 %v1317, %v1395
  %v1397 = vpop.f32.mrb[0].mxu0
  %1398 = vdwg.mxu0
  %v1399 = vld [vmem:[%s5] sm:$0xff]
  %v1400 = vld [vmem:[%s5 + $0x8] sm:$0xff]
  %v1401 = vld [vmem:[%s5 + $0x10] sm:$0xff]
  %v1402 = vld [vmem:[%s5 + $0x18] sm:$0xff]
  %v1403 = vlaneseq
  %v1404 = vshrl.u32 %v1403, 7
  %v1405 = vsub.s32 2, %v1404
  %v1406 = vrot.slane %v34, %v1405
  %1407 = vmatprep.subr.mxu0 0.0
  %1408 = vmatpush1.msra.mxu0 %v1399
  %1409 = vmatprep.subr.mxu0 0.0
  %1410 = vmatpush1.msra.mxu0 %v1400
  %1411 = vmatprep.subr.mxu0 0.0
  %1412 = vmatpush1.msra.mxu0 %v1401
  %1413 = vmatprep.subr.mxu0 0.0
  %1414 = vmatpush1.msra.mxu0 %v1402
  %1415 = vmatprep.subr.mxu0 0.0
  %1416 = vmatpush1.msra.mxu0 0.0
  %1417 = vmatprep.subr.mxu0 0.0
  %1418 = vmatpush1.msra.mxu0 0.0
  %1419 = vmatprep.subr.mxu0 0.0
  %1420 = vmatpush1.msra.mxu0 0.0
  %1421 = vmatprep.subr.mxu0 0.0
  %1422 = vmatpush1.msra.mxu0 0.0
  %1423 = vmatprep.subr.mxu0 0.0
  %1424 = vmatpush1.msra.mxu0 0.0
  %1425 = vmatprep.subr.mxu0 0.0
  %1426 = vmatpush1.msra.mxu0 0.0
  %1427 = vmatprep.subr.mxu0 0.0
  %1428 = vmatpush1.msra.mxu0 0.0
  %1429 = vmatprep.subr.mxu0 0.0
  %1430 = vmatpush1.msra.mxu0 0.0
  %1431 = vmatprep.subr.mxu0 0.0
  %1432 = vmatpush1.msra.mxu0 0.0
  %1433 = vmatprep.subr.mxu0 0.0
  %1434 = vmatpush1.msra.mxu0 0.0
  %1435 = vmatprep.subr.mxu0 0.0
  %1436 = vmatpush1.msra.mxu0 0.0
  %1437 = vmatprep.subr.mxu0 0.0
  %1438 = vmatpush1.msra.mxu0 0.0
  %1439 = vmatprep.subr.mxu0 0.0
  %1440 = vmatpush1.msra.mxu0 0.0
  %1441 = vmatprep.subr.mxu0 0.0
  %1442 = vmatpush1.msra.mxu0 0.0
  %1443 = vmatprep.subr.mxu0 0.0
  %1444 = vmatpush1.msra.mxu0 0.0
  %1445 = vmatprep.subr.mxu0 0.0
  %1446 = vmatpush1.msra.mxu0 0.0
  %1447 = vmatprep.subr.mxu0 0.0
  %1448 = vmatpush1.msra.mxu0 0.0
  %1449 = vmatprep.subr.mxu0 0.0
  %1450 = vmatpush1.msra.mxu0 0.0
  %1451 = vmatprep.subr.mxu0 0.0
  %1452 = vmatpush1.msra.mxu0 0.0
  %1453 = vmatprep.subr.mxu0 0.0
  %1454 = vmatpush1.msra.mxu0 0.0
  %1455 = vmatprep.subr.mxu0 0.0
  %1456 = vmatpush1.msra.mxu0 0.0
  %1457 = vmatprep.subr.mxu0 0.0
  %1458 = vmatpush1.msra.mxu0 0.0
  %1459 = vmatprep.subr.mxu0 0.0
  %1460 = vmatpush1.msra.mxu0 0.0
  %1461 = vmatprep.subr.mxu0 0.0
  %1462 = vmatpush1.msra.mxu0 0.0
  %1463 = vmatprep.subr.mxu0 0.0
  %1464 = vmatpush1.msra.mxu0 0.0
  %1465 = vmatprep.subr.mxu0 0.0
  %1466 = vmatpush1.msra.mxu0 0.0
  %1467 = vmatprep.subr.mxu0 0.0
  %1468 = vmatpush1.msra.mxu0 0.0
  %1469 = vmatprep.subr.mxu0 0.0
  %1470 = vmatpush1.msra.mxu0 0.0
  %1471 = vmatprep.mubr.f32.mxu0 0.0
  %1472 = vmatmul.mubr.f32.gmra.mrb[0].mxu0 %v131
  %v1473 = vpop.f32.mrb[0].mxu0
  %v1474 = vadd.f32 %v1406, %v1473
  %v1475 = vpop.f32.mrb[0].mxu0
  %1476 = vdwg.mxu0
  %v1477 = vadd.f32 %v1391, %v1474
  %v1478 = vxor.u32 %v1477, 2147483648
  %v1479 = vmul.f32 %v1478, 1.442695
  %v1480 = vpow.pop %v1479
  %v1481 = vadd.f32 %v1480, 1.0
  %v1482 = vrcp.pop %v1481
  %v1483 = vmul.f32 1.0, %v1482
  %1485 = vrot.lane.b32.xlu0 %v1474, 96
  %v1486 = vpop.permute.xlu0 %1485
  %v1488 = vmul.f32 %v1483, %v1486
  %1490 = vrot.lane.b32.xlu0 %v1488, 32
  %v1491 = vpop.permute.xlu0 %1490
  %v1493 = vadd.f32 %v1391, %v1491
  %v1494 = vtanh.pop %v1493
  %v1495 = vsub.f32 1.0, %v1483
  %1497 = vrot.lane.b32.xlu0 %v1494, 112
  %v1498 = vpop.permute.xlu0 %1497
  %v1500 = vmul.f32 %v1495, %v1498
  %v1501 = vmul.f32 %v1483, 0.0
  %v1502 = vadd.f32 %v1500, %v1501
  %v1503 = vrot.slane %v1474, 2
  %v1505 = vadd.f32 %v1396, %v1503
  %v1506 = vxor.u32 %v1505, 2147483648
  %v1507 = vmul.f32 %v1506, 1.442695
  %v1508 = vpow.pop %v1507
  %v1509 = vadd.f32 %v1508, 1.0
  %v1510 = vrcp.pop %v1509
  %v1511 = vmul.f32 1.0, %v1510
  %1512 = vrot.lane.b32.xlu0 %v1503, 96
  %v1513 = vpop.permute.xlu0 %1512
  %v1515 = vmul.f32 %v1511, %v1513
  %1517 = vrot.lane.b32.xlu0 %v1515, 32
  %v1518 = vpop.permute.xlu0 %1517
  %v1520 = vadd.f32 %v1396, %v1518
  %v1521 = vtanh.pop %v1520
  %v1522 = vsub.f32 1.0, %v1511
  %1524 = vrot.lane.b32.xlu0 %v1521, 112
  %v1525 = vpop.permute.xlu0 %1524
  %v1527 = vmul.f32 %v1522, %v1525
  %v1528 = vmul.f32 %v1511, 0.0
  %v1529 = vadd.f32 %v1527, %v1528
  %1531 = vrot.lane.b32.xlu0 %v1502, 112
  %v1532 = vpop.permute.xlu0 %1531
  %v1535 = vrot.slane %v1529, 6
  %1536 = vrot.lane.b32.xlu0 %v1535, 80
  %v1537 = vpop.permute.xlu0 %1536
  %v1539 = vsel %vm265, %v1532, %v1537
  %v1541 = vsel %vm44, %v1539, 0
  %1543 = vmatprep.subr.mxu0 0.0
  %1544 = vmatpush1.msra.mxu0 %v1399
  %1545 = vmatprep.subr.mxu0 0.0
  %1546 = vmatpush1.msra.mxu0 %v1400
  %1547 = vmatprep.subr.mxu0 0.0
  %1548 = vmatpush1.msra.mxu0 %v1401
  %1549 = vmatprep.subr.mxu0 0.0
  %1550 = vmatpush1.msra.mxu0 %v1402
  %1551 = vmatprep.subr.mxu0 0.0
  %1552 = vmatpush1.msra.mxu0 0.0
  %1553 = vmatprep.subr.mxu0 0.0
  %1554 = vmatpush1.msra.mxu0 0.0
  %1555 = vmatprep.subr.mxu0 0.0
  %1556 = vmatpush1.msra.mxu0 0.0
  %1557 = vmatprep.subr.mxu0 0.0
  %1558 = vmatpush1.msra.mxu0 0.0
  %1559 = vmatprep.subr.mxu0 0.0
  %1560 = vmatpush1.msra.mxu0 0.0
  %1561 = vmatprep.subr.mxu0 0.0
  %1562 = vmatpush1.msra.mxu0 0.0
  %1563 = vmatprep.subr.mxu0 0.0
  %1564 = vmatpush1.msra.mxu0 0.0
  %1565 = vmatprep.subr.mxu0 0.0
  %1566 = vmatpush1.msra.mxu0 0.0
  %1567 = vmatprep.subr.mxu0 0.0
  %1568 = vmatpush1.msra.mxu0 0.0
  %1569 = vmatprep.subr.mxu0 0.0
  %1570 = vmatpush1.msra.mxu0 0.0
  %1571 = vmatprep.subr.mxu0 0.0
  %1572 = vmatpush1.msra.mxu0 0.0
  %1573 = vmatprep.subr.mxu0 0.0
  %1574 = vmatpush1.msra.mxu0 0.0
  %1575 = vmatprep.subr.mxu0 0.0
  %1576 = vmatpush1.msra.mxu0 0.0
  %1577 = vmatprep.subr.mxu0 0.0
  %1578 = vmatpush1.msra.mxu0 0.0
  %1579 = vmatprep.subr.mxu0 0.0
  %1580 = vmatpush1.msra.mxu0 0.0
  %1581 = vmatprep.subr.mxu0 0.0
  %1582 = vmatpush1.msra.mxu0 0.0
  %1583 = vmatprep.subr.mxu0 0.0
  %1584 = vmatpush1.msra.mxu0 0.0
  %1585 = vmatprep.subr.mxu0 0.0
  %1586 = vmatpush1.msra.mxu0 0.0
  %1587 = vmatprep.subr.mxu0 0.0
  %1588 = vmatpush1.msra.mxu0 0.0
  %1589 = vmatprep.subr.mxu0 0.0
  %1590 = vmatpush1.msra.mxu0 0.0
  %1591 = vmatprep.subr.mxu0 0.0
  %1592 = vmatpush1.msra.mxu0 0.0
  %1593 = vmatprep.subr.mxu0 0.0
  %1594 = vmatpush1.msra.mxu0 0.0
  %1595 = vmatprep.subr.mxu0 0.0
  %1596 = vmatpush1.msra.mxu0 0.0
  %1597 = vmatprep.subr.mxu0 0.0
  %1598 = vmatpush1.msra.mxu0 0.0
  %1599 = vmatprep.subr.mxu0 0.0
  %1600 = vmatpush1.msra.mxu0 0.0
  %1601 = vmatprep.subr.mxu0 0.0
  %1602 = vmatpush1.msra.mxu0 0.0
  %1603 = vmatprep.subr.mxu0 0.0
  %1604 = vmatpush1.msra.mxu0 0.0
  %1605 = vmatprep.subr.mxu0 0.0
  %1606 = vmatpush1.msra.mxu0 0.0
  %1607 = vmatprep.mubr.f32.mxu0 0.0
  %1608 = vmatmul.mubr.f32.gmra.mrb[0].mxu0 %v1541
  %v1609 = vpop.f32.mrb[0].mxu0
  %v1610 = vadd.f32 %v1406, %v1609
  %v1611 = vpop.f32.mrb[0].mxu0
  %1612 = vdwg.mxu0
  %v1614 = vrot.slane %v1610, 6
  %v1616 = vadd.f32 %v1391, %v1614
  %v1617 = vxor.u32 %v1616, 2147483648
  %v1618 = vmul.f32 %v1617, 1.442695
  %v1619 = vpow.pop %v1618
  %v1620 = vadd.f32 %v1619, 1.0
  %v1621 = vrcp.pop %v1620
  %v1622 = vmul.f32 1.0, %v1621
  %1623 = vrot.lane.b32.xlu0 %v1614, 96
  %v1624 = vpop.permute.xlu0 %1623
  %v1626 = vmul.f32 %v1622, %v1624
  %1628 = vrot.lane.b32.xlu0 %v1626, 32
  %v1629 = vpop.permute.xlu0 %1628
  %v1631 = vadd.f32 %v1391, %v1629
  %v1632 = vtanh.pop %v1631
  %v1633 = vsub.f32 1.0, %v1622
  %1635 = vrot.lane.b32.xlu0 %v1632, 112
  %v1636 = vpop.permute.xlu0 %1635
  %v1638 = vmul.f32 %v1633, %v1636
  %v1639 = vrot.slane %v1502, 6
  %v1641 = vmul.f32 %v1622, %v1639
  %v1642 = vadd.f32 %v1638, %v1641
  %v1643 = vrot.slane %v1610, 4
  %v1645 = vadd.f32 %v1396, %v1643
  %v1646 = vxor.u32 %v1645, 2147483648
  %v1647 = vmul.f32 %v1646, 1.442695
  %v1648 = vpow.pop %v1647
  %v1649 = vadd.f32 %v1648, 1.0
  %v1650 = vrcp.pop %v1649
  %v1651 = vmul.f32 1.0, %v1650
  %1652 = vrot.lane.b32.xlu0 %v1643, 96
  %v1653 = vpop.permute.xlu0 %1652
  %v1655 = vmul.f32 %v1651, %v1653
  %1657 = vrot.lane.b32.xlu0 %v1655, 32
  %v1658 = vpop.permute.xlu0 %1657
  %v1660 = vadd.f32 %v1396, %v1658
  %v1661 = vtanh.pop %v1660
  %v1662 = vsub.f32 1.0, %v1651
  %1664 = vrot.lane.b32.xlu0 %v1661, 112
  %v1665 = vpop.permute.xlu0 %1664
  %v1667 = vmul.f32 %v1662, %v1665
  %v1668 = vrot.slane %v1529, 2
  %v1670 = vmul.f32 %v1651, %v1668
  %v1671 = vadd.f32 %v1667, %v1670
  %1673 = vrot.lane.b32.xlu0 %v1642, 112
  %v1674 = vpop.permute.xlu0 %1673
  %v1677 = vrot.slane %v1671, 2
  %1678 = vrot.lane.b32.xlu0 %v1677, 80
  %v1679 = vpop.permute.xlu0 %1678
  %v1681 = vsel %vm265, %v1674, %v1679
  %v1683 = vrot.slane %v1681, 2
  %v1684 = vsel %vm44, %v1683, 0
  %1686 = vmatprep.subr.mxu0 0.0
  %1687 = vmatpush1.msra.mxu0 %v1399
  %1688 = vmatprep.subr.mxu0 0.0
  %1689 = vmatpush1.msra.mxu0 %v1400
  %1690 = vmatprep.subr.mxu0 0.0
  %1691 = vmatpush1.msra.mxu0 %v1401
  %1692 = vmatprep.subr.mxu0 0.0
  %1693 = vmatpush1.msra.mxu0 %v1402
  %1694 = vmatprep.subr.mxu0 0.0
  %1695 = vmatpush1.msra.mxu0 0.0
  %1696 = vmatprep.subr.mxu0 0.0
  %1697 = vmatpush1.msra.mxu0 0.0
  %1698 = vmatprep.subr.mxu0 0.0
  %1699 = vmatpush1.msra.mxu0 0.0
  %1700 = vmatprep.subr.mxu0 0.0
  %1701 = vmatpush1.msra.mxu0 0.0
  %1702 = vmatprep.subr.mxu0 0.0
  %1703 = vmatpush1.msra.mxu0 0.0
  %1704 = vmatprep.subr.mxu0 0.0
  %1705 = vmatpush1.msra.mxu0 0.0
  %1706 = vmatprep.subr.mxu0 0.0
  %1707 = vmatpush1.msra.mxu0 0.0
  %1708 = vmatprep.subr.mxu0 0.0
  %1709 = vmatpush1.msra.mxu0 0.0
  %1710 = vmatprep.subr.mxu0 0.0
  %1711 = vmatpush1.msra.mxu0 0.0
  %1712 = vmatprep.subr.mxu0 0.0
  %1713 = vmatpush1.msra.mxu0 0.0
  %1714 = vmatprep.subr.mxu0 0.0
  %1715 = vmatpush1.msra.mxu0 0.0
  %1716 = vmatprep.subr.mxu0 0.0
  %1717 = vmatpush1.msra.mxu0 0.0
  %1718 = vmatprep.subr.mxu0 0.0
  %1719 = vmatpush1.msra.mxu0 0.0
  %1720 = vmatprep.subr.mxu0 0.0
  %1721 = vmatpush1.msra.mxu0 0.0
  %1722 = vmatprep.subr.mxu0 0.0
  %1723 = vmatpush1.msra.mxu0 0.0
  %1724 = vmatprep.subr.mxu0 0.0
  %1725 = vmatpush1.msra.mxu0 0.0
  %1726 = vmatprep.subr.mxu0 0.0
  %1727 = vmatpush1.msra.mxu0 0.0
  %1728 = vmatprep.subr.mxu0 0.0
  %1729 = vmatpush1.msra.mxu0 0.0
  %1730 = vmatprep.subr.mxu0 0.0
  %1731 = vmatpush1.msra.mxu0 0.0
  %1732 = vmatprep.subr.mxu0 0.0
  %1733 = vmatpush1.msra.mxu0 0.0
  %1734 = vmatprep.subr.mxu0 0.0
  %1735 = vmatpush1.msra.mxu0 0.0
  %1736 = vmatprep.subr.mxu0 0.0
  %1737 = vmatpush1.msra.mxu0 0.0
  %1738 = vmatprep.subr.mxu0 0.0
  %1739 = vmatpush1.msra.mxu0 0.0
  %1740 = vmatprep.subr.mxu0 0.0
  %1741 = vmatpush1.msra.mxu0 0.0
  %1742 = vmatprep.subr.mxu0 0.0
  %1743 = vmatpush1.msra.mxu0 0.0
  %1744 = vmatprep.subr.mxu0 0.0
  %1745 = vmatpush1.msra.mxu0 0.0
  %1746 = vmatprep.subr.mxu0 0.0
  %1747 = vmatpush1.msra.mxu0 0.0
  %1748 = vmatprep.subr.mxu0 0.0
  %1749 = vmatpush1.msra.mxu0 0.0
  %1750 = vmatprep.mubr.f32.mxu0 0.0
  %1751 = vmatmul.mubr.f32.gmra.mrb[0].mxu0 %v1684
  %v1752 = vpop.f32.mrb[0].mxu0
  %v1753 = vadd.f32 %v1406, %v1752
  %v1754 = vpop.f32.mrb[0].mxu0
  %1755 = vdwg.mxu0
  %v1757 = vrot.slane %v1753, 4
  %v1759 = vadd.f32 %v1391, %v1757
  %v1760 = vxor.u32 %v1759, 2147483648
  %v1761 = vmul.f32 %v1760, 1.442695
  %v1762 = vpow.pop %v1761
  %v1763 = vadd.f32 %v1762, 1.0
  %v1764 = vrcp.pop %v1763
  %v1765 = vmul.f32 1.0, %v1764
  %1766 = vrot.lane.b32.xlu0 %v1757, 96
  %v1767 = vpop.permute.xlu0 %1766
  %v1769 = vmul.f32 %v1765, %v1767
  %1771 = vrot.lane.b32.xlu0 %v1769, 32
  %v1772 = vpop.permute.xlu0 %1771
  %v1774 = vadd.f32 %v1391, %v1772
  %v1775 = vtanh.pop %v1774
  %v1776 = vsub.f32 1.0, %v1765
  %1778 = vrot.lane.b32.xlu0 %v1775, 112
  %v1779 = vpop.permute.xlu0 %1778
  %v1781 = vmul.f32 %v1776, %v1779
  %v1782 = vrot.slane %v1642, 6
  %v1784 = vmul.f32 %v1765, %v1782
  %v1785 = vadd.f32 %v1781, %v1784
  %v1786 = vrot.slane %v1753, 6
  %v1788 = vadd.f32 %v1396, %v1786
  %v1789 = vxor.u32 %v1788, 2147483648
  %v1790 = vmul.f32 %v1789, 1.442695
  %v1791 = vpow.pop %v1790
  %v1792 = vadd.f32 %v1791, 1.0
  %v1793 = vrcp.pop %v1792
  %v1794 = vmul.f32 1.0, %v1793
  %1795 = vrot.lane.b32.xlu0 %v1786, 96
  %v1796 = vpop.permute.xlu0 %1795
  %v1798 = vmul.f32 %v1794, %v1796
  %1800 = vrot.lane.b32.xlu0 %v1798, 32
  %v1801 = vpop.permute.xlu0 %1800
  %v1803 = vadd.f32 %v1396, %v1801
  %v1804 = vtanh.pop %v1803
  %v1805 = vsub.f32 1.0, %v1794
  %1807 = vrot.lane.b32.xlu0 %v1804, 112
  %v1808 = vpop.permute.xlu0 %1807
  %v1810 = vmul.f32 %v1805, %v1808
  %v1812 = vmul.f32 %v1794, %v1677
  %v1813 = vadd.f32 %v1810, %v1812
  %1815 = vrot.lane.b32.xlu0 %v1785, 112
  %v1816 = vpop.permute.xlu0 %1815
  %v1819 = vrot.slane %v1813, 6
  %1820 = vrot.lane.b32.xlu0 %v1819, 80
  %v1821 = vpop.permute.xlu0 %1820
  %v1823 = vsel %vm265, %v1816, %v1821
  %v1825 = vrot.slane %v1823, 4
  %v1826 = vsel %vm44, %v1825, 0
  %1828 = vmatprep.subr.mxu0 0.0
  %1829 = vmatpush1.msra.mxu0 %v1399
  %1830 = vmatprep.subr.mxu0 0.0
  %1831 = vmatpush1.msra.mxu0 %v1400
  %1832 = vmatprep.subr.mxu0 0.0
  %1833 = vmatpush1.msra.mxu0 %v1401
  %1834 = vmatprep.subr.mxu0 0.0
  %1835 = vmatpush1.msra.mxu0 %v1402
  %1836 = vmatprep.subr.mxu0 0.0
  %1837 = vmatpush1.msra.mxu0 0.0
  %1838 = vmatprep.subr.mxu0 0.0
  %1839 = vmatpush1.msra.mxu0 0.0
  %1840 = vmatprep.subr.mxu0 0.0
  %1841 = vmatpush1.msra.mxu0 0.0
  %1842 = vmatprep.subr.mxu0 0.0
  %1843 = vmatpush1.msra.mxu0 0.0
  %1844 = vmatprep.subr.mxu0 0.0
  %1845 = vmatpush1.msra.mxu0 0.0
  %1846 = vmatprep.subr.mxu0 0.0
  %1847 = vmatpush1.msra.mxu0 0.0
  %1848 = vmatprep.subr.mxu0 0.0
  %1849 = vmatpush1.msra.mxu0 0.0
  %1850 = vmatprep.subr.mxu0 0.0
  %1851 = vmatpush1.msra.mxu0 0.0
  %1852 = vmatprep.subr.mxu0 0.0
  %1853 = vmatpush1.msra.mxu0 0.0
  %1854 = vmatprep.subr.mxu0 0.0
  %1855 = vmatpush1.msra.mxu0 0.0
  %1856 = vmatprep.subr.mxu0 0.0
  %1857 = vmatpush1.msra.mxu0 0.0
  %1858 = vmatprep.subr.mxu0 0.0
  %1859 = vmatpush1.msra.mxu0 0.0
  %1860 = vmatprep.subr.mxu0 0.0
  %1861 = vmatpush1.msra.mxu0 0.0
  %1862 = vmatprep.subr.mxu0 0.0
  %1863 = vmatpush1.msra.mxu0 0.0
  %1864 = vmatprep.subr.mxu0 0.0
  %1865 = vmatpush1.msra.mxu0 0.0
  %1866 = vmatprep.subr.mxu0 0.0
  %1867 = vmatpush1.msra.mxu0 0.0
  %1868 = vmatprep.subr.mxu0 0.0
  %1869 = vmatpush1.msra.mxu0 0.0
  %1870 = vmatprep.subr.mxu0 0.0
  %1871 = vmatpush1.msra.mxu0 0.0
  %1872 = vmatprep.subr.mxu0 0.0
  %1873 = vmatpush1.msra.mxu0 0.0
  %1874 = vmatprep.subr.mxu0 0.0
  %1875 = vmatpush1.msra.mxu0 0.0
  %1876 = vmatprep.subr.mxu0 0.0
  %1877 = vmatpush1.msra.mxu0 0.0
  %1878 = vmatprep.subr.mxu0 0.0
  %1879 = vmatpush1.msra.mxu0 0.0
  %1880 = vmatprep.subr.mxu0 0.0
  %1881 = vmatpush1.msra.mxu0 0.0
  %1882 = vmatprep.subr.mxu0 0.0
  %1883 = vmatpush1.msra.mxu0 0.0
  %1884 = vmatprep.subr.mxu0 0.0
  %1885 = vmatpush1.msra.mxu0 0.0
  %1886 = vmatprep.subr.mxu0 0.0
  %1887 = vmatpush1.msra.mxu0 0.0
  %1888 = vmatprep.subr.mxu0 0.0
  %1889 = vmatpush1.msra.mxu0 0.0
  %1890 = vmatprep.subr.mxu0 0.0
  %1891 = vmatpush1.msra.mxu0 0.0
  %1892 = vmatprep.mubr.f32.mxu0 0.0
  %1893 = vmatmul.mubr.f32.gmra.mrb[0].mxu0 %v1826
  %v1894 = vpop.f32.mrb[0].mxu0
  %v1895 = vadd.f32 %v1406, %v1894
  %v1896 = vpop.f32.mrb[0].mxu0
  %1897 = vdwg.mxu0
  %v1899 = vrot.slane %v1895, 2
  %v1901 = vadd.f32 %v1391, %v1899
  %v1902 = vxor.u32 %v1901, 2147483648
  %v1903 = vmul.f32 %v1902, 1.442695
  %v1904 = vpow.pop %v1903
  %v1905 = vadd.f32 %v1904, 1.0
  %v1906 = vrcp.pop %v1905
  %v1907 = vmul.f32 1.0, %v1906
  %1908 = vrot.lane.b32.xlu0 %v1899, 96
  %v1909 = vpop.permute.xlu0 %1908
  %v1911 = vmul.f32 %v1907, %v1909
  %1913 = vrot.lane.b32.xlu0 %v1911, 32
  %v1914 = vpop.permute.xlu0 %1913
  %v1916 = vadd.f32 %v1391, %v1914
  %v1917 = vtanh.pop %v1916
  %v1918 = vsub.f32 1.0, %v1907
  %1920 = vrot.lane.b32.xlu0 %v1917, 112
  %v1921 = vpop.permute.xlu0 %1920
  %v1923 = vmul.f32 %v1918, %v1921
  %v1924 = vrot.slane %v1785, 6
  %v1926 = vmul.f32 %v1907, %v1924
  %v1927 = vadd.f32 %v1923, %v1926
  %v1928 = vadd.f32 %v1396, %v1895
  %v1929 = vxor.u32 %v1928, 2147483648
  %v1930 = vmul.f32 %v1929, 1.442695
  %v1931 = vpow.pop %v1930
  %v1932 = vadd.f32 %v1931, 1.0
  %v1933 = vrcp.pop %v1932
  %v1934 = vmul.f32 1.0, %v1933
  %1935 = vrot.lane.b32.xlu0 %v1895, 96
  %v1936 = vpop.permute.xlu0 %1935
  %v1938 = vmul.f32 %v1934, %v1936
  %1940 = vrot.lane.b32.xlu0 %v1938, 32
  %v1941 = vpop.permute.xlu0 %1940
  %v1943 = vadd.f32 %v1396, %v1941
  %v1944 = vtanh.pop %v1943
  %v1945 = vsub.f32 1.0, %v1934
  %1947 = vrot.lane.b32.xlu0 %v1944, 112
  %v1948 = vpop.permute.xlu0 %1947
  %v1950 = vmul.f32 %v1945, %v1948
  %v1951 = vrot.slane %v1813, 2
  %v1953 = vmul.f32 %v1934, %v1951
  %v1954 = vadd.f32 %v1950, %v1953
  %1956 = vrot.lane.b32.xlu0 %v1927, 112
  %v1957 = vpop.permute.xlu0 %1956
  %v1960 = vrot.slane %v1954, 2
  %1961 = vrot.lane.b32.xlu0 %v1960, 80
  %v1962 = vpop.permute.xlu0 %1961
  %v1964 = vsel %vm265, %v1957, %v1962
  %v1966 = vrot.slane %v1964, 6
  %v1967 = vsel %vm44, %v1966, 0
  %1969 = vmatprep.subr.mxu0 0.0
  %1970 = vmatpush1.msra.mxu0 %v1399
  %1971 = vmatprep.subr.mxu0 0.0
  %1972 = vmatpush1.msra.mxu0 %v1400
  %1973 = vmatprep.subr.mxu0 0.0
  %1974 = vmatpush1.msra.mxu0 %v1401
  %1975 = vmatprep.subr.mxu0 0.0
  %1976 = vmatpush1.msra.mxu0 %v1402
  %1977 = vmatprep.subr.mxu0 0.0
  %1978 = vmatpush1.msra.mxu0 0.0
  %1979 = vmatprep.subr.mxu0 0.0
  %1980 = vmatpush1.msra.mxu0 0.0
  %1981 = vmatprep.subr.mxu0 0.0
  %1982 = vmatpush1.msra.mxu0 0.0
  %1983 = vmatprep.subr.mxu0 0.0
  %1984 = vmatpush1.msra.mxu0 0.0
  %1985 = vmatprep.subr.mxu0 0.0
  %1986 = vmatpush1.msra.mxu0 0.0
  %1987 = vmatprep.subr.mxu0 0.0
  %1988 = vmatpush1.msra.mxu0 0.0
  %1989 = vmatprep.subr.mxu0 0.0
  %1990 = vmatpush1.msra.mxu0 0.0
  %1991 = vmatprep.subr.mxu0 0.0
  %1992 = vmatpush1.msra.mxu0 0.0
  %1993 = vmatprep.subr.mxu0 0.0
  %1994 = vmatpush1.msra.mxu0 0.0
  %1995 = vmatprep.subr.mxu0 0.0
  %1996 = vmatpush1.msra.mxu0 0.0
  %1997 = vmatprep.subr.mxu0 0.0
  %1998 = vmatpush1.msra.mxu0 0.0
  %1999 = vmatprep.subr.mxu0 0.0
  %2000 = vmatpush1.msra.mxu0 0.0
  %2001 = vmatprep.subr.mxu0 0.0
  %2002 = vmatpush1.msra.mxu0 0.0
  %2003 = vmatprep.subr.mxu0 0.0
  %2004 = vmatpush1.msra.mxu0 0.0
  %2005 = vmatprep.subr.mxu0 0.0
  %2006 = vmatpush1.msra.mxu0 0.0
  %2007 = vmatprep.subr.mxu0 0.0
  %2008 = vmatpush1.msra.mxu0 0.0
  %2009 = vmatprep.subr.mxu0 0.0
  %2010 = vmatpush1.msra.mxu0 0.0
  %2011 = vmatprep.subr.mxu0 0.0
  %2012 = vmatpush1.msra.mxu0 0.0
  %2013 = vmatprep.subr.mxu0 0.0
  %2014 = vmatpush1.msra.mxu0 0.0
  %2015 = vmatprep.subr.mxu0 0.0
  %2016 = vmatpush1.msra.mxu0 0.0
  %2017 = vmatprep.subr.mxu0 0.0
  %2018 = vmatpush1.msra.mxu0 0.0
  %2019 = vmatprep.subr.mxu0 0.0
  %2020 = vmatpush1.msra.mxu0 0.0
  %2021 = vmatprep.subr.mxu0 0.0
  %2022 = vmatpush1.msra.mxu0 0.0
  %2023 = vmatprep.subr.mxu0 0.0
  %2024 = vmatpush1.msra.mxu0 0.0
  %2025 = vmatprep.subr.mxu0 0.0
  %2026 = vmatpush1.msra.mxu0 0.0
  %2027 = vmatprep.subr.mxu0 0.0
  %2028 = vmatpush1.msra.mxu0 0.0
  %2029 = vmatprep.subr.mxu0 0.0
  %2030 = vmatpush1.msra.mxu0 0.0
  %2031 = vmatprep.subr.mxu0 0.0
  %2032 = vmatpush1.msra.mxu0 0.0
  %2033 = vmatprep.mubr.f32.mxu0 0.0
  %2034 = vmatmul.mubr.f32.gmra.mrb[0].mxu0 %v1967
  %v2035 = vpop.f32.mrb[0].mxu0
  %v2036 = vadd.f32 %v1406, %v2035
  %v2037 = vpop.f32.mrb[0].mxu0
  %2038 = vdwg.mxu0
  %v2039 = vadd.f32 %v1396, %v2036
  %v2040 = vxor.u32 %v2039, 2147483648
  %v2041 = vmul.f32 %v2040, 1.442695
  %v2042 = vpow.pop %v2041
  %v2043 = vadd.f32 %v2042, 1.0
  %v2044 = vrcp.pop %v2043
  %v2045 = vmul.f32 1.0, %v2044
  %2047 = vrot.lane.b32.xlu0 %v2036, 96
  %v2048 = vpop.permute.xlu0 %2047
  %v2050 = vmul.f32 %v2045, %v2048
  %2052 = vrot.lane.b32.xlu0 %v2050, 32
  %v2053 = vpop.permute.xlu0 %2052
  %v2055 = vadd.f32 %v1396, %v2053
  %v2056 = vtanh.pop %v2055
  %v2057 = vsub.f32 1.0, %v2045
  %2059 = vrot.lane.b32.xlu0 %v2056, 112
  %v2060 = vpop.permute.xlu0 %2059
  %v2062 = vmul.f32 %v2057, %v2060
  %v2063 = vrot.slane %v1927, 6
  %v2065 = vmul.f32 %v2045, %v2063
  %v2066 = vadd.f32 %v2062, %v2065
  %v2067 = vrot.slane %v2036, 2
  %v2069 = vadd.f32 %v1391, %v2067
  %v2070 = vxor.u32 %v2069, 2147483648
  %v2071 = vmul.f32 %v2070, 1.442695
  %v2072 = vpow.pop %v2071
  %v2073 = vadd.f32 %v2072, 1.0
  %v2074 = vrcp.pop %v2073
  %v2075 = vmul.f32 1.0, %v2074
  %2076 = vrot.lane.b32.xlu0 %v2067, 96
  %v2077 = vpop.permute.xlu0 %2076
  %v2079 = vmul.f32 %v2075, %v2077
  %2081 = vrot.lane.b32.xlu0 %v2079, 32
  %v2082 = vpop.permute.xlu0 %2081
  %v2084 = vadd.f32 %v1391, %v2082
  %v2085 = vtanh.pop %v2084
  %v2086 = vsub.f32 1.0, %v2075
  %2088 = vrot.lane.b32.xlu0 %v2085, 112
  %v2089 = vpop.permute.xlu0 %2088
  %v2091 = vmul.f32 %v2086, %v2089
  %v2093 = vmul.f32 %v2075, %v1960
  %v2094 = vadd.f32 %v2091, %v2093
  %2096 = vrot.lane.b32.xlu0 %v2066, 112
  %v2097 = vpop.permute.xlu0 %2096
  %v2100 = vrot.slane %v2094, 6
  %2101 = vrot.lane.b32.xlu0 %v2100, 80
  %v2102 = vpop.permute.xlu0 %2101
  %v2104 = vsel %vm265, %v2097, %v2102
  %v2106 = vsel %vm44, %v2104, 0
  %2108 = vmatprep.subr.mxu0 0.0
  %2109 = vmatpush1.msra.mxu0 %v1399
  %2110 = vmatprep.subr.mxu0 0.0
  %2111 = vmatpush1.msra.mxu0 %v1400
  %2112 = vmatprep.subr.mxu0 0.0
  %2113 = vmatpush1.msra.mxu0 %v1401
  %2114 = vmatprep.subr.mxu0 0.0
  %2115 = vmatpush1.msra.mxu0 %v1402
  %2116 = vmatprep.subr.mxu0 0.0
  %2117 = vmatpush1.msra.mxu0 0.0
  %2118 = vmatprep.subr.mxu0 0.0
  %2119 = vmatpush1.msra.mxu0 0.0
  %2120 = vmatprep.subr.mxu0 0.0
  %2121 = vmatpush1.msra.mxu0 0.0
  %2122 = vmatprep.subr.mxu0 0.0
  %2123 = vmatpush1.msra.mxu0 0.0
  %2124 = vmatprep.subr.mxu0 0.0
  %2125 = vmatpush1.msra.mxu0 0.0
  %2126 = vmatprep.subr.mxu0 0.0
  %2127 = vmatpush1.msra.mxu0 0.0
  %2128 = vmatprep.subr.mxu0 0.0
  %2129 = vmatpush1.msra.mxu0 0.0
  %2130 = vmatprep.subr.mxu0 0.0
  %2131 = vmatpush1.msra.mxu0 0.0
  %2132 = vmatprep.subr.mxu0 0.0
  %2133 = vmatpush1.msra.mxu0 0.0
  %2134 = vmatprep.subr.mxu0 0.0
  %2135 = vmatpush1.msra.mxu0 0.0
  %2136 = vmatprep.subr.mxu0 0.0
  %2137 = vmatpush1.msra.mxu0 0.0
  %2138 = vmatprep.subr.mxu0 0.0
  %2139 = vmatpush1.msra.mxu0 0.0
  %2140 = vmatprep.subr.mxu0 0.0
  %2141 = vmatpush1.msra.mxu0 0.0
  %2142 = vmatprep.subr.mxu0 0.0
  %2143 = vmatpush1.msra.mxu0 0.0
  %2144 = vmatprep.subr.mxu0 0.0
  %2145 = vmatpush1.msra.mxu0 0.0
  %2146 = vmatprep.subr.mxu0 0.0
  %2147 = vmatpush1.msra.mxu0 0.0
  %2148 = vmatprep.subr.mxu0 0.0
  %2149 = vmatpush1.msra.mxu0 0.0
  %2150 = vmatprep.subr.mxu0 0.0
  %2151 = vmatpush1.msra.mxu0 0.0
  %2152 = vmatprep.subr.mxu0 0.0
  %2153 = vmatpush1.msra.mxu0 0.0
  %2154 = vmatprep.subr.mxu0 0.0
  %2155 = vmatpush1.msra.mxu0 0.0
  %2156 = vmatprep.subr.mxu0 0.0
  %2157 = vmatpush1.msra.mxu0 0.0
  %2158 = vmatprep.subr.mxu0 0.0
  %2159 = vmatpush1.msra.mxu0 0.0
  %2160 = vmatprep.subr.mxu0 0.0
  %2161 = vmatpush1.msra.mxu0 0.0
  %2162 = vmatprep.subr.mxu0 0.0
  %2163 = vmatpush1.msra.mxu0 0.0
  %2164 = vmatprep.subr.mxu0 0.0
  %2165 = vmatpush1.msra.mxu0 0.0
  %2166 = vmatprep.subr.mxu0 0.0
  %2167 = vmatpush1.msra.mxu0 0.0
  %2168 = vmatprep.subr.mxu0 0.0
  %2169 = vmatpush1.msra.mxu0 0.0
  %2170 = vmatprep.subr.mxu0 0.0
  %2171 = vmatpush1.msra.mxu0 0.0
  %2172 = vmatprep.mubr.f32.mxu0 0.0
  %2173 = vmatmul.mubr.f32.gmra.mrb[0].mxu0 %v2106
  %v2174 = vpop.f32.mrb[0].mxu0
  %v2175 = vadd.f32 %v1406, %v2174
  %v2176 = vpop.f32.mrb[0].mxu0
  %2177 = vdwg.mxu0
  %v2179 = vrot.slane %v2175, 6
  %v2181 = vadd.f32 %v1396, %v2179
  %v2182 = vxor.u32 %v2181, 2147483648
  %v2183 = vmul.f32 %v2182, 1.442695
  %v2184 = vpow.pop %v2183
  %v2185 = vadd.f32 %v2184, 1.0
  %v2186 = vrcp.pop %v2185
  %v2187 = vmul.f32 1.0, %v2186
  %2188 = vrot.lane.b32.xlu0 %v2179, 96
  %v2189 = vpop.permute.xlu0 %2188
  %v2191 = vmul.f32 %v2187, %v2189
  %2193 = vrot.lane.b32.xlu0 %v2191, 32
  %v2194 = vpop.permute.xlu0 %2193
  %v2196 = vadd.f32 %v1396, %v2194
  %v2197 = vtanh.pop %v2196
  %v2198 = vsub.f32 1.0, %v2187
  %2200 = vrot.lane.b32.xlu0 %v2197, 112
  %v2201 = vpop.permute.xlu0 %2200
  %v2203 = vmul.f32 %v2198, %v2201
  %v2204 = vrot.slane %v2066, 6
  %v2206 = vmul.f32 %v2187, %v2204
  %v2207 = vadd.f32 %v2203, %v2206
  %v2208 = vrot.slane %v2175, 4
  %v2210 = vadd.f32 %v1391, %v2208
  %v2211 = vxor.u32 %v2210, 2147483648
  %v2212 = vmul.f32 %v2211, 1.442695
  %v2213 = vpow.pop %v2212
  %v2214 = vadd.f32 %v2213, 1.0
  %v2215 = vrcp.pop %v2214
  %v2216 = vmul.f32 1.0, %v2215
  %2217 = vrot.lane.b32.xlu0 %v2208, 96
  %v2218 = vpop.permute.xlu0 %2217
  %v2220 = vmul.f32 %v2216, %v2218
  %2222 = vrot.lane.b32.xlu0 %v2220, 32
  %v2223 = vpop.permute.xlu0 %2222
  %v2225 = vadd.f32 %v1391, %v2223
  %v2226 = vtanh.pop %v2225
  %v2227 = vsub.f32 1.0, %v2216
  %2229 = vrot.lane.b32.xlu0 %v2226, 112
  %v2230 = vpop.permute.xlu0 %2229
  %v2232 = vmul.f32 %v2227, %v2230
  %v2233 = vrot.slane %v2094, 2
  %v2235 = vmul.f32 %v2216, %v2233
  %v2236 = vadd.f32 %v2232, %v2235
  %2238 = vrot.lane.b32.xlu0 %v2207, 112
  %v2239 = vpop.permute.xlu0 %2238
  %v2242 = vrot.slane %v2236, 2
  %2243 = vrot.lane.b32.xlu0 %v2242, 80
  %v2244 = vpop.permute.xlu0 %2243
  %v2246 = vsel %vm265, %v2239, %v2244
  %v2248 = vrot.slane %v2246, 2
  %v2249 = vsel %vm44, %v2248, 0
  %2251 = vmatprep.subr.mxu0 0.0
  %2252 = vmatpush1.msra.mxu0 %v1399
  %2253 = vmatprep.subr.mxu0 0.0
  %2254 = vmatpush1.msra.mxu0 %v1400
  %2255 = vmatprep.subr.mxu0 0.0
  %2256 = vmatpush1.msra.mxu0 %v1401
  %2257 = vmatprep.subr.mxu0 0.0
  %2258 = vmatpush1.msra.mxu0 %v1402
  %2259 = vmatprep.subr.mxu0 0.0
  %2260 = vmatpush1.msra.mxu0 0.0
  %2261 = vmatprep.subr.mxu0 0.0
  %2262 = vmatpush1.msra.mxu0 0.0
  %2263 = vmatprep.subr.mxu0 0.0
  %2264 = vmatpush1.msra.mxu0 0.0
  %2265 = vmatprep.subr.mxu0 0.0
  %2266 = vmatpush1.msra.mxu0 0.0
  %2267 = vmatprep.subr.mxu0 0.0
  %2268 = vmatpush1.msra.mxu0 0.0
  %2269 = vmatprep.subr.mxu0 0.0
  %2270 = vmatpush1.msra.mxu0 0.0
  %2271 = vmatprep.subr.mxu0 0.0
  %2272 = vmatpush1.msra.mxu0 0.0
  %2273 = vmatprep.subr.mxu0 0.0
  %2274 = vmatpush1.msra.mxu0 0.0
  %2275 = vmatprep.subr.mxu0 0.0
  %2276 = vmatpush1.msra.mxu0 0.0
  %2277 = vmatprep.subr.mxu0 0.0
  %2278 = vmatpush1.msra.mxu0 0.0
  %2279 = vmatprep.subr.mxu0 0.0
  %2280 = vmatpush1.msra.mxu0 0.0
  %2281 = vmatprep.subr.mxu0 0.0
  %2282 = vmatpush1.msra.mxu0 0.0
  %2283 = vmatprep.subr.mxu0 0.0
  %2284 = vmatpush1.msra.mxu0 0.0
  %2285 = vmatprep.subr.mxu0 0.0
  %2286 = vmatpush1.msra.mxu0 0.0
  %2287 = vmatprep.subr.mxu0 0.0
  %2288 = vmatpush1.msra.mxu0 0.0
  %2289 = vmatprep.subr.mxu0 0.0
  %2290 = vmatpush1.msra.mxu0 0.0
  %2291 = vmatprep.subr.mxu0 0.0
  %2292 = vmatpush1.msra.mxu0 0.0
  %2293 = vmatprep.subr.mxu0 0.0
  %2294 = vmatpush1.msra.mxu0 0.0
  %2295 = vmatprep.subr.mxu0 0.0
  %2296 = vmatpush1.msra.mxu0 0.0
  %2297 = vmatprep.subr.mxu0 0.0
  %2298 = vmatpush1.msra.mxu0 0.0
  %2299 = vmatprep.subr.mxu0 0.0
  %2300 = vmatpush1.msra.mxu0 0.0
  %2301 = vmatprep.subr.mxu0 0.0
  %2302 = vmatpush1.msra.mxu0 0.0
  %2303 = vmatprep.subr.mxu0 0.0
  %2304 = vmatpush1.msra.mxu0 0.0
  %2305 = vmatprep.subr.mxu0 0.0
  %2306 = vmatpush1.msra.mxu0 0.0
  %2307 = vmatprep.subr.mxu0 0.0
  %2308 = vmatpush1.msra.mxu0 0.0
  %2309 = vmatprep.subr.mxu0 0.0
  %2310 = vmatpush1.msra.mxu0 0.0
  %2311 = vmatprep.subr.mxu0 0.0
  %2312 = vmatpush1.msra.mxu0 0.0
  %2313 = vmatprep.subr.mxu0 0.0
  %2314 = vmatpush1.msra.mxu0 0.0
  %2315 = vmatprep.mubr.f32.mxu0 0.0
  %2316 = vmatmul.mubr.f32.gmra.mrb[0].mxu0 %v2249
  %v2317 = vpop.f32.mrb[0].mxu0
  %v2318 = vadd.f32 %v1406, %v2317
  %v2319 = vpop.f32.mrb[0].mxu0
  %2320 = vdwg.mxu0
  %v2322 = vrot.slane %v2318, 4
  %v2324 = vadd.f32 %v1396, %v2322
  %v2325 = vxor.u32 %v2324, 2147483648
  %v2326 = vmul.f32 %v2325, 1.442695
  %v2327 = vpow.pop %v2326
  %v2328 = vadd.f32 %v2327, 1.0
  %v2329 = vrcp.pop %v2328
  %v2330 = vmul.f32 1.0, %v2329
  %2331 = vrot.lane.b32.xlu0 %v2322, 96
  %v2332 = vpop.permute.xlu0 %2331
  %v2334 = vmul.f32 %v2330, %v2332
  %2336 = vrot.lane.b32.xlu0 %v2334, 32
  %v2337 = vpop.permute.xlu0 %2336
  %v2339 = vadd.f32 %v1396, %v2337
  %v2340 = vtanh.pop %v2339
  %v2341 = vsub.f32 1.0, %v2330
  %2343 = vrot.lane.b32.xlu0 %v2340, 112
  %v2344 = vpop.permute.xlu0 %2343
  %v2346 = vmul.f32 %v2341, %v2344
  %v2347 = vrot.slane %v2207, 6
  %v2349 = vmul.f32 %v2330, %v2347
  %v2350 = vadd.f32 %v2346, %v2349
  %v2351 = vrot.slane %v2318, 6
  %v2353 = vadd.f32 %v1391, %v2351
  %v2354 = vxor.u32 %v2353, 2147483648
  %v2355 = vmul.f32 %v2354, 1.442695
  %v2356 = vpow.pop %v2355
  %v2357 = vadd.f32 %v2356, 1.0
  %v2358 = vrcp.pop %v2357
  %v2359 = vmul.f32 1.0, %v2358
  %2360 = vrot.lane.b32.xlu0 %v2351, 96
  %v2361 = vpop.permute.xlu0 %2360
  %v2363 = vmul.f32 %v2359, %v2361
  %2365 = vrot.lane.b32.xlu0 %v2363, 32
  %v2366 = vpop.permute.xlu0 %2365
  %v2368 = vadd.f32 %v1391, %v2366
  %v2369 = vtanh.pop %v2368
  %v2370 = vsub.f32 1.0, %v2359
  %2372 = vrot.lane.b32.xlu0 %v2369, 112
  %v2373 = vpop.permute.xlu0 %2372
  %v2375 = vmul.f32 %v2370, %v2373
  %v2377 = vmul.f32 %v2359, %v2242
  %v2378 = vadd.f32 %v2375, %v2377
  %2380 = vrot.lane.b32.xlu0 %v2350, 112
  %v2381 = vpop.permute.xlu0 %2380
  %v2384 = vrot.slane %v2378, 6
  %2385 = vrot.lane.b32.xlu0 %v2384, 80
  %v2386 = vpop.permute.xlu0 %2385
  %v2388 = vsel %vm265, %v2381, %v2386
  %v2390 = vrot.slane %v2388, 4
  %v2391 = vsel %vm44, %v2390, 0
  %2393 = vmatprep.subr.mxu0 0.0
  %2394 = vmatpush1.msra.mxu0 %v1399
  %2395 = vmatprep.subr.mxu0 0.0
  %2396 = vmatpush1.msra.mxu0 %v1400
  %2397 = vmatprep.subr.mxu0 0.0
  %2398 = vmatpush1.msra.mxu0 %v1401
  %2399 = vmatprep.subr.mxu0 0.0
  %2400 = vmatpush1.msra.mxu0 %v1402
  %2401 = vmatprep.subr.mxu0 0.0
  %2402 = vmatpush1.msra.mxu0 0.0
  %2403 = vmatprep.subr.mxu0 0.0
  %2404 = vmatpush1.msra.mxu0 0.0
  %2405 = vmatprep.subr.mxu0 0.0
  %2406 = vmatpush1.msra.mxu0 0.0
  %2407 = vmatprep.subr.mxu0 0.0
  %2408 = vmatpush1.msra.mxu0 0.0
  %2409 = vmatprep.subr.mxu0 0.0
  %2410 = vmatpush1.msra.mxu0 0.0
  %2411 = vmatprep.subr.mxu0 0.0
  %2412 = vmatpush1.msra.mxu0 0.0
  %2413 = vmatprep.subr.mxu0 0.0
  %2414 = vmatpush1.msra.mxu0 0.0
  %2415 = vmatprep.subr.mxu0 0.0
  %2416 = vmatpush1.msra.mxu0 0.0
  %2417 = vmatprep.subr.mxu0 0.0
  %2418 = vmatpush1.msra.mxu0 0.0
  %2419 = vmatprep.subr.mxu0 0.0
  %2420 = vmatpush1.msra.mxu0 0.0
  %2421 = vmatprep.subr.mxu0 0.0
  %2422 = vmatpush1.msra.mxu0 0.0
  %2423 = vmatprep.subr.mxu0 0.0
  %2424 = vmatpush1.msra.mxu0 0.0
  %2425 = vmatprep.subr.mxu0 0.0
  %2426 = vmatpush1.msra.mxu0 0.0
  %2427 = vmatprep.subr.mxu0 0.0
  %2428 = vmatpush1.msra.mxu0 0.0
  %2429 = vmatprep.subr.mxu0 0.0
  %2430 = vmatpush1.msra.mxu0 0.0
  %2431 = vmatprep.subr.mxu0 0.0
  %2432 = vmatpush1.msra.mxu0 0.0
  %2433 = vmatprep.subr.mxu0 0.0
  %2434 = vmatpush1.msra.mxu0 0.0
  %2435 = vmatprep.subr.mxu0 0.0
  %2436 = vmatpush1.msra.mxu0 0.0
  %2437 = vmatprep.subr.mxu0 0.0
  %2438 = vmatpush1.msra.mxu0 0.0
  %2439 = vmatprep.subr.mxu0 0.0
  %2440 = vmatpush1.msra.mxu0 0.0
  %2441 = vmatprep.subr.mxu0 0.0
  %2442 = vmatpush1.msra.mxu0 0.0
  %2443 = vmatprep.subr.mxu0 0.0
  %2444 = vmatpush1.msra.mxu0 0.0
  %2445 = vmatprep.subr.mxu0 0.0
  %2446 = vmatpush1.msra.mxu0 0.0
  %2447 = vmatprep.subr.mxu0 0.0
  %2448 = vmatpush1.msra.mxu0 0.0
  %2449 = vmatprep.subr.mxu0 0.0
  %2450 = vmatpush1.msra.mxu0 0.0
  %2451 = vmatprep.subr.mxu0 0.0
  %2452 = vmatpush1.msra.mxu0 0.0
  %2453 = vmatprep.subr.mxu0 0.0
  %2454 = vmatpush1.msra.mxu0 0.0
  %2455 = vmatprep.subr.mxu0 0.0
  %2456 = vmatpush1.msra.mxu0 0.0
  %2457 = vmatprep.mubr.f32.mxu0 0.0
  %2458 = vmatmul.mubr.f32.gmra.mrb[0].mxu0 %v2391
  %v2459 = vpop.f32.mrb[0].mxu0
  %v2460 = vadd.f32 %v1406, %v2459
  %v2461 = vpop.f32.mrb[0].mxu0
  %2462 = vdwg.mxu0
  %v2464 = vrot.slane %v2460, 2
  %v2466 = vadd.f32 %v1396, %v2464
  %v2467 = vxor.u32 %v2466, 2147483648
  %v2468 = vmul.f32 %v2467, 1.442695
  %v2469 = vpow.pop %v2468
  %v2470 = vadd.f32 %v2469, 1.0
  %v2471 = vrcp.pop %v2470
  %v2472 = vmul.f32 1.0, %v2471
  %2473 = vrot.lane.b32.xlu0 %v2464, 96
  %v2474 = vpop.permute.xlu0 %2473
  %v2476 = vmul.f32 %v2472, %v2474
  %2478 = vrot.lane.b32.xlu0 %v2476, 32
  %v2479 = vpop.permute.xlu0 %2478
  %v2481 = vadd.f32 %v1396, %v2479
  %v2482 = vtanh.pop %v2481
  %v2483 = vsub.f32 1.0, %v2472
  %2485 = vrot.lane.b32.xlu0 %v2482, 112
  %v2486 = vpop.permute.xlu0 %2485
  %v2488 = vmul.f32 %v2483, %v2486
  %v2489 = vrot.slane %v2350, 6
  %v2491 = vmul.f32 %v2472, %v2489
  %v2492 = vadd.f32 %v2488, %v2491
  %v2493 = vadd.f32 %v1391, %v2460
  %v2494 = vxor.u32 %v2493, 2147483648
  %v2495 = vmul.f32 %v2494, 1.442695
  %v2496 = vpow.pop %v2495
  %v2497 = vadd.f32 %v2496, 1.0
  %v2498 = vrcp.pop %v2497
  %v2499 = vmul.f32 1.0, %v2498
  %2500 = vrot.lane.b32.xlu0 %v2460, 96
  %v2501 = vpop.permute.xlu0 %2500
  %v2503 = vmul.f32 %v2499, %v2501
  %2505 = vrot.lane.b32.xlu0 %v2503, 32
  %v2506 = vpop.permute.xlu0 %2505
  %v2508 = vadd.f32 %v1391, %v2506
  %v2509 = vtanh.pop %v2508
  %v2510 = vsub.f32 1.0, %v2499
  %2512 = vrot.lane.b32.xlu0 %v2509, 112
  %v2513 = vpop.permute.xlu0 %2512
  %v2515 = vmul.f32 %v2510, %v2513
  %v2516 = vrot.slane %v2378, 2
  %v2518 = vmul.f32 %v2499, %v2516
  %v2519 = vadd.f32 %v2515, %v2518
  %2521 = vrot.lane.b32.xlu0 %v2519, 80
  %v2522 = vpop.permute.xlu0 %2521
  %v2524 = vsel %vm265, %v1532, %v2522
  %2525 = vrot.lane.b32.xlu0 %v2378, 80
  %v2526 = vpop.permute.xlu0 %2525
  %v2528 = vsel %vm265, %v1674, %v2526
  %2529 = vrot.lane.b32.xlu0 %v2236, 80
  %v2530 = vpop.permute.xlu0 %2529
  %v2532 = vsel %vm265, %v1816, %v2530
  %2533 = vrot.lane.b32.xlu0 %v2094, 80
  %v2534 = vpop.permute.xlu0 %2533
  %v2536 = vsel %vm265, %v1957, %v2534
  %2537 = vrot.lane.b32.xlu0 %v1954, 80
  %v2538 = vpop.permute.xlu0 %2537
  %v2540 = vsel %vm265, %v2097, %v2538
  %2541 = vrot.lane.b32.xlu0 %v1813, 80
  %v2542 = vpop.permute.xlu0 %2541
  %v2544 = vsel %vm265, %v2239, %v2542
  %2545 = vrot.lane.b32.xlu0 %v1671, 80
  %v2546 = vpop.permute.xlu0 %2545
  %v2548 = vsel %vm265, %v2381, %v2546
  %2550 = vrot.lane.b32.xlu0 %v2492, 112
  %v2551 = vpop.permute.xlu0 %2550
  %2553 = vrot.lane.b32.xlu0 %v1529, 80
  %v2554 = vpop.permute.xlu0 %2553
  %v2556 = vsel %vm265, %v2551, %v2554
  %v2557 = vsel %vm1301, %v2524, %v2528
  %v2558 = vsel %vm1303, %v2557, %v2532
  %v2559 = vsel %vm1305, %v2558, %v2536
  %v2560 = vsel %vm1301, %v2540, %v2544
  %v2561 = vsel %vm1303, %v2560, %v2548
  %v2562 = vsel %vm1305, %v2561, %v2556
  %v2563 = vld [vmem:[%s6] sm:$0xff]
  %v2564 = vld [vmem:[%s6 + $0x8] sm:$0xff]
  %v2565 = vld [vmem:[%s6 + $0x10] sm:$0xff]
  %v2566 = vld [vmem:[%s6 + $0x18] sm:$0xff]
  %v2568 = vsel %vm44, %v2559, 0
  %v2571 = vsel %vm44, %v2562, 0
  %2573 = vmatprep.subr.mxu0 0.0
  %2574 = vmatpush1.msra.mxu0 %v2563
  %2575 = vmatprep.subr.mxu0 0.0
  %2576 = vmatpush1.msra.mxu0 %v2564
  %2577 = vmatprep.subr.mxu0 0.0
  %2578 = vmatpush1.msra.mxu0 %v2565
  %2579 = vmatprep.subr.mxu0 0.0
  %2580 = vmatpush1.msra.mxu0 %v2566
  %2581 = vmatprep.subr.mxu0 0.0
  %2582 = vmatpush1.msra.mxu0 0.0
  %2583 = vmatprep.subr.mxu0 0.0
  %2584 = vmatpush1.msra.mxu0 0.0
  %2585 = vmatprep.subr.mxu0 0.0
  %2586 = vmatpush1.msra.mxu0 0.0
  %2587 = vmatprep.subr.mxu0 0.0
  %2588 = vmatpush1.msra.mxu0 0.0
  %2589 = vmatprep.subr.mxu0 0.0
  %2590 = vmatpush1.msra.mxu0 0.0
  %2591 = vmatprep.subr.mxu0 0.0
  %2592 = vmatpush1.msra.mxu0 0.0
  %2593 = vmatprep.subr.mxu0 0.0
  %2594 = vmatpush1.msra.mxu0 0.0
  %2595 = vmatprep.subr.mxu0 0.0
  %2596 = vmatpush1.msra.mxu0 0.0
  %2597 = vmatprep.subr.mxu0 0.0
  %2598 = vmatpush1.msra.mxu0 0.0
  %2599 = vmatprep.subr.mxu0 0.0
  %2600 = vmatpush1.msra.mxu0 0.0
  %2601 = vmatprep.subr.mxu0 0.0
  %2602 = vmatpush1.msra.mxu0 0.0
  %2603 = vmatprep.subr.mxu0 0.0
  %2604 = vmatpush1.msra.mxu0 0.0
  %2605 = vmatprep.subr.mxu0 0.0
  %2606 = vmatpush1.msra.mxu0 0.0
  %2607 = vmatprep.subr.mxu0 0.0
  %2608 = vmatpush1.msra.mxu0 0.0
  %2609 = vmatprep.subr.mxu0 0.0
  %2610 = vmatpush1.msra.mxu0 0.0
  %2611 = vmatprep.subr.mxu0 0.0
  %2612 = vmatpush1.msra.mxu0 0.0
  %2613 = vmatprep.subr.mxu0 0.0
  %2614 = vmatpush1.msra.mxu0 0.0
  %2615 = vmatprep.subr.mxu0 0.0
  %2616 = vmatpush1.msra.mxu0 0.0
  %2617 = vmatprep.subr.mxu0 0.0
  %2618 = vmatpush1.msra.mxu0 0.0
  %2619 = vmatprep.subr.mxu0 0.0
  %2620 = vmatpush1.msra.mxu0 0.0
  %2621 = vmatprep.subr.mxu0 0.0
  %2622 = vmatpush1.msra.mxu0 0.0
  %2623 = vmatprep.subr.mxu0 0.0
  %2624 = vmatpush1.msra.mxu0 0.0
  %2625 = vmatprep.subr.mxu0 0.0
  %2626 = vmatpush1.msra.mxu0 0.0
  %2627 = vmatprep.subr.mxu0 0.0
  %2628 = vmatpush1.msra.mxu0 0.0
  %2629 = vmatprep.subr.mxu0 0.0
  %2630 = vmatpush1.msra.mxu0 0.0
  %2631 = vmatprep.subr.mxu0 0.0
  %2632 = vmatpush1.msra.mxu0 0.0
  %2633 = vmatprep.subr.mxu0 0.0
  %2634 = vmatpush1.msra.mxu0 0.0
  %2635 = vmatprep.subr.mxu0 0.0
  %2636 = vmatpush1.msra.mxu0 0.0
  %2637 = vmatprep.mubr.f32.mxu0 0.0
  %2638 = vmatmul.mubr.f32.gmra.mrb[0].mxu0 %v2568
  %v2639 = vpop.f32.mrb[0].mxu0
  %v2640 = vadd.f32 0.0, %v2639
  %v2641 = vpop.f32.mrb[0].mxu0
  %2642 = vmatprep.mubr.f32.mxu0 0.0
  %2643 = vmatmul.mubr.f32.gmra.mrb[0].mxu0 %v2571
  %v2644 = vpop.f32.mrb[0].mxu0
  %v2645 = vadd.f32 0.0, %v2644
  %v2646 = vpop.f32.mrb[0].mxu0
  %2647 = vdwg.mxu0
  %v2649 = vrot.slane %v2640, 2
  %v2651 = vrot.slane %v2640, 4
  %v2653 = vrot.slane %v2640, 6
  %v2656 = vrot.slane %v2645, 2
  %v2658 = vrot.slane %v2645, 4
  %v2660 = vrot.slane %v2645, 6
  %v2662 = vrcp.pop 5.0
  %v2663 = vmul.f32 %v2662, %v2640
  %v2664 = vmul.f32 %v2662, %v2649
  %v2665 = vmul.f32 %v2662, %v2651
  %v2666 = vmul.f32 %v2662, %v2653
  %v2667 = vmul.f32 %v2662, %v2645
  %v2668 = vmul.f32 %v2662, %v2656
  %v2669 = vmul.f32 %v2662, %v2658
  %v2670 = vmul.f32 %v2662, %v2660
  %vm2671 = vcmask 33792
  %v2672 = vsel %vm2671, %v2663, 0.0
  %v2673 = vsel %vm2671, %v2664, 0.0
  %v2674 = vadd.f32 %v2672, %v2673
  %v2675 = vsel %vm2671, %v2665, 0.0
  %v2676 = vadd.f32 %v2674, %v2675
  %v2677 = vsel %vm2671, %v2666, 0.0
  %v2678 = vadd.f32 %v2676, %v2677
  %v2679 = vsel %vm2671, %v2667, 0.0
  %v2680 = vadd.f32 %v2678, %v2679
  %v2681 = vsel %vm2671, %v2668, 0.0
  %v2682 = vadd.f32 %v2680, %v2681
  %v2683 = vsel %vm2671, %v2669, 0.0
  %v2684 = vadd.f32 %v2682, %v2683
  %v2685 = vsel %vm2671, %v2670, 0.0
  %v2686 = vadd.f32 %v2684, %v2685
  %v2687 = vmul.f32 %v2686, %v2686
  %v2688 = vsel %vm2671, %v2687, 0.0
  %2689 = vadd.xlane.f32.xlu0 %v2688
  %v2690 = vpop.xlane.xlu0 %2689
  %v2691 = vadd.f32 %v2690, 1e-07
  %v2692 = vrsqrt.pop %v2691
  %v2693 = vmul.f32 %v2686, %v2692
  %vm2694 = vcmask 74792
  %v2695 = vsel %vm2694, %v2663, 0.0
  %v2696 = vsel %vm2694, %v2664, 0.0
  %v2697 = vadd.f32 %v2695, %v2696
  %v2698 = vsel %vm2694, %v2665, 0.0
  %v2699 = vadd.f32 %v2697, %v2698
  %v2700 = vsel %vm2694, %v2666, 0.0
  %v2701 = vadd.f32 %v2699, %v2700
  %v2702 = vsel %vm2694, %v2667, 0.0
  %v2703 = vadd.f32 %v2701, %v2702
  %v2704 = vsel %vm2694, %v2668, 0.0
  %v2705 = vadd.f32 %v2703, %v2704
  %v2706 = vsel %vm2694, %v2669, 0.0
  %v2707 = vadd.f32 %v2705, %v2706
  %v2708 = vsel %vm2694, %v2670, 0.0
  %v2709 = vadd.f32 %v2707, %v2708
  %v2710 = vmul.f32 %v2709, %v2709
  %2712 = vrot.lane.b32.xlu0 %v2710, 123
  %v2713 = vpop.permute.xlu0 %2712
  %v2715 = vsel %vm2671, %v2713, 0.0
  %2716 = vadd.xlane.f32.xlu0 %v2715
  %v2717 = vpop.xlane.xlu0 %2716
  %v2718 = vadd.f32 %v2717, 1e-07
  %v2719 = vrsqrt.pop %v2718
  %v2720 = vmul.f32 %v2709, %v2719
  %vm2721 = vcmask 115792
  %v2722 = vsel %vm2721, %v2663, 0.0
  %v2723 = vsel %vm2721, %v2664, 0.0
  %v2724 = vadd.f32 %v2722, %v2723
  %v2725 = vsel %vm2721, %v2665, 0.0
  %v2726 = vadd.f32 %v2724, %v2725
  %v2727 = vsel %vm2721, %v2666, 0.0
  %v2728 = vadd.f32 %v2726, %v2727
  %v2729 = vsel %vm2721, %v2667, 0.0
  %v2730 = vadd.f32 %v2728, %v2729
  %v2731 = vsel %vm2721, %v2668, 0.0
  %v2732 = vadd.f32 %v2730, %v2731
  %v2733 = vsel %vm2721, %v2669, 0.0
  %v2734 = vadd.f32 %v2732, %v2733
  %v2735 = vsel %vm2721, %v2670, 0.0
  %v2736 = vadd.f32 %v2734, %v2735
  %v2737 = vmul.f32 %v2736, %v2736
  %2739 = vrot.lane.b32.xlu0 %v2737, 118
  %v2740 = vpop.permute.xlu0 %2739
  %v2742 = vsel %vm2671, %v2740, 0.0
  %2743 = vadd.xlane.f32.xlu0 %v2742
  %v2744 = vpop.xlane.xlu0 %2743
  %v2745 = vadd.f32 %v2744, 1e-07
  %v2746 = vrsqrt.pop %v2745
  %v2747 = vmul.f32 %v2736, %v2746
  %vm2748 = vcmask 156792
  %v2749 = vsel %vm2748, %v2663, 0.0
  %v2750 = vsel %vm2748, %v2664, 0.0
  %v2751 = vadd.f32 %v2749, %v2750
  %v2752 = vsel %vm2748, %v2665, 0.0
  %v2753 = vadd.f32 %v2751, %v2752
  %v2754 = vsel %vm2748, %v2666, 0.0
  %v2755 = vadd.f32 %v2753, %v2754
  %v2756 = vsel %vm2748, %v2667, 0.0
  %v2757 = vadd.f32 %v2755, %v2756
  %v2758 = vsel %vm2748, %v2668, 0.0
  %v2759 = vadd.f32 %v2757, %v2758
  %v2760 = vsel %vm2748, %v2669, 0.0
  %v2761 = vadd.f32 %v2759, %v2760
  %v2762 = vsel %vm2748, %v2670, 0.0
  %v2763 = vadd.f32 %v2761, %v2762
  %v2764 = vmul.f32 %v2763, %v2763
  %2766 = vrot.lane.b32.xlu0 %v2764, 113
  %v2767 = vpop.permute.xlu0 %2766
  %v2769 = vsel %vm2671, %v2767, 0.0
  %2770 = vadd.xlane.f32.xlu0 %v2769
  %v2771 = vpop.xlane.xlu0 %2770
  %v2772 = vadd.f32 %v2771, 1e-07
  %v2773 = vrsqrt.pop %v2772
  %v2774 = vmul.f32 %v2763, %v2773
  %vm2775 = vcmask 197792
  %v2776 = vsel %vm2775, %v2663, 0.0
  %v2777 = vsel %vm2775, %v2664, 0.0
  %v2778 = vadd.f32 %v2776, %v2777
  %v2779 = vsel %vm2775, %v2665, 0.0
  %v2780 = vadd.f32 %v2778, %v2779
  %v2781 = vsel %vm2775, %v2666, 0.0
  %v2782 = vadd.f32 %v2780, %v2781
  %v2783 = vsel %vm2775, %v2667, 0.0
  %v2784 = vadd.f32 %v2782, %v2783
  %v2785 = vsel %vm2775, %v2668, 0.0
  %v2786 = vadd.f32 %v2784, %v2785
  %v2787 = vsel %vm2775, %v2669, 0.0
  %v2788 = vadd.f32 %v2786, %v2787
  %v2789 = vsel %vm2775, %v2670, 0.0
  %v2790 = vadd.f32 %v2788, %v2789
  %v2791 = vmul.f32 %v2790, %v2790
  %2793 = vrot.lane.b32.xlu0 %v2791, 108
  %v2794 = vpop.permute.xlu0 %2793
  %v2796 = vsel %vm2671, %v2794, 0.0
  %2797 = vadd.xlane.f32.xlu0 %v2796
  %v2798 = vpop.xlane.xlu0 %2797
  %v2799 = vadd.f32 %v2798, 1e-07
  %v2800 = vrsqrt.pop %v2799
  %v2801 = vmul.f32 %v2790, %v2800
  %v2802 = vmul.f32 %v2693, %v2640
  %v2803 = vmul.f32 %v2693, %v2649
  %v2804 = vmul.f32 %v2693, %v2651
  %v2805 = vmul.f32 %v2693, %v2653
  %v2806 = vmul.f32 %v2693, %v2645
  %v2807 = vmul.f32 %v2693, %v2656
  %v2808 = vmul.f32 %v2693, %v2658
  %v2809 = vmul.f32 %v2693, %v2660
  %v2810 = vsel %vm2671, %v2802, 0.0
  %2811 = vadd.xlane.f32.xlu0 %v2810
  %v2812 = vpop.xlane.xlu0 %2811
  %v2813 = vsel %vm2671, %v2803, 0.0
  %2814 = vadd.xlane.f32.xlu0 %v2813
  %v2815 = vpop.xlane.xlu0 %2814
  %v2816 = vsel %vm2671, %v2804, 0.0
  %2817 = vadd.xlane.f32.xlu0 %v2816
  %v2818 = vpop.xlane.xlu0 %2817
  %v2819 = vsel %vm2671, %v2805, 0.0
  %2820 = vadd.xlane.f32.xlu0 %v2819
  %v2821 = vpop.xlane.xlu0 %2820
  %v2822 = vsel %vm2671, %v2806, 0.0
  %2823 = vadd.xlane.f32.xlu0 %v2822
  %v2824 = vpop.xlane.xlu0 %2823
  %v2825 = vsel %vm2671, %v2807, 0.0
  %2826 = vadd.xlane.f32.xlu0 %v2825
  %v2827 = vpop.xlane.xlu0 %2826
  %v2828 = vsel %vm2671, %v2808, 0.0
  %2829 = vadd.xlane.f32.xlu0 %v2828
  %v2830 = vpop.xlane.xlu0 %2829
  %v2831 = vsel %vm2671, %v2809, 0.0
  %2832 = vadd.xlane.f32.xlu0 %v2831
  %v2833 = vpop.xlane.xlu0 %2832
  %v2834 = vmul.f32 %v2720, %v2640
  %v2835 = vmul.f32 %v2720, %v2649
  %v2836 = vmul.f32 %v2720, %v2651
  %v2837 = vmul.f32 %v2720, %v2653
  %v2838 = vmul.f32 %v2720, %v2645
  %v2839 = vmul.f32 %v2720, %v2656
  %v2840 = vmul.f32 %v2720, %v2658
  %v2841 = vmul.f32 %v2720, %v2660
  %2850 = vrot.lane.b32.xlu0 %v2834, 123
  %v2851 = vpop.permute.xlu0 %2850
  %2852 = vrot.lane.b32.xlu0 %v2835, 123
  %v2853 = vpop.permute.xlu0 %2852
  %2854 = vrot.lane.b32.xlu0 %v2836, 123
  %v2855 = vpop.permute.xlu0 %2854
  %2856 = vrot.lane.b32.xlu0 %v2837, 123
  %v2857 = vpop.permute.xlu0 %2856
  %2858 = vrot.lane.b32.xlu0 %v2838, 123
  %v2859 = vpop.permute.xlu0 %2858
  %2860 = vrot.lane.b32.xlu0 %v2839, 123
  %v2861 = vpop.permute.xlu0 %2860
  %2862 = vrot.lane.b32.xlu0 %v2840, 123
  %v2863 = vpop.permute.xlu0 %2862
  %2864 = vrot.lane.b32.xlu0 %v2841, 123
  %v2865 = vpop.permute.xlu0 %2864
  %v2874 = vsel %vm2671, %v2851, 0.0
  %2875 = vadd.xlane.f32.xlu0 %v2874
  %v2876 = vpop.xlane.xlu0 %2875
  %v2877 = vsel %vm2671, %v2853, 0.0
  %2878 = vadd.xlane.f32.xlu0 %v2877
  %v2879 = vpop.xlane.xlu0 %2878
  %v2880 = vsel %vm2671, %v2855, 0.0
  %2881 = vadd.xlane.f32.xlu0 %v2880
  %v2882 = vpop.xlane.xlu0 %2881
  %v2883 = vsel %vm2671, %v2857, 0.0
  %2884 = vadd.xlane.f32.xlu0 %v2883
  %v2885 = vpop.xlane.xlu0 %2884
  %v2886 = vsel %vm2671, %v2859, 0.0
  %2887 = vadd.xlane.f32.xlu0 %v2886
  %v2888 = vpop.xlane.xlu0 %2887
  %v2889 = vsel %vm2671, %v2861, 0.0
  %2890 = vadd.xlane.f32.xlu0 %v2889
  %v2891 = vpop.xlane.xlu0 %2890
  %v2892 = vsel %vm2671, %v2863, 0.0
  %2893 = vadd.xlane.f32.xlu0 %v2892
  %v2894 = vpop.xlane.xlu0 %2893
  %v2895 = vsel %vm2671, %v2865, 0.0
  %2896 = vadd.xlane.f32.xlu0 %v2895
  %v2897 = vpop.xlane.xlu0 %2896
  %v2898 = vmul.f32 %v2747, %v2640
  %v2899 = vmul.f32 %v2747, %v2649
  %v2900 = vmul.f32 %v2747, %v2651
  %v2901 = vmul.f32 %v2747, %v2653
  %v2902 = vmul.f32 %v2747, %v2645
  %v2903 = vmul.f32 %v2747, %v2656
  %v2904 = vmul.f32 %v2747, %v2658
  %v2905 = vmul.f32 %v2747, %v2660
  %2914 = vrot.lane.b32.xlu0 %v2898, 118
  %v2915 = vpop.permute.xlu0 %2914
  %2916 = vrot.lane.b32.xlu0 %v2899, 118
  %v2917 = vpop.permute.xlu0 %2916
  %2918 = vrot.lane.b32.xlu0 %v2900, 118
  %v2919 = vpop.permute.xlu0 %2918
  %2920 = vrot.lane.b32.xlu0 %v2901, 118
  %v2921 = vpop.permute.xlu0 %2920
  %2922 = vrot.lane.b32.xlu0 %v2902, 118
  %v2923 = vpop.permute.xlu0 %2922
  %2924 = vrot.lane.b32.xlu0 %v2903, 118
  %v2925 = vpop.permute.xlu0 %2924
  %2926 = vrot.lane.b32.xlu0 %v2904, 118
  %v2927 = vpop.permute.xlu0 %2926
  %2928 = vrot.lane.b32.xlu0 %v2905, 118
  %v2929 = vpop.permute.xlu0 %2928
  %v2938 = vsel %vm2671, %v2915, 0.0
  %2939 = vadd.xlane.f32.xlu0 %v2938
  %v2940 = vpop.xlane.xlu0 %2939
  %v2941 = vsel %vm2671, %v2917, 0.0
  %2942 = vadd.xlane.f32.xlu0 %v2941
  %v2943 = vpop.xlane.xlu0 %2942
  %v2944 = vsel %vm2671, %v2919, 0.0
  %2945 = vadd.xlane.f32.xlu0 %v2944
  %v2946 = vpop.xlane.xlu0 %2945
  %v2947 = vsel %vm2671, %v2921, 0.0
  %2948 = vadd.xlane.f32.xlu0 %v2947
  %v2949 = vpop.xlane.xlu0 %2948
  %v2950 = vsel %vm2671, %v2923, 0.0
  %2951 = vadd.xlane.f32.xlu0 %v2950
  %v2952 = vpop.xlane.xlu0 %2951
  %v2953 = vsel %vm2671, %v2925, 0.0
  %2954 = vadd.xlane.f32.xlu0 %v2953
  %v2955 = vpop.xlane.xlu0 %2954
  %v2956 = vsel %vm2671, %v2927, 0.0
  %2957 = vadd.xlane.f32.xlu0 %v2956
  %v2958 = vpop.xlane.xlu0 %2957
  %v2959 = vsel %vm2671, %v2929, 0.0
  %2960 = vadd.xlane.f32.xlu0 %v2959
  %v2961 = vpop.xlane.xlu0 %2960
  %v2962 = vmul.f32 %v2774, %v2640
  %v2963 = vmul.f32 %v2774, %v2649
  %v2964 = vmul.f32 %v2774, %v2651
  %v2965 = vmul.f32 %v2774, %v2653
  %v2966 = vmul.f32 %v2774, %v2645
  %v2967 = vmul.f32 %v2774, %v2656
  %v2968 = vmul.f32 %v2774, %v2658
  %v2969 = vmul.f32 %v2774, %v2660
  %2978 = vrot.lane.b32.xlu0 %v2962, 113
  %v2979 = vpop.permute.xlu0 %2978
  %2980 = vrot.lane.b32.xlu0 %v2963, 113
  %v2981 = vpop.permute.xlu0 %2980
  %2982 = vrot.lane.b32.xlu0 %v2964, 113
  %v2983 = vpop.permute.xlu0 %2982
  %2984 = vrot.lane.b32.xlu0 %v2965, 113
  %v2985 = vpop.permute.xlu0 %2984
  %2986 = vrot.lane.b32.xlu0 %v2966, 113
  %v2987 = vpop.permute.xlu0 %2986
  %2988 = vrot.lane.b32.xlu0 %v2967, 113
  %v2989 = vpop.permute.xlu0 %2988
  %2990 = vrot.lane.b32.xlu0 %v2968, 113
  %v2991 = vpop.permute.xlu0 %2990
  %2992 = vrot.lane.b32.xlu0 %v2969, 113
  %v2993 = vpop.permute.xlu0 %2992
  %v3002 = vsel %vm2671, %v2979, 0.0
  %3003 = vadd.xlane.f32.xlu0 %v3002
  %v3004 = vpop.xlane.xlu0 %3003
  %v3005 = vsel %vm2671, %v2981, 0.0
  %3006 = vadd.xlane.f32.xlu0 %v3005
  %v3007 = vpop.xlane.xlu0 %3006
  %v3008 = vsel %vm2671, %v2983, 0.0
  %3009 = vadd.xlane.f32.xlu0 %v3008
  %v3010 = vpop.xlane.xlu0 %3009
  %v3011 = vsel %vm2671, %v2985, 0.0
  %3012 = vadd.xlane.f32.xlu0 %v3011
  %v3013 = vpop.xlane.xlu0 %3012
  %v3014 = vsel %vm2671, %v2987, 0.0
  %3015 = vadd.xlane.f32.xlu0 %v3014
  %v3016 = vpop.xlane.xlu0 %3015
  %v3017 = vsel %vm2671, %v2989, 0.0
  %3018 = vadd.xlane.f32.xlu0 %v3017
  %v3019 = vpop.xlane.xlu0 %3018
  %v3020 = vsel %vm2671, %v2991, 0.0
  %3021 = vadd.xlane.f32.xlu0 %v3020
  %v3022 = vpop.xlane.xlu0 %3021
  %v3023 = vsel %vm2671, %v2993, 0.0
  %3024 = vadd.xlane.f32.xlu0 %v3023
  %v3025 = vpop.xlane.xlu0 %3024
  %v3026 = vmul.f32 %v2801, %v2640
  %v3027 = vmul.f32 %v2801, %v2649
  %v3028 = vmul.f32 %v2801, %v2651
  %v3029 = vmul.f32 %v2801, %v2653
  %v3030 = vmul.f32 %v2801, %v2645
  %v3031 = vmul.f32 %v2801, %v2656
  %v3032 = vmul.f32 %v2801, %v2658
  %v3033 = vmul.f32 %v2801, %v2660
  %3042 = vrot.lane.b32.xlu0 %v3026, 108
  %v3043 = vpop.permute.xlu0 %3042
  %3044 = vrot.lane.b32.xlu0 %v3027, 108
  %v3045 = vpop.permute.xlu0 %3044
  %3046 = vrot.lane.b32.xlu0 %v3028, 108
  %v3047 = vpop.permute.xlu0 %3046
  %3048 = vrot.lane.b32.xlu0 %v3029, 108
  %v3049 = vpop.permute.xlu0 %3048
  %3050 = vrot.lane.b32.xlu0 %v3030, 108
  %v3051 = vpop.permute.xlu0 %3050
  %3052 = vrot.lane.b32.xlu0 %v3031, 108
  %v3053 = vpop.permute.xlu0 %3052
  %3054 = vrot.lane.b32.xlu0 %v3032, 108
  %v3055 = vpop.permute.xlu0 %3054
  %3056 = vrot.lane.b32.xlu0 %v3033, 108
  %v3057 = vpop.permute.xlu0 %3056
  %v3066 = vsel %vm2671, %v3043, 0.0
  %3067 = vadd.xlane.f32.xlu0 %v3066
  %v3068 = vpop.xlane.xlu0 %3067
  %v3069 = vsel %vm2671, %v3045, 0.0
  %3070 = vadd.xlane.f32.xlu0 %v3069
  %v3071 = vpop.xlane.xlu0 %3070
  %v3072 = vsel %vm2671, %v3047, 0.0
  %3073 = vadd.xlane.f32.xlu0 %v3072
  %v3074 = vpop.xlane.xlu0 %3073
  %v3075 = vsel %vm2671, %v3049, 0.0
  %3076 = vadd.xlane.f32.xlu0 %v3075
  %v3077 = vpop.xlane.xlu0 %3076
  %v3078 = vsel %vm2671, %v3051, 0.0
  %3079 = vadd.xlane.f32.xlu0 %v3078
  %v3080 = vpop.xlane.xlu0 %3079
  %v3081 = vsel %vm2671, %v3053, 0.0
  %3082 = vadd.xlane.f32.xlu0 %v3081
  %v3083 = vpop.xlane.xlu0 %3082
  %v3084 = vsel %vm2671, %v3055, 0.0
  %3085 = vadd.xlane.f32.xlu0 %v3084
  %v3086 = vpop.xlane.xlu0 %3085
  %v3087 = vsel %vm2671, %v3057, 0.0
  %3088 = vadd.xlane.f32.xlu0 %v3087
  %v3089 = vpop.xlane.xlu0 %3088
  %v3090 = vmax.f32 %v2812, %v2876
  %v3091 = vmax.f32 %v2815, %v2879
  %v3092 = vmax.f32 %v2818, %v2882
  %v3093 = vmax.f32 %v2821, %v2885
  %v3094 = vmax.f32 %v2824, %v2888
  %v3095 = vmax.f32 %v2827, %v2891
  %v3096 = vmax.f32 %v2830, %v2894
  %v3097 = vmax.f32 %v2833, %v2897
  %v3098 = vmax.f32 %v3090, %v2940
  %v3099 = vmax.f32 %v3091, %v2943
  %v3100 = vmax.f32 %v3092, %v2946
  %v3101 = vmax.f32 %v3093, %v2949
  %v3102 = vmax.f32 %v3094, %v2952
  %v3103 = vmax.f32 %v3095, %v2955
  %v3104 = vmax.f32 %v3096, %v2958
  %v3105 = vmax.f32 %v3097, %v2961
  %v3106 = vmax.f32 %v3098, %v3004
  %v3107 = vmax.f32 %v3099, %v3007
  %v3108 = vmax.f32 %v3100, %v3010
  %v3109 = vmax.f32 %v3101, %v3013
  %v3110 = vmax.f32 %v3102, %v3016
  %v3111 = vmax.f32 %v3103, %v3019
  %v3112 = vmax.f32 %v3104, %v3022
  %v3113 = vmax.f32 %v3105, %v3025
  %v3114 = vmax.f32 %v3106, %v3068
  %v3115 = vmax.f32 %v3107, %v3071
  %v3116 = vmax.f32 %v3108, %v3074
  %v3117 = vmax.f32 %v3109, %v3077
  %v3118 = vmax.f32 %v3110, %v3080
  %v3119 = vmax.f32 %v3111, %v3083
  %v3120 = vmax.f32 %v3112, %v3086
  %v3121 = vmax.f32 %v3113, %v3089
  %v3122 = vsub.f32 %v2812, %v3114
  %v3123 = vsub.f32 %v2815, %v3115
  %v3124 = vsub.f32 %v2818, %v3116
  %v3125 = vsub.f32 %v2821, %v3117
  %v3126 = vsub.f32 %v2824, %v3118
  %v3127 = vsub.f32 %v2827, %v3119
  %v3128 = vsub.f32 %v2830, %v3120
  %v3129 = vsub.f32 %v2833, %v3121
  %v3130 = vmul.f32 %v3122, 1.442695
  %v3131 = vpow.pop %v3130
  %v3132 = vmul.f32 %v3123, 1.442695
  %v3133 = vpow.pop %v3132
  %v3134 = vmul.f32 %v3124, 1.442695
  %v3135 = vpow.pop %v3134
  %v3136 = vmul.f32 %v3125, 1.442695
  %v3137 = vpow.pop %v3136
  %v3138 = vmul.f32 %v3126, 1.442695
  %v3139 = vpow.pop %v3138
  %v3140 = vmul.f32 %v3127, 1.442695
  %v3141 = vpow.pop %v3140
  %v3142 = vmul.f32 %v3128, 1.442695
  %v3143 = vpow.pop %v3142
  %v3144 = vmul.f32 %v3129, 1.442695
  %v3145 = vpow.pop %v3144
  %v3146 = vsub.f32 %v2876, %v3114
  %v3147 = vsub.f32 %v2879, %v3115
  %v3148 = vsub.f32 %v2882, %v3116
  %v3149 = vsub.f32 %v2885, %v3117
  %v3150 = vsub.f32 %v2888, %v3118
  %v3151 = vsub.f32 %v2891, %v3119
  %v3152 = vsub.f32 %v2894, %v3120
  %v3153 = vsub.f32 %v2897, %v3121
  %v3154 = vmul.f32 %v3146, 1.442695
  %v3155 = vpow.pop %v3154
  %v3156 = vmul.f32 %v3147, 1.442695
  %v3157 = vpow.pop %v3156
  %v3158 = vmul.f32 %v3148, 1.442695
  %v3159 = vpow.pop %v3158
  %v3160 = vmul.f32 %v3149, 1.442695
  %v3161 = vpow.pop %v3160
  %v3162 = vmul.f32 %v3150, 1.442695
  %v3163 = vpow.pop %v3162
  %v3164 = vmul.f32 %v3151, 1.442695
  %v3165 = vpow.pop %v3164
  %v3166 = vmul.f32 %v3152, 1.442695
  %v3167 = vpow.pop %v3166
  %v3168 = vmul.f32 %v3153, 1.442695
  %v3169 = vpow.pop %v3168
  %v3170 = vsub.f32 %v2940, %v3114
  %v3171 = vsub.f32 %v2943, %v3115
  %v3172 = vsub.f32 %v2946, %v3116
  %v3173 = vsub.f32 %v2949, %v3117
  %v3174 = vsub.f32 %v2952, %v3118
  %v3175 = vsub.f32 %v2955, %v3119
  %v3176 = vsub.f32 %v2958, %v3120
  %v3177 = vsub.f32 %v2961, %v3121
  %v3178 = vmul.f32 %v3170, 1.442695
  %v3179 = vpow.pop %v3178
  %v3180 = vmul.f32 %v3171, 1.442695
  %v3181 = vpow.pop %v3180
  %v3182 = vmul.f32 %v3172, 1.442695
  %v3183 = vpow.pop %v3182
  %v3184 = vmul.f32 %v3173, 1.442695
  %v3185 = vpow.pop %v3184
  %v3186 = vmul.f32 %v3174, 1.442695
  %v3187 = vpow.pop %v3186
  %v3188 = vmul.f32 %v3175, 1.442695
  %v3189 = vpow.pop %v3188
  %v3190 = vmul.f32 %v3176, 1.442695
  %v3191 = vpow.pop %v3190
  %v3192 = vmul.f32 %v3177, 1.442695
  %v3193 = vpow.pop %v3192
  %v3194 = vsub.f32 %v3004, %v3114
  %v3195 = vsub.f32 %v3007, %v3115
  %v3196 = vsub.f32 %v3010, %v3116
  %v3197 = vsub.f32 %v3013, %v3117
  %v3198 = vsub.f32 %v3016, %v3118
  %v3199 = vsub.f32 %v3019, %v3119
  %v3200 = vsub.f32 %v3022, %v3120
  %v3201 = vsub.f32 %v3025, %v3121
  %v3202 = vmul.f32 %v3194, 1.442695
  %v3203 = vpow.pop %v3202
  %v3204 = vmul.f32 %v3195, 1.442695
  %v3205 = vpow.pop %v3204
  %v3206 = vmul.f32 %v3196, 1.442695
  %v3207 = vpow.pop %v3206
  %v3208 = vmul.f32 %v3197, 1.442695
  %v3209 = vpow.pop %v3208
  %v3210 = vmul.f32 %v3198, 1.442695
  %v3211 = vpow.pop %v3210
  %v3212 = vmul.f32 %v3199, 1.442695
  %v3213 = vpow.pop %v3212
  %v3214 = vmul.f32 %v3200, 1.442695
  %v3215 = vpow.pop %v3214
  %v3216 = vmul.f32 %v3201, 1.442695
  %v3217 = vpow.pop %v3216
  %v3218 = vsub.f32 %v3068, %v3114
  %v3219 = vsub.f32 %v3071, %v3115
  %v3220 = vsub.f32 %v3074, %v3116
  %v3221 = vsub.f32 %v3077, %v3117
  %v3222 = vsub.f32 %v3080, %v3118
  %v3223 = vsub.f32 %v3083, %v3119
  %v3224 = vsub.f32 %v3086, %v3120
  %v3225 = vsub.f32 %v3089, %v3121
  %v3226 = vmul.f32 %v3218, 1.442695
  %v3227 = vpow.pop %v3226
  %v3228 = vmul.f32 %v3219, 1.442695
  %v3229 = vpow.pop %v3228
  %v3230 = vmul.f32 %v3220, 1.442695
  %v3231 = vpow.pop %v3230
  %v3232 = vmul.f32 %v3221, 1.442695
  %v3233 = vpow.pop %v3232
  %v3234 = vmul.f32 %v3222, 1.442695
  %v3235 = vpow.pop %v3234
  %v3236 = vmul.f32 %v3223, 1.442695
  %v3237 = vpow.pop %v3236
  %v3238 = vmul.f32 %v3224, 1.442695
  %v3239 = vpow.pop %v3238
  %v3240 = vmul.f32 %v3225, 1.442695
  %v3241 = vpow.pop %v3240
  %v3242 = vadd.f32 %v3131, %v3155
  %v3243 = vadd.f32 %v3133, %v3157
  %v3244 = vadd.f32 %v3135, %v3159
  %v3245 = vadd.f32 %v3137, %v3161
  %v3246 = vadd.f32 %v3139, %v3163
  %v3247 = vadd.f32 %v3141, %v3165
  %v3248 = vadd.f32 %v3143, %v3167
  %v3249 = vadd.f32 %v3145, %v3169
  %v3250 = vadd.f32 %v3242, %v3179
  %v3251 = vadd.f32 %v3243, %v3181
  %v3252 = vadd.f32 %v3244, %v3183
  %v3253 = vadd.f32 %v3245, %v3185
  %v3254 = vadd.f32 %v3246, %v3187
  %v3255 = vadd.f32 %v3247, %v3189
  %v3256 = vadd.f32 %v3248, %v3191
  %v3257 = vadd.f32 %v3249, %v3193
  %v3258 = vadd.f32 %v3250, %v3203
  %v3259 = vadd.f32 %v3251, %v3205
  %v3260 = vadd.f32 %v3252, %v3207
  %v3261 = vadd.f32 %v3253, %v3209
  %v3262 = vadd.f32 %v3254, %v3211
  %v3263 = vadd.f32 %v3255, %v3213
  %v3264 = vadd.f32 %v3256, %v3215
  %v3265 = vadd.f32 %v3257, %v3217
  %v3266 = vadd.f32 %v3258, %v3227
  %v3267 = vadd.f32 %v3259, %v3229
  %v3268 = vadd.f32 %v3260, %v3231
  %v3269 = vadd.f32 %v3261, %v3233
  %v3270 = vadd.f32 %v3262, %v3235
  %v3271 = vadd.f32 %v3263, %v3237
  %v3272 = vadd.f32 %v3264, %v3239
  %v3273 = vadd.f32 %v3265, %v3241
  %v3274 = vrcp.pop %v3266
  %v3275 = vrcp.pop %v3267
  %v3276 = vrcp.pop %v3268
  %v3277 = vrcp.pop %v3269
  %v3278 = vrcp.pop %v3270
  %v3279 = vrcp.pop %v3271
  %v3280 = vrcp.pop %v3272
  %v3281 = vrcp.pop %v3273
  %v3282 = vmul.f32 %v3131, %v3274
  %v3283 = vmul.f32 %v3133, %v3275
  %v3284 = vmul.f32 %v3135, %v3276
  %v3285 = vmul.f32 %v3137, %v3277
  %v3286 = vmul.f32 %v3139, %v3278
  %v3287 = vmul.f32 %v3141, %v3279
  %v3288 = vmul.f32 %v3143, %v3280
  %v3289 = vmul.f32 %v3145, %v3281
  %v3290 = vmul.f32 %v3282, %v2640
  %v3291 = vmul.f32 %v3283, %v2649
  %v3292 = vmul.f32 %v3284, %v2651
  %v3293 = vmul.f32 %v3285, %v2653
  %v3294 = vmul.f32 %v3286, %v2645
  %v3295 = vmul.f32 %v3287, %v2656
  %v3296 = vmul.f32 %v3288, %v2658
  %v3297 = vmul.f32 %v3289, %v2660
  %v3298 = vsel %vm2671, %v3290, 0.0
  %v3299 = vsel %vm2671, %v3291, 0.0
  %v3300 = vadd.f32 %v3298, %v3299
  %v3301 = vsel %vm2671, %v3292, 0.0
  %v3302 = vadd.f32 %v3300, %v3301
  %v3303 = vsel %vm2671, %v3293, 0.0
  %v3304 = vadd.f32 %v3302, %v3303
  %v3305 = vsel %vm2671, %v3294, 0.0
  %v3306 = vadd.f32 %v3304, %v3305
  %v3307 = vsel %vm2671, %v3295, 0.0
  %v3308 = vadd.f32 %v3306, %v3307
  %v3309 = vsel %vm2671, %v3296, 0.0
  %v3310 = vadd.f32 %v3308, %v3309
  %v3311 = vsel %vm2671, %v3297, 0.0
  %v3312 = vadd.f32 %v3310, %v3311
  %v3313 = vmul.f32 %v3312, %v3312
  %v3314 = vsel %vm2671, %v3313, 0.0
  %3315 = vadd.xlane.f32.xlu0 %v3314
  %v3316 = vpop.xlane.xlu0 %3315
  %v3317 = vadd.f32 %v3316, 1e-07
  %v3318 = vrsqrt.pop %v3317
  %v3319 = vmul.f32 %v3312, %v3318
  %v3320 = vmul.f32 %v3155, %v3274
  %v3321 = vmul.f32 %v3157, %v3275
  %v3322 = vmul.f32 %v3159, %v3276
  %v3323 = vmul.f32 %v3161, %v3277
  %v3324 = vmul.f32 %v3163, %v3278
  %v3325 = vmul.f32 %v3165, %v3279
  %v3326 = vmul.f32 %v3167, %v3280
  %v3327 = vmul.f32 %v3169, %v3281
  %v3328 = vmul.f32 %v3320, %v2640
  %v3329 = vmul.f32 %v3321, %v2649
  %v3330 = vmul.f32 %v3322, %v2651
  %v3331 = vmul.f32 %v3323, %v2653
  %v3332 = vmul.f32 %v3324, %v2645
  %v3333 = vmul.f32 %v3325, %v2656
  %v3334 = vmul.f32 %v3326, %v2658
  %v3335 = vmul.f32 %v3327, %v2660
  %v3336 = vsel %vm2694, %v3328, 0.0
  %v3337 = vsel %vm2694, %v3329, 0.0
  %v3338 = vadd.f32 %v3336, %v3337
  %v3339 = vsel %vm2694, %v3330, 0.0
  %v3340 = vadd.f32 %v3338, %v3339
  %v3341 = vsel %vm2694, %v3331, 0.0
  %v3342 = vadd.f32 %v3340, %v3341
  %v3343 = vsel %vm2694, %v3332, 0.0
  %v3344 = vadd.f32 %v3342, %v3343
  %v3345 = vsel %vm2694, %v3333, 0.0
  %v3346 = vadd.f32 %v3344, %v3345
  %v3347 = vsel %vm2694, %v3334, 0.0
  %v3348 = vadd.f32 %v3346, %v3347
  %v3349 = vsel %vm2694, %v3335, 0.0
  %v3350 = vadd.f32 %v3348, %v3349
  %v3351 = vmul.f32 %v3350, %v3350
  %3353 = vrot.lane.b32.xlu0 %v3351, 123
  %v3354 = vpop.permute.xlu0 %3353
  %v3356 = vsel %vm2671, %v3354, 0.0
  %3357 = vadd.xlane.f32.xlu0 %v3356
  %v3358 = vpop.xlane.xlu0 %3357
  %v3359 = vadd.f32 %v3358, 1e-07
  %v3360 = vrsqrt.pop %v3359
  %v3361 = vmul.f32 %v3350, %v3360
  %v3362 = vmul.f32 %v3179, %v3274
  %v3363 = vmul.f32 %v3181, %v3275
  %v3364 = vmul.f32 %v3183, %v3276
  %v3365 = vmul.f32 %v3185, %v3277
  %v3366 = vmul.f32 %v3187, %v3278
  %v3367 = vmul.f32 %v3189, %v3279
  %v3368 = vmul.f32 %v3191, %v3280
  %v3369 = vmul.f32 %v3193, %v3281
  %v3370 = vmul.f32 %v3362, %v2640
  %v3371 = vmul.f32 %v3363, %v2649
  %v3372 = vmul.f32 %v3364, %v2651
  %v3373 = vmul.f32 %v3365, %v2653
  %v3374 = vmul.f32 %v3366, %v2645
  %v3375 = vmul.f32 %v3367, %v2656
  %v3376 = vmul.f32 %v3368, %v2658
  %v3377 = vmul.f32 %v3369, %v2660
  %v3378 = vsel %vm2721, %v3370, 0.0
  %v3379 = vsel %vm2721, %v3371, 0.0
  %v3380 = vadd.f32 %v3378, %v3379
  %v3381 = vsel %vm2721, %v3372, 0.0
  %v3382 = vadd.f32 %v3380, %v3381
  %v3383 = vsel %vm2721, %v3373, 0.0
  %v3384 = vadd.f32 %v3382, %v3383
  %v3385 = vsel %vm2721, %v3374, 0.0
  %v3386 = vadd.f32 %v3384, %v3385
  %v3387 = vsel %vm2721, %v3375, 0.0
  %v3388 = vadd.f32 %v3386, %v3387
  %v3389 = vsel %vm2721, %v3376, 0.0
  %v3390 = vadd.f32 %v3388, %v3389
  %v3391 = vsel %vm2721, %v3377, 0.0
  %v3392 = vadd.f32 %v3390, %v3391
  %v3393 = vmul.f32 %v3392, %v3392
  %3395 = vrot.lane.b32.xlu0 %v3393, 118
  %v3396 = vpop.permute.xlu0 %3395
  %v3398 = vsel %vm2671, %v3396, 0.0
  %3399 = vadd.xlane.f32.xlu0 %v3398
  %v3400 = vpop.xlane.xlu0 %3399
  %v3401 = vadd.f32 %v3400, 1e-07
  %v3402 = vrsqrt.pop %v3401
  %v3403 = vmul.f32 %v3392, %v3402
  %v3404 = vmul.f32 %v3203, %v3274
  %v3405 = vmul.f32 %v3205, %v3275
  %v3406 = vmul.f32 %v3207, %v3276
  %v3407 = vmul.f32 %v3209, %v3277
  %v3408 = vmul.f32 %v3211, %v3278
  %v3409 = vmul.f32 %v3213, %v3279
  %v3410 = vmul.f32 %v3215, %v3280
  %v3411 = vmul.f32 %v3217, %v3281
  %v3412 = vmul.f32 %v3404, %v2640
  %v3413 = vmul.f32 %v3405, %v2649
  %v3414 = vmul.f32 %v3406, %v2651
  %v3415 = vmul.f32 %v3407, %v2653
  %v3416 = vmul.f32 %v3408, %v2645
  %v3417 = vmul.f32 %v3409, %v2656
  %v3418 = vmul.f32 %v3410, %v2658
  %v3419 = vmul.f32 %v3411, %v2660
  %v3420 = vsel %vm2748, %v3412, 0.0
  %v3421 = vsel %vm2748, %v3413, 0.0
  %v3422 = vadd.f32 %v3420, %v3421
  %v3423 = vsel %vm2748, %v3414, 0.0
  %v3424 = vadd.f32 %v3422, %v3423
  %v3425 = vsel %vm2748, %v3415, 0.0
  %v3426 = vadd.f32 %v3424, %v3425
  %v3427 = vsel %vm2748, %v3416, 0.0
  %v3428 = vadd.f32 %v3426, %v3427
  %v3429 = vsel %vm2748, %v3417, 0.0
  %v3430 = vadd.f32 %v3428, %v3429
  %v3431 = vsel %vm2748, %v3418, 0.0
  %v3432 = vadd.f32 %v3430, %v3431
  %v3433 = vsel %vm2748, %v3419, 0.0
  %v3434 = vadd.f32 %v3432, %v3433
  %v3435 = vmul.f32 %v3434, %v3434
  %3437 = vrot.lane.b32.xlu0 %v3435, 113
  %v3438 = vpop.permute.xlu0 %3437
  %v3440 = vsel %vm2671, %v3438, 0.0
  %3441 = vadd.xlane.f32.xlu0 %v3440
  %v3442 = vpop.xlane.xlu0 %3441
  %v3443 = vadd.f32 %v3442, 1e-07
  %v3444 = vrsqrt.pop %v3443
  %v3445 = vmul.f32 %v3434, %v3444
  %v3446 = vmul.f32 %v3227, %v3274
  %v3447 = vmul.f32 %v3229, %v3275
  %v3448 = vmul.f32 %v3231, %v3276
  %v3449 = vmul.f32 %v3233, %v3277
  %v3450 = vmul.f32 %v3235, %v3278
  %v3451 = vmul.f32 %v3237, %v3279
  %v3452 = vmul.f32 %v3239, %v3280
  %v3453 = vmul.f32 %v3241, %v3281
  %v3454 = vmul.f32 %v3446, %v2640
  %v3455 = vmul.f32 %v3447, %v2649
  %v3456 = vmul.f32 %v3448, %v2651
  %v3457 = vmul.f32 %v3449, %v2653
  %v3458 = vmul.f32 %v3450, %v2645
  %v3459 = vmul.f32 %v3451, %v2656
  %v3460 = vmul.f32 %v3452, %v2658
  %v3461 = vmul.f32 %v3453, %v2660
  %v3462 = vsel %vm2775, %v3454, 0.0
  %v3463 = vsel %vm2775, %v3455, 0.0
  %v3464 = vadd.f32 %v3462, %v3463
  %v3465 = vsel %vm2775, %v3456, 0.0
  %v3466 = vadd.f32 %v3464, %v3465
  %v3467 = vsel %vm2775, %v3457, 0.0
  %v3468 = vadd.f32 %v3466, %v3467
  %v3469 = vsel %vm2775, %v3458, 0.0
  %v3470 = vadd.f32 %v3468, %v3469
  %v3471 = vsel %vm2775, %v3459, 0.0
  %v3472 = vadd.f32 %v3470, %v3471
  %v3473 = vsel %vm2775, %v3460, 0.0
  %v3474 = vadd.f32 %v3472, %v3473
  %v3475 = vsel %vm2775, %v3461, 0.0
  %v3476 = vadd.f32 %v3474, %v3475
  %v3477 = vmul.f32 %v3476, %v3476
  %3479 = vrot.lane.b32.xlu0 %v3477, 108
  %v3480 = vpop.permute.xlu0 %3479
  %v3482 = vsel %vm2671, %v3480, 0.0
  %3483 = vadd.xlane.f32.xlu0 %v3482
  %v3484 = vpop.xlane.xlu0 %3483
  %v3485 = vadd.f32 %v3484, 1e-07
  %v3486 = vrsqrt.pop %v3485
  %v3487 = vmul.f32 %v3476, %v3486
  %v3488 = vmul.f32 %v3319, %v2640
  %v3489 = vmul.f32 %v3319, %v2649
  %v3490 = vmul.f32 %v3319, %v2651
  %v3491 = vmul.f32 %v3319, %v2653
  %v3492 = vmul.f32 %v3319, %v2645
  %v3493 = vmul.f32 %v3319, %v2656
  %v3494 = vmul.f32 %v3319, %v2658
  %v3495 = vmul.f32 %v3319, %v2660
  %v3496 = vsel %vm2671, %v3488, 0.0
  %3497 = vadd.xlane.f32.xlu0 %v3496
  %v3498 = vpop.xlane.xlu0 %3497
  %v3499 = vsel %vm2671, %v3489, 0.0
  %3500 = vadd.xlane.f32.xlu0 %v3499
  %v3501 = vpop.xlane.xlu0 %3500
  %v3502 = vsel %vm2671, %v3490, 0.0
  %3503 = vadd.xlane.f32.xlu0 %v3502
  %v3504 = vpop.xlane.xlu0 %3503
  %v3505 = vsel %vm2671, %v3491, 0.0
  %3506 = vadd.xlane.f32.xlu0 %v3505
  %v3507 = vpop.xlane.xlu0 %3506
  %v3508 = vsel %vm2671, %v3492, 0.0
  %3509 = vadd.xlane.f32.xlu0 %v3508
  %v3510 = vpop.xlane.xlu0 %3509
  %v3511 = vsel %vm2671, %v3493, 0.0
  %3512 = vadd.xlane.f32.xlu0 %v3511
  %v3513 = vpop.xlane.xlu0 %3512
  %v3514 = vsel %vm2671, %v3494, 0.0
  %3515 = vadd.xlane.f32.xlu0 %v3514
  %v3516 = vpop.xlane.xlu0 %3515
  %v3517 = vsel %vm2671, %v3495, 0.0
  %3518 = vadd.xlane.f32.xlu0 %v3517
  %v3519 = vpop.xlane.xlu0 %3518
  %v3520 = vmul.f32 %v3361, %v2640
  %v3521 = vmul.f32 %v3361, %v2649
  %v3522 = vmul.f32 %v3361, %v2651
  %v3523 = vmul.f32 %v3361, %v2653
  %v3524 = vmul.f32 %v3361, %v2645
  %v3525 = vmul.f32 %v3361, %v2656
  %v3526 = vmul.f32 %v3361, %v2658
  %v3527 = vmul.f32 %v3361, %v2660
  %3536 = vrot.lane.b32.xlu0 %v3520, 123
  %v3537 = vpop.permute.xlu0 %3536
  %3538 = vrot.lane.b32.xlu0 %v3521, 123
  %v3539 = vpop.permute.xlu0 %3538
  %3540 = vrot.lane.b32.xlu0 %v3522, 123
  %v3541 = vpop.permute.xlu0 %3540
  %3542 = vrot.lane.b32.xlu0 %v3523, 123
  %v3543 = vpop.permute.xlu0 %3542
  %3544 = vrot.lane.b32.xlu0 %v3524, 123
  %v3545 = vpop.permute.xlu0 %3544
  %3546 = vrot.lane.b32.xlu0 %v3525, 123
  %v3547 = vpop.permute.xlu0 %3546
  %3548 = vrot.lane.b32.xlu0 %v3526, 123
  %v3549 = vpop.permute.xlu0 %3548
  %3550 = vrot.lane.b32.xlu0 %v3527, 123
  %v3551 = vpop.permute.xlu0 %3550
  %v3560 = vsel %vm2671, %v3537, 0.0
  %3561 = vadd.xlane.f32.xlu0 %v3560
  %v3562 = vpop.xlane.xlu0 %3561
  %v3563 = vsel %vm2671, %v3539, 0.0
  %3564 = vadd.xlane.f32.xlu0 %v3563
  %v3565 = vpop.xlane.xlu0 %3564
  %v3566 = vsel %vm2671, %v3541, 0.0
  %3567 = vadd.xlane.f32.xlu0 %v3566
  %v3568 = vpop.xlane.xlu0 %3567
  %v3569 = vsel %vm2671, %v3543, 0.0
  %3570 = vadd.xlane.f32.xlu0 %v3569
  %v3571 = vpop.xlane.xlu0 %3570
  %v3572 = vsel %vm2671, %v3545, 0.0
  %3573 = vadd.xlane.f32.xlu0 %v3572
  %v3574 = vpop.xlane.xlu0 %3573
  %v3575 = vsel %vm2671, %v3547, 0.0
  %3576 = vadd.xlane.f32.xlu0 %v3575
  %v3577 = vpop.xlane.xlu0 %3576
  %v3578 = vsel %vm2671, %v3549, 0.0
  %3579 = vadd.xlane.f32.xlu0 %v3578
  %v3580 = vpop.xlane.xlu0 %3579
  %v3581 = vsel %vm2671, %v3551, 0.0
  %3582 = vadd.xlane.f32.xlu0 %v3581
  %v3583 = vpop.xlane.xlu0 %3582
  %v3584 = vmul.f32 %v3403, %v2640
  %v3585 = vmul.f32 %v3403, %v2649
  %v3586 = vmul.f32 %v3403, %v2651
  %v3587 = vmul.f32 %v3403, %v2653
  %v3588 = vmul.f32 %v3403, %v2645
  %v3589 = vmul.f32 %v3403, %v2656
  %v3590 = vmul.f32 %v3403, %v2658
  %v3591 = vmul.f32 %v3403, %v2660
  %3600 = vrot.lane.b32.xlu0 %v3584, 118
  %v3601 = vpop.permute.xlu0 %3600
  %3602 = vrot.lane.b32.xlu0 %v3585, 118
  %v3603 = vpop.permute.xlu0 %3602
  %3604 = vrot.lane.b32.xlu0 %v3586, 118
  %v3605 = vpop.permute.xlu0 %3604
  %3606 = vrot.lane.b32.xlu0 %v3587, 118
  %v3607 = vpop.permute.xlu0 %3606
  %3608 = vrot.lane.b32.xlu0 %v3588, 118
  %v3609 = vpop.permute.xlu0 %3608
  %3610 = vrot.lane.b32.xlu0 %v3589, 118
  %v3611 = vpop.permute.xlu0 %3610
  %3612 = vrot.lane.b32.xlu0 %v3590, 118
  %v3613 = vpop.permute.xlu0 %3612
  %3614 = vrot.lane.b32.xlu0 %v3591, 118
  %v3615 = vpop.permute.xlu0 %3614
  %v3624 = vsel %vm2671, %v3601, 0.0
  %3625 = vadd.xlane.f32.xlu0 %v3624
  %v3626 = vpop.xlane.xlu0 %3625
  %v3627 = vsel %vm2671, %v3603, 0.0
  %3628 = vadd.xlane.f32.xlu0 %v3627
  %v3629 = vpop.xlane.xlu0 %3628
  %v3630 = vsel %vm2671, %v3605, 0.0
  %3631 = vadd.xlane.f32.xlu0 %v3630
  %v3632 = vpop.xlane.xlu0 %3631
  %v3633 = vsel %vm2671, %v3607, 0.0
  %3634 = vadd.xlane.f32.xlu0 %v3633
  %v3635 = vpop.xlane.xlu0 %3634
  %v3636 = vsel %vm2671, %v3609, 0.0
  %3637 = vadd.xlane.f32.xlu0 %v3636
  %v3638 = vpop.xlane.xlu0 %3637
  %v3639 = vsel %vm2671, %v3611, 0.0
  %3640 = vadd.xlane.f32.xlu0 %v3639
  %v3641 = vpop.xlane.xlu0 %3640
  %v3642 = vsel %vm2671, %v3613, 0.0
  %3643 = vadd.xlane.f32.xlu0 %v3642
  %v3644 = vpop.xlane.xlu0 %3643
  %v3645 = vsel %vm2671, %v3615, 0.0
  %3646 = vadd.xlane.f32.xlu0 %v3645
  %v3647 = vpop.xlane.xlu0 %3646
  %v3648 = vmul.f32 %v3445, %v2640
  %v3649 = vmul.f32 %v3445, %v2649
  %v3650 = vmul.f32 %v3445, %v2651
  %v3651 = vmul.f32 %v3445, %v2653
  %v3652 = vmul.f32 %v3445, %v2645
  %v3653 = vmul.f32 %v3445, %v2656
  %v3654 = vmul.f32 %v3445, %v2658
  %v3655 = vmul.f32 %v3445, %v2660
  %3664 = vrot.lane.b32.xlu0 %v3648, 113
  %v3665 = vpop.permute.xlu0 %3664
  %3666 = vrot.lane.b32.xlu0 %v3649, 113
  %v3667 = vpop.permute.xlu0 %3666
  %3668 = vrot.lane.b32.xlu0 %v3650, 113
  %v3669 = vpop.permute.xlu0 %3668
  %3670 = vrot.lane.b32.xlu0 %v3651, 113
  %v3671 = vpop.permute.xlu0 %3670
  %3672 = vrot.lane.b32.xlu0 %v3652, 113
  %v3673 = vpop.permute.xlu0 %3672
  %3674 = vrot.lane.b32.xlu0 %v3653, 113
  %v3675 = vpop.permute.xlu0 %3674
  %3676 = vrot.lane.b32.xlu0 %v3654, 113
  %v3677 = vpop.permute.xlu0 %3676
  %3678 = vrot.lane.b32.xlu0 %v3655, 113
  %v3679 = vpop.permute.xlu0 %3678
  %v3688 = vsel %vm2671, %v3665, 0.0
  %3689 = vadd.xlane.f32.xlu0 %v3688
  %v3690 = vpop.xlane.xlu0 %3689
  %v3691 = vsel %vm2671, %v3667, 0.0
  %3692 = vadd.xlane.f32.xlu0 %v3691
  %v3693 = vpop.xlane.xlu0 %3692
  %v3694 = vsel %vm2671, %v3669, 0.0
  %3695 = vadd.xlane.f32.xlu0 %v3694
  %v3696 = vpop.xlane.xlu0 %3695
  %v3697 = vsel %vm2671, %v3671, 0.0
  %3698 = vadd.xlane.f32.xlu0 %v3697
  %v3699 = vpop.xlane.xlu0 %3698
  %v3700 = vsel %vm2671, %v3673, 0.0
  %3701 = vadd.xlane.f32.xlu0 %v3700
  %v3702 = vpop.xlane.xlu0 %3701
  %v3703 = vsel %vm2671, %v3675, 0.0
  %3704 = vadd.xlane.f32.xlu0 %v3703
  %v3705 = vpop.xlane.xlu0 %3704
  %v3706 = vsel %vm2671, %v3677, 0.0
  %3707 = vadd.xlane.f32.xlu0 %v3706
  %v3708 = vpop.xlane.xlu0 %3707
  %v3709 = vsel %vm2671, %v3679, 0.0
  %3710 = vadd.xlane.f32.xlu0 %v3709
  %v3711 = vpop.xlane.xlu0 %3710
  %v3712 = vmul.f32 %v3487, %v2640
  %v3713 = vmul.f32 %v3487, %v2649
  %v3714 = vmul.f32 %v3487, %v2651
  %v3715 = vmul.f32 %v3487, %v2653
  %v3716 = vmul.f32 %v3487, %v2645
  %v3717 = vmul.f32 %v3487, %v2656
  %v3718 = vmul.f32 %v3487, %v2658
  %v3719 = vmul.f32 %v3487, %v2660
  %3728 = vrot.lane.b32.xlu0 %v3712, 108
  %v3729 = vpop.permute.xlu0 %3728
  %3730 = vrot.lane.b32.xlu0 %v3713, 108
  %v3731 = vpop.permute.xlu0 %3730
  %3732 = vrot.lane.b32.xlu0 %v3714, 108
  %v3733 = vpop.permute.xlu0 %3732
  %3734 = vrot.lane.b32.xlu0 %v3715, 108
  %v3735 = vpop.permute.xlu0 %3734
  %3736 = vrot.lane.b32.xlu0 %v3716, 108
  %v3737 = vpop.permute.xlu0 %3736
  %3738 = vrot.lane.b32.xlu0 %v3717, 108
  %v3739 = vpop.permute.xlu0 %3738
  %3740 = vrot.lane.b32.xlu0 %v3718, 108
  %v3741 = vpop.permute.xlu0 %3740
  %3742 = vrot.lane.b32.xlu0 %v3719, 108
  %v3743 = vpop.permute.xlu0 %3742
  %v3752 = vsel %vm2671, %v3729, 0.0
  %3753 = vadd.xlane.f32.xlu0 %v3752
  %v3754 = vpop.xlane.xlu0 %3753
  %v3755 = vsel %vm2671, %v3731, 0.0
  %3756 = vadd.xlane.f32.xlu0 %v3755
  %v3757 = vpop.xlane.xlu0 %3756
  %v3758 = vsel %vm2671, %v3733, 0.0
  %3759 = vadd.xlane.f32.xlu0 %v3758
  %v3760 = vpop.xlane.xlu0 %3759
  %v3761 = vsel %vm2671, %v3735, 0.0
  %3762 = vadd.xlane.f32.xlu0 %v3761
  %v3763 = vpop.xlane.xlu0 %3762
  %v3764 = vsel %vm2671, %v3737, 0.0
  %3765 = vadd.xlane.f32.xlu0 %v3764
  %v3766 = vpop.xlane.xlu0 %3765
  %v3767 = vsel %vm2671, %v3739, 0.0
  %3768 = vadd.xlane.f32.xlu0 %v3767
  %v3769 = vpop.xlane.xlu0 %3768
  %v3770 = vsel %vm2671, %v3741, 0.0
  %3771 = vadd.xlane.f32.xlu0 %v3770
  %v3772 = vpop.xlane.xlu0 %3771
  %v3773 = vsel %vm2671, %v3743, 0.0
  %3774 = vadd.xlane.f32.xlu0 %v3773
  %v3775 = vpop.xlane.xlu0 %3774
  %v3776 = vmax.f32 %v3498, %v3562
  %v3777 = vmax.f32 %v3501, %v3565
  %v3778 = vmax.f32 %v3504, %v3568
  %v3779 = vmax.f32 %v3507, %v3571
  %v3780 = vmax.f32 %v3510, %v3574
  %v3781 = vmax.f32 %v3513, %v3577
  %v3782 = vmax.f32 %v3516, %v3580
  %v3783 = vmax.f32 %v3519, %v3583
  %v3784 = vmax.f32 %v3776, %v3626
  %v3785 = vmax.f32 %v3777, %v3629
  %v3786 = vmax.f32 %v3778, %v3632
  %v3787 = vmax.f32 %v3779, %v3635
  %v3788 = vmax.f32 %v3780, %v3638
  %v3789 = vmax.f32 %v3781, %v3641
  %v3790 = vmax.f32 %v3782, %v3644
  %v3791 = vmax.f32 %v3783, %v3647
  %v3792 = vmax.f32 %v3784, %v3690
  %v3793 = vmax.f32 %v3785, %v3693
  %v3794 = vmax.f32 %v3786, %v3696
  %v3795 = vmax.f32 %v3787, %v3699
  %v3796 = vmax.f32 %v3788, %v3702
  %v3797 = vmax.f32 %v3789, %v3705
  %v3798 = vmax.f32 %v3790, %v3708
  %v3799 = vmax.f32 %v3791, %v3711
  %v3800 = vmax.f32 %v3792, %v3754
  %v3801 = vmax.f32 %v3793, %v3757
  %v3802 = vmax.f32 %v3794, %v3760
  %v3803 = vmax.f32 %v3795, %v3763
  %v3804 = vmax.f32 %v3796, %v3766
  %v3805 = vmax.f32 %v3797, %v3769
  %v3806 = vmax.f32 %v3798, %v3772
  %v3807 = vmax.f32 %v3799, %v3775
  %v3808 = vsub.f32 %v3498, %v3800
  %v3809 = vsub.f32 %v3501, %v3801
  %v3810 = vsub.f32 %v3504, %v3802
  %v3811 = vsub.f32 %v3507, %v3803
  %v3812 = vsub.f32 %v3510, %v3804
  %v3813 = vsub.f32 %v3513, %v3805
  %v3814 = vsub.f32 %v3516, %v3806
  %v3815 = vsub.f32 %v3519, %v3807
  %v3816 = vmul.f32 %v3808, 1.442695
  %v3817 = vpow.pop %v3816
  %v3818 = vmul.f32 %v3809, 1.442695
  %v3819 = vpow.pop %v3818
  %v3820 = vmul.f32 %v3810, 1.442695
  %v3821 = vpow.pop %v3820
  %v3822 = vmul.f32 %v3811, 1.442695
  %v3823 = vpow.pop %v3822
  %v3824 = vmul.f32 %v3812, 1.442695
  %v3825 = vpow.pop %v3824
  %v3826 = vmul.f32 %v3813, 1.442695
  %v3827 = vpow.pop %v3826
  %v3828 = vmul.f32 %v3814, 1.442695
  %v3829 = vpow.pop %v3828
  %v3830 = vmul.f32 %v3815, 1.442695
  %v3831 = vpow.pop %v3830
  %v3832 = vsub.f32 %v3562, %v3800
  %v3833 = vsub.f32 %v3565, %v3801
  %v3834 = vsub.f32 %v3568, %v3802
  %v3835 = vsub.f32 %v3571, %v3803
  %v3836 = vsub.f32 %v3574, %v3804
  %v3837 = vsub.f32 %v3577, %v3805
  %v3838 = vsub.f32 %v3580, %v3806
  %v3839 = vsub.f32 %v3583, %v3807
  %v3840 = vmul.f32 %v3832, 1.442695
  %v3841 = vpow.pop %v3840
  %v3842 = vmul.f32 %v3833, 1.442695
  %v3843 = vpow.pop %v3842
  %v3844 = vmul.f32 %v3834, 1.442695
  %v3845 = vpow.pop %v3844
  %v3846 = vmul.f32 %v3835, 1.442695
  %v3847 = vpow.pop %v3846
  %v3848 = vmul.f32 %v3836, 1.442695
  %v3849 = vpow.pop %v3848
  %v3850 = vmul.f32 %v3837, 1.442695
  %v3851 = vpow.pop %v3850
  %v3852 = vmul.f32 %v3838, 1.442695
  %v3853 = vpow.pop %v3852
  %v3854 = vmul.f32 %v3839, 1.442695
  %v3855 = vpow.pop %v3854
  %v3856 = vsub.f32 %v3626, %v3800
  %v3857 = vsub.f32 %v3629, %v3801
  %v3858 = vsub.f32 %v3632, %v3802
  %v3859 = vsub.f32 %v3635, %v3803
  %v3860 = vsub.f32 %v3638, %v3804
  %v3861 = vsub.f32 %v3641, %v3805
  %v3862 = vsub.f32 %v3644, %v3806
  %v3863 = vsub.f32 %v3647, %v3807
  %v3864 = vmul.f32 %v3856, 1.442695
  %v3865 = vpow.pop %v3864
  %v3866 = vmul.f32 %v3857, 1.442695
  %v3867 = vpow.pop %v3866
  %v3868 = vmul.f32 %v3858, 1.442695
  %v3869 = vpow.pop %v3868
  %v3870 = vmul.f32 %v3859, 1.442695
  %v3871 = vpow.pop %v3870
  %v3872 = vmul.f32 %v3860, 1.442695
  %v3873 = vpow.pop %v3872
  %v3874 = vmul.f32 %v3861, 1.442695
  %v3875 = vpow.pop %v3874
  %v3876 = vmul.f32 %v3862, 1.442695
  %v3877 = vpow.pop %v3876
  %v3878 = vmul.f32 %v3863, 1.442695
  %v3879 = vpow.pop %v3878
  %v3880 = vsub.f32 %v3690, %v3800
  %v3881 = vsub.f32 %v3693, %v3801
  %v3882 = vsub.f32 %v3696, %v3802
  %v3883 = vsub.f32 %v3699, %v3803
  %v3884 = vsub.f32 %v3702, %v3804
  %v3885 = vsub.f32 %v3705, %v3805
  %v3886 = vsub.f32 %v3708, %v3806
  %v3887 = vsub.f32 %v3711, %v3807
  %v3888 = vmul.f32 %v3880, 1.442695
  %v3889 = vpow.pop %v3888
  %v3890 = vmul.f32 %v3881, 1.442695
  %v3891 = vpow.pop %v3890
  %v3892 = vmul.f32 %v3882, 1.442695
  %v3893 = vpow.pop %v3892
  %v3894 = vmul.f32 %v3883, 1.442695
  %v3895 = vpow.pop %v3894
  %v3896 = vmul.f32 %v3884, 1.442695
  %v3897 = vpow.pop %v3896
  %v3898 = vmul.f32 %v3885, 1.442695
  %v3899 = vpow.pop %v3898
  %v3900 = vmul.f32 %v3886, 1.442695
  %v3901 = vpow.pop %v3900
  %v3902 = vmul.f32 %v3887, 1.442695
  %v3903 = vpow.pop %v3902
  %v3904 = vsub.f32 %v3754, %v3800
  %v3905 = vsub.f32 %v3757, %v3801
  %v3906 = vsub.f32 %v3760, %v3802
  %v3907 = vsub.f32 %v3763, %v3803
  %v3908 = vsub.f32 %v3766, %v3804
  %v3909 = vsub.f32 %v3769, %v3805
  %v3910 = vsub.f32 %v3772, %v3806
  %v3911 = vsub.f32 %v3775, %v3807
  %v3912 = vmul.f32 %v3904, 1.442695
  %v3913 = vpow.pop %v3912
  %v3914 = vmul.f32 %v3905, 1.442695
  %v3915 = vpow.pop %v3914
  %v3916 = vmul.f32 %v3906, 1.442695
  %v3917 = vpow.pop %v3916
  %v3918 = vmul.f32 %v3907, 1.442695
  %v3919 = vpow.pop %v3918
  %v3920 = vmul.f32 %v3908, 1.442695
  %v3921 = vpow.pop %v3920
  %v3922 = vmul.f32 %v3909, 1.442695
  %v3923 = vpow.pop %v3922
  %v3924 = vmul.f32 %v3910, 1.442695
  %v3925 = vpow.pop %v3924
  %v3926 = vmul.f32 %v3911, 1.442695
  %v3927 = vpow.pop %v3926
  %v3928 = vadd.f32 %v3817, %v3841
  %v3929 = vadd.f32 %v3819, %v3843
  %v3930 = vadd.f32 %v3821, %v3845
  %v3931 = vadd.f32 %v3823, %v3847
  %v3932 = vadd.f32 %v3825, %v3849
  %v3933 = vadd.f32 %v3827, %v3851
  %v3934 = vadd.f32 %v3829, %v3853
  %v3935 = vadd.f32 %v3831, %v3855
  %v3936 = vadd.f32 %v3928, %v3865
  %v3937 = vadd.f32 %v3929, %v3867
  %v3938 = vadd.f32 %v3930, %v3869
  %v3939 = vadd.f32 %v3931, %v3871
  %v3940 = vadd.f32 %v3932, %v3873
  %v3941 = vadd.f32 %v3933, %v3875
  %v3942 = vadd.f32 %v3934, %v3877
  %v3943 = vadd.f32 %v3935, %v3879
  %v3944 = vadd.f32 %v3936, %v3889
  %v3945 = vadd.f32 %v3937, %v3891
  %v3946 = vadd.f32 %v3938, %v3893
  %v3947 = vadd.f32 %v3939, %v3895
  %v3948 = vadd.f32 %v3940, %v3897
  %v3949 = vadd.f32 %v3941, %v3899
  %v3950 = vadd.f32 %v3942, %v3901
  %v3951 = vadd.f32 %v3943, %v3903
  %v3952 = vadd.f32 %v3944, %v3913
  %v3953 = vadd.f32 %v3945, %v3915
  %v3954 = vadd.f32 %v3946, %v3917
  %v3955 = vadd.f32 %v3947, %v3919
  %v3956 = vadd.f32 %v3948, %v3921
  %v3957 = vadd.f32 %v3949, %v3923
  %v3958 = vadd.f32 %v3950, %v3925
  %v3959 = vadd.f32 %v3951, %v3927
  %v3960 = vrcp.pop %v3952
  %v3961 = vrcp.pop %v3953
  %v3962 = vrcp.pop %v3954
  %v3963 = vrcp.pop %v3955
  %v3964 = vrcp.pop %v3956
  %v3965 = vrcp.pop %v3957
  %v3966 = vrcp.pop %v3958
  %v3967 = vrcp.pop %v3959
  %v3968 = vmul.f32 %v3817, %v3960
  %v3969 = vmul.f32 %v3819, %v3961
  %v3970 = vmul.f32 %v3821, %v3962
  %v3971 = vmul.f32 %v3823, %v3963
  %v3972 = vmul.f32 %v3825, %v3964
  %v3973 = vmul.f32 %v3827, %v3965
  %v3974 = vmul.f32 %v3829, %v3966
  %v3975 = vmul.f32 %v3831, %v3967
  %v3976 = vmul.f32 %v3968, %v2640
  %v3977 = vmul.f32 %v3969, %v2649
  %v3978 = vmul.f32 %v3970, %v2651
  %v3979 = vmul.f32 %v3971, %v2653
  %v3980 = vmul.f32 %v3972, %v2645
  %v3981 = vmul.f32 %v3973, %v2656
  %v3982 = vmul.f32 %v3974, %v2658
  %v3983 = vmul.f32 %v3975, %v2660
  %v3984 = vsel %vm2671, %v3976, 0.0
  %v3985 = vsel %vm2671, %v3977, 0.0
  %v3986 = vadd.f32 %v3984, %v3985
  %v3987 = vsel %vm2671, %v3978, 0.0
  %v3988 = vadd.f32 %v3986, %v3987
  %v3989 = vsel %vm2671, %v3979, 0.0
  %v3990 = vadd.f32 %v3988, %v3989
  %v3991 = vsel %vm2671, %v3980, 0.0
  %v3992 = vadd.f32 %v3990, %v3991
  %v3993 = vsel %vm2671, %v3981, 0.0
  %v3994 = vadd.f32 %v3992, %v3993
  %v3995 = vsel %vm2671, %v3982, 0.0
  %v3996 = vadd.f32 %v3994, %v3995
  %v3997 = vsel %vm2671, %v3983, 0.0
  %v3998 = vadd.f32 %v3996, %v3997
  %v3999 = vmul.f32 %v3998, %v3998
  %v4000 = vsel %vm2671, %v3999, 0.0
  %4001 = vadd.xlane.f32.xlu0 %v4000
  %v4002 = vpop.xlane.xlu0 %4001
  %v4003 = vadd.f32 %v4002, 1e-07
  %v4004 = vrsqrt.pop %v4003
  %v4005 = vmul.f32 %v3998, %v4004
  %v4006 = vmul.f32 %v3841, %v3960
  %v4007 = vmul.f32 %v3843, %v3961
  %v4008 = vmul.f32 %v3845, %v3962
  %v4009 = vmul.f32 %v3847, %v3963
  %v4010 = vmul.f32 %v3849, %v3964
  %v4011 = vmul.f32 %v3851, %v3965
  %v4012 = vmul.f32 %v3853, %v3966
  %v4013 = vmul.f32 %v3855, %v3967
  %v4014 = vmul.f32 %v4006, %v2640
  %v4015 = vmul.f32 %v4007, %v2649
  %v4016 = vmul.f32 %v4008, %v2651
  %v4017 = vmul.f32 %v4009, %v2653
  %v4018 = vmul.f32 %v4010, %v2645
  %v4019 = vmul.f32 %v4011, %v2656
  %v4020 = vmul.f32 %v4012, %v2658
  %v4021 = vmul.f32 %v4013, %v2660
  %v4022 = vsel %vm2694, %v4014, 0.0
  %v4023 = vsel %vm2694, %v4015, 0.0
  %v4024 = vadd.f32 %v4022, %v4023
  %v4025 = vsel %vm2694, %v4016, 0.0
  %v4026 = vadd.f32 %v4024, %v4025
  %v4027 = vsel %vm2694, %v4017, 0.0
  %v4028 = vadd.f32 %v4026, %v4027
  %v4029 = vsel %vm2694, %v4018, 0.0
  %v4030 = vadd.f32 %v4028, %v4029
  %v4031 = vsel %vm2694, %v4019, 0.0
  %v4032 = vadd.f32 %v4030, %v4031
  %v4033 = vsel %vm2694, %v4020, 0.0
  %v4034 = vadd.f32 %v4032, %v4033
  %v4035 = vsel %vm2694, %v4021, 0.0
  %v4036 = vadd.f32 %v4034, %v4035
  %v4037 = vmul.f32 %v4036, %v4036
  %4039 = vrot.lane.b32.xlu0 %v4037, 123
  %v4040 = vpop.permute.xlu0 %4039
  %v4042 = vsel %vm2671, %v4040, 0.0
  %4043 = vadd.xlane.f32.xlu0 %v4042
  %v4044 = vpop.xlane.xlu0 %4043
  %v4045 = vadd.f32 %v4044, 1e-07
  %v4046 = vrsqrt.pop %v4045
  %v4047 = vmul.f32 %v4036, %v4046
  %v4048 = vmul.f32 %v3865, %v3960
  %v4049 = vmul.f32 %v3867, %v3961
  %v4050 = vmul.f32 %v3869, %v3962
  %v4051 = vmul.f32 %v3871, %v3963
  %v4052 = vmul.f32 %v3873, %v3964
  %v4053 = vmul.f32 %v3875, %v3965
  %v4054 = vmul.f32 %v3877, %v3966
  %v4055 = vmul.f32 %v3879, %v3967
  %v4056 = vmul.f32 %v4048, %v2640
  %v4057 = vmul.f32 %v4049, %v2649
  %v4058 = vmul.f32 %v4050, %v2651
  %v4059 = vmul.f32 %v4051, %v2653
  %v4060 = vmul.f32 %v4052, %v2645
  %v4061 = vmul.f32 %v4053, %v2656
  %v4062 = vmul.f32 %v4054, %v2658
  %v4063 = vmul.f32 %v4055, %v2660
  %v4064 = vsel %vm2721, %v4056, 0.0
  %v4065 = vsel %vm2721, %v4057, 0.0
  %v4066 = vadd.f32 %v4064, %v4065
  %v4067 = vsel %vm2721, %v4058, 0.0
  %v4068 = vadd.f32 %v4066, %v4067
  %v4069 = vsel %vm2721, %v4059, 0.0
  %v4070 = vadd.f32 %v4068, %v4069
  %v4071 = vsel %vm2721, %v4060, 0.0
  %v4072 = vadd.f32 %v4070, %v4071
  %v4073 = vsel %vm2721, %v4061, 0.0
  %v4074 = vadd.f32 %v4072, %v4073
  %v4075 = vsel %vm2721, %v4062, 0.0
  %v4076 = vadd.f32 %v4074, %v4075
  %v4077 = vsel %vm2721, %v4063, 0.0
  %v4078 = vadd.f32 %v4076, %v4077
  %v4079 = vmul.f32 %v4078, %v4078
  %4081 = vrot.lane.b32.xlu0 %v4079, 118
  %v4082 = vpop.permute.xlu0 %4081
  %v4084 = vsel %vm2671, %v4082, 0.0
  %4085 = vadd.xlane.f32.xlu0 %v4084
  %v4086 = vpop.xlane.xlu0 %4085
  %v4087 = vadd.f32 %v4086, 1e-07
  %v4088 = vrsqrt.pop %v4087
  %v4089 = vmul.f32 %v4078, %v4088
  %v4090 = vmul.f32 %v3889, %v3960
  %v4091 = vmul.f32 %v3891, %v3961
  %v4092 = vmul.f32 %v3893, %v3962
  %v4093 = vmul.f32 %v3895, %v3963
  %v4094 = vmul.f32 %v3897, %v3964
  %v4095 = vmul.f32 %v3899, %v3965
  %v4096 = vmul.f32 %v3901, %v3966
  %v4097 = vmul.f32 %v3903, %v3967
  %v4098 = vmul.f32 %v4090, %v2640
  %v4099 = vmul.f32 %v4091, %v2649
  %v4100 = vmul.f32 %v4092, %v2651
  %v4101 = vmul.f32 %v4093, %v2653
  %v4102 = vmul.f32 %v4094, %v2645
  %v4103 = vmul.f32 %v4095, %v2656
  %v4104 = vmul.f32 %v4096, %v2658
  %v4105 = vmul.f32 %v4097, %v2660
  %v4106 = vsel %vm2748, %v4098, 0.0
  %v4107 = vsel %vm2748, %v4099, 0.0
  %v4108 = vadd.f32 %v4106, %v4107
  %v4109 = vsel %vm2748, %v4100, 0.0
  %v4110 = vadd.f32 %v4108, %v4109
  %v4111 = vsel %vm2748, %v4101, 0.0
  %v4112 = vadd.f32 %v4110, %v4111
  %v4113 = vsel %vm2748, %v4102, 0.0
  %v4114 = vadd.f32 %v4112, %v4113
  %v4115 = vsel %vm2748, %v4103, 0.0
  %v4116 = vadd.f32 %v4114, %v4115
  %v4117 = vsel %vm2748, %v4104, 0.0
  %v4118 = vadd.f32 %v4116, %v4117
  %v4119 = vsel %vm2748, %v4105, 0.0
  %v4120 = vadd.f32 %v4118, %v4119
  %v4121 = vmul.f32 %v4120, %v4120
  %4123 = vrot.lane.b32.xlu0 %v4121, 113
  %v4124 = vpop.permute.xlu0 %4123
  %v4126 = vsel %vm2671, %v4124, 0.0
  %4127 = vadd.xlane.f32.xlu0 %v4126
  %v4128 = vpop.xlane.xlu0 %4127
  %v4129 = vadd.f32 %v4128, 1e-07
  %v4130 = vrsqrt.pop %v4129
  %v4131 = vmul.f32 %v4120, %v4130
  %v4132 = vmul.f32 %v3913, %v3960
  %v4133 = vmul.f32 %v3915, %v3961
  %v4134 = vmul.f32 %v3917, %v3962
  %v4135 = vmul.f32 %v3919, %v3963
  %v4136 = vmul.f32 %v3921, %v3964
  %v4137 = vmul.f32 %v3923, %v3965
  %v4138 = vmul.f32 %v3925, %v3966
  %v4139 = vmul.f32 %v3927, %v3967
  %v4140 = vmul.f32 %v4132, %v2640
  %v4141 = vmul.f32 %v4133, %v2649
  %v4142 = vmul.f32 %v4134, %v2651
  %v4143 = vmul.f32 %v4135, %v2653
  %v4144 = vmul.f32 %v4136, %v2645
  %v4145 = vmul.f32 %v4137, %v2656
  %v4146 = vmul.f32 %v4138, %v2658
  %v4147 = vmul.f32 %v4139, %v2660
  %v4148 = vsel %vm2775, %v4140, 0.0
  %v4149 = vsel %vm2775, %v4141, 0.0
  %v4150 = vadd.f32 %v4148, %v4149
  %v4151 = vsel %vm2775, %v4142, 0.0
  %v4152 = vadd.f32 %v4150, %v4151
  %v4153 = vsel %vm2775, %v4143, 0.0
  %v4154 = vadd.f32 %v4152, %v4153
  %v4155 = vsel %vm2775, %v4144, 0.0
  %v4156 = vadd.f32 %v4154, %v4155
  %v4157 = vsel %vm2775, %v4145, 0.0
  %v4158 = vadd.f32 %v4156, %v4157
  %v4159 = vsel %vm2775, %v4146, 0.0
  %v4160 = vadd.f32 %v4158, %v4159
  %v4161 = vsel %vm2775, %v4147, 0.0
  %v4162 = vadd.f32 %v4160, %v4161
  %v4163 = vmul.f32 %v4162, %v4162
  %4165 = vrot.lane.b32.xlu0 %v4163, 108
  %v4166 = vpop.permute.xlu0 %4165
  %v4168 = vsel %vm2671, %v4166, 0.0
  %4169 = vadd.xlane.f32.xlu0 %v4168
  %v4170 = vpop.xlane.xlu0 %4169
  %v4171 = vadd.f32 %v4170, 1e-07
  %v4172 = vrsqrt.pop %v4171
  %v4173 = vmul.f32 %v4162, %v4172
  %v4174 = vmul.f32 %v4005, %v2640
  %v4175 = vmul.f32 %v4005, %v2649
  %v4176 = vmul.f32 %v4005, %v2651
  %v4177 = vmul.f32 %v4005, %v2653
  %v4178 = vmul.f32 %v4005, %v2645
  %v4179 = vmul.f32 %v4005, %v2656
  %v4180 = vmul.f32 %v4005, %v2658
  %v4181 = vmul.f32 %v4005, %v2660
  %v4182 = vsel %vm2671, %v4174, 0.0
  %4183 = vadd.xlane.f32.xlu0 %v4182
  %v4184 = vpop.xlane.xlu0 %4183
  %v4185 = vsel %vm2671, %v4175, 0.0
  %4186 = vadd.xlane.f32.xlu0 %v4185
  %v4187 = vpop.xlane.xlu0 %4186
  %v4188 = vsel %vm2671, %v4176, 0.0
  %4189 = vadd.xlane.f32.xlu0 %v4188
  %v4190 = vpop.xlane.xlu0 %4189
  %v4191 = vsel %vm2671, %v4177, 0.0
  %4192 = vadd.xlane.f32.xlu0 %v4191
  %v4193 = vpop.xlane.xlu0 %4192
  %v4194 = vsel %vm2671, %v4178, 0.0
  %4195 = vadd.xlane.f32.xlu0 %v4194
  %v4196 = vpop.xlane.xlu0 %4195
  %v4197 = vsel %vm2671, %v4179, 0.0
  %4198 = vadd.xlane.f32.xlu0 %v4197
  %v4199 = vpop.xlane.xlu0 %4198
  %v4200 = vsel %vm2671, %v4180, 0.0
  %4201 = vadd.xlane.f32.xlu0 %v4200
  %v4202 = vpop.xlane.xlu0 %4201
  %v4203 = vsel %vm2671, %v4181, 0.0
  %4204 = vadd.xlane.f32.xlu0 %v4203
  %v4205 = vpop.xlane.xlu0 %4204
  %v4206 = vmul.f32 %v4047, %v2640
  %v4207 = vmul.f32 %v4047, %v2649
  %v4208 = vmul.f32 %v4047, %v2651
  %v4209 = vmul.f32 %v4047, %v2653
  %v4210 = vmul.f32 %v4047, %v2645
  %v4211 = vmul.f32 %v4047, %v2656
  %v4212 = vmul.f32 %v4047, %v2658
  %v4213 = vmul.f32 %v4047, %v2660
  %4222 = vrot.lane.b32.xlu0 %v4206, 123
  %v4223 = vpop.permute.xlu0 %4222
  %4224 = vrot.lane.b32.xlu0 %v4207, 123
  %v4225 = vpop.permute.xlu0 %4224
  %4226 = vrot.lane.b32.xlu0 %v4208, 123
  %v4227 = vpop.permute.xlu0 %4226
  %4228 = vrot.lane.b32.xlu0 %v4209, 123
  %v4229 = vpop.permute.xlu0 %4228
  %4230 = vrot.lane.b32.xlu0 %v4210, 123
  %v4231 = vpop.permute.xlu0 %4230
  %4232 = vrot.lane.b32.xlu0 %v4211, 123
  %v4233 = vpop.permute.xlu0 %4232
  %4234 = vrot.lane.b32.xlu0 %v4212, 123
  %v4235 = vpop.permute.xlu0 %4234
  %4236 = vrot.lane.b32.xlu0 %v4213, 123
  %v4237 = vpop.permute.xlu0 %4236
  %v4246 = vsel %vm2671, %v4223, 0.0
  %4247 = vadd.xlane.f32.xlu0 %v4246
  %v4248 = vpop.xlane.xlu0 %4247
  %v4249 = vsel %vm2671, %v4225, 0.0
  %4250 = vadd.xlane.f32.xlu0 %v4249
  %v4251 = vpop.xlane.xlu0 %4250
  %v4252 = vsel %vm2671, %v4227, 0.0
  %4253 = vadd.xlane.f32.xlu0 %v4252
  %v4254 = vpop.xlane.xlu0 %4253
  %v4255 = vsel %vm2671, %v4229, 0.0
  %4256 = vadd.xlane.f32.xlu0 %v4255
  %v4257 = vpop.xlane.xlu0 %4256
  %v4258 = vsel %vm2671, %v4231, 0.0
  %4259 = vadd.xlane.f32.xlu0 %v4258
  %v4260 = vpop.xlane.xlu0 %4259
  %v4261 = vsel %vm2671, %v4233, 0.0
  %4262 = vadd.xlane.f32.xlu0 %v4261
  %v4263 = vpop.xlane.xlu0 %4262
  %v4264 = vsel %vm2671, %v4235, 0.0
  %4265 = vadd.xlane.f32.xlu0 %v4264
  %v4266 = vpop.xlane.xlu0 %4265
  %v4267 = vsel %vm2671, %v4237, 0.0
  %4268 = vadd.xlane.f32.xlu0 %v4267
  %v4269 = vpop.xlane.xlu0 %4268
  %v4270 = vmul.f32 %v4089, %v2640
  %v4271 = vmul.f32 %v4089, %v2649
  %v4272 = vmul.f32 %v4089, %v2651
  %v4273 = vmul.f32 %v4089, %v2653
  %v4274 = vmul.f32 %v4089, %v2645
  %v4275 = vmul.f32 %v4089, %v2656
  %v4276 = vmul.f32 %v4089, %v2658
  %v4277 = vmul.f32 %v4089, %v2660
  %4286 = vrot.lane.b32.xlu0 %v4270, 118
  %v4287 = vpop.permute.xlu0 %4286
  %4288 = vrot.lane.b32.xlu0 %v4271, 118
  %v4289 = vpop.permute.xlu0 %4288
  %4290 = vrot.lane.b32.xlu0 %v4272, 118
  %v4291 = vpop.permute.xlu0 %4290
  %4292 = vrot.lane.b32.xlu0 %v4273, 118
  %v4293 = vpop.permute.xlu0 %4292
  %4294 = vrot.lane.b32.xlu0 %v4274, 118
  %v4295 = vpop.permute.xlu0 %4294
  %4296 = vrot.lane.b32.xlu0 %v4275, 118
  %v4297 = vpop.permute.xlu0 %4296
  %4298 = vrot.lane.b32.xlu0 %v4276, 118
  %v4299 = vpop.permute.xlu0 %4298
  %4300 = vrot.lane.b32.xlu0 %v4277, 118
  %v4301 = vpop.permute.xlu0 %4300
  %v4310 = vsel %vm2671, %v4287, 0.0
  %4311 = vadd.xlane.f32.xlu0 %v4310
  %v4312 = vpop.xlane.xlu0 %4311
  %v4313 = vsel %vm2671, %v4289, 0.0
  %4314 = vadd.xlane.f32.xlu0 %v4313
  %v4315 = vpop.xlane.xlu0 %4314
  %v4316 = vsel %vm2671, %v4291, 0.0
  %4317 = vadd.xlane.f32.xlu0 %v4316
  %v4318 = vpop.xlane.xlu0 %4317
  %v4319 = vsel %vm2671, %v4293, 0.0
  %4320 = vadd.xlane.f32.xlu0 %v4319
  %v4321 = vpop.xlane.xlu0 %4320
  %v4322 = vsel %vm2671, %v4295, 0.0
  %4323 = vadd.xlane.f32.xlu0 %v4322
  %v4324 = vpop.xlane.xlu0 %4323
  %v4325 = vsel %vm2671, %v4297, 0.0
  %4326 = vadd.xlane.f32.xlu0 %v4325
  %v4327 = vpop.xlane.xlu0 %4326
  %v4328 = vsel %vm2671, %v4299, 0.0
  %4329 = vadd.xlane.f32.xlu0 %v4328
  %v4330 = vpop.xlane.xlu0 %4329
  %v4331 = vsel %vm2671, %v4301, 0.0
  %4332 = vadd.xlane.f32.xlu0 %v4331
  %v4333 = vpop.xlane.xlu0 %4332
  %v4334 = vmul.f32 %v4131, %v2640
  %v4335 = vmul.f32 %v4131, %v2649
  %v4336 = vmul.f32 %v4131, %v2651
  %v4337 = vmul.f32 %v4131, %v2653
  %v4338 = vmul.f32 %v4131, %v2645
  %v4339 = vmul.f32 %v4131, %v2656
  %v4340 = vmul.f32 %v4131, %v2658
  %v4341 = vmul.f32 %v4131, %v2660
  %4350 = vrot.lane.b32.xlu0 %v4334, 113
  %v4351 = vpop.permute.xlu0 %4350
  %4352 = vrot.lane.b32.xlu0 %v4335, 113
  %v4353 = vpop.permute.xlu0 %4352
  %4354 = vrot.lane.b32.xlu0 %v4336, 113
  %v4355 = vpop.permute.xlu0 %4354
  %4356 = vrot.lane.b32.xlu0 %v4337, 113
  %v4357 = vpop.permute.xlu0 %4356
  %4358 = vrot.lane.b32.xlu0 %v4338, 113
  %v4359 = vpop.permute.xlu0 %4358
  %4360 = vrot.lane.b32.xlu0 %v4339, 113
  %v4361 = vpop.permute.xlu0 %4360
  %4362 = vrot.lane.b32.xlu0 %v4340, 113
  %v4363 = vpop.permute.xlu0 %4362
  %4364 = vrot.lane.b32.xlu0 %v4341, 113
  %v4365 = vpop.permute.xlu0 %4364
  %v4374 = vsel %vm2671, %v4351, 0.0
  %4375 = vadd.xlane.f32.xlu0 %v4374
  %v4376 = vpop.xlane.xlu0 %4375
  %v4377 = vsel %vm2671, %v4353, 0.0
  %4378 = vadd.xlane.f32.xlu0 %v4377
  %v4379 = vpop.xlane.xlu0 %4378
  %v4380 = vsel %vm2671, %v4355, 0.0
  %4381 = vadd.xlane.f32.xlu0 %v4380
  %v4382 = vpop.xlane.xlu0 %4381
  %v4383 = vsel %vm2671, %v4357, 0.0
  %4384 = vadd.xlane.f32.xlu0 %v4383
  %v4385 = vpop.xlane.xlu0 %4384
  %v4386 = vsel %vm2671, %v4359, 0.0
  %4387 = vadd.xlane.f32.xlu0 %v4386
  %v4388 = vpop.xlane.xlu0 %4387
  %v4389 = vsel %vm2671, %v4361, 0.0
  %4390 = vadd.xlane.f32.xlu0 %v4389
  %v4391 = vpop.xlane.xlu0 %4390
  %v4392 = vsel %vm2671, %v4363, 0.0
  %4393 = vadd.xlane.f32.xlu0 %v4392
  %v4394 = vpop.xlane.xlu0 %4393
  %v4395 = vsel %vm2671, %v4365, 0.0
  %4396 = vadd.xlane.f32.xlu0 %v4395
  %v4397 = vpop.xlane.xlu0 %4396
  %v4398 = vmul.f32 %v4173, %v2640
  %v4399 = vmul.f32 %v4173, %v2649
  %v4400 = vmul.f32 %v4173, %v2651
  %v4401 = vmul.f32 %v4173, %v2653
  %v4402 = vmul.f32 %v4173, %v2645
  %v4403 = vmul.f32 %v4173, %v2656
  %v4404 = vmul.f32 %v4173, %v2658
  %v4405 = vmul.f32 %v4173, %v2660
  %4414 = vrot.lane.b32.xlu0 %v4398, 108
  %v4415 = vpop.permute.xlu0 %4414
  %4416 = vrot.lane.b32.xlu0 %v4399, 108
  %v4417 = vpop.permute.xlu0 %4416
  %4418 = vrot.lane.b32.xlu0 %v4400, 108
  %v4419 = vpop.permute.xlu0 %4418
  %4420 = vrot.lane.b32.xlu0 %v4401, 108
  %v4421 = vpop.permute.xlu0 %4420
  %4422 = vrot.lane.b32.xlu0 %v4402, 108
  %v4423 = vpop.permute.xlu0 %4422
  %4424 = vrot.lane.b32.xlu0 %v4403, 108
  %v4425 = vpop.permute.xlu0 %4424
  %4426 = vrot.lane.b32.xlu0 %v4404, 108
  %v4427 = vpop.permute.xlu0 %4426
  %4428 = vrot.lane.b32.xlu0 %v4405, 108
  %v4429 = vpop.permute.xlu0 %4428
  %v4438 = vsel %vm2671, %v4415, 0.0
  %4439 = vadd.xlane.f32.xlu0 %v4438
  %v4440 = vpop.xlane.xlu0 %4439
  %v4441 = vsel %vm2671, %v4417, 0.0
  %4442 = vadd.xlane.f32.xlu0 %v4441
  %v4443 = vpop.xlane.xlu0 %4442
  %v4444 = vsel %vm2671, %v4419, 0.0
  %4445 = vadd.xlane.f32.xlu0 %v4444
  %v4446 = vpop.xlane.xlu0 %4445
  %v4447 = vsel %vm2671, %v4421, 0.0
  %4448 = vadd.xlane.f32.xlu0 %v4447
  %v4449 = vpop.xlane.xlu0 %4448
  %v4450 = vsel %vm2671, %v4423, 0.0
  %4451 = vadd.xlane.f32.xlu0 %v4450
  %v4452 = vpop.xlane.xlu0 %4451
  %v4453 = vsel %vm2671, %v4425, 0.0
  %4454 = vadd.xlane.f32.xlu0 %v4453
  %v4455 = vpop.xlane.xlu0 %4454
  %v4456 = vsel %vm2671, %v4427, 0.0
  %4457 = vadd.xlane.f32.xlu0 %v4456
  %v4458 = vpop.xlane.xlu0 %4457
  %v4459 = vsel %vm2671, %v4429, 0.0
  %4460 = vadd.xlane.f32.xlu0 %v4459
  %v4461 = vpop.xlane.xlu0 %4460
  %v4462 = vmax.f32 %v4184, %v4248
  %v4463 = vmax.f32 %v4187, %v4251
  %v4464 = vmax.f32 %v4190, %v4254
  %v4465 = vmax.f32 %v4193, %v4257
  %v4466 = vmax.f32 %v4196, %v4260
  %v4467 = vmax.f32 %v4199, %v4263
  %v4468 = vmax.f32 %v4202, %v4266
  %v4469 = vmax.f32 %v4205, %v4269
  %v4470 = vmax.f32 %v4462, %v4312
  %v4471 = vmax.f32 %v4463, %v4315
  %v4472 = vmax.f32 %v4464, %v4318
  %v4473 = vmax.f32 %v4465, %v4321
  %v4474 = vmax.f32 %v4466, %v4324
  %v4475 = vmax.f32 %v4467, %v4327
  %v4476 = vmax.f32 %v4468, %v4330
  %v4477 = vmax.f32 %v4469, %v4333
  %v4478 = vmax.f32 %v4470, %v4376
  %v4479 = vmax.f32 %v4471, %v4379
  %v4480 = vmax.f32 %v4472, %v4382
  %v4481 = vmax.f32 %v4473, %v4385
  %v4482 = vmax.f32 %v4474, %v4388
  %v4483 = vmax.f32 %v4475, %v4391
  %v4484 = vmax.f32 %v4476, %v4394
  %v4485 = vmax.f32 %v4477, %v4397
  %v4486 = vmax.f32 %v4478, %v4440
  %v4487 = vmax.f32 %v4479, %v4443
  %v4488 = vmax.f32 %v4480, %v4446
  %v4489 = vmax.f32 %v4481, %v4449
  %v4490 = vmax.f32 %v4482, %v4452
  %v4491 = vmax.f32 %v4483, %v4455
  %v4492 = vmax.f32 %v4484, %v4458
  %v4493 = vmax.f32 %v4485, %v4461
  %v4494 = vsub.f32 %v4184, %v4486
  %v4495 = vsub.f32 %v4187, %v4487
  %v4496 = vsub.f32 %v4190, %v4488
  %v4497 = vsub.f32 %v4193, %v4489
  %v4498 = vsub.f32 %v4196, %v4490
  %v4499 = vsub.f32 %v4199, %v4491
  %v4500 = vsub.f32 %v4202, %v4492
  %v4501 = vsub.f32 %v4205, %v4493
  %v4502 = vmul.f32 %v4494, 1.442695
  %v4503 = vpow.pop %v4502
  %v4504 = vmul.f32 %v4495, 1.442695
  %v4505 = vpow.pop %v4504
  %v4506 = vmul.f32 %v4496, 1.442695
  %v4507 = vpow.pop %v4506
  %v4508 = vmul.f32 %v4497, 1.442695
  %v4509 = vpow.pop %v4508
  %v4510 = vmul.f32 %v4498, 1.442695
  %v4511 = vpow.pop %v4510
  %v4512 = vmul.f32 %v4499, 1.442695
  %v4513 = vpow.pop %v4512
  %v4514 = vmul.f32 %v4500, 1.442695
  %v4515 = vpow.pop %v4514
  %v4516 = vmul.f32 %v4501, 1.442695
  %v4517 = vpow.pop %v4516
  %v4518 = vsub.f32 %v4248, %v4486
  %v4519 = vsub.f32 %v4251, %v4487
  %v4520 = vsub.f32 %v4254, %v4488
  %v4521 = vsub.f32 %v4257, %v4489
  %v4522 = vsub.f32 %v4260, %v4490
  %v4523 = vsub.f32 %v4263, %v4491
  %v4524 = vsub.f32 %v4266, %v4492
  %v4525 = vsub.f32 %v4269, %v4493
  %v4526 = vmul.f32 %v4518, 1.442695
  %v4527 = vpow.pop %v4526
  %v4528 = vmul.f32 %v4519, 1.442695
  %v4529 = vpow.pop %v4528
  %v4530 = vmul.f32 %v4520, 1.442695
  %v4531 = vpow.pop %v4530
  %v4532 = vmul.f32 %v4521, 1.442695
  %v4533 = vpow.pop %v4532
  %v4534 = vmul.f32 %v4522, 1.442695
  %v4535 = vpow.pop %v4534
  %v4536 = vmul.f32 %v4523, 1.442695
  %v4537 = vpow.pop %v4536
  %v4538 = vmul.f32 %v4524, 1.442695
  %v4539 = vpow.pop %v4538
  %v4540 = vmul.f32 %v4525, 1.442695
  %v4541 = vpow.pop %v4540
  %v4542 = vsub.f32 %v4312, %v4486
  %v4543 = vsub.f32 %v4315, %v4487
  %v4544 = vsub.f32 %v4318, %v4488
  %v4545 = vsub.f32 %v4321, %v4489
  %v4546 = vsub.f32 %v4324, %v4490
  %v4547 = vsub.f32 %v4327, %v4491
  %v4548 = vsub.f32 %v4330, %v4492
  %v4549 = vsub.f32 %v4333, %v4493
  %v4550 = vmul.f32 %v4542, 1.442695
  %v4551 = vpow.pop %v4550
  %v4552 = vmul.f32 %v4543, 1.442695
  %v4553 = vpow.pop %v4552
  %v4554 = vmul.f32 %v4544, 1.442695
  %v4555 = vpow.pop %v4554
  %v4556 = vmul.f32 %v4545, 1.442695
  %v4557 = vpow.pop %v4556
  %v4558 = vmul.f32 %v4546, 1.442695
  %v4559 = vpow.pop %v4558
  %v4560 = vmul.f32 %v4547, 1.442695
  %v4561 = vpow.pop %v4560
  %v4562 = vmul.f32 %v4548, 1.442695
  %v4563 = vpow.pop %v4562
  %v4564 = vmul.f32 %v4549, 1.442695
  %v4565 = vpow.pop %v4564
  %v4566 = vsub.f32 %v4376, %v4486
  %v4567 = vsub.f32 %v4379, %v4487
  %v4568 = vsub.f32 %v4382, %v4488
  %v4569 = vsub.f32 %v4385, %v4489
  %v4570 = vsub.f32 %v4388, %v4490
  %v4571 = vsub.f32 %v4391, %v4491
  %v4572 = vsub.f32 %v4394, %v4492
  %v4573 = vsub.f32 %v4397, %v4493
  %v4574 = vmul.f32 %v4566, 1.442695
  %v4575 = vpow.pop %v4574
  %v4576 = vmul.f32 %v4567, 1.442695
  %v4577 = vpow.pop %v4576
  %v4578 = vmul.f32 %v4568, 1.442695
  %v4579 = vpow.pop %v4578
  %v4580 = vmul.f32 %v4569, 1.442695
  %v4581 = vpow.pop %v4580
  %v4582 = vmul.f32 %v4570, 1.442695
  %v4583 = vpow.pop %v4582
  %v4584 = vmul.f32 %v4571, 1.442695
  %v4585 = vpow.pop %v4584
  %v4586 = vmul.f32 %v4572, 1.442695
  %v4587 = vpow.pop %v4586
  %v4588 = vmul.f32 %v4573, 1.442695
  %v4589 = vpow.pop %v4588
  %v4590 = vsub.f32 %v4440, %v4486
  %v4591 = vsub.f32 %v4443, %v4487
  %v4592 = vsub.f32 %v4446, %v4488
  %v4593 = vsub.f32 %v4449, %v4489
  %v4594 = vsub.f32 %v4452, %v4490
  %v4595 = vsub.f32 %v4455, %v4491
  %v4596 = vsub.f32 %v4458, %v4492
  %v4597 = vsub.f32 %v4461, %v4493
  %v4598 = vmul.f32 %v4590, 1.442695
  %v4599 = vpow.pop %v4598
  %v4600 = vmul.f32 %v4591, 1.442695
  %v4601 = vpow.pop %v4600
  %v4602 = vmul.f32 %v4592, 1.442695
  %v4603 = vpow.pop %v4602
  %v4604 = vmul.f32 %v4593, 1.442695
  %v4605 = vpow.pop %v4604
  %v4606 = vmul.f32 %v4594, 1.442695
  %v4607 = vpow.pop %v4606
  %v4608 = vmul.f32 %v4595, 1.442695
  %v4609 = vpow.pop %v4608
  %v4610 = vmul.f32 %v4596, 1.442695
  %v4611 = vpow.pop %v4610
  %v4612 = vmul.f32 %v4597, 1.442695
  %v4613 = vpow.pop %v4612
  %v4614 = vadd.f32 %v4503, %v4527
  %v4615 = vadd.f32 %v4505, %v4529
  %v4616 = vadd.f32 %v4507, %v4531
  %v4617 = vadd.f32 %v4509, %v4533
  %v4618 = vadd.f32 %v4511, %v4535
  %v4619 = vadd.f32 %v4513, %v4537
  %v4620 = vadd.f32 %v4515, %v4539
  %v4621 = vadd.f32 %v4517, %v4541
  %v4622 = vadd.f32 %v4614, %v4551
  %v4623 = vadd.f32 %v4615, %v4553
  %v4624 = vadd.f32 %v4616, %v4555
  %v4625 = vadd.f32 %v4617, %v4557
  %v4626 = vadd.f32 %v4618, %v4559
  %v4627 = vadd.f32 %v4619, %v4561
  %v4628 = vadd.f32 %v4620, %v4563
  %v4629 = vadd.f32 %v4621, %v4565
  %v4630 = vadd.f32 %v4622, %v4575
  %v4631 = vadd.f32 %v4623, %v4577
  %v4632 = vadd.f32 %v4624, %v4579
  %v4633 = vadd.f32 %v4625, %v4581
  %v4634 = vadd.f32 %v4626, %v4583
  %v4635 = vadd.f32 %v4627, %v4585
  %v4636 = vadd.f32 %v4628, %v4587
  %v4637 = vadd.f32 %v4629, %v4589
  %v4638 = vadd.f32 %v4630, %v4599
  %v4639 = vadd.f32 %v4631, %v4601
  %v4640 = vadd.f32 %v4632, %v4603
  %v4641 = vadd.f32 %v4633, %v4605
  %v4642 = vadd.f32 %v4634, %v4607
  %v4643 = vadd.f32 %v4635, %v4609
  %v4644 = vadd.f32 %v4636, %v4611
  %v4645 = vadd.f32 %v4637, %v4613
  %v4646 = vrcp.pop %v4638
  %v4647 = vrcp.pop %v4639
  %v4648 = vrcp.pop %v4640
  %v4649 = vrcp.pop %v4641
  %v4650 = vrcp.pop %v4642
  %v4651 = vrcp.pop %v4643
  %v4652 = vrcp.pop %v4644
  %v4653 = vrcp.pop %v4645
  %v4654 = vmul.f32 %v4503, %v4646
  %v4655 = vmul.f32 %v4505, %v4647
  %v4656 = vmul.f32 %v4507, %v4648
  %v4657 = vmul.f32 %v4509, %v4649
  %v4658 = vmul.f32 %v4511, %v4650
  %v4659 = vmul.f32 %v4513, %v4651
  %v4660 = vmul.f32 %v4515, %v4652
  %v4661 = vmul.f32 %v4517, %v4653
  %v4662 = vmul.f32 %v4654, %v2640
  %v4663 = vmul.f32 %v4655, %v2649
  %v4664 = vmul.f32 %v4656, %v2651
  %v4665 = vmul.f32 %v4657, %v2653
  %v4666 = vmul.f32 %v4658, %v2645
  %v4667 = vmul.f32 %v4659, %v2656
  %v4668 = vmul.f32 %v4660, %v2658
  %v4669 = vmul.f32 %v4661, %v2660
  %v4670 = vsel %vm2671, %v4662, 0.0
  %v4671 = vsel %vm2671, %v4663, 0.0
  %v4672 = vadd.f32 %v4670, %v4671
  %v4673 = vsel %vm2671, %v4664, 0.0
  %v4674 = vadd.f32 %v4672, %v4673
  %v4675 = vsel %vm2671, %v4665, 0.0
  %v4676 = vadd.f32 %v4674, %v4675
  %v4677 = vsel %vm2671, %v4666, 0.0
  %v4678 = vadd.f32 %v4676, %v4677
  %v4679 = vsel %vm2671, %v4667, 0.0
  %v4680 = vadd.f32 %v4678, %v4679
  %v4681 = vsel %vm2671, %v4668, 0.0
  %v4682 = vadd.f32 %v4680, %v4681
  %v4683 = vsel %vm2671, %v4669, 0.0
  %v4684 = vadd.f32 %v4682, %v4683
  %v4685 = vmul.f32 %v4684, %v4684
  %v4686 = vsel %vm2671, %v4685, 0.0
  %4687 = vadd.xlane.f32.xlu0 %v4686
  %v4688 = vpop.xlane.xlu0 %4687
  %v4689 = vadd.f32 %v4688, 1e-07
  %v4690 = vrsqrt.pop %v4689
  %v4691 = vmul.f32 %v4684, %v4690
  %v4692 = vmul.f32 %v4527, %v4646
  %v4693 = vmul.f32 %v4529, %v4647
  %v4694 = vmul.f32 %v4531, %v4648
  %v4695 = vmul.f32 %v4533, %v4649
  %v4696 = vmul.f32 %v4535, %v4650
  %v4697 = vmul.f32 %v4537, %v4651
  %v4698 = vmul.f32 %v4539, %v4652
  %v4699 = vmul.f32 %v4541, %v4653
  %v4700 = vmul.f32 %v4692, %v2640
  %v4701 = vmul.f32 %v4693, %v2649
  %v4702 = vmul.f32 %v4694, %v2651
  %v4703 = vmul.f32 %v4695, %v2653
  %v4704 = vmul.f32 %v4696, %v2645
  %v4705 = vmul.f32 %v4697, %v2656
  %v4706 = vmul.f32 %v4698, %v2658
  %v4707 = vmul.f32 %v4699, %v2660
  %v4708 = vsel %vm2694, %v4700, 0.0
  %v4709 = vsel %vm2694, %v4701, 0.0
  %v4710 = vadd.f32 %v4708, %v4709
  %v4711 = vsel %vm2694, %v4702, 0.0
  %v4712 = vadd.f32 %v4710, %v4711
  %v4713 = vsel %vm2694, %v4703, 0.0
  %v4714 = vadd.f32 %v4712, %v4713
  %v4715 = vsel %vm2694, %v4704, 0.0
  %v4716 = vadd.f32 %v4714, %v4715
  %v4717 = vsel %vm2694, %v4705, 0.0
  %v4718 = vadd.f32 %v4716, %v4717
  %v4719 = vsel %vm2694, %v4706, 0.0
  %v4720 = vadd.f32 %v4718, %v4719
  %v4721 = vsel %vm2694, %v4707, 0.0
  %v4722 = vadd.f32 %v4720, %v4721
  %v4723 = vmul.f32 %v4722, %v4722
  %4725 = vrot.lane.b32.xlu0 %v4723, 123
  %v4726 = vpop.permute.xlu0 %4725
  %v4728 = vsel %vm2671, %v4726, 0.0
  %4729 = vadd.xlane.f32.xlu0 %v4728
  %v4730 = vpop.xlane.xlu0 %4729
  %v4731 = vadd.f32 %v4730, 1e-07
  %v4732 = vrsqrt.pop %v4731
  %v4733 = vmul.f32 %v4722, %v4732
  %v4734 = vmul.f32 %v4551, %v4646
  %v4735 = vmul.f32 %v4553, %v4647
  %v4736 = vmul.f32 %v4555, %v4648
  %v4737 = vmul.f32 %v4557, %v4649
  %v4738 = vmul.f32 %v4559, %v4650
  %v4739 = vmul.f32 %v4561, %v4651
  %v4740 = vmul.f32 %v4563, %v4652
  %v4741 = vmul.f32 %v4565, %v4653
  %v4742 = vmul.f32 %v4734, %v2640
  %v4743 = vmul.f32 %v4735, %v2649
  %v4744 = vmul.f32 %v4736, %v2651
  %v4745 = vmul.f32 %v4737, %v2653
  %v4746 = vmul.f32 %v4738, %v2645
  %v4747 = vmul.f32 %v4739, %v2656
  %v4748 = vmul.f32 %v4740, %v2658
  %v4749 = vmul.f32 %v4741, %v2660
  %v4750 = vsel %vm2721, %v4742, 0.0
  %v4751 = vsel %vm2721, %v4743, 0.0
  %v4752 = vadd.f32 %v4750, %v4751
  %v4753 = vsel %vm2721, %v4744, 0.0
  %v4754 = vadd.f32 %v4752, %v4753
  %v4755 = vsel %vm2721, %v4745, 0.0
  %v4756 = vadd.f32 %v4754, %v4755
  %v4757 = vsel %vm2721, %v4746, 0.0
  %v4758 = vadd.f32 %v4756, %v4757
  %v4759 = vsel %vm2721, %v4747, 0.0
  %v4760 = vadd.f32 %v4758, %v4759
  %v4761 = vsel %vm2721, %v4748, 0.0
  %v4762 = vadd.f32 %v4760, %v4761
  %v4763 = vsel %vm2721, %v4749, 0.0
  %v4764 = vadd.f32 %v4762, %v4763
  %v4765 = vmul.f32 %v4764, %v4764
  %4767 = vrot.lane.b32.xlu0 %v4765, 118
  %v4768 = vpop.permute.xlu0 %4767
  %v4770 = vsel %vm2671, %v4768, 0.0
  %4771 = vadd.xlane.f32.xlu0 %v4770
  %v4772 = vpop.xlane.xlu0 %4771
  %v4773 = vadd.f32 %v4772, 1e-07
  %v4774 = vrsqrt.pop %v4773
  %v4775 = vmul.f32 %v4764, %v4774
  %v4776 = vmul.f32 %v4575, %v4646
  %v4777 = vmul.f32 %v4577, %v4647
  %v4778 = vmul.f32 %v4579, %v4648
  %v4779 = vmul.f32 %v4581, %v4649
  %v4780 = vmul.f32 %v4583, %v4650
  %v4781 = vmul.f32 %v4585, %v4651
  %v4782 = vmul.f32 %v4587, %v4652
  %v4783 = vmul.f32 %v4589, %v4653
  %v4784 = vmul.f32 %v4776, %v2640
  %v4785 = vmul.f32 %v4777, %v2649
  %v4786 = vmul.f32 %v4778, %v2651
  %v4787 = vmul.f32 %v4779, %v2653
  %v4788 = vmul.f32 %v4780, %v2645
  %v4789 = vmul.f32 %v4781, %v2656
  %v4790 = vmul.f32 %v4782, %v2658
  %v4791 = vmul.f32 %v4783, %v2660
  %v4792 = vsel %vm2748, %v4784, 0.0
  %v4793 = vsel %vm2748, %v4785, 0.0
  %v4794 = vadd.f32 %v4792, %v4793
  %v4795 = vsel %vm2748, %v4786, 0.0
  %v4796 = vadd.f32 %v4794, %v4795
  %v4797 = vsel %vm2748, %v4787, 0.0
  %v4798 = vadd.f32 %v4796, %v4797
  %v4799 = vsel %vm2748, %v4788, 0.0
  %v4800 = vadd.f32 %v4798, %v4799
  %v4801 = vsel %vm2748, %v4789, 0.0
  %v4802 = vadd.f32 %v4800, %v4801
  %v4803 = vsel %vm2748, %v4790, 0.0
  %v4804 = vadd.f32 %v4802, %v4803
  %v4805 = vsel %vm2748, %v4791, 0.0
  %v4806 = vadd.f32 %v4804, %v4805
  %v4807 = vmul.f32 %v4806, %v4806
  %4809 = vrot.lane.b32.xlu0 %v4807, 113
  %v4810 = vpop.permute.xlu0 %4809
  %v4812 = vsel %vm2671, %v4810, 0.0
  %4813 = vadd.xlane.f32.xlu0 %v4812
  %v4814 = vpop.xlane.xlu0 %4813
  %v4815 = vadd.f32 %v4814, 1e-07
  %v4816 = vrsqrt.pop %v4815
  %v4817 = vmul.f32 %v4806, %v4816
  %v4818 = vmul.f32 %v4599, %v4646
  %v4819 = vmul.f32 %v4601, %v4647
  %v4820 = vmul.f32 %v4603, %v4648
  %v4821 = vmul.f32 %v4605, %v4649
  %v4822 = vmul.f32 %v4607, %v4650
  %v4823 = vmul.f32 %v4609, %v4651
  %v4824 = vmul.f32 %v4611, %v4652
  %v4825 = vmul.f32 %v4613, %v4653
  %v4826 = vmul.f32 %v4818, %v2640
  %v4827 = vmul.f32 %v4819, %v2649
  %v4828 = vmul.f32 %v4820, %v2651
  %v4829 = vmul.f32 %v4821, %v2653
  %v4830 = vmul.f32 %v4822, %v2645
  %v4831 = vmul.f32 %v4823, %v2656
  %v4832 = vmul.f32 %v4824, %v2658
  %v4833 = vmul.f32 %v4825, %v2660
  %v4834 = vsel %vm2775, %v4826, 0.0
  %v4835 = vsel %vm2775, %v4827, 0.0
  %v4836 = vadd.f32 %v4834, %v4835
  %v4837 = vsel %vm2775, %v4828, 0.0
  %v4838 = vadd.f32 %v4836, %v4837
  %v4839 = vsel %vm2775, %v4829, 0.0
  %v4840 = vadd.f32 %v4838, %v4839
  %v4841 = vsel %vm2775, %v4830, 0.0
  %v4842 = vadd.f32 %v4840, %v4841
  %v4843 = vsel %vm2775, %v4831, 0.0
  %v4844 = vadd.f32 %v4842, %v4843
  %v4845 = vsel %vm2775, %v4832, 0.0
  %v4846 = vadd.f32 %v4844, %v4845
  %v4847 = vsel %vm2775, %v4833, 0.0
  %v4848 = vadd.f32 %v4846, %v4847
  %v4849 = vmul.f32 %v4848, %v4848
  %4851 = vrot.lane.b32.xlu0 %v4849, 108
  %v4852 = vpop.permute.xlu0 %4851
  %v4854 = vsel %vm2671, %v4852, 0.0
  %4855 = vadd.xlane.f32.xlu0 %v4854
  %v4856 = vpop.xlane.xlu0 %4855
  %v4857 = vadd.f32 %v4856, 1e-07
  %v4858 = vrsqrt.pop %v4857
  %v4859 = vmul.f32 %v4848, %v4858
  %vm4860 = vcmask 39936
  %v4861 = vsel %vm4860, %v4691, %v4733
  %vm4862 = vcmask 80896
  %v4863 = vsel %vm4862, %v4861, %v4775
  %vm4864 = vcmask 121856
  %v4865 = vsel %vm4864, %v4863, %v4817
  %vm4866 = vcmask 162816
  %v4867 = vsel %vm4866, %v4865, %v4859
  %v4868 = vlaneseq
  %v4869 = vshrl.u32 %v4868, 7
  %v4870 = vsub.s32 7, %v4869
  %v4871 = vrot.slane %v34, %v4870
  %v4872 = vmul.f32 %v4867, %v4871
  %vm4873 = vcmask 197632
  %v4874 = vsel %vm4873, %v4872, 0.0
  %4875 = vadd.xlane.f32.xlu0 %v4874
  %v4876 = vpop.xlane.xlu0 %4875
  %v4877 = vlaneseq
  %v4878 = vshrl.u32 %v4877, 7
  %v4879 = vsub.s32 6, %v4878
  %v4880 = vrot.slane %v35, %v4879
  %v4881 = vadd.f32 %v4876, %v4880
  %v4882 = vmax.f32 %v4881, 0.0
  %v4883 = vlaneseq
  %v4884 = vshrl.u32 %v4883, 7
  %v4885 = vsub.s32 3, %v4884
  %v4886 = vrot.slane %v34, %v4885
  %v4887 = vmul.f32 %v1268, %v4886
  %vm4888 = vcmask 254976
  %v4889 = vsel %vm4888, %v4887, 0.0
  %4890 = vadd.xlane.f32.xlu0 %v4889
  %v4891 = vpop.xlane.xlu0 %4890
  %v4892 = vlaneseq
  %v4893 = vshrl.u32 %v4892, 7
  %v4894 = vsub.s32 5, %v4893
  %v4895 = vrot.slane %v34, %v4894
  %v4896 = vadd.f32 %v4891, %v4895
  %v4897 = vtanh.pop %v4896
  %v4898 = vmul.f32 %v4897, 1.442695
  %v4899 = vpow.pop %v4898
  %v4900 = vmul.f32 %v1272, %v4886
  %vm4901 = vcmask 257026
  %v4902 = vsel %vm4901, %v4900, 0.0
  %4903 = vadd.xlane.f32.xlu0 %v4902
  %v4904 = vpop.xlane.xlu0 %4903
  %v4905 = vadd.f32 %v4904, %v4895
  %v4906 = vtanh.pop %v4905
  %v4907 = vmul.f32 %v4906, 1.442695
  %v4908 = vpow.pop %v4907
  %v4909 = vmul.f32 %v1276, %v4886
  %vm4910 = vcmask 259076
  %v4911 = vsel %vm4910, %v4909, 0.0
  %4912 = vadd.xlane.f32.xlu0 %v4911
  %v4913 = vpop.xlane.xlu0 %4912
  %v4914 = vadd.f32 %v4913, %v4895
  %v4915 = vtanh.pop %v4914
  %v4916 = vmul.f32 %v4915, 1.442695
  %v4917 = vpow.pop %v4916
  %v4918 = vmul.f32 %v1280, %v4886
  %vm4919 = vcmask 261126
  %v4920 = vsel %vm4919, %v4918, 0.0
  %4921 = vadd.xlane.f32.xlu0 %v4920
  %v4922 = vpop.xlane.xlu0 %4921
  %v4923 = vadd.f32 %v4922, %v4895
  %v4924 = vtanh.pop %v4923
  %v4925 = vmul.f32 %v4924, 1.442695
  %v4926 = vpow.pop %v4925
  %v4927 = vmul.f32 %v1284, %v4886
  %v4928 = vsel %vm4888, %v4927, 0.0
  %4929 = vadd.xlane.f32.xlu0 %v4928
  %v4930 = vpop.xlane.xlu0 %4929
  %v4931 = vadd.f32 %v4930, %v4895
  %v4932 = vtanh.pop %v4931
  %v4933 = vmul.f32 %v4932, 1.442695
  %v4934 = vpow.pop %v4933
  %v4935 = vmul.f32 %v1288, %v4886
  %v4936 = vsel %vm4901, %v4935, 0.0
  %4937 = vadd.xlane.f32.xlu0 %v4936
  %v4938 = vpop.xlane.xlu0 %4937
  %v4939 = vadd.f32 %v4938, %v4895
  %v4940 = vtanh.pop %v4939
  %v4941 = vmul.f32 %v4940, 1.442695
  %v4942 = vpow.pop %v4941
  %v4943 = vmul.f32 %v1292, %v4886
  %v4944 = vsel %vm4910, %v4943, 0.0
  %4945 = vadd.xlane.f32.xlu0 %v4944
  %v4946 = vpop.xlane.xlu0 %4945
  %v4947 = vadd.f32 %v4946, %v4895
  %v4948 = vtanh.pop %v4947
  %v4949 = vmul.f32 %v4948, 1.442695
  %v4950 = vpow.pop %v4949
  %v4951 = vmul.f32 %v1300, %v4886
  %v4952 = vsel %vm4919, %v4951, 0.0
  %4953 = vadd.xlane.f32.xlu0 %v4952
  %v4954 = vpop.xlane.xlu0 %4953
  %v4955 = vadd.f32 %v4954, %v4895
  %v4956 = vtanh.pop %v4955
  %v4957 = vmul.f32 %v4956, 1.442695
  %v4958 = vpow.pop %v4957
  %v4960 = vrot.slane %v4908, 2
  %4961 = vrot.lane.b32.xlu0 %v4960, 127
  %v4962 = vpop.permute.xlu0 %4961
  %v4964 = vadd.f32 %v4899, %v4962
  %v4966 = vrot.slane %v4917, 4
  %4967 = vrot.lane.b32.xlu0 %v4966, 126
  %v4968 = vpop.permute.xlu0 %4967
  %v4970 = vadd.f32 %v4964, %v4968
  %v4972 = vrot.slane %v4926, 6
  %4973 = vrot.lane.b32.xlu0 %v4972, 125
  %v4974 = vpop.permute.xlu0 %4973
  %v4976 = vadd.f32 %v4970, %v4974
  %4978 = vrot.lane.b32.xlu0 %v4934, 124
  %v4979 = vpop.permute.xlu0 %4978
  %v4981 = vadd.f32 %v4976, %v4979
  %v4983 = vrot.slane %v4942, 2
  %4984 = vrot.lane.b32.xlu0 %v4983, 123
  %v4985 = vpop.permute.xlu0 %4984
  %v4987 = vadd.f32 %v4981, %v4985
  %v4989 = vrot.slane %v4950, 4
  %4990 = vrot.lane.b32.xlu0 %v4989, 122
  %v4991 = vpop.permute.xlu0 %4990
  %v4993 = vadd.f32 %v4987, %v4991
  %v4995 = vrot.slane %v4958, 6
  %4996 = vrot.lane.b32.xlu0 %v4995, 121
  %v4997 = vpop.permute.xlu0 %4996
  %v4999 = vadd.f32 %v4993, %v4997
  %v5000 = vrcp.pop %v4999
  %v5001 = vmul.f32 %v4899, %v5000
  %v5002 = vadd.f32 %v5001, 1e-10
  %5004 = vset.pattern.permute.xlu0 0
  %5005 = vperm.xlu0 %5004, %v5002
  %v5006 = vpop.permute.xlu0 %5005
  %v5008 = vmul.f32 %v5006, %v1268
  %v5009 = vadd.f32 %v5008, 0.0
  %v5011 = vrot.slane %v5000, 6
  %5012 = vrot.lane.b32.xlu0 %v5011, 1
  %v5013 = vpop.permute.xlu0 %5012
  %v5015 = vmul.f32 %v4908, %v5013
  %v5016 = vadd.f32 %v5015, 1e-10
  %5018 = vset.pattern.permute.xlu0 1
  %5019 = vperm.xlu0 %5018, %v5016
  %v5020 = vpop.permute.xlu0 %5019
  %v5022 = vmul.f32 %v5020, %v1272
  %v5024 = vrot.slane %v5022, 2
  %v5026 = vadd.f32 %v5009, %v5024
  %v5027 = vrot.slane %v5000, 4
  %5028 = vrot.lane.b32.xlu0 %v5027, 2
  %v5029 = vpop.permute.xlu0 %5028
  %v5031 = vmul.f32 %v4917, %v5029
  %v5032 = vadd.f32 %v5031, 1e-10
  %5034 = vset.pattern.permute.xlu0 2
  %5035 = vperm.xlu0 %5034, %v5032
  %v5036 = vpop.permute.xlu0 %5035
  %v5038 = vmul.f32 %v5036, %v1276
  %v5040 = vrot.slane %v5038, 4
  %v5042 = vadd.f32 %v5026, %v5040
  %v5043 = vrot.slane %v5000, 2
  %5044 = vrot.lane.b32.xlu0 %v5043, 3
  %v5045 = vpop.permute.xlu0 %5044
  %v5047 = vmul.f32 %v4926, %v5045
  %v5048 = vadd.f32 %v5047, 1e-10
  %5050 = vset.pattern.permute.xlu0 3
  %5051 = vperm.xlu0 %5050, %v5048
  %v5052 = vpop.permute.xlu0 %5051
  %v5054 = vmul.f32 %v5052, %v1280
  %v5056 = vrot.slane %v5054, 6
  %v5058 = vadd.f32 %v5042, %v5056
  %5059 = vrot.lane.b32.xlu0 %v5000, 4
  %v5060 = vpop.permute.xlu0 %5059
  %v5062 = vmul.f32 %v4934, %v5060
  %v5063 = vadd.f32 %v5062, 1e-10
  %5065 = vset.pattern.permute.xlu0 4
  %5066 = vperm.xlu0 %5065, %v5063
  %v5067 = vpop.permute.xlu0 %5066
  %v5069 = vmul.f32 %v5067, %v1284
  %v5070 = vadd.f32 %v5058, %v5069
  %5071 = vrot.lane.b32.xlu0 %v5011, 5
  %v5072 = vpop.permute.xlu0 %5071
  %v5074 = vmul.f32 %v4942, %v5072
  %v5075 = vadd.f32 %v5074, 1e-10
  %5077 = vset.pattern.permute.xlu0 5
  %5078 = vperm.xlu0 %5077, %v5075
  %v5079 = vpop.permute.xlu0 %5078
  %v5081 = vmul.f32 %v5079, %v1288
  %v5083 = vrot.slane %v5081, 2
  %v5085 = vadd.f32 %v5070, %v5083
  %5086 = vrot.lane.b32.xlu0 %v5027, 6
  %v5087 = vpop.permute.xlu0 %5086
  %v5089 = vmul.f32 %v4950, %v5087
  %v5090 = vadd.f32 %v5089, 1e-10
  %5092 = vset.pattern.permute.xlu0 6
  %5093 = vperm.xlu0 %5092, %v5090
  %v5094 = vpop.permute.xlu0 %5093
  %v5096 = vmul.f32 %v5094, %v1292
  %v5098 = vrot.slane %v5096, 4
  %v5100 = vadd.f32 %v5085, %v5098
  %5101 = vrot.lane.b32.xlu0 %v5043, 7
  %v5102 = vpop.permute.xlu0 %5101
  %v5104 = vmul.f32 %v4958, %v5102
  %v5105 = vadd.f32 %v5104, 1e-10
  %5107 = vset.pattern.permute.xlu0 7
  %5108 = vperm.xlu0 %5107, %v5105
  %v5109 = vpop.permute.xlu0 %5108
  %v5111 = vmul.f32 %v5109, %v1300
  %v5113 = vrot.slane %v5111, 6
  %v5115 = vadd.f32 %v5100, %v5113
  %v5116 = vlaneseq
  %v5117 = vshrl.u32 %v5116, 7
  %v5118 = vsub.s32 4, %v5117
  %v5119 = vrot.slane %v34, %v5118
  %v5120 = vmul.f32 %v2524, %v5119
  %v5121 = vsel %vm4888, %v5120, 0.0
  %5122 = vadd.xlane.f32.xlu0 %v5121
  %v5123 = vpop.xlane.xlu0 %5122
  %v5124 = vlaneseq
  %v5125 = vshrl.u32 %v5124, 7
  %v5126 = vsub.s32 6, %v5125
  %v5127 = vrot.slane %v34, %v5126
  %v5128 = vadd.f32 %v5123, %v5127
  %v5129 = vtanh.pop %v5128
  %v5130 = vmul.f32 %v5129, 1.442695
  %v5131 = vpow.pop %v5130
  %v5132 = vmul.f32 %v2528, %v5119
  %v5133 = vsel %vm4901, %v5132, 0.0
  %5134 = vadd.xlane.f32.xlu0 %v5133
  %v5135 = vpop.xlane.xlu0 %5134
  %v5136 = vadd.f32 %v5135, %v5127
  %v5137 = vtanh.pop %v5136
  %v5138 = vmul.f32 %v5137, 1.442695
  %v5139 = vpow.pop %v5138
  %v5140 = vmul.f32 %v2532, %v5119
  %v5141 = vsel %vm4910, %v5140, 0.0
  %5142 = vadd.xlane.f32.xlu0 %v5141
  %v5143 = vpop.xlane.xlu0 %5142
  %v5144 = vadd.f32 %v5143, %v5127
  %v5145 = vtanh.pop %v5144
  %v5146 = vmul.f32 %v5145, 1.442695
  %v5147 = vpow.pop %v5146
  %v5148 = vmul.f32 %v2536, %v5119
  %v5149 = vsel %vm4919, %v5148, 0.0
  %5150 = vadd.xlane.f32.xlu0 %v5149
  %v5151 = vpop.xlane.xlu0 %5150
  %v5152 = vadd.f32 %v5151, %v5127
  %v5153 = vtanh.pop %v5152
  %v5154 = vmul.f32 %v5153, 1.442695
  %v5155 = vpow.pop %v5154
  %v5156 = vmul.f32 %v2540, %v5119
  %v5157 = vsel %vm4888, %v5156, 0.0
  %5158 = vadd.xlane.f32.xlu0 %v5157
  %v5159 = vpop.xlane.xlu0 %5158
  %v5160 = vadd.f32 %v5159, %v5127
  %v5161 = vtanh.pop %v5160
  %v5162 = vmul.f32 %v5161, 1.442695
  %v5163 = vpow.pop %v5162
  %v5164 = vmul.f32 %v2544, %v5119
  %v5165 = vsel %vm4901, %v5164, 0.0
  %5166 = vadd.xlane.f32.xlu0 %v5165
  %v5167 = vpop.xlane.xlu0 %5166
  %v5168 = vadd.f32 %v5167, %v5127
  %v5169 = vtanh.pop %v5168
  %v5170 = vmul.f32 %v5169, 1.442695
  %v5171 = vpow.pop %v5170
  %v5172 = vmul.f32 %v2548, %v5119
  %v5173 = vsel %vm4910, %v5172, 0.0
  %5174 = vadd.xlane.f32.xlu0 %v5173
  %v5175 = vpop.xlane.xlu0 %5174
  %v5176 = vadd.f32 %v5175, %v5127
  %v5177 = vtanh.pop %v5176
  %v5178 = vmul.f32 %v5177, 1.442695
  %v5179 = vpow.pop %v5178
  %v5180 = vmul.f32 %v2556, %v5119
  %v5181 = vsel %vm4919, %v5180, 0.0
  %5182 = vadd.xlane.f32.xlu0 %v5181
  %v5183 = vpop.xlane.xlu0 %5182
  %v5184 = vadd.f32 %v5183, %v5127
  %v5185 = vtanh.pop %v5184
  %v5186 = vmul.f32 %v5185, 1.442695
  %v5187 = vpow.pop %v5186
  %v5189 = vrot.slane %v5139, 2
  %5190 = vrot.lane.b32.xlu0 %v5189, 127
  %v5191 = vpop.permute.xlu0 %5190
  %v5193 = vadd.f32 %v5131, %v5191
  %v5195 = vrot.slane %v5147, 4
  %5196 = vrot.lane.b32.xlu0 %v5195, 126
  %v5197 = vpop.permute.xlu0 %5196
  %v5199 = vadd.f32 %v5193, %v5197
  %v5201 = vrot.slane %v5155, 6
  %5202 = vrot.lane.b32.xlu0 %v5201, 125
  %v5203 = vpop.permute.xlu0 %5202
  %v5205 = vadd.f32 %v5199, %v5203
  %5207 = vrot.lane.b32.xlu0 %v5163, 124
  %v5208 = vpop.permute.xlu0 %5207
  %v5210 = vadd.f32 %v5205, %v5208
  %v5212 = vrot.slane %v5171, 2
  %5213 = vrot.lane.b32.xlu0 %v5212, 123
  %v5214 = vpop.permute.xlu0 %5213
  %v5216 = vadd.f32 %v5210, %v5214
  %v5218 = vrot.slane %v5179, 4
  %5219 = vrot.lane.b32.xlu0 %v5218, 122
  %v5220 = vpop.permute.xlu0 %5219
  %v5222 = vadd.f32 %v5216, %v5220
  %v5224 = vrot.slane %v5187, 6
  %5225 = vrot.lane.b32.xlu0 %v5224, 121
  %v5226 = vpop.permute.xlu0 %5225
  %v5228 = vadd.f32 %v5222, %v5226
  %v5229 = vrcp.pop %v5228
  %v5230 = vmul.f32 %v5131, %v5229
  %v5231 = vadd.f32 %v5230, 1e-10
  %5233 = vset.pattern.permute.xlu0 0
  %5234 = vperm.xlu0 %5233, %v5231
  %v5235 = vpop.permute.xlu0 %5234
  %v5237 = vmul.f32 %v5235, %v2524
  %v5238 = vadd.f32 %v5237, 0.0
  %v5240 = vrot.slane %v5229, 6
  %5241 = vrot.lane.b32.xlu0 %v5240, 1
  %v5242 = vpop.permute.xlu0 %5241
  %v5244 = vmul.f32 %v5139, %v5242
  %v5245 = vadd.f32 %v5244, 1e-10
  %5247 = vset.pattern.permute.xlu0 1
  %5248 = vperm.xlu0 %5247, %v5245
  %v5249 = vpop.permute.xlu0 %5248
  %v5251 = vmul.f32 %v5249, %v2528
  %v5253 = vrot.slane %v5251, 2
  %v5255 = vadd.f32 %v5238, %v5253
  %v5256 = vrot.slane %v5229, 4
  %5257 = vrot.lane.b32.xlu0 %v5256, 2
  %v5258 = vpop.permute.xlu0 %5257
  %v5260 = vmul.f32 %v5147, %v5258
  %v5261 = vadd.f32 %v5260, 1e-10
  %5263 = vset.pattern.permute.xlu0 2
  %5264 = vperm.xlu0 %5263, %v5261
  %v5265 = vpop.permute.xlu0 %5264
  %v5267 = vmul.f32 %v5265, %v2532
  %v5269 = vrot.slane %v5267, 4
  %v5271 = vadd.f32 %v5255, %v5269
  %v5272 = vrot.slane %v5229, 2
  %5273 = vrot.lane.b32.xlu0 %v5272, 3
  %v5274 = vpop.permute.xlu0 %5273
  %v5276 = vmul.f32 %v5155, %v5274
  %v5277 = vadd.f32 %v5276, 1e-10
  %5279 = vset.pattern.permute.xlu0 3
  %5280 = vperm.xlu0 %5279, %v5277
  %v5281 = vpop.permute.xlu0 %5280
  %v5283 = vmul.f32 %v5281, %v2536
  %v5285 = vrot.slane %v5283, 6
  %v5287 = vadd.f32 %v5271, %v5285
  %5288 = vrot.lane.b32.xlu0 %v5229, 4
  %v5289 = vpop.permute.xlu0 %5288
  %v5291 = vmul.f32 %v5163, %v5289
  %v5292 = vadd.f32 %v5291, 1e-10
  %5294 = vset.pattern.permute.xlu0 4
  %5295 = vperm.xlu0 %5294, %v5292
  %v5296 = vpop.permute.xlu0 %5295
  %v5298 = vmul.f32 %v5296, %v2540
  %v5299 = vadd.f32 %v5287, %v5298
  %5300 = vrot.lane.b32.xlu0 %v5240, 5
  %v5301 = vpop.permute.xlu0 %5300
  %v5303 = vmul.f32 %v5171, %v5301
  %v5304 = vadd.f32 %v5303, 1e-10
  %5306 = vset.pattern.permute.xlu0 5
  %5307 = vperm.xlu0 %5306, %v5304
  %v5308 = vpop.permute.xlu0 %5307
  %v5310 = vmul.f32 %v5308, %v2544
  %v5312 = vrot.slane %v5310, 2
  %v5314 = vadd.f32 %v5299, %v5312
  %5315 = vrot.lane.b32.xlu0 %v5256, 6
  %v5316 = vpop.permute.xlu0 %5315
  %v5318 = vmul.f32 %v5179, %v5316
  %v5319 = vadd.f32 %v5318, 1e-10
  %5321 = vset.pattern.permute.xlu0 6
  %5322 = vperm.xlu0 %5321, %v5319
  %v5323 = vpop.permute.xlu0 %5322
  %v5325 = vmul.f32 %v5323, %v2548
  %v5327 = vrot.slane %v5325, 4
  %v5329 = vadd.f32 %v5314, %v5327
  %5330 = vrot.lane.b32.xlu0 %v5272, 7
  %v5331 = vpop.permute.xlu0 %5330
  %v5333 = vmul.f32 %v5187, %v5331
  %v5334 = vadd.f32 %v5333, 1e-10
  %5336 = vset.pattern.permute.xlu0 7
  %5337 = vperm.xlu0 %5336, %v5334
  %v5338 = vpop.permute.xlu0 %5337
  %v5340 = vmul.f32 %v5338, %v2556
  %v5342 = vrot.slane %v5340, 6
  %v5344 = vadd.f32 %v5329, %v5342
  %v5346 = vrot.slane %v2528, 2
  %v5348 = vadd.f32 %v2524, %v5346
  %v5349 = vmax.f32 %v2524, %v5346
  %v5351 = vrot.slane %v2532, 4
  %v5353 = vadd.f32 %v5348, %v5351
  %v5354 = vmax.f32 %v5349, %v5351
  %v5356 = vrot.slane %v2536, 6
  %v5358 = vadd.f32 %v5353, %v5356
  %v5359 = vmax.f32 %v5354, %v5356
  %v5360 = vadd.f32 %v5358, %v2540
  %v5361 = vmax.f32 %v5359, %v2540
  %v5363 = vrot.slane %v2544, 2
  %v5365 = vadd.f32 %v5360, %v5363
  %v5366 = vmax.f32 %v5361, %v5363
  %v5368 = vrot.slane %v2548, 4
  %v5370 = vadd.f32 %v5365, %v5368
  %v5371 = vmax.f32 %v5366, %v5368
  %v5373 = vrot.slane %v2556, 6
  %v5375 = vadd.f32 %v5370, %v5373
  %v5376 = vmax.f32 %v5371, %v5373
  %v5377 = vmul.f32 %v5375, 0.125
  %v5378 = vld [vmem:[%s1] sm:$0x3]
  %5380 = vrot.lane.b32.xlu0 %v5344, 32
  %v5381 = vpop.permute.xlu0 %5380
  %5384 = vrot.lane.b32.xlu0 %v4882, 64
  %v5385 = vpop.permute.xlu0 %5384
  %5388 = vrot.lane.b32.xlu0 %v5377, 65
  %v5389 = vpop.permute.xlu0 %5388
  %5392 = vrot.lane.b32.xlu0 %v5376, 97
  %v5393 = vpop.permute.xlu0 %5392
  %5396 = vrot.lane.b32.xlu0 %v5378, 1
  %v5397 = vpop.permute.xlu0 %5396
  %v5399 = vsel %vm44, %v5115, %v5381
  %vm5400 = vcmask 523264
  %v5401 = vsel %vm5400, %v5399, %v5385
  %vm5402 = vcmask 531456
  %v5403 = vsel %vm5402, %v5401, %v5389
  %vm5404 = vcmask 793600
  %v5405 = vsel %vm5404, %v5403, %v5393
  %vm5406 = vcmask 7168
  %v5407 = vsel %vm5406, %v5393, %v5397
  %v5408 = vld [vmem:[%s7] sm:$0xff]
  %v5409 = vld [vmem:[%s7 + $0x8] sm:$0xff]
  %v5410 = vld [vmem:[%s7 + $0x10] sm:$0xff]
  %v5411 = vld [vmem:[%s7 + $0x18] sm:$0xff]
  %v5412 = vld [vmem:[%s7 + $0x20] sm:$0xff]
  %v5413 = vld [vmem:[%s7 + $0x28] sm:$0xff]
  %v5414 = vld [vmem:[%s7 + $0x30] sm:$0xff]
  %v5415 = vld [vmem:[%s7 + $0x38] sm:$0xff]
  %v5416 = vld [vmem:[%s7 + $0x40] sm:$0xff]
  %v5417 = vld [vmem:[%s7 + $0x48] sm:$0xff]
  %v5418 = vld [vmem:[%s7 + $0x50] sm:$0xff]
  %v5419 = vld [vmem:[%s7 + $0x58] sm:$0xff]
  %v5420 = vld [vmem:[%s7 + $0x60] sm:$0xff]
  %v5421 = vld [vmem:[%s7 + $0x68] sm:$0xff]
  %v5422 = vld [vmem:[%s7 + $0x70] sm:$0xff]
  %v5423 = vld [vmem:[%s7 + $0x78] sm:$0xff]
  %v5424 = vld [vmem:[%s7 + $0x80] sm:$0x7]
  %v5425 = vlaneseq
  %v5426 = vshrl.u32 %v5425, 7
  %v5427 = vsub.s32 0, %v5426
  %v5428 = vrot.slane %v35, %v5427
  %vm5429 = vcmask 23552
  %v5431 = vsel %vm5429, %v5407, 0
  %vm5433 = vcmask 1042432
  %v5435 = vsel %vm5433, %v5424, 0
  %5437 = vmatprep.subr.mxu0 0.0
  %5438 = vmatpush1.msra.mxu0 %v5408
  %5439 = vmatprep.subr.mxu0 0.0
  %5440 = vmatpush1.msra.mxu0 %v5409
  %5441 = vmatprep.subr.mxu0 0.0
  %5442 = vmatpush1.msra.mxu0 %v5410
  %5443 = vmatprep.subr.mxu0 0.0
  %5444 = vmatpush1.msra.mxu0 %v5411
  %5445 = vmatprep.subr.mxu0 0.0
  %5446 = vmatpush1.msra.mxu0 %v5412
  %5447 = vmatprep.subr.mxu0 0.0
  %5448 = vmatpush1.msra.mxu0 %v5413
  %5449 = vmatprep.subr.mxu0 0.0
  %5450 = vmatpush1.msra.mxu0 %v5414
  %5451 = vmatprep.subr.mxu0 0.0
  %5452 = vmatpush1.msra.mxu0 %v5415
  %5453 = vmatprep.subr.mxu0 0.0
  %5454 = vmatpush1.msra.mxu0 %v5416
  %5455 = vmatprep.subr.mxu0 0.0
  %5456 = vmatpush1.msra.mxu0 %v5417
  %5457 = vmatprep.subr.mxu0 0.0
  %5458 = vmatpush1.msra.mxu0 %v5418
  %5459 = vmatprep.subr.mxu0 0.0
  %5460 = vmatpush1.msra.mxu0 %v5419
  %5461 = vmatprep.subr.mxu0 0.0
  %5462 = vmatpush1.msra.mxu0 %v5420
  %5463 = vmatprep.subr.mxu0 0.0
  %5464 = vmatpush1.msra.mxu0 %v5421
  %5465 = vmatprep.subr.mxu0 0.0
  %5466 = vmatpush1.msra.mxu0 %v5422
  %5467 = vmatprep.subr.mxu0 0.0
  %5468 = vmatpush1.msra.mxu0 %v5423
  %5469 = vmatprep.subr.mxu0 0.0
  %5470 = vmatpush1.msra.mxu0 %v5435
  %5471 = vmatprep.subr.mxu0 0.0
  %5472 = vmatpush1.msra.mxu0 0.0
  %5473 = vmatprep.subr.mxu0 0.0
  %5474 = vmatpush1.msra.mxu0 0.0
  %5475 = vmatprep.subr.mxu0 0.0
  %5476 = vmatpush1.msra.mxu0 0.0
  %5477 = vmatprep.subr.mxu0 0.0
  %5478 = vmatpush1.msra.mxu0 0.0
  %5479 = vmatprep.subr.mxu0 0.0
  %5480 = vmatpush1.msra.mxu0 0.0
  %5481 = vmatprep.subr.mxu0 0.0
  %5482 = vmatpush1.msra.mxu0 0.0
  %5483 = vmatprep.subr.mxu0 0.0
  %5484 = vmatpush1.msra.mxu0 0.0
  %5485 = vmatprep.subr.mxu0 0.0
  %5486 = vmatpush1.msra.mxu0 0.0
  %5487 = vmatprep.subr.mxu0 0.0
  %5488 = vmatpush1.msra.mxu0 0.0
  %5489 = vmatprep.subr.mxu0 0.0
  %5490 = vmatpush1.msra.mxu0 0.0
  %5491 = vmatprep.subr.mxu0 0.0
  %5492 = vmatpush1.msra.mxu0 0.0
  %5493 = vmatprep.subr.mxu0 0.0
  %5494 = vmatpush1.msra.mxu0 0.0
  %5495 = vmatprep.subr.mxu0 0.0
  %5496 = vmatpush1.msra.mxu0 0.0
  %5497 = vmatprep.subr.mxu0 0.0
  %5498 = vmatpush1.msra.mxu0 0.0
  %5499 = vmatprep.subr.mxu0 0.0
  %5500 = vmatpush1.msra.mxu0 0.0
  %5501 = vmatprep.mubr.f32.mxu0 %v5431
  %5502 = vmatmul.mubr.f32.gmra.mrb[0].mxu0 %v5405
  %v5503 = vpop.f32.mrb[0].mxu0
  %v5504 = vadd.f32 %v5428, %v5503
  %v5505 = vpop.f32.mrb[0].mxu0
  %5506 = vdwg.mxu0
  %v5507 = vmax.f32 %v5504, 0.0
  %v5508 = vlaneseq
  %v5509 = vshrl.u32 %v5508, 7
  %v5510 = vsub.s32 3, %v5509
  %v5511 = vrot.slane %v35, %v5510
  %v5512 = vsub.f32 %v5507, %v5511
  %v5513 = vadd.f32 %v35, 1e-05
  %v5514 = vrsqrt.pop %v5513
  %v5515 = vlaneseq
  %v5516 = vshrl.u32 %v5515, 7
  %v5517 = vsub.s32 4, %v5516
  %v5518 = vrot.slane %v5514, %v5517
  %v5519 = vmul.f32 %v5512, %v5518
  %v5520 = vlaneseq
  %v5521 = vshrl.u32 %v5520, 7
  %v5522 = vsub.s32 1, %v5521
  %v5523 = vrot.slane %v35, %v5522
  %v5524 = vmul.f32 %v5519, %v5523
  %v5525 = vlaneseq
  %v5526 = vshrl.u32 %v5525, 7
  %v5527 = vsub.s32 2, %v5526
  %v5528 = vrot.slane %v35, %v5527
  %v5529 = vadd.f32 %v5524, %v5528
  %v5530 = vlaneseq
  %v5531 = vshrl.u32 %v5530, 7
  %v5532 = vsub.s32 5, %v5531
  %v5533 = vrot.slane %v35, %v5532
  %v5534 = vmul.f32 %v5529, %v5533
  %vm5535 = vcmask 123904
  %v5536 = vsel %vm5535, %v5534, 0.0
  %5537 = vadd.xlane.f32.xlu0 %v5536
  %v5538 = vpop.xlane.xlu0 %5537
  %v5539 = vadd.f32 %v5538, %v4880
  %5541 = vrot.lane.b32.xlu0 %v5539, 127
  %v5542 = vpop.permute.xlu0 %5541
  %vm5544 = vcmask 1024
  %5545 = vst.msk [vmem:[%s9] sm:$0x3] %vm5544, %v5542
  // Predicated region
  $region38: #{neural_net_forward.1} parent=0 // pred_check
    _
  $region39: #{neural_net_forward.1} parent=0 // pred_check_branch
    %5547 = sbr.rel (0) target = $region41
  $region40: #{neural_net_forward.1} parent=0 // pred_region
    _
  $region41: #{neural_net_forward.1} parent=0 // pred_fallthru
    _
  // Predicated region
  $region42: #{neural_net_forward.1} parent=0 // pred_check
    _
  $region43: #{neural_net_forward.1} parent=0 // pred_check_branch
    %5549 = sbr.rel (0) target = $region45
  $region44: #{neural_net_forward.1} parent=0 // pred_region
    _
  $region45: #{neural_net_forward.1} parent=0 // pred_fallthru
    _

</llo_original>
